<compile_context>
chip_gen: v7x
topology: tpu7x:2x2x1
jax: 0.10.0
libtpu: 0.0.40
codegen_flags: <defaults>
</compile_context>

<pallas_src>
import numpy as np

import jax
import jax.numpy as jnp
from jax.experimental import pallas as pl
from jax.experimental.pallas import tpu as pltpu


# ----------------------------- geometry helpers ----------------------------- #

def _geom(d, h, w):
    """Flat padded-stride geometry for a 3x3x3 / pad=1 conv on a (d, h, w) volume."""
    dp, hp, wp = d + 2, h + 2, w + 2
    hw = hp * wp
    offs = tuple(dz * hw + dy * wp + dx
                 for dz in range(3) for dy in range(3) for dx in range(3))
    l_acc = d * hw                 # flat accumulator length (padded strides)
    lp = l_acc + offs[-1]          # padded-flat buffer length incl. slice slack
    delta = hw + wp + 1            # flat offset of padded coordinate (z+1, y+1, x+1)
    return dict(d=d, h=h, w=w, dp=dp, hp=hp, wp=wp, hw=hw,
                offs=offs, l_acc=l_acc, lp=lp, delta=delta)


def _valid_mask(g):
    """(1, l_acc) float mask: 1 at flat positions that map to real output voxels."""
    idx = np.arange(g["l_acc"])
    rem = idx % g["hw"]
    valid = ((rem % g["wp"]) < g["w"]) & ((rem // g["wp"]) < g["h"])
    return jnp.asarray(valid.astype(np.float32)[None, :])


def _prep_weight(w):
    """(Cout, Cin, 3, 3, 3) -> (Cout, 27*Cin), K index = tap*Cin + cin (tap = dz*9+dy*3+dx)."""
    cout, cin = int(w.shape[0]), int(w.shape[1])
    return jnp.transpose(w, (0, 2, 3, 4, 1)).reshape(cout, 27 * cin)


# ------------------------------ Pallas kernels ------------------------------ #

def _make_encoder_kernel(g, c_in, c_mid, c_out, n_pool):
    """Fused [optional maxpool] -> conv+ReLU -> conv+ReLU kernel for one encoder."""
    offs, l_acc, delta, lp = g["offs"], g["l_acc"], g["delta"], g["lp"]

    def kernel(x_ref, w1_ref, b1_ref, w2_ref, b2_ref, mask_ref,
               o_ref, xpad_ref, patch_ref):
        # -- fused 2x2x2 max-pool: elementwise max over the n_pool pre-shifted
        #    candidates the wrapper laid out in identical padded-flat coordinates.
        xin = x_ref[pl.ds(0, c_in), :]
        for t in range(1, n_pool):
            xin = jnp.maximum(xin, x_ref[pl.ds(t * c_in, c_in), :])

        # -- conv1: in-kernel im2col (27 shifted slices) + one lane-dense matmul.
        for t, off in enumerate(offs):
            patch_ref[pl.ds(t * c_in, c_in), :] = xin[:, off:off + l_acc]
        h = jnp.dot(w1_ref[...], patch_ref[pl.ds(0, 27 * c_in), :],
                    preferred_element_type=jnp.float32)
        h = jnp.maximum(h + b1_ref[...], 0.0) * mask_ref[...]

        # -- re-embed the conv1 activation into a zero-padded VMEM buffer
        #    (garbage flat positions were masked to 0 and land exactly on padding).
        xpad_ref[...] = jnp.zeros((c_mid, lp), jnp.float32)
        xpad_ref[:, pl.ds(delta, l_acc)] = h

        # -- conv2: same in-kernel im2col + matmul, output straight to HBM block.
        for t, off in enumerate(offs):
            patch_ref[pl.ds(t * c_mid, c_mid), :] = xpad_ref[:, pl.ds(off, l_acc)]
        h2 = jnp.dot(w2_ref[...], patch_ref[pl.ds(0, 27 * c_mid), :],
                     preferred_element_type=jnp.float32)
        o_ref[...] = jnp.maximum(h2 + b2_ref[...], 0.0)

    return kernel


def _run_encoder(x_in, w1, b1, w2, b2, mask, *, g, c_in, c_mid, c_out, n_pool):
    kernel = _make_encoder_kernel(g, c_in, c_mid, c_out, n_pool)
    k_rows = 27 * max(c_in, c_mid)      # patch scratch reused by both convs

    def _zmap(ndim):
        return lambda i: (0,) * ndim

    return pl.pallas_call(
        kernel,
        out_shape=jax.ShapeDtypeStruct((c_out, g["l_acc"]), jnp.float32),
        grid_spec=pltpu.PrefetchScalarGridSpec(
            num_scalar_prefetch=0,
            grid=(1,),
            in_specs=[
                pl.BlockSpec(x_in.shape, _zmap(2)),
                pl.BlockSpec(w1.shape, _zmap(2)),
                pl.BlockSpec(b1.shape, _zmap(2)),
                pl.BlockSpec(w2.shape, _zmap(2)),
                pl.BlockSpec(b2.shape, _zmap(2)),
                pl.BlockSpec(mask.shape, _zmap(2)),
            ],
            out_specs=pl.BlockSpec((c_out, g["l_acc"]), _zmap(2)),
            scratch_shapes=[
                pltpu.VMEM((c_mid, g["lp"]), jnp.float32),      # padded conv1 act.
                pltpu.VMEM((k_rows, g["l_acc"]), jnp.float32),  # im2col patches
            ],
        ),
        compiler_params=pltpu.CompilerParams(dimension_semantics=("arbitrary",)),
    )(x_in, w1, b1, w2, b2, mask)


# ------------------------------ forward pass -------------------------------- #

def intermediate_output_forward(x, params):
    """Forward of IntermediateOutput (first two encoders of the synthetic UNet3D)."""
    n, c, d, h, w = x.shape
    assert c == 1, "synthetic UNet3D encoder stack expects in_channels == 1"
    assert d % 2 == 0 and h % 2 == 0 and w % 2 == 0
    # TODO(synk): odd spatial sizes (PyTorch MaxPool3d floors) are not handled here.

    g0 = _geom(d, h, w)
    d1, h1, w1 = d // 2, h // 2, w // 2
    g1 = _geom(d1, h1, w1)

    w01 = _prep_weight(params["e0_w1"]); b01 = params["e0_b1"].reshape(-1, 1)
    w02 = _prep_weight(params["e0_w2"]); b02 = params["e0_b2"].reshape(-1, 1)
    w11 = _prep_weight(params["e1_w1"]); b11 = params["e1_b1"].reshape(-1, 1)
    w12 = _prep_weight(params["e1_w2"]); b12 = params["e1_b2"].reshape(-1, 1)
    m0 = _valid_mask(g0)
    m1 = _valid_mask(g1)

    outs = []
    for i in range(n):  # batch loop unrolled at trace time (n == 1 in the demo)
        # ---- encoder 0: conv(1->8)+ReLU, conv(8->8)+ReLU in one pallas_call ----
        xp = jnp.pad(x[i], ((0, 0), (1, 1), (1, 1), (1, 1)))          # (1, dp, hp, wp)
        xf = xp.reshape(1, g0["dp"] * g0["hw"])
        xf = jnp.pad(xf, ((0, 0), (0, g0["lp"] - xf.shape[1])))
        e0 = _run_encoder(xf, w01, b01, w02, b02, m0,
                          g=g0, c_in=1, c_mid=8, c_out=8, n_pool=1)    # (8, l_acc0)

        # ---- layout-only glue for the 2x2x2 max-pool (the max itself is fused
        #      into the encoder-1 kernel): 8 strided candidates in padded-flat form.
        e0v = e0.reshape(8, d, g0["hp"], g0["wp"])[:, :, :h, :w]       # (8, d, h, w)
        cands = jnp.stack([e0v[:, a::2, b::2, cc::2]
                           for a in (0, 1) for b in (0, 1) for cc in (0, 1)],
                          axis=0)                                      # (8, 8, d1, h1, w1)
        cp = jnp.pad(cands, ((0, 0), (0, 0), (1, 1), (1, 1), (1, 1)))
        cf = cp.reshape(8, 8, g1["dp"] * g1["hw"])
        cf = jnp.pad(cf, ((0, 0), (0, 0), (0, g1["lp"] - cf.shape[2])))
        cf = cf.reshape(8 * 8, g1["lp"])                               # (tap*8+ch, lp1)

        # ---- encoder 1: maxpool(fused), conv(8->16)+ReLU, conv(16->16)+ReLU ----
        e1 = _run_encoder(cf, w11, b11, w12, b12, m1,
                          g=g1, c_in=8, c_mid=16, c_out=16, n_pool=8)  # (16, l_acc1)
        e1v = e1.reshape(16, d1, g1["hp"], g1["wp"])[:, :, :h1, :w1]   # (16, d1, h1, w1)
        outs.append(e1v)

    return jnp.stack(outs, axis=0)


# ------------------------------- parameters --------------------------------- #

def make_params():
    key = jax.random.PRNGKey(0)
    ks = jax.random.split(key, 8)

    def conv_w(k, cout, cin):
        return 0.1 * jax.random.normal(k, (cout, cin, 3, 3, 3), dtype=jnp.float32)

    def conv_b(k, cout):
        return 0.01 * jax.random.normal(k, (cout,), dtype=jnp.float32)

    return {
        "e0_w1": conv_w(ks[0], 8, 1),   "e0_b1": conv_b(ks[1], 8),
        "e0_w2": conv_w(ks[2], 8, 8),   "e0_b2": conv_b(ks[3], 8),
        "e1_w1": conv_w(ks[4], 16, 8),  "e1_b1": conv_b(ks[5], 16),
        "e1_w2": conv_w(ks[6], 16, 16), "e1_b2": conv_b(ks[7], 16),
    }


# --------------------------- pure-JAX reference ------------------------------ #

def _reference_forward(x, params):
    def conv(hh, wgt, bias):
        y = jax.lax.conv_general_dilated(
            hh, wgt, window_strides=(1, 1, 1),
            padding=((1, 1), (1, 1), (1, 1)),
            dimension_numbers=("NCDHW", "OIDHW", "NCDHW"))
        return jax.nn.relu(y + bias.reshape(1, -1, 1, 1, 1))

    hh = conv(x, params["e0_w1"], params["e0_b1"])
    hh = conv(hh, params["e0_w2"], params["e0_b2"])
    hh = jax.lax.reduce_window(hh, -jnp.inf, jax.lax.max,
                               window_dimensions=(1, 1, 2, 2, 2),
                               window_strides=(1, 1, 2, 2, 2), padding="VALID")
    hh = conv(hh, params["e1_w1"], params["e1_b1"])
    hh = conv(hh, params["e1_w2"], params["e1_b2"])
    return hh


if __name__ == "__main__":
    key = jax.random.PRNGKey(0)
    # NCDHW input, like PyTorch Conv3d: N=1, C=1, D=8, H=16, W=16
    x = jax.random.normal(key, (1, 1, 8, 16, 16), dtype=jnp.float32)
    params = make_params()

    fwd = jax.jit(intermediate_output_forward)
    out = fwd(x, params)
    jax.block_until_ready(out)

    assert out.shape == (1, 16, 4, 8, 8), out.shape
    assert out.dtype == jnp.float32

    # sanity-check against a pure-JAX reference (loose tol: MXU matmul-pass /
    # XLA conv precision modes may differ slightly; real bugs are O(0.5) off).
    ref = _reference_forward(x, params)
    err = float(jnp.max(jnp.abs(out - ref)))
    assert err < 0.1, f"max abs error vs reference: {err}"

    print("KERNEL_OK")
</pallas_src>

<mosaic_0001>
module attributes {stable_mosaic.version = 11 : i64} {
  func.func @kernel(%arg0: i32, %arg1: memref<1x3278xf32, #tpu.memory_space<vmem>>, %arg2: memref<8x27xf32, #tpu.memory_space<vmem>>, %arg3: memref<8x1xf32, #tpu.memory_space<vmem>>, %arg4: memref<8x216xf32, #tpu.memory_space<vmem>>, %arg5: memref<8x1xf32, #tpu.memory_space<vmem>>, %arg6: memref<1x2592xf32, #tpu.memory_space<vmem>>, %arg7: memref<8x2592xf32, #tpu.memory_space<vmem>>, %arg8: memref<8x3278xf32, #tpu.memory_space<vmem>>, %arg9: memref<216x2592xf32, #tpu.memory_space<vmem>>) attributes {dimension_semantics = [#tpu.dimension_semantics<arbitrary>], iteration_bounds = array<i64: 1>, scalar_prefetch = 0 : i64, scratch_operands = 2 : i64, tpu.core_type = #tpu.core_type<tc>, window_params = [{pipeline_mode = #tpu.pipeline_mode<synchronous>, transform_indices = @transform_0, window_bounds = array<i64: 1, 3278>}, {pipeline_mode = #tpu.pipeline_mode<synchronous>, transform_indices = @transform_1, window_bounds = array<i64: 8, 27>}, {pipeline_mode = #tpu.pipeline_mode<synchronous>, transform_indices = @transform_2, window_bounds = array<i64: 8, 1>}, {pipeline_mode = #tpu.pipeline_mode<synchronous>, transform_indices = @transform_3, window_bounds = array<i64: 8, 216>}, {pipeline_mode = #tpu.pipeline_mode<synchronous>, transform_indices = @transform_4, window_bounds = array<i64: 8, 1>}, {pipeline_mode = #tpu.pipeline_mode<synchronous>, transform_indices = @transform_5, window_bounds = array<i64: 1, 2592>}, {pipeline_mode = #tpu.pipeline_mode<synchronous>, transform_indices = @transform_6, window_bounds = array<i64: 8, 2592>}]} {
    %c0 = arith.constant 0 : index
    %c0_0 = arith.constant 0 : index
    %0 = vector.load %arg1[%c0, %c0_0] : memref<1x3278xf32, #tpu.memory_space<vmem>>, vector<1x3278xf32>
    %1 = vector.extract_strided_slice %0 {offsets = [0, 0], sizes = [1, 2592], strides = [1, 1]} : vector<1x3278xf32> to vector<1x2592xf32>
    %c0_1 = arith.constant 0 : index
    %c0_2 = arith.constant 0 : index
    %2 = vector.load %arg9[%c0_1, %c0_2] : memref<216x2592xf32, #tpu.memory_space<vmem>>, vector<1x2592xf32>
    tpu.vector_store %arg9[%c0_1, %c0_2], %1 {strides = array<i32>} : memref<216x2592xf32, #tpu.memory_space<vmem>>, vector<1x2592xf32>,
    %3 = vector.extract_strided_slice %0 {offsets = [0, 1], sizes = [1, 2592], strides = [1, 1]} : vector<1x3278xf32> to vector<1x2592xf32>
    %c1 = arith.constant 1 : index
    %c0_3 = arith.constant 0 : index
    %4 = vector.load %arg9[%c1, %c0_3] : memref<216x2592xf32, #tpu.memory_space<vmem>>, vector<1x2592xf32>
    tpu.vector_store %arg9[%c1, %c0_3], %3 {strides = array<i32>} : memref<216x2592xf32, #tpu.memory_space<vmem>>, vector<1x2592xf32>,
    %5 = vector.extract_strided_slice %0 {offsets = [0, 2], sizes = [1, 2592], strides = [1, 1]} : vector<1x3278xf32> to vector<1x2592xf32>
    %c2 = arith.constant 2 : index
    %c0_4 = arith.constant 0 : index
    %6 = vector.load %arg9[%c2, %c0_4] : memref<216x2592xf32, #tpu.memory_space<vmem>>, vector<1x2592xf32>
    tpu.vector_store %arg9[%c2, %c0_4], %5 {strides = array<i32>} : memref<216x2592xf32, #tpu.memory_space<vmem>>, vector<1x2592xf32>,
    %7 = vector.extract_strided_slice %0 {offsets = [0, 18], sizes = [1, 2592], strides = [1, 1]} : vector<1x3278xf32> to vector<1x2592xf32>
    %c3 = arith.constant 3 : index
    %c0_5 = arith.constant 0 : index
    %8 = vector.load %arg9[%c3, %c0_5] : memref<216x2592xf32, #tpu.memory_space<vmem>>, vector<1x2592xf32>
    tpu.vector_store %arg9[%c3, %c0_5], %7 {strides = array<i32>} : memref<216x2592xf32, #tpu.memory_space<vmem>>, vector<1x2592xf32>,
    %9 = vector.extract_strided_slice %0 {offsets = [0, 19], sizes = [1, 2592], strides = [1, 1]} : vector<1x3278xf32> to vector<1x2592xf32>
    %c4 = arith.constant 4 : index
    %c0_6 = arith.constant 0 : index
    %10 = vector.load %arg9[%c4, %c0_6] : memref<216x2592xf32, #tpu.memory_space<vmem>>, vector<1x2592xf32>
    tpu.vector_store %arg9[%c4, %c0_6], %9 {strides = array<i32>} : memref<216x2592xf32, #tpu.memory_space<vmem>>, vector<1x2592xf32>,
    %11 = vector.extract_strided_slice %0 {offsets = [0, 20], sizes = [1, 2592], strides = [1, 1]} : vector<1x3278xf32> to vector<1x2592xf32>
    %c5 = arith.constant 5 : index
    %c0_7 = arith.constant 0 : index
    %12 = vector.load %arg9[%c5, %c0_7] : memref<216x2592xf32, #tpu.memory_space<vmem>>, vector<1x2592xf32>
    tpu.vector_store %arg9[%c5, %c0_7], %11 {strides = array<i32>} : memref<216x2592xf32, #tpu.memory_space<vmem>>, vector<1x2592xf32>,
    %13 = vector.extract_strided_slice %0 {offsets = [0, 36], sizes = [1, 2592], strides = [1, 1]} : vector<1x3278xf32> to vector<1x2592xf32>
    %c6 = arith.constant 6 : index
    %c0_8 = arith.constant 0 : index
    %14 = vector.load %arg9[%c6, %c0_8] : memref<216x2592xf32, #tpu.memory_space<vmem>>, vector<1x2592xf32>
    tpu.vector_store %arg9[%c6, %c0_8], %13 {strides = array<i32>} : memref<216x2592xf32, #tpu.memory_space<vmem>>, vector<1x2592xf32>,
    %15 = vector.extract_strided_slice %0 {offsets = [0, 37], sizes = [1, 2592], strides = [1, 1]} : vector<1x3278xf32> to vector<1x2592xf32>
    %c7 = arith.constant 7 : index
    %c0_9 = arith.constant 0 : index
    %16 = vector.load %arg9[%c7, %c0_9] : memref<216x2592xf32, #tpu.memory_space<vmem>>, vector<1x2592xf32>
    tpu.vector_store %arg9[%c7, %c0_9], %15 {strides = array<i32>} : memref<216x2592xf32, #tpu.memory_space<vmem>>, vector<1x2592xf32>,
    %17 = vector.extract_strided_slice %0 {offsets = [0, 38], sizes = [1, 2592], strides = [1, 1]} : vector<1x3278xf32> to vector<1x2592xf32>
    %c8 = arith.constant 8 : index
    %c0_10 = arith.constant 0 : index
    %18 = vector.load %arg9[%c8, %c0_10] : memref<216x2592xf32, #tpu.memory_space<vmem>>, vector<1x2592xf32>
    tpu.vector_store %arg9[%c8, %c0_10], %17 {strides = array<i32>} : memref<216x2592xf32, #tpu.memory_space<vmem>>, vector<1x2592xf32>,
    %19 = vector.extract_strided_slice %0 {offsets = [0, 324], sizes = [1, 2592], strides = [1, 1]} : vector<1x3278xf32> to vector<1x2592xf32>
    %c9 = arith.constant 9 : index
    %c0_11 = arith.constant 0 : index
    %20 = vector.load %arg9[%c9, %c0_11] : memref<216x2592xf32, #tpu.memory_space<vmem>>, vector<1x2592xf32>
    tpu.vector_store %arg9[%c9, %c0_11], %19 {strides = array<i32>} : memref<216x2592xf32, #tpu.memory_space<vmem>>, vector<1x2592xf32>,
    %21 = vector.extract_strided_slice %0 {offsets = [0, 325], sizes = [1, 2592], strides = [1, 1]} : vector<1x3278xf32> to vector<1x2592xf32>
    %c10 = arith.constant 10 : index
    %c0_12 = arith.constant 0 : index
    %22 = vector.load %arg9[%c10, %c0_12] : memref<216x2592xf32, #tpu.memory_space<vmem>>, vector<1x2592xf32>
    tpu.vector_store %arg9[%c10, %c0_12], %21 {strides = array<i32>} : memref<216x2592xf32, #tpu.memory_space<vmem>>, vector<1x2592xf32>,
    %23 = vector.extract_strided_slice %0 {offsets = [0, 326], sizes = [1, 2592], strides = [1, 1]} : vector<1x3278xf32> to vector<1x2592xf32>
    %c11 = arith.constant 11 : index
    %c0_13 = arith.constant 0 : index
    %24 = vector.load %arg9[%c11, %c0_13] : memref<216x2592xf32, #tpu.memory_space<vmem>>, vector<1x2592xf32>
    tpu.vector_store %arg9[%c11, %c0_13], %23 {strides = array<i32>} : memref<216x2592xf32, #tpu.memory_space<vmem>>, vector<1x2592xf32>,
    %25 = vector.extract_strided_slice %0 {offsets = [0, 342], sizes = [1, 2592], strides = [1, 1]} : vector<1x3278xf32> to vector<1x2592xf32>
    %c12 = arith.constant 12 : index
    %c0_14 = arith.constant 0 : index
    %26 = vector.load %arg9[%c12, %c0_14] : memref<216x2592xf32, #tpu.memory_space<vmem>>, vector<1x2592xf32>
    tpu.vector_store %arg9[%c12, %c0_14], %25 {strides = array<i32>} : memref<216x2592xf32, #tpu.memory_space<vmem>>, vector<1x2592xf32>,
    %27 = vector.extract_strided_slice %0 {offsets = [0, 343], sizes = [1, 2592], strides = [1, 1]} : vector<1x3278xf32> to vector<1x2592xf32>
    %c13 = arith.constant 13 : index
    %c0_15 = arith.constant 0 : index
    %28 = vector.load %arg9[%c13, %c0_15] : memref<216x2592xf32, #tpu.memory_space<vmem>>, vector<1x2592xf32>
    tpu.vector_store %arg9[%c13, %c0_15], %27 {strides = array<i32>} : memref<216x2592xf32, #tpu.memory_space<vmem>>, vector<1x2592xf32>,
    %29 = vector.extract_strided_slice %0 {offsets = [0, 344], sizes = [1, 2592], strides = [1, 1]} : vector<1x3278xf32> to vector<1x2592xf32>
    %c14 = arith.constant 14 : index
    %c0_16 = arith.constant 0 : index
    %30 = vector.load %arg9[%c14, %c0_16] : memref<216x2592xf32, #tpu.memory_space<vmem>>, vector<1x2592xf32>
    tpu.vector_store %arg9[%c14, %c0_16], %29 {strides = array<i32>} : memref<216x2592xf32, #tpu.memory_space<vmem>>, vector<1x2592xf32>,
    %31 = vector.extract_strided_slice %0 {offsets = [0, 360], sizes = [1, 2592], strides = [1, 1]} : vector<1x3278xf32> to vector<1x2592xf32>
    %c15 = arith.constant 15 : index
    %c0_17 = arith.constant 0 : index
    %32 = vector.load %arg9[%c15, %c0_17] : memref<216x2592xf32, #tpu.memory_space<vmem>>, vector<1x2592xf32>
    tpu.vector_store %arg9[%c15, %c0_17], %31 {strides = array<i32>} : memref<216x2592xf32, #tpu.memory_space<vmem>>, vector<1x2592xf32>,
    %33 = vector.extract_strided_slice %0 {offsets = [0, 361], sizes = [1, 2592], strides = [1, 1]} : vector<1x3278xf32> to vector<1x2592xf32>
    %c16 = arith.constant 16 : index
    %c0_18 = arith.constant 0 : index
    %34 = vector.load %arg9[%c16, %c0_18] : memref<216x2592xf32, #tpu.memory_space<vmem>>, vector<1x2592xf32>
    tpu.vector_store %arg9[%c16, %c0_18], %33 {strides = array<i32>} : memref<216x2592xf32, #tpu.memory_space<vmem>>, vector<1x2592xf32>,
    %35 = vector.extract_strided_slice %0 {offsets = [0, 362], sizes = [1, 2592], strides = [1, 1]} : vector<1x3278xf32> to vector<1x2592xf32>
    %c17 = arith.constant 17 : index
    %c0_19 = arith.constant 0 : index
    %36 = vector.load %arg9[%c17, %c0_19] : memref<216x2592xf32, #tpu.memory_space<vmem>>, vector<1x2592xf32>
    tpu.vector_store %arg9[%c17, %c0_19], %35 {strides = array<i32>} : memref<216x2592xf32, #tpu.memory_space<vmem>>, vector<1x2592xf32>,
    %37 = vector.extract_strided_slice %0 {offsets = [0, 648], sizes = [1, 2592], strides = [1, 1]} : vector<1x3278xf32> to vector<1x2592xf32>
    %c18 = arith.constant 18 : index
    %c0_20 = arith.constant 0 : index
    %38 = vector.load %arg9[%c18, %c0_20] : memref<216x2592xf32, #tpu.memory_space<vmem>>, vector<1x2592xf32>
    tpu.vector_store %arg9[%c18, %c0_20], %37 {strides = array<i32>} : memref<216x2592xf32, #tpu.memory_space<vmem>>, vector<1x2592xf32>,
    %39 = vector.extract_strided_slice %0 {offsets = [0, 649], sizes = [1, 2592], strides = [1, 1]} : vector<1x3278xf32> to vector<1x2592xf32>
    %c19 = arith.constant 19 : index
    %c0_21 = arith.constant 0 : index
    %40 = vector.load %arg9[%c19, %c0_21] : memref<216x2592xf32, #tpu.memory_space<vmem>>, vector<1x2592xf32>
    tpu.vector_store %arg9[%c19, %c0_21], %39 {strides = array<i32>} : memref<216x2592xf32, #tpu.memory_space<vmem>>, vector<1x2592xf32>,
    %41 = vector.extract_strided_slice %0 {offsets = [0, 650], sizes = [1, 2592], strides = [1, 1]} : vector<1x3278xf32> to vector<1x2592xf32>
    %c20 = arith.constant 20 : index
    %c0_22 = arith.constant 0 : index
    %42 = vector.load %arg9[%c20, %c0_22] : memref<216x2592xf32, #tpu.memory_space<vmem>>, vector<1x2592xf32>
    tpu.vector_store %arg9[%c20, %c0_22], %41 {strides = array<i32>} : memref<216x2592xf32, #tpu.memory_space<vmem>>, vector<1x2592xf32>,
    %43 = vector.extract_strided_slice %0 {offsets = [0, 666], sizes = [1, 2592], strides = [1, 1]} : vector<1x3278xf32> to vector<1x2592xf32>
    %c21 = arith.constant 21 : index
    %c0_23 = arith.constant 0 : index
    %44 = vector.load %arg9[%c21, %c0_23] : memref<216x2592xf32, #tpu.memory_space<vmem>>, vector<1x2592xf32>
    tpu.vector_store %arg9[%c21, %c0_23], %43 {strides = array<i32>} : memref<216x2592xf32, #tpu.memory_space<vmem>>, vector<1x2592xf32>,
    %45 = vector.extract_strided_slice %0 {offsets = [0, 667], sizes = [1, 2592], strides = [1, 1]} : vector<1x3278xf32> to vector<1x2592xf32>
    %c22 = arith.constant 22 : index
    %c0_24 = arith.constant 0 : index
    %46 = vector.load %arg9[%c22, %c0_24] : memref<216x2592xf32, #tpu.memory_space<vmem>>, vector<1x2592xf32>
    tpu.vector_store %arg9[%c22, %c0_24], %45 {strides = array<i32>} : memref<216x2592xf32, #tpu.memory_space<vmem>>, vector<1x2592xf32>,
    %47 = vector.extract_strided_slice %0 {offsets = [0, 668], sizes = [1, 2592], strides = [1, 1]} : vector<1x3278xf32> to vector<1x2592xf32>
    %c23 = arith.constant 23 : index
    %c0_25 = arith.constant 0 : index
    %48 = vector.load %arg9[%c23, %c0_25] : memref<216x2592xf32, #tpu.memory_space<vmem>>, vector<1x2592xf32>
    tpu.vector_store %arg9[%c23, %c0_25], %47 {strides = array<i32>} : memref<216x2592xf32, #tpu.memory_space<vmem>>, vector<1x2592xf32>,
    %49 = vector.extract_strided_slice %0 {offsets = [0, 684], sizes = [1, 2592], strides = [1, 1]} : vector<1x3278xf32> to vector<1x2592xf32>
    %c24 = arith.constant 24 : index
    %c0_26 = arith.constant 0 : index
    %50 = vector.load %arg9[%c24, %c0_26] : memref<216x2592xf32, #tpu.memory_space<vmem>>, vector<1x2592xf32>
    tpu.vector_store %arg9[%c24, %c0_26], %49 {strides = array<i32>} : memref<216x2592xf32, #tpu.memory_space<vmem>>, vector<1x2592xf32>,
    %51 = vector.extract_strided_slice %0 {offsets = [0, 685], sizes = [1, 2592], strides = [1, 1]} : vector<1x3278xf32> to vector<1x2592xf32>
    %c25 = arith.constant 25 : index
    %c0_27 = arith.constant 0 : index
    %52 = vector.load %arg9[%c25, %c0_27] : memref<216x2592xf32, #tpu.memory_space<vmem>>, vector<1x2592xf32>
    tpu.vector_store %arg9[%c25, %c0_27], %51 {strides = array<i32>} : memref<216x2592xf32, #tpu.memory_space<vmem>>, vector<1x2592xf32>,
    %53 = vector.extract_strided_slice %0 {offsets = [0, 686], sizes = [1, 2592], strides = [1, 1]} : vector<1x3278xf32> to vector<1x2592xf32>
    %c26 = arith.constant 26 : index
    %c0_28 = arith.constant 0 : index
    %54 = vector.load %arg9[%c26, %c0_28] : memref<216x2592xf32, #tpu.memory_space<vmem>>, vector<1x2592xf32>
    tpu.vector_store %arg9[%c26, %c0_28], %53 {strides = array<i32>} : memref<216x2592xf32, #tpu.memory_space<vmem>>, vector<1x2592xf32>,
    %c0_29 = arith.constant 0 : index
    %c0_30 = arith.constant 0 : index
    %55 = vector.load %arg2[%c0_29, %c0_30] : memref<8x27xf32, #tpu.memory_space<vmem>>, vector<8x27xf32>
    %c0_31 = arith.constant 0 : index
    %c0_32 = arith.constant 0 : index
    %56 = vector.load %arg9[%c0_31, %c0_32] : memref<216x2592xf32, #tpu.memory_space<vmem>>, vector<27x2592xf32>
    %cst = arith.constant dense<0.000000e+00> : vector<8x2592xf32>
    %57 = tpu.matmul %55, %56, %cst {dimension_numbers = #tpu.dot_dimension_numbers<[1], [0], [0], [1], [0, 0, 1, 1], [], []>} : vector<8x27xf32>, vector<27x2592xf32>, vector<8x2592xf32> -> vector<8x2592xf32>
    %c0_33 = arith.constant 0 : index
    %c0_34 = arith.constant 0 : index
    %58 = vector.load %arg3[%c0_33, %c0_34] : memref<8x1xf32, #tpu.memory_space<vmem>>, vector<8x1xf32>
    %59 = vector.broadcast %58 : vector<8x1xf32> to vector<8x2592xf32>
    %60 = arith.addf %57, %59 : vector<8x2592xf32>
    %cst_35 = arith.constant 0.000000e+00 : f32
    %61 = vector.broadcast %cst_35 : f32 to vector<8x2592xf32>
    %62 = arith.maximumf %60, %61 : vector<8x2592xf32>
    %c0_36 = arith.constant 0 : index
    %c0_37 = arith.constant 0 : index
    %63 = vector.load %arg6[%c0_36, %c0_37] : memref<1x2592xf32, #tpu.memory_space<vmem>>, vector<1x2592xf32>
    %64 = vector.broadcast %63 : vector<1x2592xf32> to vector<8x2592xf32>
    %65 = arith.mulf %62, %64 : vector<8x2592xf32>
    %cst_38 = arith.constant 0.000000e+00 : f32
    %66 = vector.broadcast %cst_38 : f32 to vector<8x3278xf32>
    %c0_39 = arith.constant 0 : index
    %c0_40 = arith.constant 0 : index
    %67 = vector.load %arg8[%c0_39, %c0_40] : memref<8x3278xf32, #tpu.memory_space<vmem>>, vector<8x3278xf32>
    tpu.vector_store %arg8[%c0_39, %c0_40], %66 {strides = array<i32>} : memref<8x3278xf32, #tpu.memory_space<vmem>>, vector<8x3278xf32>,
    %c0_41 = arith.constant 0 : index
    %c343 = arith.constant 343 : index
    %68 = vector.load %arg8[%c0_41, %c343] : memref<8x3278xf32, #tpu.memory_space<vmem>>, vector<8x2592xf32>
    tpu.vector_store %arg8[%c0_41, %c343], %65 {strides = array<i32>} : memref<8x3278xf32, #tpu.memory_space<vmem>>, vector<8x2592xf32>,
    %c0_42 = arith.constant 0 : index
    %c0_43 = arith.constant 0 : index
    %69 = vector.load %arg8[%c0_42, %c0_43] : memref<8x3278xf32, #tpu.memory_space<vmem>>, vector<8x2592xf32>
    %c0_44 = arith.constant 0 : index
    %c0_45 = arith.constant 0 : index
    %70 = vector.load %arg9[%c0_44, %c0_45] : memref<216x2592xf32, #tpu.memory_space<vmem>>, vector<8x2592xf32>
    tpu.vector_store %arg9[%c0_44, %c0_45], %69 {strides = array<i32>} : memref<216x2592xf32, #tpu.memory_space<vmem>>, vector<8x2592xf32>,
    %c0_46 = arith.constant 0 : index
    %c1_47 = arith.constant 1 : index
    %71 = vector.load %arg8[%c0_46, %c1_47] : memref<8x3278xf32, #tpu.memory_space<vmem>>, vector<8x2592xf32>
    %c8_48 = arith.constant 8 : index
    %c0_49 = arith.constant 0 : index
    %72 = vector.load %arg9[%c8_48, %c0_49] : memref<216x2592xf32, #tpu.memory_space<vmem>>, vector<8x2592xf32>
    tpu.vector_store %arg9[%c8_48, %c0_49], %71 {strides = array<i32>} : memref<216x2592xf32, #tpu.memory_space<vmem>>, vector<8x2592xf32>,
    %c0_50 = arith.constant 0 : index
    %c2_51 = arith.constant 2 : index
    %73 = vector.load %arg8[%c0_50, %c2_51] : memref<8x3278xf32, #tpu.memory_space<vmem>>, vector<8x2592xf32>
    %c16_52 = arith.constant 16 : index
    %c0_53 = arith.constant 0 : index
    %74 = vector.load %arg9[%c16_52, %c0_53] : memref<216x2592xf32, #tpu.memory_space<vmem>>, vector<8x2592xf32>
    tpu.vector_store %arg9[%c16_52, %c0_53], %73 {strides = array<i32>} : memref<216x2592xf32, #tpu.memory_space<vmem>>, vector<8x2592xf32>,
    %c0_54 = arith.constant 0 : index
    %c18_55 = arith.constant 18 : index
    %75 = vector.load %arg8[%c0_54, %c18_55] : memref<8x3278xf32, #tpu.memory_space<vmem>>, vector<8x2592xf32>
    %c24_56 = arith.constant 24 : index
    %c0_57 = arith.constant 0 : index
    %76 = vector.load %arg9[%c24_56, %c0_57] : memref<216x2592xf32, #tpu.memory_space<vmem>>, vector<8x2592xf32>
    tpu.vector_store %arg9[%c24_56, %c0_57], %75 {strides = array<i32>} : memref<216x2592xf32, #tpu.memory_space<vmem>>, vector<8x2592xf32>,
    %c0_58 = arith.constant 0 : index
    %c19_59 = arith.constant 19 : index
    %77 = vector.load %arg8[%c0_58, %c19_59] : memref<8x3278xf32, #tpu.memory_space<vmem>>, vector<8x2592xf32>
    %c32 = arith.constant 32 : index
    %c0_60 = arith.constant 0 : index
    %78 = vector.load %arg9[%c32, %c0_60] : memref<216x2592xf32, #tpu.memory_space<vmem>>, vector<8x2592xf32>
    tpu.vector_store %arg9[%c32, %c0_60], %77 {strides = array<i32>} : memref<216x2592xf32, #tpu.memory_space<vmem>>, vector<8x2592xf32>,
    %c0_61 = arith.constant 0 : index
    %c20_62 = arith.constant 20 : index
    %79 = vector.load %arg8[%c0_61, %c20_62] : memref<8x3278xf32, #tpu.memory_space<vmem>>, vector<8x2592xf32>
    %c40 = arith.constant 40 : index
    %c0_63 = arith.constant 0 : index
    %80 = vector.load %arg9[%c40, %c0_63] : memref<216x2592xf32, #tpu.memory_space<vmem>>, vector<8x2592xf32>
    tpu.vector_store %arg9[%c40, %c0_63], %79 {strides = array<i32>} : memref<216x2592xf32, #tpu.memory_space<vmem>>, vector<8x2592xf32>,
    %c0_64 = arith.constant 0 : index
    %c36 = arith.constant 36 : index
    %81 = vector.load %arg8[%c0_64, %c36] : memref<8x3278xf32, #tpu.memory_space<vmem>>, vector<8x2592xf32>
    %c48 = arith.constant 48 : index
    %c0_65 = arith.constant 0 : index
    %82 = vector.load %arg9[%c48, %c0_65] : memref<216x2592xf32, #tpu.memory_space<vmem>>, vector<8x2592xf32>
    tpu.vector_store %arg9[%c48, %c0_65], %81 {strides = array<i32>} : memref<216x2592xf32, #tpu.memory_space<vmem>>, vector<8x2592xf32>,
    %c0_66 = arith.constant 0 : index
    %c37 = arith.constant 37 : index
    %83 = vector.load %arg8[%c0_66, %c37] : memref<8x3278xf32, #tpu.memory_space<vmem>>, vector<8x2592xf32>
    %c56 = arith.constant 56 : index
    %c0_67 = arith.constant 0 : index
    %84 = vector.load %arg9[%c56, %c0_67] : memref<216x2592xf32, #tpu.memory_space<vmem>>, vector<8x2592xf32>
    tpu.vector_store %arg9[%c56, %c0_67], %83 {strides = array<i32>} : memref<216x2592xf32, #tpu.memory_space<vmem>>, vector<8x2592xf32>,
    %c0_68 = arith.constant 0 : index
    %c38 = arith.constant 38 : index
    %85 = vector.load %arg8[%c0_68, %c38] : memref<8x3278xf32, #tpu.memory_space<vmem>>, vector<8x2592xf32>
    %c64 = arith.constant 64 : index
    %c0_69 = arith.constant 0 : index
    %86 = vector.load %arg9[%c64, %c0_69] : memref<216x2592xf32, #tpu.memory_space<vmem>>, vector<8x2592xf32>
    tpu.vector_store %arg9[%c64, %c0_69], %85 {strides = array<i32>} : memref<216x2592xf32, #tpu.memory_space<vmem>>, vector<8x2592xf32>,
    %c0_70 = arith.constant 0 : index
    %c324 = arith.constant 324 : index
    %87 = vector.load %arg8[%c0_70, %c324] : memref<8x3278xf32, #tpu.memory_space<vmem>>, vector<8x2592xf32>
    %c72 = arith.constant 72 : index
    %c0_71 = arith.constant 0 : index
    %88 = vector.load %arg9[%c72, %c0_71] : memref<216x2592xf32, #tpu.memory_space<vmem>>, vector<8x2592xf32>
    tpu.vector_store %arg9[%c72, %c0_71], %87 {strides = array<i32>} : memref<216x2592xf32, #tpu.memory_space<vmem>>, vector<8x2592xf32>,
    %c0_72 = arith.constant 0 : index
    %c325 = arith.constant 325 : index
    %89 = vector.load %arg8[%c0_72, %c325] : memref<8x3278xf32, #tpu.memory_space<vmem>>, vector<8x2592xf32>
    %c80 = arith.constant 80 : index
    %c0_73 = arith.constant 0 : index
    %90 = vector.load %arg9[%c80, %c0_73] : memref<216x2592xf32, #tpu.memory_space<vmem>>, vector<8x2592xf32>
    tpu.vector_store %arg9[%c80, %c0_73], %89 {strides = array<i32>} : memref<216x2592xf32, #tpu.memory_space<vmem>>, vector<8x2592xf32>,
    %c0_74 = arith.constant 0 : index
    %c326 = arith.constant 326 : index
    %91 = vector.load %arg8[%c0_74, %c326] : memref<8x3278xf32, #tpu.memory_space<vmem>>, vector<8x2592xf32>
    %c88 = arith.constant 88 : index
    %c0_75 = arith.constant 0 : index
    %92 = vector.load %arg9[%c88, %c0_75] : memref<216x2592xf32, #tpu.memory_space<vmem>>, vector<8x2592xf32>
    tpu.vector_store %arg9[%c88, %c0_75], %91 {strides = array<i32>} : memref<216x2592xf32, #tpu.memory_space<vmem>>, vector<8x2592xf32>,
    %c0_76 = arith.constant 0 : index
    %c342 = arith.constant 342 : index
    %93 = vector.load %arg8[%c0_76, %c342] : memref<8x3278xf32, #tpu.memory_space<vmem>>, vector<8x2592xf32>
    %c96 = arith.constant 96 : index
    %c0_77 = arith.constant 0 : index
    %94 = vector.load %arg9[%c96, %c0_77] : memref<216x2592xf32, #tpu.memory_space<vmem>>, vector<8x2592xf32>
    tpu.vector_store %arg9[%c96, %c0_77], %93 {strides = array<i32>} : memref<216x2592xf32, #tpu.memory_space<vmem>>, vector<8x2592xf32>,
    %c0_78 = arith.constant 0 : index
    %c343_79 = arith.constant 343 : index
    %95 = vector.load %arg8[%c0_78, %c343_79] : memref<8x3278xf32, #tpu.memory_space<vmem>>, vector<8x2592xf32>
    %c104 = arith.constant 104 : index
    %c0_80 = arith.constant 0 : index
    %96 = vector.load %arg9[%c104, %c0_80] : memref<216x2592xf32, #tpu.memory_space<vmem>>, vector<8x2592xf32>
    tpu.vector_store %arg9[%c104, %c0_80], %95 {strides = array<i32>} : memref<216x2592xf32, #tpu.memory_space<vmem>>, vector<8x2592xf32>,
    %c0_81 = arith.constant 0 : index
    %c344 = arith.constant 344 : index
    %97 = vector.load %arg8[%c0_81, %c344] : memref<8x3278xf32, #tpu.memory_space<vmem>>, vector<8x2592xf32>
    %c112 = arith.constant 112 : index
    %c0_82 = arith.constant 0 : index
    %98 = vector.load %arg9[%c112, %c0_82] : memref<216x2592xf32, #tpu.memory_space<vmem>>, vector<8x2592xf32>
    tpu.vector_store %arg9[%c112, %c0_82], %97 {strides = array<i32>} : memref<216x2592xf32, #tpu.memory_space<vmem>>, vector<8x2592xf32>,
    %c0_83 = arith.constant 0 : index
    %c360 = arith.constant 360 : index
    %99 = vector.load %arg8[%c0_83, %c360] : memref<8x3278xf32, #tpu.memory_space<vmem>>, vector<8x2592xf32>
    %c120 = arith.constant 120 : index
    %c0_84 = arith.constant 0 : index
    %100 = vector.load %arg9[%c120, %c0_84] : memref<216x2592xf32, #tpu.memory_space<vmem>>, vector<8x2592xf32>
    tpu.vector_store %arg9[%c120, %c0_84], %99 {strides = array<i32>} : memref<216x2592xf32, #tpu.memory_space<vmem>>, vector<8x2592xf32>,
    %c0_85 = arith.constant 0 : index
    %c361 = arith.constant 361 : index
    %101 = vector.load %arg8[%c0_85, %c361] : memref<8x3278xf32, #tpu.memory_space<vmem>>, vector<8x2592xf32>
    %c128 = arith.constant 128 : index
    %c0_86 = arith.constant 0 : index
    %102 = vector.load %arg9[%c128, %c0_86] : memref<216x2592xf32, #tpu.memory_space<vmem>>, vector<8x2592xf32>
    tpu.vector_store %arg9[%c128, %c0_86], %101 {strides = array<i32>} : memref<216x2592xf32, #tpu.memory_space<vmem>>, vector<8x2592xf32>,
    %c0_87 = arith.constant 0 : index
    %c362 = arith.constant 362 : index
    %103 = vector.load %arg8[%c0_87, %c362] : memref<8x3278xf32, #tpu.memory_space<vmem>>, vector<8x2592xf32>
    %c136 = arith.constant 136 : index
    %c0_88 = arith.constant 0 : index
    %104 = vector.load %arg9[%c136, %c0_88] : memref<216x2592xf32, #tpu.memory_space<vmem>>, vector<8x2592xf32>
    tpu.vector_store %arg9[%c136, %c0_88], %103 {strides = array<i32>} : memref<216x2592xf32, #tpu.memory_space<vmem>>, vector<8x2592xf32>,
    %c0_89 = arith.constant 0 : index
    %c648 = arith.constant 648 : index
    %105 = vector.load %arg8[%c0_89, %c648] : memref<8x3278xf32, #tpu.memory_space<vmem>>, vector<8x2592xf32>
    %c144 = arith.constant 144 : index
    %c0_90 = arith.constant 0 : index
    %106 = vector.load %arg9[%c144, %c0_90] : memref<216x2592xf32, #tpu.memory_space<vmem>>, vector<8x2592xf32>
    tpu.vector_store %arg9[%c144, %c0_90], %105 {strides = array<i32>} : memref<216x2592xf32, #tpu.memory_space<vmem>>, vector<8x2592xf32>,
    %c0_91 = arith.constant 0 : index
    %c649 = arith.constant 649 : index
    %107 = vector.load %arg8[%c0_91, %c649] : memref<8x3278xf32, #tpu.memory_space<vmem>>, vector<8x2592xf32>
    %c152 = arith.constant 152 : index
    %c0_92 = arith.constant 0 : index
    %108 = vector.load %arg9[%c152, %c0_92] : memref<216x2592xf32, #tpu.memory_space<vmem>>, vector<8x2592xf32>
    tpu.vector_store %arg9[%c152, %c0_92], %107 {strides = array<i32>} : memref<216x2592xf32, #tpu.memory_space<vmem>>, vector<8x2592xf32>,
    %c0_93 = arith.constant 0 : index
    %c650 = arith.constant 650 : index
    %109 = vector.load %arg8[%c0_93, %c650] : memref<8x3278xf32, #tpu.memory_space<vmem>>, vector<8x2592xf32>
    %c160 = arith.constant 160 : index
    %c0_94 = arith.constant 0 : index
    %110 = vector.load %arg9[%c160, %c0_94] : memref<216x2592xf32, #tpu.memory_space<vmem>>, vector<8x2592xf32>
    tpu.vector_store %arg9[%c160, %c0_94], %109 {strides = array<i32>} : memref<216x2592xf32, #tpu.memory_space<vmem>>, vector<8x2592xf32>,
    %c0_95 = arith.constant 0 : index
    %c666 = arith.constant 666 : index
    %111 = vector.load %arg8[%c0_95, %c666] : memref<8x3278xf32, #tpu.memory_space<vmem>>, vector<8x2592xf32>
    %c168 = arith.constant 168 : index
    %c0_96 = arith.constant 0 : index
    %112 = vector.load %arg9[%c168, %c0_96] : memref<216x2592xf32, #tpu.memory_space<vmem>>, vector<8x2592xf32>
    tpu.vector_store %arg9[%c168, %c0_96], %111 {strides = array<i32>} : memref<216x2592xf32, #tpu.memory_space<vmem>>, vector<8x2592xf32>,
    %c0_97 = arith.constant 0 : index
    %c667 = arith.constant 667 : index
    %113 = vector.load %arg8[%c0_97, %c667] : memref<8x3278xf32, #tpu.memory_space<vmem>>, vector<8x2592xf32>
    %c176 = arith.constant 176 : index
    %c0_98 = arith.constant 0 : index
    %114 = vector.load %arg9[%c176, %c0_98] : memref<216x2592xf32, #tpu.memory_space<vmem>>, vector<8x2592xf32>
    tpu.vector_store %arg9[%c176, %c0_98], %113 {strides = array<i32>} : memref<216x2592xf32, #tpu.memory_space<vmem>>, vector<8x2592xf32>,
    %c0_99 = arith.constant 0 : index
    %c668 = arith.constant 668 : index
    %115 = vector.load %arg8[%c0_99, %c668] : memref<8x3278xf32, #tpu.memory_space<vmem>>, vector<8x2592xf32>
    %c184 = arith.constant 184 : index
    %c0_100 = arith.constant 0 : index
    %116 = vector.load %arg9[%c184, %c0_100] : memref<216x2592xf32, #tpu.memory_space<vmem>>, vector<8x2592xf32>
    tpu.vector_store %arg9[%c184, %c0_100], %115 {strides = array<i32>} : memref<216x2592xf32, #tpu.memory_space<vmem>>, vector<8x2592xf32>,
    %c0_101 = arith.constant 0 : index
    %c684 = arith.constant 684 : index
    %117 = vector.load %arg8[%c0_101, %c684] : memref<8x3278xf32, #tpu.memory_space<vmem>>, vector<8x2592xf32>
    %c192 = arith.constant 192 : index
    %c0_102 = arith.constant 0 : index
    %118 = vector.load %arg9[%c192, %c0_102] : memref<216x2592xf32, #tpu.memory_space<vmem>>, vector<8x2592xf32>
    tpu.vector_store %arg9[%c192, %c0_102], %117 {strides = array<i32>} : memref<216x2592xf32, #tpu.memory_space<vmem>>, vector<8x2592xf32>,
    %c0_103 = arith.constant 0 : index
    %c685 = arith.constant 685 : index
    %119 = vector.load %arg8[%c0_103, %c685] : memref<8x3278xf32, #tpu.memory_space<vmem>>, vector<8x2592xf32>
    %c200 = arith.constant 200 : index
    %c0_104 = arith.constant 0 : index
    %120 = vector.load %arg9[%c200, %c0_104] : memref<216x2592xf32, #tpu.memory_space<vmem>>, vector<8x2592xf32>
    tpu.vector_store %arg9[%c200, %c0_104], %119 {strides = array<i32>} : memref<216x2592xf32, #tpu.memory_space<vmem>>, vector<8x2592xf32>,
    %c0_105 = arith.constant 0 : index
    %c686 = arith.constant 686 : index
    %121 = vector.load %arg8[%c0_105, %c686] : memref<8x3278xf32, #tpu.memory_space<vmem>>, vector<8x2592xf32>
    %c208 = arith.constant 208 : index
    %c0_106 = arith.constant 0 : index
    %122 = vector.load %arg9[%c208, %c0_106] : memref<216x2592xf32, #tpu.memory_space<vmem>>, vector<8x2592xf32>
    tpu.vector_store %arg9[%c208, %c0_106], %121 {strides = array<i32>} : memref<216x2592xf32, #tpu.memory_space<vmem>>, vector<8x2592xf32>,
    %c0_107 = arith.constant 0 : index
    %c0_108 = arith.constant 0 : index
    %123 = vector.load %arg4[%c0_107, %c0_108] : memref<8x216xf32, #tpu.memory_space<vmem>>, vector<8x216xf32>
    %c0_109 = arith.constant 0 : index
    %c0_110 = arith.constant 0 : index
    %124 = vector.load %arg9[%c0_109, %c0_110] : memref<216x2592xf32, #tpu.memory_space<vmem>>, vector<216x2592xf32>
    %cst_111 = arith.constant dense<0.000000e+00> : vector<8x2592xf32>
    %125 = tpu.matmul %123, %124, %cst_111 {dimension_numbers = #tpu.dot_dimension_numbers<[1], [0], [0], [1], [0, 0, 1, 1], [], []>} : vector<8x216xf32>, vector<216x2592xf32>, vector<8x2592xf32> -> vector<8x2592xf32>
    %c0_112 = arith.constant 0 : index
    %c0_113 = arith.constant 0 : index
    %126 = vector.load %arg5[%c0_112, %c0_113] : memref<8x1xf32, #tpu.memory_space<vmem>>, vector<8x1xf32>
    %127 = vector.broadcast %126 : vector<8x1xf32> to vector<8x2592xf32>
    %128 = arith.addf %125, %127 : vector<8x2592xf32>
    %cst_114 = arith.constant 0.000000e+00 : f32
    %129 = vector.broadcast %cst_114 : f32 to vector<8x2592xf32>
    %130 = arith.maximumf %128, %129 : vector<8x2592xf32>
    %c0_115 = arith.constant 0 : index
    %c0_116 = arith.constant 0 : index
    %131 = vector.load %arg7[%c0_115, %c0_116] : memref<8x2592xf32, #tpu.memory_space<vmem>>, vector<8x2592xf32>
    tpu.vector_store %arg7[%c0_115, %c0_116], %130 {strides = array<i32>} : memref<8x2592xf32, #tpu.memory_space<vmem>>, vector<8x2592xf32>,
    return
  }
  func.func @transform_0(%arg0: i32) -> (i32, i32) {
    %c0_i32 = arith.constant 0 : i32
    %c0_i32_0 = arith.constant 0 : i32
    %c0_i32_1 = arith.constant 0 : i32
    return %c0_i32, %c0_i32_0 : i32, i32
  }
  func.func @transform_1(%arg0: i32) -> (i32, i32) {
    %c0_i32 = arith.constant 0 : i32
    %c0_i32_0 = arith.constant 0 : i32
    %c0_i32_1 = arith.constant 0 : i32
    return %c0_i32, %c0_i32_0 : i32, i32
  }
  func.func @transform_2(%arg0: i32) -> (i32, i32) {
    %c0_i32 = arith.constant 0 : i32
    %c0_i32_0 = arith.constant 0 : i32
    %c0_i32_1 = arith.constant 0 : i32
    return %c0_i32, %c0_i32_0 : i32, i32
  }
  func.func @transform_3(%arg0: i32) -> (i32, i32) {
    %c0_i32 = arith.constant 0 : i32
    %c0_i32_0 = arith.constant 0 : i32
    %c0_i32_1 = arith.constant 0 : i32
    return %c0_i32, %c0_i32_0 : i32, i32
  }
  func.func @transform_4(%arg0: i32) -> (i32, i32) {
    %c0_i32 = arith.constant 0 : i32
    %c0_i32_0 = arith.constant 0 : i32
    %c0_i32_1 = arith.constant 0 : i32
    return %c0_i32, %c0_i32_0 : i32, i32
  }
  func.func @transform_5(%arg0: i32) -> (i32, i32) {
    %c0_i32 = arith.constant 0 : i32
    %c0_i32_0 = arith.constant 0 : i32
    %c0_i32_1 = arith.constant 0 : i32
    return %c0_i32, %c0_i32_0 : i32, i32
  }
  func.func @transform_6(%arg0: i32) -> (i32, i32) {
    %c0_i32 = arith.constant 0 : i32
    %c0_i32_0 = arith.constant 0 : i32
    %c0_i32_1 = arith.constant 0 : i32
    return %c0_i32, %c0_i32_0 : i32, i32
  }
}

module attributes {stable_mosaic.version = 11 : i64} {
  func.func @kernel(%arg0: i32, %arg1: memref<64x622xf32, #tpu.memory_space<vmem>>, %arg2: memref<16x216xf32, #tpu.memory_space<vmem>>, %arg3: memref<16x1xf32, #tpu.memory_space<vmem>>, %arg4: memref<16x432xf32, #tpu.memory_space<vmem>>, %arg5: memref<16x1xf32, #tpu.memory_space<vmem>>, %arg6: memref<1x400xf32, #tpu.memory_space<vmem>>, %arg7: memref<16x400xf32, #tpu.memory_space<vmem>>, %arg8: memref<16x622xf32, #tpu.memory_space<vmem>>, %arg9: memref<432x400xf32, #tpu.memory_space<vmem>>) attributes {dimension_semantics = [#tpu.dimension_semantics<arbitrary>], iteration_bounds = array<i64: 1>, scalar_prefetch = 0 : i64, scratch_operands = 2 : i64, tpu.core_type = #tpu.core_type<tc>, window_params = [{pipeline_mode = #tpu.pipeline_mode<synchronous>, transform_indices = @transform_0, window_bounds = array<i64: 64, 622>}, {pipeline_mode = #tpu.pipeline_mode<synchronous>, transform_indices = @transform_1, window_bounds = array<i64: 16, 216>}, {pipeline_mode = #tpu.pipeline_mode<synchronous>, transform_indices = @transform_2, window_bounds = array<i64: 16, 1>}, {pipeline_mode = #tpu.pipeline_mode<synchronous>, transform_indices = @transform_3, window_bounds = array<i64: 16, 432>}, {pipeline_mode = #tpu.pipeline_mode<synchronous>, transform_indices = @transform_4, window_bounds = array<i64: 16, 1>}, {pipeline_mode = #tpu.pipeline_mode<synchronous>, transform_indices = @transform_5, window_bounds = array<i64: 1, 400>}, {pipeline_mode = #tpu.pipeline_mode<synchronous>, transform_indices = @transform_6, window_bounds = array<i64: 16, 400>}]} {
    %c0 = arith.constant 0 : index
    %c0_0 = arith.constant 0 : index
    %0 = vector.load %arg1[%c0, %c0_0] : memref<64x622xf32, #tpu.memory_space<vmem>>, vector<8x622xf32>
    %c8 = arith.constant 8 : index
    %c0_1 = arith.constant 0 : index
    %1 = vector.load %arg1[%c8, %c0_1] : memref<64x622xf32, #tpu.memory_space<vmem>>, vector<8x622xf32>
    %2 = arith.maximumf %0, %1 : vector<8x622xf32>
    %c16 = arith.constant 16 : index
    %c0_2 = arith.constant 0 : index
    %3 = vector.load %arg1[%c16, %c0_2] : memref<64x622xf32, #tpu.memory_space<vmem>>, vector<8x622xf32>
    %4 = arith.maximumf %2, %3 : vector<8x622xf32>
    %c24 = arith.constant 24 : index
    %c0_3 = arith.constant 0 : index
    %5 = vector.load %arg1[%c24, %c0_3] : memref<64x622xf32, #tpu.memory_space<vmem>>, vector<8x622xf32>
    %6 = arith.maximumf %4, %5 : vector<8x622xf32>
    %c32 = arith.constant 32 : index
    %c0_4 = arith.constant 0 : index
    %7 = vector.load %arg1[%c32, %c0_4] : memref<64x622xf32, #tpu.memory_space<vmem>>, vector<8x622xf32>
    %8 = arith.maximumf %6, %7 : vector<8x622xf32>
    %c40 = arith.constant 40 : index
    %c0_5 = arith.constant 0 : index
    %9 = vector.load %arg1[%c40, %c0_5] : memref<64x622xf32, #tpu.memory_space<vmem>>, vector<8x622xf32>
    %10 = arith.maximumf %8, %9 : vector<8x622xf32>
    %c48 = arith.constant 48 : index
    %c0_6 = arith.constant 0 : index
    %11 = vector.load %arg1[%c48, %c0_6] : memref<64x622xf32, #tpu.memory_space<vmem>>, vector<8x622xf32>
    %12 = arith.maximumf %10, %11 : vector<8x622xf32>
    %c56 = arith.constant 56 : index
    %c0_7 = arith.constant 0 : index
    %13 = vector.load %arg1[%c56, %c0_7] : memref<64x622xf32, #tpu.memory_space<vmem>>, vector<8x622xf32>
    %14 = arith.maximumf %12, %13 : vector<8x622xf32>
    %15 = vector.extract_strided_slice %14 {offsets = [0, 0], sizes = [8, 400], strides = [1, 1]} : vector<8x622xf32> to vector<8x400xf32>
    %c0_8 = arith.constant 0 : index
    %c0_9 = arith.constant 0 : index
    %16 = vector.load %arg9[%c0_8, %c0_9] : memref<432x400xf32, #tpu.memory_space<vmem>>, vector<8x400xf32>
    tpu.vector_store %arg9[%c0_8, %c0_9], %15 {strides = array<i32>} : memref<432x400xf32, #tpu.memory_space<vmem>>, vector<8x400xf32>,
    %17 = vector.extract_strided_slice %14 {offsets = [0, 1], sizes = [8, 400], strides = [1, 1]} : vector<8x622xf32> to vector<8x400xf32>
    %c8_10 = arith.constant 8 : index
    %c0_11 = arith.constant 0 : index
    %18 = vector.load %arg9[%c8_10, %c0_11] : memref<432x400xf32, #tpu.memory_space<vmem>>, vector<8x400xf32>
    tpu.vector_store %arg9[%c8_10, %c0_11], %17 {strides = array<i32>} : memref<432x400xf32, #tpu.memory_space<vmem>>, vector<8x400xf32>,
    %19 = vector.extract_strided_slice %14 {offsets = [0, 2], sizes = [8, 400], strides = [1, 1]} : vector<8x622xf32> to vector<8x400xf32>
    %c16_12 = arith.constant 16 : index
    %c0_13 = arith.constant 0 : index
    %20 = vector.load %arg9[%c16_12, %c0_13] : memref<432x400xf32, #tpu.memory_space<vmem>>, vector<8x400xf32>
    tpu.vector_store %arg9[%c16_12, %c0_13], %19 {strides = array<i32>} : memref<432x400xf32, #tpu.memory_space<vmem>>, vector<8x400xf32>,
    %21 = vector.extract_strided_slice %14 {offsets = [0, 10], sizes = [8, 400], strides = [1, 1]} : vector<8x622xf32> to vector<8x400xf32>
    %c24_14 = arith.constant 24 : index
    %c0_15 = arith.constant 0 : index
    %22 = vector.load %arg9[%c24_14, %c0_15] : memref<432x400xf32, #tpu.memory_space<vmem>>, vector<8x400xf32>
    tpu.vector_store %arg9[%c24_14, %c0_15], %21 {strides = array<i32>} : memref<432x400xf32, #tpu.memory_space<vmem>>, vector<8x400xf32>,
    %23 = vector.extract_strided_slice %14 {offsets = [0, 11], sizes = [8, 400], strides = [1, 1]} : vector<8x622xf32> to vector<8x400xf32>
    %c32_16 = arith.constant 32 : index
    %c0_17 = arith.constant 0 : index
    %24 = vector.load %arg9[%c32_16, %c0_17] : memref<432x400xf32, #tpu.memory_space<vmem>>, vector<8x400xf32>
    tpu.vector_store %arg9[%c32_16, %c0_17], %23 {strides = array<i32>} : memref<432x400xf32, #tpu.memory_space<vmem>>, vector<8x400xf32>,
    %25 = vector.extract_strided_slice %14 {offsets = [0, 12], sizes = [8, 400], strides = [1, 1]} : vector<8x622xf32> to vector<8x400xf32>
    %c40_18 = arith.constant 40 : index
    %c0_19 = arith.constant 0 : index
    %26 = vector.load %arg9[%c40_18, %c0_19] : memref<432x400xf32, #tpu.memory_space<vmem>>, vector<8x400xf32>
    tpu.vector_store %arg9[%c40_18, %c0_19], %25 {strides = array<i32>} : memref<432x400xf32, #tpu.memory_space<vmem>>, vector<8x400xf32>,
    %27 = vector.extract_strided_slice %14 {offsets = [0, 20], sizes = [8, 400], strides = [1, 1]} : vector<8x622xf32> to vector<8x400xf32>
    %c48_20 = arith.constant 48 : index
    %c0_21 = arith.constant 0 : index
    %28 = vector.load %arg9[%c48_20, %c0_21] : memref<432x400xf32, #tpu.memory_space<vmem>>, vector<8x400xf32>
    tpu.vector_store %arg9[%c48_20, %c0_21], %27 {strides = array<i32>} : memref<432x400xf32, #tpu.memory_space<vmem>>, vector<8x400xf32>,
    %29 = vector.extract_strided_slice %14 {offsets = [0, 21], sizes = [8, 400], strides = [1, 1]} : vector<8x622xf32> to vector<8x400xf32>
    %c56_22 = arith.constant 56 : index
    %c0_23 = arith.constant 0 : index
    %30 = vector.load %arg9[%c56_22, %c0_23] : memref<432x400xf32, #tpu.memory_space<vmem>>, vector<8x400xf32>
    tpu.vector_store %arg9[%c56_22, %c0_23], %29 {strides = array<i32>} : memref<432x400xf32, #tpu.memory_space<vmem>>, vector<8x400xf32>,
    %31 = vector.extract_strided_slice %14 {offsets = [0, 22], sizes = [8, 400], strides = [1, 1]} : vector<8x622xf32> to vector<8x400xf32>
    %c64 = arith.constant 64 : index
    %c0_24 = arith.constant 0 : index
    %32 = vector.load %arg9[%c64, %c0_24] : memref<432x400xf32, #tpu.memory_space<vmem>>, vector<8x400xf32>
    tpu.vector_store %arg9[%c64, %c0_24], %31 {strides = array<i32>} : memref<432x400xf32, #tpu.memory_space<vmem>>, vector<8x400xf32>,
    %33 = vector.extract_strided_slice %14 {offsets = [0, 100], sizes = [8, 400], strides = [1, 1]} : vector<8x622xf32> to vector<8x400xf32>
    %c72 = arith.constant 72 : index
    %c0_25 = arith.constant 0 : index
    %34 = vector.load %arg9[%c72, %c0_25] : memref<432x400xf32, #tpu.memory_space<vmem>>, vector<8x400xf32>
    tpu.vector_store %arg9[%c72, %c0_25], %33 {strides = array<i32>} : memref<432x400xf32, #tpu.memory_space<vmem>>, vector<8x400xf32>,
    %35 = vector.extract_strided_slice %14 {offsets = [0, 101], sizes = [8, 400], strides = [1, 1]} : vector<8x622xf32> to vector<8x400xf32>
    %c80 = arith.constant 80 : index
    %c0_26 = arith.constant 0 : index
    %36 = vector.load %arg9[%c80, %c0_26] : memref<432x400xf32, #tpu.memory_space<vmem>>, vector<8x400xf32>
    tpu.vector_store %arg9[%c80, %c0_26], %35 {strides = array<i32>} : memref<432x400xf32, #tpu.memory_space<vmem>>, vector<8x400xf32>,
    %37 = vector.extract_strided_slice %14 {offsets = [0, 102], sizes = [8, 400], strides = [1, 1]} : vector<8x622xf32> to vector<8x400xf32>
    %c88 = arith.constant 88 : index
    %c0_27 = arith.constant 0 : index
    %38 = vector.load %arg9[%c88, %c0_27] : memref<432x400xf32, #tpu.memory_space<vmem>>, vector<8x400xf32>
    tpu.vector_store %arg9[%c88, %c0_27], %37 {strides = array<i32>} : memref<432x400xf32, #tpu.memory_space<vmem>>, vector<8x400xf32>,
    %39 = vector.extract_strided_slice %14 {offsets = [0, 110], sizes = [8, 400], strides = [1, 1]} : vector<8x622xf32> to vector<8x400xf32>
    %c96 = arith.constant 96 : index
    %c0_28 = arith.constant 0 : index
    %40 = vector.load %arg9[%c96, %c0_28] : memref<432x400xf32, #tpu.memory_space<vmem>>, vector<8x400xf32>
    tpu.vector_store %arg9[%c96, %c0_28], %39 {strides = array<i32>} : memref<432x400xf32, #tpu.memory_space<vmem>>, vector<8x400xf32>,
    %41 = vector.extract_strided_slice %14 {offsets = [0, 111], sizes = [8, 400], strides = [1, 1]} : vector<8x622xf32> to vector<8x400xf32>
    %c104 = arith.constant 104 : index
    %c0_29 = arith.constant 0 : index
    %42 = vector.load %arg9[%c104, %c0_29] : memref<432x400xf32, #tpu.memory_space<vmem>>, vector<8x400xf32>
    tpu.vector_store %arg9[%c104, %c0_29], %41 {strides = array<i32>} : memref<432x400xf32, #tpu.memory_space<vmem>>, vector<8x400xf32>,
    %43 = vector.extract_strided_slice %14 {offsets = [0, 112], sizes = [8, 400], strides = [1, 1]} : vector<8x622xf32> to vector<8x400xf32>
    %c112 = arith.constant 112 : index
    %c0_30 = arith.constant 0 : index
    %44 = vector.load %arg9[%c112, %c0_30] : memref<432x400xf32, #tpu.memory_space<vmem>>, vector<8x400xf32>
    tpu.vector_store %arg9[%c112, %c0_30], %43 {strides = array<i32>} : memref<432x400xf32, #tpu.memory_space<vmem>>, vector<8x400xf32>,
    %45 = vector.extract_strided_slice %14 {offsets = [0, 120], sizes = [8, 400], strides = [1, 1]} : vector<8x622xf32> to vector<8x400xf32>
    %c120 = arith.constant 120 : index
    %c0_31 = arith.constant 0 : index
    %46 = vector.load %arg9[%c120, %c0_31] : memref<432x400xf32, #tpu.memory_space<vmem>>, vector<8x400xf32>
    tpu.vector_store %arg9[%c120, %c0_31], %45 {strides = array<i32>} : memref<432x400xf32, #tpu.memory_space<vmem>>, vector<8x400xf32>,
    %47 = vector.extract_strided_slice %14 {offsets = [0, 121], sizes = [8, 400], strides = [1, 1]} : vector<8x622xf32> to vector<8x400xf32>
    %c128 = arith.constant 128 : index
    %c0_32 = arith.constant 0 : index
    %48 = vector.load %arg9[%c128, %c0_32] : memref<432x400xf32, #tpu.memory_space<vmem>>, vector<8x400xf32>
    tpu.vector_store %arg9[%c128, %c0_32], %47 {strides = array<i32>} : memref<432x400xf32, #tpu.memory_space<vmem>>, vector<8x400xf32>,
    %49 = vector.extract_strided_slice %14 {offsets = [0, 122], sizes = [8, 400], strides = [1, 1]} : vector<8x622xf32> to vector<8x400xf32>
    %c136 = arith.constant 136 : index
    %c0_33 = arith.constant 0 : index
    %50 = vector.load %arg9[%c136, %c0_33] : memref<432x400xf32, #tpu.memory_space<vmem>>, vector<8x400xf32>
    tpu.vector_store %arg9[%c136, %c0_33], %49 {strides = array<i32>} : memref<432x400xf32, #tpu.memory_space<vmem>>, vector<8x400xf32>,
    %51 = vector.extract_strided_slice %14 {offsets = [0, 200], sizes = [8, 400], strides = [1, 1]} : vector<8x622xf32> to vector<8x400xf32>
    %c144 = arith.constant 144 : index
    %c0_34 = arith.constant 0 : index
    %52 = vector.load %arg9[%c144, %c0_34] : memref<432x400xf32, #tpu.memory_space<vmem>>, vector<8x400xf32>
    tpu.vector_store %arg9[%c144, %c0_34], %51 {strides = array<i32>} : memref<432x400xf32, #tpu.memory_space<vmem>>, vector<8x400xf32>,
    %53 = vector.extract_strided_slice %14 {offsets = [0, 201], sizes = [8, 400], strides = [1, 1]} : vector<8x622xf32> to vector<8x400xf32>
    %c152 = arith.constant 152 : index
    %c0_35 = arith.constant 0 : index
    %54 = vector.load %arg9[%c152, %c0_35] : memref<432x400xf32, #tpu.memory_space<vmem>>, vector<8x400xf32>
    tpu.vector_store %arg9[%c152, %c0_35], %53 {strides = array<i32>} : memref<432x400xf32, #tpu.memory_space<vmem>>, vector<8x400xf32>,
    %55 = vector.extract_strided_slice %14 {offsets = [0, 202], sizes = [8, 400], strides = [1, 1]} : vector<8x622xf32> to vector<8x400xf32>
    %c160 = arith.constant 160 : index
    %c0_36 = arith.constant 0 : index
    %56 = vector.load %arg9[%c160, %c0_36] : memref<432x400xf32, #tpu.memory_space<vmem>>, vector<8x400xf32>
    tpu.vector_store %arg9[%c160, %c0_36], %55 {strides = array<i32>} : memref<432x400xf32, #tpu.memory_space<vmem>>, vector<8x400xf32>,
    %57 = vector.extract_strided_slice %14 {offsets = [0, 210], sizes = [8, 400], strides = [1, 1]} : vector<8x622xf32> to vector<8x400xf32>
    %c168 = arith.constant 168 : index
    %c0_37 = arith.constant 0 : index
    %58 = vector.load %arg9[%c168, %c0_37] : memref<432x400xf32, #tpu.memory_space<vmem>>, vector<8x400xf32>
    tpu.vector_store %arg9[%c168, %c0_37], %57 {strides = array<i32>} : memref<432x400xf32, #tpu.memory_space<vmem>>, vector<8x400xf32>,
    %59 = vector.extract_strided_slice %14 {offsets = [0, 211], sizes = [8, 400], strides = [1, 1]} : vector<8x622xf32> to vector<8x400xf32>
    %c176 = arith.constant 176 : index
    %c0_38 = arith.constant 0 : index
    %60 = vector.load %arg9[%c176, %c0_38] : memref<432x400xf32, #tpu.memory_space<vmem>>, vector<8x400xf32>
    tpu.vector_store %arg9[%c176, %c0_38], %59 {strides = array<i32>} : memref<432x400xf32, #tpu.memory_space<vmem>>, vector<8x400xf32>,
    %61 = vector.extract_strided_slice %14 {offsets = [0, 212], sizes = [8, 400], strides = [1, 1]} : vector<8x622xf32> to vector<8x400xf32>
    %c184 = arith.constant 184 : index
    %c0_39 = arith.constant 0 : index
    %62 = vector.load %arg9[%c184, %c0_39] : memref<432x400xf32, #tpu.memory_space<vmem>>, vector<8x400xf32>
    tpu.vector_store %arg9[%c184, %c0_39], %61 {strides = array<i32>} : memref<432x400xf32, #tpu.memory_space<vmem>>, vector<8x400xf32>,
    %63 = vector.extract_strided_slice %14 {offsets = [0, 220], sizes = [8, 400], strides = [1, 1]} : vector<8x622xf32> to vector<8x400xf32>
    %c192 = arith.constant 192 : index
    %c0_40 = arith.constant 0 : index
    %64 = vector.load %arg9[%c192, %c0_40] : memref<432x400xf32, #tpu.memory_space<vmem>>, vector<8x400xf32>
    tpu.vector_store %arg9[%c192, %c0_40], %63 {strides = array<i32>} : memref<432x400xf32, #tpu.memory_space<vmem>>, vector<8x400xf32>,
    %65 = vector.extract_strided_slice %14 {offsets = [0, 221], sizes = [8, 400], strides = [1, 1]} : vector<8x622xf32> to vector<8x400xf32>
    %c200 = arith.constant 200 : index
    %c0_41 = arith.constant 0 : index
    %66 = vector.load %arg9[%c200, %c0_41] : memref<432x400xf32, #tpu.memory_space<vmem>>, vector<8x400xf32>
    tpu.vector_store %arg9[%c200, %c0_41], %65 {strides = array<i32>} : memref<432x400xf32, #tpu.memory_space<vmem>>, vector<8x400xf32>,
    %67 = vector.extract_strided_slice %14 {offsets = [0, 222], sizes = [8, 400], strides = [1, 1]} : vector<8x622xf32> to vector<8x400xf32>
    %c208 = arith.constant 208 : index
    %c0_42 = arith.constant 0 : index
    %68 = vector.load %arg9[%c208, %c0_42] : memref<432x400xf32, #tpu.memory_space<vmem>>, vector<8x400xf32>
    tpu.vector_store %arg9[%c208, %c0_42], %67 {strides = array<i32>} : memref<432x400xf32, #tpu.memory_space<vmem>>, vector<8x400xf32>,
    %c0_43 = arith.constant 0 : index
    %c0_44 = arith.constant 0 : index
    %69 = vector.load %arg2[%c0_43, %c0_44] : memref<16x216xf32, #tpu.memory_space<vmem>>, vector<16x216xf32>
    %c0_45 = arith.constant 0 : index
    %c0_46 = arith.constant 0 : index
    %70 = vector.load %arg9[%c0_45, %c0_46] : memref<432x400xf32, #tpu.memory_space<vmem>>, vector<216x400xf32>
    %cst = arith.constant dense<0.000000e+00> : vector<16x400xf32>
    %71 = tpu.matmul %69, %70, %cst {dimension_numbers = #tpu.dot_dimension_numbers<[1], [0], [0], [1], [0, 0, 1, 1], [], []>} : vector<16x216xf32>, vector<216x400xf32>, vector<16x400xf32> -> vector<16x400xf32>
    %c0_47 = arith.constant 0 : index
    %c0_48 = arith.constant 0 : index
    %72 = vector.load %arg3[%c0_47, %c0_48] : memref<16x1xf32, #tpu.memory_space<vmem>>, vector<16x1xf32>
    %73 = vector.broadcast %72 : vector<16x1xf32> to vector<16x400xf32>
    %74 = arith.addf %71, %73 : vector<16x400xf32>
    %cst_49 = arith.constant 0.000000e+00 : f32
    %75 = vector.broadcast %cst_49 : f32 to vector<16x400xf32>
    %76 = arith.maximumf %74, %75 : vector<16x400xf32>
    %c0_50 = arith.constant 0 : index
    %c0_51 = arith.constant 0 : index
    %77 = vector.load %arg6[%c0_50, %c0_51] : memref<1x400xf32, #tpu.memory_space<vmem>>, vector<1x400xf32>
    %78 = vector.broadcast %77 : vector<1x400xf32> to vector<16x400xf32>
    %79 = arith.mulf %76, %78 : vector<16x400xf32>
    %cst_52 = arith.constant 0.000000e+00 : f32
    %80 = vector.broadcast %cst_52 : f32 to vector<16x622xf32>
    %c0_53 = arith.constant 0 : index
    %c0_54 = arith.constant 0 : index
    %81 = vector.load %arg8[%c0_53, %c0_54] : memref<16x622xf32, #tpu.memory_space<vmem>>, vector<16x622xf32>
    tpu.vector_store %arg8[%c0_53, %c0_54], %80 {strides = array<i32>} : memref<16x622xf32, #tpu.memory_space<vmem>>, vector<16x622xf32>,
    %c0_55 = arith.constant 0 : index
    %c111 = arith.constant 111 : index
    %82 = vector.load %arg8[%c0_55, %c111] : memref<16x622xf32, #tpu.memory_space<vmem>>, vector<16x400xf32>
    tpu.vector_store %arg8[%c0_55, %c111], %79 {strides = array<i32>} : memref<16x622xf32, #tpu.memory_space<vmem>>, vector<16x400xf32>,
    %c0_56 = arith.constant 0 : index
    %c0_57 = arith.constant 0 : index
    %83 = vector.load %arg8[%c0_56, %c0_57] : memref<16x622xf32, #tpu.memory_space<vmem>>, vector<16x400xf32>
    %c0_58 = arith.constant 0 : index
    %c0_59 = arith.constant 0 : index
    %84 = vector.load %arg9[%c0_58, %c0_59] : memref<432x400xf32, #tpu.memory_space<vmem>>, vector<16x400xf32>
    tpu.vector_store %arg9[%c0_58, %c0_59], %83 {strides = array<i32>} : memref<432x400xf32, #tpu.memory_space<vmem>>, vector<16x400xf32>,
    %c0_60 = arith.constant 0 : index
    %c1 = arith.constant 1 : index
    %85 = vector.load %arg8[%c0_60, %c1] : memref<16x622xf32, #tpu.memory_space<vmem>>, vector<16x400xf32>
    %c16_61 = arith.constant 16 : index
    %c0_62 = arith.constant 0 : index
    %86 = vector.load %arg9[%c16_61, %c0_62] : memref<432x400xf32, #tpu.memory_space<vmem>>, vector<16x400xf32>
    tpu.vector_store %arg9[%c16_61, %c0_62], %85 {strides = array<i32>} : memref<432x400xf32, #tpu.memory_space<vmem>>, vector<16x400xf32>,
    %c0_63 = arith.constant 0 : index
    %c2 = arith.constant 2 : index
    %87 = vector.load %arg8[%c0_63, %c2] : memref<16x622xf32, #tpu.memory_space<vmem>>, vector<16x400xf32>
    %c32_64 = arith.constant 32 : index
    %c0_65 = arith.constant 0 : index
    %88 = vector.load %arg9[%c32_64, %c0_65] : memref<432x400xf32, #tpu.memory_space<vmem>>, vector<16x400xf32>
    tpu.vector_store %arg9[%c32_64, %c0_65], %87 {strides = array<i32>} : memref<432x400xf32, #tpu.memory_space<vmem>>, vector<16x400xf32>,
    %c0_66 = arith.constant 0 : index
    %c10 = arith.constant 10 : index
    %89 = vector.load %arg8[%c0_66, %c10] : memref<16x622xf32, #tpu.memory_space<vmem>>, vector<16x400xf32>
    %c48_67 = arith.constant 48 : index
    %c0_68 = arith.constant 0 : index
    %90 = vector.load %arg9[%c48_67, %c0_68] : memref<432x400xf32, #tpu.memory_space<vmem>>, vector<16x400xf32>
    tpu.vector_store %arg9[%c48_67, %c0_68], %89 {strides = array<i32>} : memref<432x400xf32, #tpu.memory_space<vmem>>, vector<16x400xf32>,
    %c0_69 = arith.constant 0 : index
    %c11 = arith.constant 11 : index
    %91 = vector.load %arg8[%c0_69, %c11] : memref<16x622xf32, #tpu.memory_space<vmem>>, vector<16x400xf32>
    %c64_70 = arith.constant 64 : index
    %c0_71 = arith.constant 0 : index
    %92 = vector.load %arg9[%c64_70, %c0_71] : memref<432x400xf32, #tpu.memory_space<vmem>>, vector<16x400xf32>
    tpu.vector_store %arg9[%c64_70, %c0_71], %91 {strides = array<i32>} : memref<432x400xf32, #tpu.memory_space<vmem>>, vector<16x400xf32>,
    %c0_72 = arith.constant 0 : index
    %c12 = arith.constant 12 : index
    %93 = vector.load %arg8[%c0_72, %c12] : memref<16x622xf32, #tpu.memory_space<vmem>>, vector<16x400xf32>
    %c80_73 = arith.constant 80 : index
    %c0_74 = arith.constant 0 : index
    %94 = vector.load %arg9[%c80_73, %c0_74] : memref<432x400xf32, #tpu.memory_space<vmem>>, vector<16x400xf32>
    tpu.vector_store %arg9[%c80_73, %c0_74], %93 {strides = array<i32>} : memref<432x400xf32, #tpu.memory_space<vmem>>, vector<16x400xf32>,
    %c0_75 = arith.constant 0 : index
    %c20 = arith.constant 20 : index
    %95 = vector.load %arg8[%c0_75, %c20] : memref<16x622xf32, #tpu.memory_space<vmem>>, vector<16x400xf32>
    %c96_76 = arith.constant 96 : index
    %c0_77 = arith.constant 0 : index
    %96 = vector.load %arg9[%c96_76, %c0_77] : memref<432x400xf32, #tpu.memory_space<vmem>>, vector<16x400xf32>
    tpu.vector_store %arg9[%c96_76, %c0_77], %95 {strides = array<i32>} : memref<432x400xf32, #tpu.memory_space<vmem>>, vector<16x400xf32>,
    %c0_78 = arith.constant 0 : index
    %c21 = arith.constant 21 : index
    %97 = vector.load %arg8[%c0_78, %c21] : memref<16x622xf32, #tpu.memory_space<vmem>>, vector<16x400xf32>
    %c112_79 = arith.constant 112 : index
    %c0_80 = arith.constant 0 : index
    %98 = vector.load %arg9[%c112_79, %c0_80] : memref<432x400xf32, #tpu.memory_space<vmem>>, vector<16x400xf32>
    tpu.vector_store %arg9[%c112_79, %c0_80], %97 {strides = array<i32>} : memref<432x400xf32, #tpu.memory_space<vmem>>, vector<16x400xf32>,
    %c0_81 = arith.constant 0 : index
    %c22 = arith.constant 22 : index
    %99 = vector.load %arg8[%c0_81, %c22] : memref<16x622xf32, #tpu.memory_space<vmem>>, vector<16x400xf32>
    %c128_82 = arith.constant 128 : index
    %c0_83 = arith.constant 0 : index
    %100 = vector.load %arg9[%c128_82, %c0_83] : memref<432x400xf32, #tpu.memory_space<vmem>>, vector<16x400xf32>
    tpu.vector_store %arg9[%c128_82, %c0_83], %99 {strides = array<i32>} : memref<432x400xf32, #tpu.memory_space<vmem>>, vector<16x400xf32>,
    %c0_84 = arith.constant 0 : index
    %c100 = arith.constant 100 : index
    %101 = vector.load %arg8[%c0_84, %c100] : memref<16x622xf32, #tpu.memory_space<vmem>>, vector<16x400xf32>
    %c144_85 = arith.constant 144 : index
    %c0_86 = arith.constant 0 : index
    %102 = vector.load %arg9[%c144_85, %c0_86] : memref<432x400xf32, #tpu.memory_space<vmem>>, vector<16x400xf32>
    tpu.vector_store %arg9[%c144_85, %c0_86], %101 {strides = array<i32>} : memref<432x400xf32, #tpu.memory_space<vmem>>, vector<16x400xf32>,
    %c0_87 = arith.constant 0 : index
    %c101 = arith.constant 101 : index
    %103 = vector.load %arg8[%c0_87, %c101] : memref<16x622xf32, #tpu.memory_space<vmem>>, vector<16x400xf32>
    %c160_88 = arith.constant 160 : index
    %c0_89 = arith.constant 0 : index
    %104 = vector.load %arg9[%c160_88, %c0_89] : memref<432x400xf32, #tpu.memory_space<vmem>>, vector<16x400xf32>
    tpu.vector_store %arg9[%c160_88, %c0_89], %103 {strides = array<i32>} : memref<432x400xf32, #tpu.memory_space<vmem>>, vector<16x400xf32>,
    %c0_90 = arith.constant 0 : index
    %c102 = arith.constant 102 : index
    %105 = vector.load %arg8[%c0_90, %c102] : memref<16x622xf32, #tpu.memory_space<vmem>>, vector<16x400xf32>
    %c176_91 = arith.constant 176 : index
    %c0_92 = arith.constant 0 : index
    %106 = vector.load %arg9[%c176_91, %c0_92] : memref<432x400xf32, #tpu.memory_space<vmem>>, vector<16x400xf32>
    tpu.vector_store %arg9[%c176_91, %c0_92], %105 {strides = array<i32>} : memref<432x400xf32, #tpu.memory_space<vmem>>, vector<16x400xf32>,
    %c0_93 = arith.constant 0 : index
    %c110 = arith.constant 110 : index
    %107 = vector.load %arg8[%c0_93, %c110] : memref<16x622xf32, #tpu.memory_space<vmem>>, vector<16x400xf32>
    %c192_94 = arith.constant 192 : index
    %c0_95 = arith.constant 0 : index
    %108 = vector.load %arg9[%c192_94, %c0_95] : memref<432x400xf32, #tpu.memory_space<vmem>>, vector<16x400xf32>
    tpu.vector_store %arg9[%c192_94, %c0_95], %107 {strides = array<i32>} : memref<432x400xf32, #tpu.memory_space<vmem>>, vector<16x400xf32>,
    %c0_96 = arith.constant 0 : index
    %c111_97 = arith.constant 111 : index
    %109 = vector.load %arg8[%c0_96, %c111_97] : memref<16x622xf32, #tpu.memory_space<vmem>>, vector<16x400xf32>
    %c208_98 = arith.constant 208 : index
    %c0_99 = arith.constant 0 : index
    %110 = vector.load %arg9[%c208_98, %c0_99] : memref<432x400xf32, #tpu.memory_space<vmem>>, vector<16x400xf32>
    tpu.vector_store %arg9[%c208_98, %c0_99], %109 {strides = array<i32>} : memref<432x400xf32, #tpu.memory_space<vmem>>, vector<16x400xf32>,
    %c0_100 = arith.constant 0 : index
    %c112_101 = arith.constant 112 : index
    %111 = vector.load %arg8[%c0_100, %c112_101] : memref<16x622xf32, #tpu.memory_space<vmem>>, vector<16x400xf32>
    %c224 = arith.constant 224 : index
    %c0_102 = arith.constant 0 : index
    %112 = vector.load %arg9[%c224, %c0_102] : memref<432x400xf32, #tpu.memory_space<vmem>>, vector<16x400xf32>
    tpu.vector_store %arg9[%c224, %c0_102], %111 {strides = array<i32>} : memref<432x400xf32, #tpu.memory_space<vmem>>, vector<16x400xf32>,
    %c0_103 = arith.constant 0 : index
    %c120_104 = arith.constant 120 : index
    %113 = vector.load %arg8[%c0_103, %c120_104] : memref<16x622xf32, #tpu.memory_space<vmem>>, vector<16x400xf32>
    %c240 = arith.constant 240 : index
    %c0_105 = arith.constant 0 : index
    %114 = vector.load %arg9[%c240, %c0_105] : memref<432x400xf32, #tpu.memory_space<vmem>>, vector<16x400xf32>
    tpu.vector_store %arg9[%c240, %c0_105], %113 {strides = array<i32>} : memref<432x400xf32, #tpu.memory_space<vmem>>, vector<16x400xf32>,
    %c0_106 = arith.constant 0 : index
    %c121 = arith.constant 121 : index
    %115 = vector.load %arg8[%c0_106, %c121] : memref<16x622xf32, #tpu.memory_space<vmem>>, vector<16x400xf32>
    %c256 = arith.constant 256 : index
    %c0_107 = arith.constant 0 : index
    %116 = vector.load %arg9[%c256, %c0_107] : memref<432x400xf32, #tpu.memory_space<vmem>>, vector<16x400xf32>
    tpu.vector_store %arg9[%c256, %c0_107], %115 {strides = array<i32>} : memref<432x400xf32, #tpu.memory_space<vmem>>, vector<16x400xf32>,
    %c0_108 = arith.constant 0 : index
    %c122 = arith.constant 122 : index
    %117 = vector.load %arg8[%c0_108, %c122] : memref<16x622xf32, #tpu.memory_space<vmem>>, vector<16x400xf32>
    %c272 = arith.constant 272 : index
    %c0_109 = arith.constant 0 : index
    %118 = vector.load %arg9[%c272, %c0_109] : memref<432x400xf32, #tpu.memory_space<vmem>>, vector<16x400xf32>
    tpu.vector_store %arg9[%c272, %c0_109], %117 {strides = array<i32>} : memref<432x400xf32, #tpu.memory_space<vmem>>, vector<16x400xf32>,
    %c0_110 = arith.constant 0 : index
    %c200_111 = arith.constant 200 : index
    %119 = vector.load %arg8[%c0_110, %c200_111] : memref<16x622xf32, #tpu.memory_space<vmem>>, vector<16x400xf32>
    %c288 = arith.constant 288 : index
    %c0_112 = arith.constant 0 : index
    %120 = vector.load %arg9[%c288, %c0_112] : memref<432x400xf32, #tpu.memory_space<vmem>>, vector<16x400xf32>
    tpu.vector_store %arg9[%c288, %c0_112], %119 {strides = array<i32>} : memref<432x400xf32, #tpu.memory_space<vmem>>, vector<16x400xf32>,
    %c0_113 = arith.constant 0 : index
    %c201 = arith.constant 201 : index
    %121 = vector.load %arg8[%c0_113, %c201] : memref<16x622xf32, #tpu.memory_space<vmem>>, vector<16x400xf32>
    %c304 = arith.constant 304 : index
    %c0_114 = arith.constant 0 : index
    %122 = vector.load %arg9[%c304, %c0_114] : memref<432x400xf32, #tpu.memory_space<vmem>>, vector<16x400xf32>
    tpu.vector_store %arg9[%c304, %c0_114], %121 {strides = array<i32>} : memref<432x400xf32, #tpu.memory_space<vmem>>, vector<16x400xf32>,
    %c0_115 = arith.constant 0 : index
    %c202 = arith.constant 202 : index
    %123 = vector.load %arg8[%c0_115, %c202] : memref<16x622xf32, #tpu.memory_space<vmem>>, vector<16x400xf32>
    %c320 = arith.constant 320 : index
    %c0_116 = arith.constant 0 : index
    %124 = vector.load %arg9[%c320, %c0_116] : memref<432x400xf32, #tpu.memory_space<vmem>>, vector<16x400xf32>
    tpu.vector_store %arg9[%c320, %c0_116], %123 {strides = array<i32>} : memref<432x400xf32, #tpu.memory_space<vmem>>, vector<16x400xf32>,
    %c0_117 = arith.constant 0 : index
    %c210 = arith.constant 210 : index
    %125 = vector.load %arg8[%c0_117, %c210] : memref<16x622xf32, #tpu.memory_space<vmem>>, vector<16x400xf32>
    %c336 = arith.constant 336 : index
    %c0_118 = arith.constant 0 : index
    %126 = vector.load %arg9[%c336, %c0_118] : memref<432x400xf32, #tpu.memory_space<vmem>>, vector<16x400xf32>
    tpu.vector_store %arg9[%c336, %c0_118], %125 {strides = array<i32>} : memref<432x400xf32, #tpu.memory_space<vmem>>, vector<16x400xf32>,
    %c0_119 = arith.constant 0 : index
    %c211 = arith.constant 211 : index
    %127 = vector.load %arg8[%c0_119, %c211] : memref<16x622xf32, #tpu.memory_space<vmem>>, vector<16x400xf32>
    %c352 = arith.constant 352 : index
    %c0_120 = arith.constant 0 : index
    %128 = vector.load %arg9[%c352, %c0_120] : memref<432x400xf32, #tpu.memory_space<vmem>>, vector<16x400xf32>
    tpu.vector_store %arg9[%c352, %c0_120], %127 {strides = array<i32>} : memref<432x400xf32, #tpu.memory_space<vmem>>, vector<16x400xf32>,
    %c0_121 = arith.constant 0 : index
    %c212 = arith.constant 212 : index
    %129 = vector.load %arg8[%c0_121, %c212] : memref<16x622xf32, #tpu.memory_space<vmem>>, vector<16x400xf32>
    %c368 = arith.constant 368 : index
    %c0_122 = arith.constant 0 : index
    %130 = vector.load %arg9[%c368, %c0_122] : memref<432x400xf32, #tpu.memory_space<vmem>>, vector<16x400xf32>
    tpu.vector_store %arg9[%c368, %c0_122], %129 {strides = array<i32>} : memref<432x400xf32, #tpu.memory_space<vmem>>, vector<16x400xf32>,
    %c0_123 = arith.constant 0 : index
    %c220 = arith.constant 220 : index
    %131 = vector.load %arg8[%c0_123, %c220] : memref<16x622xf32, #tpu.memory_space<vmem>>, vector<16x400xf32>
    %c384 = arith.constant 384 : index
    %c0_124 = arith.constant 0 : index
    %132 = vector.load %arg9[%c384, %c0_124] : memref<432x400xf32, #tpu.memory_space<vmem>>, vector<16x400xf32>
    tpu.vector_store %arg9[%c384, %c0_124], %131 {strides = array<i32>} : memref<432x400xf32, #tpu.memory_space<vmem>>, vector<16x400xf32>,
    %c0_125 = arith.constant 0 : index
    %c221 = arith.constant 221 : index
    %133 = vector.load %arg8[%c0_125, %c221] : memref<16x622xf32, #tpu.memory_space<vmem>>, vector<16x400xf32>
    %c400 = arith.constant 400 : index
    %c0_126 = arith.constant 0 : index
    %134 = vector.load %arg9[%c400, %c0_126] : memref<432x400xf32, #tpu.memory_space<vmem>>, vector<16x400xf32>
    tpu.vector_store %arg9[%c400, %c0_126], %133 {strides = array<i32>} : memref<432x400xf32, #tpu.memory_space<vmem>>, vector<16x400xf32>,
    %c0_127 = arith.constant 0 : index
    %c222 = arith.constant 222 : index
    %135 = vector.load %arg8[%c0_127, %c222] : memref<16x622xf32, #tpu.memory_space<vmem>>, vector<16x400xf32>
    %c416 = arith.constant 416 : index
    %c0_128 = arith.constant 0 : index
    %136 = vector.load %arg9[%c416, %c0_128] : memref<432x400xf32, #tpu.memory_space<vmem>>, vector<16x400xf32>
    tpu.vector_store %arg9[%c416, %c0_128], %135 {strides = array<i32>} : memref<432x400xf32, #tpu.memory_space<vmem>>, vector<16x400xf32>,
    %c0_129 = arith.constant 0 : index
    %c0_130 = arith.constant 0 : index
    %137 = vector.load %arg4[%c0_129, %c0_130] : memref<16x432xf32, #tpu.memory_space<vmem>>, vector<16x432xf32>
    %c0_131 = arith.constant 0 : index
    %c0_132 = arith.constant 0 : index
    %138 = vector.load %arg9[%c0_131, %c0_132] : memref<432x400xf32, #tpu.memory_space<vmem>>, vector<432x400xf32>
    %cst_133 = arith.constant dense<0.000000e+00> : vector<16x400xf32>
    %139 = tpu.matmul %137, %138, %cst_133 {dimension_numbers = #tpu.dot_dimension_numbers<[1], [0], [0], [1], [0, 0, 1, 1], [], []>} : vector<16x432xf32>, vector<432x400xf32>, vector<16x400xf32> -> vector<16x400xf32>
    %c0_134 = arith.constant 0 : index
    %c0_135 = arith.constant 0 : index
    %140 = vector.load %arg5[%c0_134, %c0_135] : memref<16x1xf32, #tpu.memory_space<vmem>>, vector<16x1xf32>
    %141 = vector.broadcast %140 : vector<16x1xf32> to vector<16x400xf32>
    %142 = arith.addf %139, %141 : vector<16x400xf32>
    %cst_136 = arith.constant 0.000000e+00 : f32
    %143 = vector.broadcast %cst_136 : f32 to vector<16x400xf32>
    %144 = arith.maximumf %142, %143 : vector<16x400xf32>
    %c0_137 = arith.constant 0 : index
    %c0_138 = arith.constant 0 : index
    %145 = vector.load %arg7[%c0_137, %c0_138] : memref<16x400xf32, #tpu.memory_space<vmem>>, vector<16x400xf32>
    tpu.vector_store %arg7[%c0_137, %c0_138], %144 {strides = array<i32>} : memref<16x400xf32, #tpu.memory_space<vmem>>, vector<16x400xf32>,
    return
  }
  func.func @transform_0(%arg0: i32) -> (i32, i32) {
    %c0_i32 = arith.constant 0 : i32
    %c0_i32_0 = arith.constant 0 : i32
    %c0_i32_1 = arith.constant 0 : i32
    return %c0_i32, %c0_i32_0 : i32, i32
  }
  func.func @transform_1(%arg0: i32) -> (i32, i32) {
    %c0_i32 = arith.constant 0 : i32
    %c0_i32_0 = arith.constant 0 : i32
    %c0_i32_1 = arith.constant 0 : i32
    return %c0_i32, %c0_i32_0 : i32, i32
  }
  func.func @transform_2(%arg0: i32) -> (i32, i32) {
    %c0_i32 = arith.constant 0 : i32
    %c0_i32_0 = arith.constant 0 : i32
    %c0_i32_1 = arith.constant 0 : i32
    return %c0_i32, %c0_i32_0 : i32, i32
  }
  func.func @transform_3(%arg0: i32) -> (i32, i32) {
    %c0_i32 = arith.constant 0 : i32
    %c0_i32_0 = arith.constant 0 : i32
    %c0_i32_1 = arith.constant 0 : i32
    return %c0_i32, %c0_i32_0 : i32, i32
  }
  func.func @transform_4(%arg0: i32) -> (i32, i32) {
    %c0_i32 = arith.constant 0 : i32
    %c0_i32_0 = arith.constant 0 : i32
    %c0_i32_1 = arith.constant 0 : i32
    return %c0_i32, %c0_i32_0 : i32, i32
  }
  func.func @transform_5(%arg0: i32) -> (i32, i32) {
    %c0_i32 = arith.constant 0 : i32
    %c0_i32_0 = arith.constant 0 : i32
    %c0_i32_1 = arith.constant 0 : i32
    return %c0_i32, %c0_i32_0 : i32, i32
  }
  func.func @transform_6(%arg0: i32) -> (i32, i32) {
    %c0_i32 = arith.constant 0 : i32
    %c0_i32_0 = arith.constant 0 : i32
    %c0_i32_1 = arith.constant 0 : i32
    return %c0_i32, %c0_i32_0 : i32, i32
  }
}

</mosaic_0001>

<llo_original>
// kernel: intermediate_output_forward.2
$region0: #{intermediate_output_forward.2}
  #allocation0 [shape = 'u32[]', space=smem, size = 0x4, offset = 0x4, fixed_abs, tag = 'smem constant byte address 0x4 - core index']
  #allocation1 [shape = 'u32[144,128]{1,0:T(1,128)}', space=vmem, size = 0x12000, scoped, tag = 'internal scratch']
  #allocation2 [shape = 'f32[8,3278]{1,0:T(8,128)}', space=vmem, size = 0x1a000, scoped, tag = 'scratch operand']
  #allocation3 [shape = 'f32[216,2592]{1,0:T(8,128)}', space=vmem, size = 0x237000, scoped, tag = 'scratch operand']
  %s0 = inlined_call_operand.vmem [shape: f32[1,3278], index: 0, kind: input, shape index: {}]
  %s1 = inlined_call_operand.vmem [shape: f32[8,27], index: 1, kind: input, shape index: {}]
  %s2 = inlined_call_operand.vmem [shape: f32[8,1], index: 2, kind: input, shape index: {}]
  %s3 = inlined_call_operand.vmem [shape: f32[8,216], index: 3, kind: input, shape index: {}]
  %s4 = inlined_call_operand.vmem [shape: f32[8,1], index: 4, kind: input, shape index: {}]
  %s5 = inlined_call_operand.hbm [shape: f32[1,2592], index: 5, kind: input, shape index: {}]
  %s6 = inlined_call_operand.vmem [shape: f32[8,2592], index: 6, kind: output, shape index: {}]
  %s7 = sld [smem:[#allocation0]]
  $region38: #{intermediate_output_forward.2} parent=0
    _
  %s9 = ssub.s32 1, %s7
  %s10 = scalar_select 0, %s9, %s7
  $region1: #{intermediate_output_forward.2} parent=0
    #allocation4 [shape = 'u8[10752]{0}', space=vmem, size = 0x2c00, scoped, tag = 'input window, operand 5, single buffered']
    #allocation5 [shape = 's32[1]{0}', space=sflag, size = 0x4, scoped, tag = 'scoped memory for intermediate_output_forward.2']
    %11 = vsyncpa [#allocation5], 0
    // Predicated region
    $region2: #{intermediate_output_forward.2} parent=1 // pred_check
      _
    $region3: #{intermediate_output_forward.2} parent=1 // pred_check_branch
      %13 = sbr.rel (0) target = $region5
    $region4: #{intermediate_output_forward.2} parent=1 // pred_region
      _
    $region5: #{intermediate_output_forward.2} parent=1 // pred_fallthru
      _
    // Predicated region
    $region6: #{intermediate_output_forward.2} parent=1 // pred_check
      _
    $region7: #{intermediate_output_forward.2} parent=1 // pred_check_branch
      %15 = sbr.rel (0) target = $region9
    $region8: #{intermediate_output_forward.2} parent=1 // pred_region
      _
    $region9: #{intermediate_output_forward.2} parent=1 // pred_fallthru
      _
    // Predicated region
    $region10: #{intermediate_output_forward.2} parent=1 // pred_check
      _
    $region11: #{intermediate_output_forward.2} parent=1 // pred_check_branch
      %17 = sbr.rel (0) target = $region13
    $region12: #{intermediate_output_forward.2} parent=1 // pred_region
      _
    $region13: #{intermediate_output_forward.2} parent=1 // pred_fallthru
      _
    // Predicated region
    $region14: #{intermediate_output_forward.2} parent=1 // pred_check
      _
    $region15: #{intermediate_output_forward.2} parent=1 // pred_check_branch
      %19 = sbr.rel (0) target = $region17
    $region16: #{intermediate_output_forward.2} parent=1 // pred_region
      _
    $region17: #{intermediate_output_forward.2} parent=1 // pred_fallthru
      _
    // Predicated region
    $region18: #{intermediate_output_forward.2} parent=1 // pred_check
      _
    $region19: #{intermediate_output_forward.2} parent=1 // pred_check_branch
      %21 = sbr.rel (0) target = $region21
    $region20: #{intermediate_output_forward.2} parent=1 // pred_region
      _
    $region21: #{intermediate_output_forward.2} parent=1 // pred_fallthru
      _
    // Predicated region
    $region22: #{intermediate_output_forward.2} parent=1 // pred_check
      _
    $region23: #{intermediate_output_forward.2} parent=1 // pred_check_branch
      %23 = sbr.rel (0) target = $region25
    $region24: #{intermediate_output_forward.2} parent=1 // pred_region
      %s25 = ssub.s32 336, 336
      %26 = vsyncadd [#allocation5], %s25
      %s28 = sshll.u32 [#allocation4], 4
      %s29 = int_to_ptr.vmem [resolvable:$true] %s28
      %31 = dma.hbm_to_vmem [thread:$0]  %s5, 336, %s29, [#allocation5]
    $region25: #{intermediate_output_forward.2} parent=1 // pred_fallthru
      _
    // Predicated region
    $region26: #{intermediate_output_forward.2} parent=1 // pred_check
      _
    $region27: #{intermediate_output_forward.2} parent=1 // pred_check_branch
      %33 = sbr.rel (0) target = $region29
    $region28: #{intermediate_output_forward.2} parent=1 // pred_region
      %34 = dma.done [#allocation5], 336
    $region29: #{intermediate_output_forward.2} parent=1 // pred_fallthru
      _
    %v35 = vld [vmem:[%s0] sm:$0xff]
    %v36 = vld [vmem:[%s0 + $0x8] sm:$0xff]
    %v37 = vld [vmem:[%s0 + $0x10] sm:$0xff]
    %v38 = vld [vmem:[%s0 + $0x18] sm:$0x3]
    %39 = vst [vmem:[#allocation3] ss:$8 sm:$0xf] %v35
    %40 = vst [vmem:[#allocation3] ss:$8 sm:$0xf0] %v35
    %s41 = scalar_lea.vmem [#allocation3], 64
    %42 = vst [vmem:[%s41] ss:$8 sm:$0xf] %v36
    %43 = vst [vmem:[%s41] ss:$8 sm:$0xf0] %v36
    %v44 = vlaneseq
    %vm45 = vcmp.ge.s32.totalorder %v44, 0
    %vm46 = vcmp.lt.s32.totalorder %v44, 544
    %vm47 = vmand %vm45, %vm46
    %s48 = scalar_lea.vmem [#allocation3], 128
    %49 = vst.msk [vmem:[%s48] ss:$8 sm:$0xf] %vm47, %v37
    %50 = vst.msk [vmem:[%s48] ss:$8 sm:$0x10] %vm47, %v37
    %54 = vrot.lane.b32.xlu0 %v35, 127
    %v55 = vpop.permute.xlu0 %54
    %56 = vrot.lane.b32.xlu0 %v36, 127
    %v57 = vpop.permute.xlu0 %56
    %58 = vrot.lane.b32.xlu0 %v37, 127
    %v59 = vpop.permute.xlu0 %58
    %v60 = vrot.slane %v55, 1
    %v61 = vrot.slane %v57, 1
    %v62 = vrot.slane %v59, 1
    %vm63 = vcmask 1046528
    %v64 = vsel %vm63, %v60, %v61
    %vm65 = vcmask 1039360
    %v66 = vsel %vm65, %v55, %v64
    %v67 = vsel %vm63, %v61, %v62
    %v68 = vsel %vm65, %v57, %v67
    %v69 = vsel %vm65, %v59, %v62
    %s73 = scalar_lea.vmem [#allocation3], 1
    %74 = vst [vmem:[%s73] ss:$8 sm:$0xf] %v66
    %75 = vst [vmem:[%s73] ss:$8 sm:$0xf0] %v66
    %s76 = scalar_lea.vmem [#allocation3], 65
    %77 = vst [vmem:[%s76] ss:$8 sm:$0xf] %v68
    %78 = vst [vmem:[%s76] ss:$8 sm:$0xf0] %v68
    %s79 = scalar_lea.vmem [#allocation3], 129
    %80 = vst.msk [vmem:[%s79] ss:$8 sm:$0xf] %vm47, %v69
    %81 = vst.msk [vmem:[%s79] ss:$8 sm:$0x10] %vm47, %v69
    %82 = vrot.lane.b32.xlu0 %v35, 126
    %v83 = vpop.permute.xlu0 %82
    %84 = vrot.lane.b32.xlu0 %v36, 126
    %v85 = vpop.permute.xlu0 %84
    %86 = vrot.lane.b32.xlu0 %v37, 126
    %v87 = vpop.permute.xlu0 %86
    %v88 = vrot.slane %v83, 1
    %v89 = vrot.slane %v85, 1
    %v90 = vrot.slane %v87, 1
    %v91 = vsel %vm63, %v88, %v89
    %vm92 = vcmask 1031168
    %v93 = vsel %vm92, %v83, %v91
    %v94 = vsel %vm63, %v89, %v90
    %v95 = vsel %vm92, %v85, %v94
    %v96 = vsel %vm92, %v87, %v90
    %s100 = scalar_lea.vmem [#allocation3], 2
    %101 = vst [vmem:[%s100] ss:$8 sm:$0xf] %v93
    %102 = vst [vmem:[%s100] ss:$8 sm:$0xf0] %v93
    %s103 = scalar_lea.vmem [#allocation3], 66
    %104 = vst [vmem:[%s103] ss:$8 sm:$0xf] %v95
    %105 = vst [vmem:[%s103] ss:$8 sm:$0xf0] %v95
    %s106 = scalar_lea.vmem [#allocation3], 130
    %107 = vst.msk [vmem:[%s106] ss:$8 sm:$0xf] %vm47, %v96
    %108 = vst.msk [vmem:[%s106] ss:$8 sm:$0x10] %vm47, %v96
    %109 = vrot.lane.b32.xlu0 %v35, 110
    %v110 = vpop.permute.xlu0 %109
    %111 = vrot.lane.b32.xlu0 %v36, 110
    %v112 = vpop.permute.xlu0 %111
    %113 = vrot.lane.b32.xlu0 %v37, 110
    %v114 = vpop.permute.xlu0 %113
    %v115 = vrot.slane %v110, 1
    %v116 = vrot.slane %v112, 1
    %v117 = vrot.slane %v114, 1
    %v118 = vsel %vm63, %v115, %v116
    %vm119 = vcmask 900096
    %v120 = vsel %vm119, %v110, %v118
    %v121 = vsel %vm63, %v116, %v117
    %v122 = vsel %vm119, %v112, %v121
    %v123 = vsel %vm119, %v114, %v117
    %s127 = scalar_lea.vmem [#allocation3], 3
    %128 = vst [vmem:[%s127] ss:$8 sm:$0xf] %v120
    %129 = vst [vmem:[%s127] ss:$8 sm:$0xf0] %v120
    %s130 = scalar_lea.vmem [#allocation3], 67
    %131 = vst [vmem:[%s130] ss:$8 sm:$0xf] %v122
    %132 = vst [vmem:[%s130] ss:$8 sm:$0xf0] %v122
    %s133 = scalar_lea.vmem [#allocation3], 131
    %134 = vst.msk [vmem:[%s133] ss:$8 sm:$0xf] %vm47, %v123
    %135 = vst.msk [vmem:[%s133] ss:$8 sm:$0x10] %vm47, %v123
    %136 = vrot.lane.b32.xlu0 %v35, 109
    %v137 = vpop.permute.xlu0 %136
    %138 = vrot.lane.b32.xlu0 %v36, 109
    %v139 = vpop.permute.xlu0 %138
    %140 = vrot.lane.b32.xlu0 %v37, 109
    %v141 = vpop.permute.xlu0 %140
    %v142 = vrot.slane %v137, 1
    %v143 = vrot.slane %v139, 1
    %v144 = vrot.slane %v141, 1
    %v145 = vsel %vm63, %v142, %v143
    %vm146 = vcmask 891904
    %v147 = vsel %vm146, %v137, %v145
    %v148 = vsel %vm63, %v143, %v144
    %v149 = vsel %vm146, %v139, %v148
    %v150 = vsel %vm146, %v141, %v144
    %s154 = scalar_lea.vmem [#allocation3], 4
    %155 = vst [vmem:[%s154] ss:$8 sm:$0xf] %v147
    %156 = vst [vmem:[%s154] ss:$8 sm:$0xf0] %v147
    %s157 = scalar_lea.vmem [#allocation3], 68
    %158 = vst [vmem:[%s157] ss:$8 sm:$0xf] %v149
    %159 = vst [vmem:[%s157] ss:$8 sm:$0xf0] %v149
    %s160 = scalar_lea.vmem [#allocation3], 132
    %161 = vst.msk [vmem:[%s160] ss:$8 sm:$0xf] %vm47, %v150
    %162 = vst.msk [vmem:[%s160] ss:$8 sm:$0x10] %vm47, %v150
    %163 = vrot.lane.b32.xlu0 %v35, 108
    %v164 = vpop.permute.xlu0 %163
    %165 = vrot.lane.b32.xlu0 %v36, 108
    %v166 = vpop.permute.xlu0 %165
    %167 = vrot.lane.b32.xlu0 %v37, 108
    %v168 = vpop.permute.xlu0 %167
    %v169 = vrot.slane %v164, 1
    %v170 = vrot.slane %v166, 1
    %v171 = vrot.slane %v168, 1
    %v172 = vsel %vm63, %v169, %v170
    %vm173 = vcmask 883712
    %v174 = vsel %vm173, %v164, %v172
    %v175 = vsel %vm63, %v170, %v171
    %v176 = vsel %vm173, %v166, %v175
    %v177 = vsel %vm173, %v168, %v171
    %s181 = scalar_lea.vmem [#allocation3], 5
    %182 = vst [vmem:[%s181] ss:$8 sm:$0xf] %v174
    %183 = vst [vmem:[%s181] ss:$8 sm:$0xf0] %v174
    %s184 = scalar_lea.vmem [#allocation3], 69
    %185 = vst [vmem:[%s184] ss:$8 sm:$0xf] %v176
    %186 = vst [vmem:[%s184] ss:$8 sm:$0xf0] %v176
    %s187 = scalar_lea.vmem [#allocation3], 133
    %188 = vst.msk [vmem:[%s187] ss:$8 sm:$0xf] %vm47, %v177
    %189 = vst.msk [vmem:[%s187] ss:$8 sm:$0x10] %vm47, %v177
    %190 = vrot.lane.b32.xlu0 %v35, 92
    %v191 = vpop.permute.xlu0 %190
    %192 = vrot.lane.b32.xlu0 %v36, 92
    %v193 = vpop.permute.xlu0 %192
    %194 = vrot.lane.b32.xlu0 %v37, 92
    %v195 = vpop.permute.xlu0 %194
    %v196 = vrot.slane %v191, 1
    %v197 = vrot.slane %v193, 1
    %v198 = vrot.slane %v195, 1
    %v199 = vsel %vm63, %v196, %v197
    %vm200 = vcmask 752640
    %v201 = vsel %vm200, %v191, %v199
    %v202 = vsel %vm63, %v197, %v198
    %v203 = vsel %vm200, %v193, %v202
    %v204 = vsel %vm200, %v195, %v198
    %s208 = scalar_lea.vmem [#allocation3], 6
    %209 = vst [vmem:[%s208] ss:$8 sm:$0xf] %v201
    %210 = vst [vmem:[%s208] ss:$8 sm:$0xf0] %v201
    %s211 = scalar_lea.vmem [#allocation3], 70
    %212 = vst [vmem:[%s211] ss:$8 sm:$0xf] %v203
    %213 = vst [vmem:[%s211] ss:$8 sm:$0xf0] %v203
    %s214 = scalar_lea.vmem [#allocation3], 134
    %215 = vst.msk [vmem:[%s214] ss:$8 sm:$0xf] %vm47, %v204
    %216 = vst.msk [vmem:[%s214] ss:$8 sm:$0x10] %vm47, %v204
    %217 = vrot.lane.b32.xlu0 %v35, 91
    %v218 = vpop.permute.xlu0 %217
    %219 = vrot.lane.b32.xlu0 %v36, 91
    %v220 = vpop.permute.xlu0 %219
    %221 = vrot.lane.b32.xlu0 %v37, 91
    %v222 = vpop.permute.xlu0 %221
    %v223 = vrot.slane %v218, 1
    %v224 = vrot.slane %v220, 1
    %v225 = vrot.slane %v222, 1
    %v226 = vsel %vm63, %v223, %v224
    %vm227 = vcmask 744448
    %v228 = vsel %vm227, %v218, %v226
    %v229 = vsel %vm63, %v224, %v225
    %v230 = vsel %vm227, %v220, %v229
    %v231 = vsel %vm227, %v222, %v225
    %s235 = scalar_lea.vmem [#allocation3], 7
    %236 = vst [vmem:[%s235] ss:$8 sm:$0xf] %v228
    %237 = vst [vmem:[%s235] ss:$8 sm:$0xf0] %v228
    %s238 = scalar_lea.vmem [#allocation3], 71
    %239 = vst [vmem:[%s238] ss:$8 sm:$0xf] %v230
    %240 = vst [vmem:[%s238] ss:$8 sm:$0xf0] %v230
    %s241 = scalar_lea.vmem [#allocation3], 135
    %242 = vst.msk [vmem:[%s241] ss:$8 sm:$0xf] %vm47, %v231
    %243 = vst.msk [vmem:[%s241] ss:$8 sm:$0x10] %vm47, %v231
    %244 = vrot.lane.b32.xlu0 %v35, 90
    %v245 = vpop.permute.xlu0 %244
    %246 = vrot.lane.b32.xlu0 %v36, 90
    %v247 = vpop.permute.xlu0 %246
    %248 = vrot.lane.b32.xlu0 %v37, 90
    %v249 = vpop.permute.xlu0 %248
    %v250 = vrot.slane %v245, 1
    %v251 = vrot.slane %v247, 1
    %v252 = vrot.slane %v249, 1
    %v253 = vsel %vm63, %v250, %v251
    %vm254 = vcmask 736256
    %v255 = vsel %vm254, %v245, %v253
    %v256 = vsel %vm63, %v251, %v252
    %v257 = vsel %vm254, %v247, %v256
    %v258 = vsel %vm254, %v249, %v252
    %s262 = scalar_lea.vmem [#allocation3], 168
    %263 = vst [vmem:[%s262] ss:$8 sm:$0xf] %v255
    %264 = vst [vmem:[%s262] ss:$8 sm:$0xf0] %v255
    %s265 = scalar_lea.vmem [#allocation3], 232
    %266 = vst [vmem:[%s265] ss:$8 sm:$0xf] %v257
    %267 = vst [vmem:[%s265] ss:$8 sm:$0xf0] %v257
    %s268 = scalar_lea.vmem [#allocation3], 296
    %269 = vst.msk [vmem:[%s268] ss:$8 sm:$0xf] %vm47, %v258
    %270 = vst.msk [vmem:[%s268] ss:$8 sm:$0x10] %vm47, %v258
    %271 = vrot.lane.b32.xlu0 %v35, 60
    %v272 = vpop.permute.xlu0 %271
    %273 = vrot.lane.b32.xlu0 %v36, 60
    %v274 = vpop.permute.xlu0 %273
    %275 = vrot.lane.b32.xlu0 %v37, 60
    %v276 = vpop.permute.xlu0 %275
    %v277 = vrot.slane %v272, 2
    %v278 = vrot.slane %v274, 2
    %v279 = vrot.slane %v276, 2
    %v280 = vrot.slane %v272, 3
    %v281 = vrot.slane %v274, 3
    %v282 = vrot.slane %v276, 3
    %vm283 = vcmask 1045504
    %v284 = vsel %vm283, %v277, %v278
    %vm285 = vcmask 1044480
    %v286 = vsel %vm285, %v280, %v281
    %vm287 = vcmask 490496
    %v288 = vsel %vm287, %v284, %v286
    %v289 = vsel %vm283, %v278, %v279
    %v290 = vsel %vm285, %v281, %v282
    %v291 = vsel %vm287, %v289, %v290
    %v292 = vsel %vm287, %v279, %v282
    %s296 = scalar_lea.vmem [#allocation3], 169
    %297 = vst [vmem:[%s296] ss:$8 sm:$0xf] %v288
    %298 = vst [vmem:[%s296] ss:$8 sm:$0xf0] %v288
    %s299 = scalar_lea.vmem [#allocation3], 233
    %300 = vst [vmem:[%s299] ss:$8 sm:$0xf] %v291
    %301 = vst [vmem:[%s299] ss:$8 sm:$0xf0] %v291
    %s302 = scalar_lea.vmem [#allocation3], 297
    %303 = vst.msk [vmem:[%s302] ss:$8 sm:$0xf] %vm47, %v292
    %304 = vst.msk [vmem:[%s302] ss:$8 sm:$0x10] %vm47, %v292
    %305 = vrot.lane.b32.xlu0 %v35, 59
    %v306 = vpop.permute.xlu0 %305
    %307 = vrot.lane.b32.xlu0 %v36, 59
    %v308 = vpop.permute.xlu0 %307
    %309 = vrot.lane.b32.xlu0 %v37, 59
    %v310 = vpop.permute.xlu0 %309
    %v311 = vrot.slane %v306, 2
    %v312 = vrot.slane %v308, 2
    %v313 = vrot.slane %v310, 2
    %v314 = vrot.slane %v306, 3
    %v315 = vrot.slane %v308, 3
    %v316 = vrot.slane %v310, 3
    %v317 = vsel %vm283, %v311, %v312
    %v318 = vsel %vm285, %v314, %v315
    %vm319 = vcmask 482304
    %v320 = vsel %vm319, %v317, %v318
    %v321 = vsel %vm283, %v312, %v313
    %v322 = vsel %vm285, %v315, %v316
    %v323 = vsel %vm319, %v321, %v322
    %v324 = vsel %vm319, %v313, %v316
    %s328 = scalar_lea.vmem [#allocation3], 170
    %329 = vst [vmem:[%s328] ss:$8 sm:$0xf] %v320
    %330 = vst [vmem:[%s328] ss:$8 sm:$0xf0] %v320
    %s331 = scalar_lea.vmem [#allocation3], 234
    %332 = vst [vmem:[%s331] ss:$8 sm:$0xf] %v323
    %333 = vst [vmem:[%s331] ss:$8 sm:$0xf0] %v323
    %s334 = scalar_lea.vmem [#allocation3], 298
    %335 = vst.msk [vmem:[%s334] ss:$8 sm:$0xf] %vm47, %v324
    %336 = vst.msk [vmem:[%s334] ss:$8 sm:$0x10] %vm47, %v324
    %337 = vrot.lane.b32.xlu0 %v35, 58
    %v338 = vpop.permute.xlu0 %337
    %339 = vrot.lane.b32.xlu0 %v36, 58
    %v340 = vpop.permute.xlu0 %339
    %341 = vrot.lane.b32.xlu0 %v37, 58
    %v342 = vpop.permute.xlu0 %341
    %v343 = vrot.slane %v338, 2
    %v344 = vrot.slane %v340, 2
    %v345 = vrot.slane %v342, 2
    %v346 = vrot.slane %v338, 3
    %v347 = vrot.slane %v340, 3
    %v348 = vrot.slane %v342, 3
    %v349 = vsel %vm283, %v343, %v344
    %v350 = vsel %vm285, %v346, %v347
    %vm351 = vcmask 474112
    %v352 = vsel %vm351, %v349, %v350
    %v353 = vsel %vm283, %v344, %v345
    %v354 = vsel %vm285, %v347, %v348
    %v355 = vsel %vm351, %v353, %v354
    %v356 = vsel %vm351, %v345, %v348
    %s360 = scalar_lea.vmem [#allocation3], 171
    %361 = vst [vmem:[%s360] ss:$8 sm:$0xf] %v352
    %362 = vst [vmem:[%s360] ss:$8 sm:$0xf0] %v352
    %s363 = scalar_lea.vmem [#allocation3], 235
    %364 = vst [vmem:[%s363] ss:$8 sm:$0xf] %v355
    %365 = vst [vmem:[%s363] ss:$8 sm:$0xf0] %v355
    %s366 = scalar_lea.vmem [#allocation3], 299
    %367 = vst.msk [vmem:[%s366] ss:$8 sm:$0xf] %vm47, %v356
    %368 = vst.msk [vmem:[%s366] ss:$8 sm:$0x10] %vm47, %v356
    %369 = vrot.lane.b32.xlu0 %v35, 42
    %v370 = vpop.permute.xlu0 %369
    %371 = vrot.lane.b32.xlu0 %v36, 42
    %v372 = vpop.permute.xlu0 %371
    %373 = vrot.lane.b32.xlu0 %v37, 42
    %v374 = vpop.permute.xlu0 %373
    %v375 = vrot.slane %v370, 2
    %v376 = vrot.slane %v372, 2
    %v377 = vrot.slane %v374, 2
    %v378 = vrot.slane %v370, 3
    %v379 = vrot.slane %v372, 3
    %v380 = vrot.slane %v374, 3
    %v381 = vsel %vm283, %v375, %v376
    %v382 = vsel %vm285, %v378, %v379
    %vm383 = vcmask 343040
    %v384 = vsel %vm383, %v381, %v382
    %v385 = vsel %vm283, %v376, %v377
    %v386 = vsel %vm285, %v379, %v380
    %v387 = vsel %vm383, %v385, %v386
    %v388 = vsel %vm383, %v377, %v380
    %s392 = scalar_lea.vmem [#allocation3], 172
    %393 = vst [vmem:[%s392] ss:$8 sm:$0xf] %v384
    %394 = vst [vmem:[%s392] ss:$8 sm:$0xf0] %v384
    %s395 = scalar_lea.vmem [#allocation3], 236
    %396 = vst [vmem:[%s395] ss:$8 sm:$0xf] %v387
    %397 = vst [vmem:[%s395] ss:$8 sm:$0xf0] %v387
    %s398 = scalar_lea.vmem [#allocation3], 300
    %399 = vst.msk [vmem:[%s398] ss:$8 sm:$0xf] %vm47, %v388
    %400 = vst.msk [vmem:[%s398] ss:$8 sm:$0x10] %vm47, %v388
    %401 = vrot.lane.b32.xlu0 %v35, 41
    %v402 = vpop.permute.xlu0 %401
    %403 = vrot.lane.b32.xlu0 %v36, 41
    %v404 = vpop.permute.xlu0 %403
    %405 = vrot.lane.b32.xlu0 %v37, 41
    %v406 = vpop.permute.xlu0 %405
    %v407 = vrot.slane %v402, 2
    %v408 = vrot.slane %v404, 2
    %v409 = vrot.slane %v406, 2
    %v410 = vrot.slane %v402, 3
    %v411 = vrot.slane %v404, 3
    %v412 = vrot.slane %v406, 3
    %v413 = vsel %vm283, %v407, %v408
    %v414 = vsel %vm285, %v410, %v411
    %vm415 = vcmask 334848
    %v416 = vsel %vm415, %v413, %v414
    %v417 = vsel %vm283, %v408, %v409
    %v418 = vsel %vm285, %v411, %v412
    %v419 = vsel %vm415, %v417, %v418
    %v420 = vsel %vm415, %v409, %v412
    %s424 = scalar_lea.vmem [#allocation3], 173
    %425 = vst [vmem:[%s424] ss:$8 sm:$0xf] %v416
    %426 = vst [vmem:[%s424] ss:$8 sm:$0xf0] %v416
    %s427 = scalar_lea.vmem [#allocation3], 237
    %428 = vst [vmem:[%s427] ss:$8 sm:$0xf] %v419
    %429 = vst [vmem:[%s427] ss:$8 sm:$0xf0] %v419
    %s430 = scalar_lea.vmem [#allocation3], 301
    %431 = vst.msk [vmem:[%s430] ss:$8 sm:$0xf] %vm47, %v420
    %432 = vst.msk [vmem:[%s430] ss:$8 sm:$0x10] %vm47, %v420
    %433 = vrot.lane.b32.xlu0 %v35, 40
    %v434 = vpop.permute.xlu0 %433
    %435 = vrot.lane.b32.xlu0 %v36, 40
    %v436 = vpop.permute.xlu0 %435
    %437 = vrot.lane.b32.xlu0 %v37, 40
    %v438 = vpop.permute.xlu0 %437
    %v439 = vrot.slane %v434, 2
    %v440 = vrot.slane %v436, 2
    %v441 = vrot.slane %v438, 2
    %v442 = vrot.slane %v434, 3
    %v443 = vrot.slane %v436, 3
    %v444 = vrot.slane %v438, 3
    %v445 = vsel %vm283, %v439, %v440
    %v446 = vsel %vm285, %v442, %v443
    %vm447 = vcmask 326656
    %v448 = vsel %vm447, %v445, %v446
    %v449 = vsel %vm283, %v440, %v441
    %v450 = vsel %vm285, %v443, %v444
    %v451 = vsel %vm447, %v449, %v450
    %v452 = vsel %vm447, %v441, %v444
    %s456 = scalar_lea.vmem [#allocation3], 174
    %457 = vst [vmem:[%s456] ss:$8 sm:$0xf] %v448
    %458 = vst [vmem:[%s456] ss:$8 sm:$0xf0] %v448
    %s459 = scalar_lea.vmem [#allocation3], 238
    %460 = vst [vmem:[%s459] ss:$8 sm:$0xf] %v451
    %461 = vst [vmem:[%s459] ss:$8 sm:$0xf0] %v451
    %s462 = scalar_lea.vmem [#allocation3], 302
    %463 = vst.msk [vmem:[%s462] ss:$8 sm:$0xf] %vm47, %v452
    %464 = vst.msk [vmem:[%s462] ss:$8 sm:$0x10] %vm47, %v452
    %465 = vrot.lane.b32.xlu0 %v35, 24
    %v466 = vpop.permute.xlu0 %465
    %467 = vrot.lane.b32.xlu0 %v36, 24
    %v468 = vpop.permute.xlu0 %467
    %469 = vrot.lane.b32.xlu0 %v37, 24
    %v470 = vpop.permute.xlu0 %469
    %v471 = vrot.slane %v466, 2
    %v472 = vrot.slane %v468, 2
    %v473 = vrot.slane %v470, 2
    %v474 = vrot.slane %v466, 3
    %v475 = vrot.slane %v468, 3
    %v476 = vrot.slane %v470, 3
    %v477 = vsel %vm283, %v471, %v472
    %v478 = vsel %vm285, %v474, %v475
    %vm479 = vcmask 195584
    %v480 = vsel %vm479, %v477, %v478
    %v481 = vsel %vm283, %v472, %v473
    %v482 = vsel %vm285, %v475, %v476
    %v483 = vsel %vm479, %v481, %v482
    %v484 = vsel %vm479, %v473, %v476
    %s488 = scalar_lea.vmem [#allocation3], 175
    %489 = vst [vmem:[%s488] ss:$8 sm:$0xf] %v480
    %490 = vst [vmem:[%s488] ss:$8 sm:$0xf0] %v480
    %s491 = scalar_lea.vmem [#allocation3], 239
    %492 = vst [vmem:[%s491] ss:$8 sm:$0xf] %v483
    %493 = vst [vmem:[%s491] ss:$8 sm:$0xf0] %v483
    %s494 = scalar_lea.vmem [#allocation3], 303
    %495 = vst.msk [vmem:[%s494] ss:$8 sm:$0xf] %vm47, %v484
    %496 = vst.msk [vmem:[%s494] ss:$8 sm:$0x10] %vm47, %v484
    %497 = vrot.lane.b32.xlu0 %v35, 23
    %v498 = vpop.permute.xlu0 %497
    %499 = vrot.lane.b32.xlu0 %v36, 23
    %v500 = vpop.permute.xlu0 %499
    %501 = vrot.lane.b32.xlu0 %v37, 23
    %v502 = vpop.permute.xlu0 %501
    %v503 = vrot.slane %v498, 2
    %v504 = vrot.slane %v500, 2
    %v505 = vrot.slane %v502, 2
    %v506 = vrot.slane %v498, 3
    %v507 = vrot.slane %v500, 3
    %v508 = vrot.slane %v502, 3
    %v509 = vsel %vm283, %v503, %v504
    %v510 = vsel %vm285, %v506, %v507
    %vm511 = vcmask 187392
    %v512 = vsel %vm511, %v509, %v510
    %v513 = vsel %vm283, %v504, %v505
    %v514 = vsel %vm285, %v507, %v508
    %v515 = vsel %vm511, %v513, %v514
    %v516 = vsel %vm511, %v505, %v508
    %s520 = scalar_lea.vmem [#allocation3], 336
    %521 = vst [vmem:[%s520] ss:$8 sm:$0xf] %v512
    %522 = vst [vmem:[%s520] ss:$8 sm:$0xf0] %v512
    %s523 = scalar_lea.vmem [#allocation3], 400
    %524 = vst [vmem:[%s523] ss:$8 sm:$0xf] %v515
    %525 = vst [vmem:[%s523] ss:$8 sm:$0xf0] %v515
    %s526 = scalar_lea.vmem [#allocation3], 464
    %527 = vst.msk [vmem:[%s526] ss:$8 sm:$0xf] %vm47, %v516
    %528 = vst.msk [vmem:[%s526] ss:$8 sm:$0x10] %vm47, %v516
    %529 = vrot.lane.b32.xlu0 %v35, 22
    %v530 = vpop.permute.xlu0 %529
    %531 = vrot.lane.b32.xlu0 %v36, 22
    %v532 = vpop.permute.xlu0 %531
    %533 = vrot.lane.b32.xlu0 %v37, 22
    %v534 = vpop.permute.xlu0 %533
    %v535 = vrot.slane %v530, 2
    %v536 = vrot.slane %v532, 2
    %v537 = vrot.slane %v534, 2
    %v538 = vrot.slane %v530, 3
    %v539 = vrot.slane %v532, 3
    %v540 = vrot.slane %v534, 3
    %v541 = vsel %vm283, %v535, %v536
    %v542 = vsel %vm285, %v538, %v539
    %vm543 = vcmask 179200
    %v544 = vsel %vm543, %v541, %v542
    %v545 = vsel %vm283, %v536, %v537
    %v546 = vsel %vm285, %v539, %v540
    %v547 = vsel %vm543, %v545, %v546
    %v548 = vsel %vm543, %v537, %v540
    %s552 = scalar_lea.vmem [#allocation3], 337
    %553 = vst [vmem:[%s552] ss:$8 sm:$0xf] %v544
    %554 = vst [vmem:[%s552] ss:$8 sm:$0xf0] %v544
    %s555 = scalar_lea.vmem [#allocation3], 401
    %556 = vst [vmem:[%s555] ss:$8 sm:$0xf] %v547
    %557 = vst [vmem:[%s555] ss:$8 sm:$0xf0] %v547
    %s558 = scalar_lea.vmem [#allocation3], 465
    %559 = vst.msk [vmem:[%s558] ss:$8 sm:$0xf] %vm47, %v548
    %560 = vst.msk [vmem:[%s558] ss:$8 sm:$0x10] %vm47, %v548
    %562 = vrot.lane.b32.xlu0 %v35, 120
    %v563 = vpop.permute.xlu0 %562
    %564 = vrot.lane.b32.xlu0 %v36, 120
    %v565 = vpop.permute.xlu0 %564
    %566 = vrot.lane.b32.xlu0 %v37, 120
    %v567 = vpop.permute.xlu0 %566
    %568 = vrot.lane.b32.xlu0 %v38, 120
    %v569 = vpop.permute.xlu0 %568
    %v570 = vrot.slane %v563, 5
    %v571 = vrot.slane %v565, 5
    %v572 = vrot.slane %v567, 5
    %v573 = vrot.slane %v569, 5
    %v574 = vrot.slane %v563, 6
    %v575 = vrot.slane %v565, 6
    %v576 = vrot.slane %v567, 6
    %v577 = vrot.slane %v569, 6
    %vm578 = vcmask 1042432
    %v579 = vsel %vm578, %v570, %v571
    %vm580 = vcmask 1041408
    %v581 = vsel %vm580, %v574, %v575
    %vm582 = vcmask 982016
    %v583 = vsel %vm582, %v579, %v581
    %v584 = vsel %vm578, %v571, %v572
    %v585 = vsel %vm580, %v575, %v576
    %v586 = vsel %vm582, %v584, %v585
    %v587 = vsel %vm578, %v572, %v573
    %v588 = vsel %vm580, %v576, %v577
    %v589 = vsel %vm582, %v587, %v588
    %s593 = scalar_lea.vmem [#allocation3], 338
    %594 = vst [vmem:[%s593] ss:$8 sm:$0xf] %v583
    %595 = vst [vmem:[%s593] ss:$8 sm:$0xf0] %v583
    %s596 = scalar_lea.vmem [#allocation3], 402
    %597 = vst [vmem:[%s596] ss:$8 sm:$0xf] %v586
    %598 = vst [vmem:[%s596] ss:$8 sm:$0xf0] %v586
    %s599 = scalar_lea.vmem [#allocation3], 466
    %600 = vst.msk [vmem:[%s599] ss:$8 sm:$0xf] %vm47, %v589
    %601 = vst.msk [vmem:[%s599] ss:$8 sm:$0x10] %vm47, %v589
    %602 = vrot.lane.b32.xlu0 %v35, 119
    %v603 = vpop.permute.xlu0 %602
    %604 = vrot.lane.b32.xlu0 %v36, 119
    %v605 = vpop.permute.xlu0 %604
    %606 = vrot.lane.b32.xlu0 %v37, 119
    %v607 = vpop.permute.xlu0 %606
    %608 = vrot.lane.b32.xlu0 %v38, 119
    %v609 = vpop.permute.xlu0 %608
    %v610 = vrot.slane %v603, 5
    %v611 = vrot.slane %v605, 5
    %v612 = vrot.slane %v607, 5
    %v613 = vrot.slane %v609, 5
    %v614 = vrot.slane %v603, 6
    %v615 = vrot.slane %v605, 6
    %v616 = vrot.slane %v607, 6
    %v617 = vrot.slane %v609, 6
    %v618 = vsel %vm578, %v610, %v611
    %v619 = vsel %vm580, %v614, %v615
    %vm620 = vcmask 973824
    %v621 = vsel %vm620, %v618, %v619
    %v622 = vsel %vm578, %v611, %v612
    %v623 = vsel %vm580, %v615, %v616
    %v624 = vsel %vm620, %v622, %v623
    %v625 = vsel %vm578, %v612, %v613
    %v626 = vsel %vm580, %v616, %v617
    %v627 = vsel %vm620, %v625, %v626
    %s631 = scalar_lea.vmem [#allocation3], 339
    %632 = vst [vmem:[%s631] ss:$8 sm:$0xf] %v621
    %633 = vst [vmem:[%s631] ss:$8 sm:$0xf0] %v621
    %s634 = scalar_lea.vmem [#allocation3], 403
    %635 = vst [vmem:[%s634] ss:$8 sm:$0xf] %v624
    %636 = vst [vmem:[%s634] ss:$8 sm:$0xf0] %v624
    %s637 = scalar_lea.vmem [#allocation3], 467
    %638 = vst.msk [vmem:[%s637] ss:$8 sm:$0xf] %vm47, %v627
    %639 = vst.msk [vmem:[%s637] ss:$8 sm:$0x10] %vm47, %v627
    %640 = vrot.lane.b32.xlu0 %v35, 118
    %v641 = vpop.permute.xlu0 %640
    %642 = vrot.lane.b32.xlu0 %v36, 118
    %v643 = vpop.permute.xlu0 %642
    %644 = vrot.lane.b32.xlu0 %v37, 118
    %v645 = vpop.permute.xlu0 %644
    %646 = vrot.lane.b32.xlu0 %v38, 118
    %v647 = vpop.permute.xlu0 %646
    %v648 = vrot.slane %v641, 5
    %v649 = vrot.slane %v643, 5
    %v650 = vrot.slane %v645, 5
    %v651 = vrot.slane %v647, 5
    %v652 = vrot.slane %v641, 6
    %v653 = vrot.slane %v643, 6
    %v654 = vrot.slane %v645, 6
    %v655 = vrot.slane %v647, 6
    %v656 = vsel %vm578, %v648, %v649
    %v657 = vsel %vm580, %v652, %v653
    %vm658 = vcmask 965632
    %v659 = vsel %vm658, %v656, %v657
    %v660 = vsel %vm578, %v649, %v650
    %v661 = vsel %vm580, %v653, %v654
    %v662 = vsel %vm658, %v660, %v661
    %v663 = vsel %vm578, %v650, %v651
    %v664 = vsel %vm580, %v654, %v655
    %v665 = vsel %vm658, %v663, %v664
    %s669 = scalar_lea.vmem [#allocation3], 340
    %670 = vst [vmem:[%s669] ss:$8 sm:$0xf] %v659
    %671 = vst [vmem:[%s669] ss:$8 sm:$0xf0] %v659
    %s672 = scalar_lea.vmem [#allocation3], 404
    %673 = vst [vmem:[%s672] ss:$8 sm:$0xf] %v662
    %674 = vst [vmem:[%s672] ss:$8 sm:$0xf0] %v662
    %s675 = scalar_lea.vmem [#allocation3], 468
    %676 = vst.msk [vmem:[%s675] ss:$8 sm:$0xf] %vm47, %v665
    %677 = vst.msk [vmem:[%s675] ss:$8 sm:$0x10] %vm47, %v665
    %678 = vrot.lane.b32.xlu0 %v35, 102
    %v679 = vpop.permute.xlu0 %678
    %680 = vrot.lane.b32.xlu0 %v36, 102
    %v681 = vpop.permute.xlu0 %680
    %682 = vrot.lane.b32.xlu0 %v37, 102
    %v683 = vpop.permute.xlu0 %682
    %684 = vrot.lane.b32.xlu0 %v38, 102
    %v685 = vpop.permute.xlu0 %684
    %v686 = vrot.slane %v679, 5
    %v687 = vrot.slane %v681, 5
    %v688 = vrot.slane %v683, 5
    %v689 = vrot.slane %v685, 5
    %v690 = vrot.slane %v679, 6
    %v691 = vrot.slane %v681, 6
    %v692 = vrot.slane %v683, 6
    %v693 = vrot.slane %v685, 6
    %v694 = vsel %vm578, %v686, %v687
    %v695 = vsel %vm580, %v690, %v691
    %vm696 = vcmask 834560
    %v697 = vsel %vm696, %v694, %v695
    %v698 = vsel %vm578, %v687, %v688
    %v699 = vsel %vm580, %v691, %v692
    %v700 = vsel %vm696, %v698, %v699
    %v701 = vsel %vm578, %v688, %v689
    %v702 = vsel %vm580, %v692, %v693
    %v703 = vsel %vm696, %v701, %v702
    %s707 = scalar_lea.vmem [#allocation3], 341
    %708 = vst [vmem:[%s707] ss:$8 sm:$0xf] %v697
    %709 = vst [vmem:[%s707] ss:$8 sm:$0xf0] %v697
    %s710 = scalar_lea.vmem [#allocation3], 405
    %711 = vst [vmem:[%s710] ss:$8 sm:$0xf] %v700
    %712 = vst [vmem:[%s710] ss:$8 sm:$0xf0] %v700
    %s713 = scalar_lea.vmem [#allocation3], 469
    %714 = vst.msk [vmem:[%s713] ss:$8 sm:$0xf] %vm47, %v703
    %715 = vst.msk [vmem:[%s713] ss:$8 sm:$0x10] %vm47, %v703
    %716 = vrot.lane.b32.xlu0 %v35, 101
    %v717 = vpop.permute.xlu0 %716
    %718 = vrot.lane.b32.xlu0 %v36, 101
    %v719 = vpop.permute.xlu0 %718
    %720 = vrot.lane.b32.xlu0 %v37, 101
    %v721 = vpop.permute.xlu0 %720
    %722 = vrot.lane.b32.xlu0 %v38, 101
    %v723 = vpop.permute.xlu0 %722
    %v724 = vrot.slane %v717, 5
    %v725 = vrot.slane %v719, 5
    %v726 = vrot.slane %v721, 5
    %v727 = vrot.slane %v723, 5
    %v728 = vrot.slane %v717, 6
    %v729 = vrot.slane %v719, 6
    %v730 = vrot.slane %v721, 6
    %v731 = vrot.slane %v723, 6
    %v732 = vsel %vm578, %v724, %v725
    %v733 = vsel %vm580, %v728, %v729
    %vm734 = vcmask 826368
    %v735 = vsel %vm734, %v732, %v733
    %v736 = vsel %vm578, %v725, %v726
    %v737 = vsel %vm580, %v729, %v730
    %v738 = vsel %vm734, %v736, %v737
    %v739 = vsel %vm578, %v726, %v727
    %v740 = vsel %vm580, %v730, %v731
    %v741 = vsel %vm734, %v739, %v740
    %s745 = scalar_lea.vmem [#allocation3], 342
    %746 = vst [vmem:[%s745] ss:$8 sm:$0xf] %v735
    %747 = vst [vmem:[%s745] ss:$8 sm:$0xf0] %v735
    %s748 = scalar_lea.vmem [#allocation3], 406
    %749 = vst [vmem:[%s748] ss:$8 sm:$0xf] %v738
    %750 = vst [vmem:[%s748] ss:$8 sm:$0xf0] %v738
    %s751 = scalar_lea.vmem [#allocation3], 470
    %752 = vst.msk [vmem:[%s751] ss:$8 sm:$0xf] %vm47, %v741
    %753 = vst.msk [vmem:[%s751] ss:$8 sm:$0x10] %vm47, %v741
    %754 = vrot.lane.b32.xlu0 %v35, 100
    %v755 = vpop.permute.xlu0 %754
    %756 = vrot.lane.b32.xlu0 %v36, 100
    %v757 = vpop.permute.xlu0 %756
    %758 = vrot.lane.b32.xlu0 %v37, 100
    %v759 = vpop.permute.xlu0 %758
    %760 = vrot.lane.b32.xlu0 %v38, 100
    %v761 = vpop.permute.xlu0 %760
    %v762 = vrot.slane %v755, 5
    %v763 = vrot.slane %v757, 5
    %v764 = vrot.slane %v759, 5
    %v765 = vrot.slane %v761, 5
    %v766 = vrot.slane %v755, 6
    %v767 = vrot.slane %v757, 6
    %v768 = vrot.slane %v759, 6
    %v769 = vrot.slane %v761, 6
    %v770 = vsel %vm578, %v762, %v763
    %v771 = vsel %vm580, %v766, %v767
    %vm772 = vcmask 818176
    %v773 = vsel %vm772, %v770, %v771
    %v774 = vsel %vm578, %v763, %v764
    %v775 = vsel %vm580, %v767, %v768
    %v776 = vsel %vm772, %v774, %v775
    %v777 = vsel %vm578, %v764, %v765
    %v778 = vsel %vm580, %v768, %v769
    %v779 = vsel %vm772, %v777, %v778
    %s783 = scalar_lea.vmem [#allocation3], 343
    %784 = vst [vmem:[%s783] ss:$8 sm:$0xf] %v773
    %785 = vst [vmem:[%s783] ss:$8 sm:$0xf0] %v773
    %s786 = scalar_lea.vmem [#allocation3], 407
    %787 = vst [vmem:[%s786] ss:$8 sm:$0xf] %v776
    %788 = vst [vmem:[%s786] ss:$8 sm:$0xf0] %v776
    %s789 = scalar_lea.vmem [#allocation3], 471
    %790 = vst.msk [vmem:[%s789] ss:$8 sm:$0xf] %vm47, %v779
    %791 = vst.msk [vmem:[%s789] ss:$8 sm:$0x10] %vm47, %v779
    %792 = vrot.lane.b32.xlu0 %v35, 84
    %v793 = vpop.permute.xlu0 %792
    %794 = vrot.lane.b32.xlu0 %v36, 84
    %v795 = vpop.permute.xlu0 %794
    %796 = vrot.lane.b32.xlu0 %v37, 84
    %v797 = vpop.permute.xlu0 %796
    %798 = vrot.lane.b32.xlu0 %v38, 84
    %v799 = vpop.permute.xlu0 %798
    %v800 = vrot.slane %v793, 5
    %v801 = vrot.slane %v795, 5
    %v802 = vrot.slane %v797, 5
    %v803 = vrot.slane %v799, 5
    %v804 = vrot.slane %v793, 6
    %v805 = vrot.slane %v795, 6
    %v806 = vrot.slane %v797, 6
    %v807 = vrot.slane %v799, 6
    %v808 = vsel %vm578, %v800, %v801
    %v809 = vsel %vm580, %v804, %v805
    %vm810 = vcmask 687104
    %v811 = vsel %vm810, %v808, %v809
    %v812 = vsel %vm578, %v801, %v802
    %v813 = vsel %vm580, %v805, %v806
    %v814 = vsel %vm810, %v812, %v813
    %v815 = vsel %vm578, %v802, %v803
    %v816 = vsel %vm580, %v806, %v807
    %v817 = vsel %vm810, %v815, %v816
    %s821 = scalar_lea.vmem [#allocation3], 504
    %822 = vst [vmem:[%s821] ss:$8 sm:$0xf] %v811
    %823 = vst [vmem:[%s821] ss:$8 sm:$0xf0] %v811
    %s824 = scalar_lea.vmem [#allocation3], 568
    %825 = vst [vmem:[%s824] ss:$8 sm:$0xf] %v814
    %826 = vst [vmem:[%s824] ss:$8 sm:$0xf0] %v814
    %s827 = scalar_lea.vmem [#allocation3], 632
    %828 = vst.msk [vmem:[%s827] ss:$8 sm:$0xf] %vm47, %v817
    %829 = vst.msk [vmem:[%s827] ss:$8 sm:$0x10] %vm47, %v817
    %830 = vrot.lane.b32.xlu0 %v35, 83
    %v831 = vpop.permute.xlu0 %830
    %832 = vrot.lane.b32.xlu0 %v36, 83
    %v833 = vpop.permute.xlu0 %832
    %834 = vrot.lane.b32.xlu0 %v37, 83
    %v835 = vpop.permute.xlu0 %834
    %836 = vrot.lane.b32.xlu0 %v38, 83
    %v837 = vpop.permute.xlu0 %836
    %v838 = vrot.slane %v831, 5
    %v839 = vrot.slane %v833, 5
    %v840 = vrot.slane %v835, 5
    %v841 = vrot.slane %v837, 5
    %v842 = vrot.slane %v831, 6
    %v843 = vrot.slane %v833, 6
    %v844 = vrot.slane %v835, 6
    %v845 = vrot.slane %v837, 6
    %v846 = vsel %vm578, %v838, %v839
    %v847 = vsel %vm580, %v842, %v843
    %vm848 = vcmask 678912
    %v849 = vsel %vm848, %v846, %v847
    %v850 = vsel %vm578, %v839, %v840
    %v851 = vsel %vm580, %v843, %v844
    %v852 = vsel %vm848, %v850, %v851
    %v853 = vsel %vm578, %v840, %v841
    %v854 = vsel %vm580, %v844, %v845
    %v855 = vsel %vm848, %v853, %v854
    %s859 = scalar_lea.vmem [#allocation3], 505
    %860 = vst [vmem:[%s859] ss:$8 sm:$0xf] %v849
    %861 = vst [vmem:[%s859] ss:$8 sm:$0xf0] %v849
    %s862 = scalar_lea.vmem [#allocation3], 569
    %863 = vst [vmem:[%s862] ss:$8 sm:$0xf] %v852
    %864 = vst [vmem:[%s862] ss:$8 sm:$0xf0] %v852
    %s865 = scalar_lea.vmem [#allocation3], 633
    %866 = vst.msk [vmem:[%s865] ss:$8 sm:$0xf] %vm47, %v855
    %867 = vst.msk [vmem:[%s865] ss:$8 sm:$0x10] %vm47, %v855
    %868 = vrot.lane.b32.xlu0 %v35, 82
    %v869 = vpop.permute.xlu0 %868
    %870 = vrot.lane.b32.xlu0 %v36, 82
    %v871 = vpop.permute.xlu0 %870
    %872 = vrot.lane.b32.xlu0 %v37, 82
    %v873 = vpop.permute.xlu0 %872
    %874 = vrot.lane.b32.xlu0 %v38, 82
    %v875 = vpop.permute.xlu0 %874
    %v876 = vrot.slane %v869, 5
    %v877 = vrot.slane %v871, 5
    %v878 = vrot.slane %v873, 5
    %v879 = vrot.slane %v875, 5
    %v880 = vrot.slane %v869, 6
    %v881 = vrot.slane %v871, 6
    %v882 = vrot.slane %v873, 6
    %v883 = vrot.slane %v875, 6
    %v884 = vsel %vm578, %v876, %v877
    %v885 = vsel %vm580, %v880, %v881
    %vm886 = vcmask 670720
    %v887 = vsel %vm886, %v884, %v885
    %v888 = vsel %vm578, %v877, %v878
    %v889 = vsel %vm580, %v881, %v882
    %v890 = vsel %vm886, %v888, %v889
    %v891 = vsel %vm578, %v878, %v879
    %v892 = vsel %vm580, %v882, %v883
    %v893 = vsel %vm886, %v891, %v892
    %s897 = scalar_lea.vmem [#allocation3], 506
    %898 = vst [vmem:[%s897] ss:$8 sm:$0xf] %v887
    %899 = vst [vmem:[%s897] ss:$8 sm:$0xf0] %v887
    %s900 = scalar_lea.vmem [#allocation3], 570
    %901 = vst [vmem:[%s900] ss:$8 sm:$0xf] %v890
    %902 = vst [vmem:[%s900] ss:$8 sm:$0xf0] %v890
    %s903 = scalar_lea.vmem [#allocation3], 634
    %904 = vst.msk [vmem:[%s903] ss:$8 sm:$0xf] %vm47, %v893
    %905 = vst.msk [vmem:[%s903] ss:$8 sm:$0x10] %vm47, %v893
    %v906 = vld [vmem:[%s1] sm:$0xff]
    %v907 = vld [vmem:[#allocation3] sm:$0xff]
    %v908 = vld [vmem:[#allocation3 + $0x8] sm:$0xff]
    %v909 = vld [vmem:[#allocation3 + $0x10] sm:$0xff]
    %v910 = vld [vmem:[#allocation3 + $0x18] sm:$0xff]
    %v911 = vld [vmem:[#allocation3 + $0x20] sm:$0xff]
    %v912 = vld [vmem:[#allocation3 + $0x28] sm:$0xff]
    %v913 = vld [vmem:[#allocation3 + $0x30] sm:$0xff]
    %v914 = vld [vmem:[#allocation3 + $0x38] sm:$0xff]
    %v915 = vld [vmem:[#allocation3 + $0x40] sm:$0xff]
    %v916 = vld [vmem:[#allocation3 + $0x48] sm:$0xff]
    %v917 = vld [vmem:[#allocation3 + $0x50] sm:$0xff]
    %v918 = vld [vmem:[#allocation3 + $0x58] sm:$0xff]
    %v919 = vld [vmem:[#allocation3 + $0x60] sm:$0xff]
    %v920 = vld [vmem:[#allocation3 + $0x68] sm:$0xff]
    %v921 = vld [vmem:[#allocation3 + $0x70] sm:$0xff]
    %v922 = vld [vmem:[#allocation3 + $0x78] sm:$0xff]
    %v923 = vld [vmem:[#allocation3 + $0x80] sm:$0xff]
    %v924 = vld [vmem:[#allocation3 + $0x88] sm:$0xff]
    %v925 = vld [vmem:[#allocation3 + $0x90] sm:$0xff]
    %v926 = vld [vmem:[#allocation3 + $0x98] sm:$0xff]
    %v927 = vld [vmem:[#allocation3 + $0xa0] sm:$0xff]
    %v928 = vld [vmem:[#allocation3 + $0xa8] sm:$0xff]
    %v929 = vld [vmem:[#allocation3 + $0xb0] sm:$0xff]
    %v930 = vld [vmem:[#allocation3 + $0xb8] sm:$0xff]
    %v931 = vld [vmem:[#allocation3 + $0xc0] sm:$0xff]
    %v932 = vld [vmem:[#allocation3 + $0xc8] sm:$0xff]
    %v933 = vld [vmem:[#allocation3 + $0xd0] sm:$0xff]
    %v934 = vld [vmem:[#allocation3 + $0xd8] sm:$0xff]
    %v935 = vld [vmem:[#allocation3 + $0xe0] sm:$0xff]
    %v936 = vld [vmem:[#allocation3 + $0xe8] sm:$0xff]
    %v937 = vld [vmem:[#allocation3 + $0xf0] sm:$0xff]
    %v938 = vld [vmem:[#allocation3 + $0xf8] sm:$0xff]
    %v939 = vld [vmem:[#allocation3 + $0x100] sm:$0xff]
    %v940 = vld [vmem:[#allocation3 + $0x108] sm:$0xff]
    %v941 = vld [vmem:[#allocation3 + $0x110] sm:$0xff]
    %v942 = vld [vmem:[#allocation3 + $0x118] sm:$0xff]
    %v943 = vld [vmem:[#allocation3 + $0x120] sm:$0xff]
    %v944 = vld [vmem:[#allocation3 + $0x128] sm:$0xff]
    %v945 = vld [vmem:[#allocation3 + $0x130] sm:$0xff]
    %v946 = vld [vmem:[#allocation3 + $0x138] sm:$0xff]
    %v947 = vld [vmem:[#allocation3 + $0x140] sm:$0xff]
    %v948 = vld [vmem:[#allocation3 + $0x148] sm:$0xff]
    %v949 = vld [vmem:[#allocation3 + $0x150] sm:$0xff]
    %v950 = vld [vmem:[#allocation3 + $0x158] sm:$0xff]
    %v951 = vld [vmem:[#allocation3 + $0x160] sm:$0xff]
    %v952 = vld [vmem:[#allocation3 + $0x168] sm:$0xff]
    %v953 = vld [vmem:[#allocation3 + $0x170] sm:$0xff]
    %v954 = vld [vmem:[#allocation3 + $0x178] sm:$0xff]
    %v955 = vld [vmem:[#allocation3 + $0x180] sm:$0xff]
    %v956 = vld [vmem:[#allocation3 + $0x188] sm:$0xff]
    %v957 = vld [vmem:[#allocation3 + $0x190] sm:$0xff]
    %v958 = vld [vmem:[#allocation3 + $0x198] sm:$0xff]
    %v959 = vld [vmem:[#allocation3 + $0x1a0] sm:$0xff]
    %v960 = vld [vmem:[#allocation3 + $0x1a8] sm:$0xff]
    %v961 = vld [vmem:[#allocation3 + $0x1b0] sm:$0xff]
    %v962 = vld [vmem:[#allocation3 + $0x1b8] sm:$0xff]
    %v963 = vld [vmem:[#allocation3 + $0x1c0] sm:$0xff]
    %v964 = vld [vmem:[#allocation3 + $0x1c8] sm:$0xff]
    %v965 = vld [vmem:[#allocation3 + $0x1d0] sm:$0xff]
    %v966 = vld [vmem:[#allocation3 + $0x1d8] sm:$0xff]
    %v967 = vld [vmem:[#allocation3 + $0x1e0] sm:$0xff]
    %v968 = vld [vmem:[#allocation3 + $0x1e8] sm:$0xff]
    %v969 = vld [vmem:[#allocation3 + $0x1f0] sm:$0xff]
    %v970 = vld [vmem:[#allocation3 + $0x1f8] sm:$0x7]
    %v971 = vld [vmem:[#allocation3 + $0x200] sm:$0x7]
    %v972 = vld [vmem:[#allocation3 + $0x208] sm:$0x7]
    %v973 = vld [vmem:[#allocation3 + $0x210] sm:$0x7]
    %v974 = vld [vmem:[#allocation3 + $0x218] sm:$0x7]
    %v975 = vld [vmem:[#allocation3 + $0x220] sm:$0x7]
    %v976 = vld [vmem:[#allocation3 + $0x228] sm:$0x7]
    %v977 = vld [vmem:[#allocation3 + $0x230] sm:$0x7]
    %v978 = vld [vmem:[#allocation3 + $0x238] sm:$0x7]
    %v979 = vld [vmem:[#allocation3 + $0x240] sm:$0x7]
    %v980 = vld [vmem:[#allocation3 + $0x248] sm:$0x7]
    %v981 = vld [vmem:[#allocation3 + $0x250] sm:$0x7]
    %v982 = vld [vmem:[#allocation3 + $0x258] sm:$0x7]
    %v983 = vld [vmem:[#allocation3 + $0x260] sm:$0x7]
    %v984 = vld [vmem:[#allocation3 + $0x268] sm:$0x7]
    %v985 = vld [vmem:[#allocation3 + $0x270] sm:$0x7]
    %v986 = vld [vmem:[#allocation3 + $0x278] sm:$0x7]
    %v987 = vld [vmem:[#allocation3 + $0x280] sm:$0x7]
    %v988 = vld [vmem:[#allocation3 + $0x288] sm:$0x7]
    %v989 = vld [vmem:[#allocation3 + $0x290] sm:$0x7]
    %v990 = vld [vmem:[#allocation3 + $0x298] sm:$0x7]
    %v991 = vld [vmem:[%s2] sm:$0xff]
    %993 = vset.pattern.permute.xlu0 0
    %994 = vperm.xlu0 %993, %v991
    %v995 = vpop.permute.xlu0 %994
    %vm997 = vcmask 220160
    %v999 = vsel %vm997, %v906, 0
    %v1002 = vsel %vm578, %v970, 0
    %v1005 = vsel %vm578, %v971, 0
    %v1008 = vsel %vm578, %v972, 0
    %v1011 = vsel %vm578, %v973, 0
    %v1014 = vsel %vm578, %v974, 0
    %v1017 = vsel %vm578, %v975, 0
    %v1020 = vsel %vm578, %v976, 0
    %v1023 = vsel %vm578, %v977, 0
    %v1026 = vsel %vm578, %v978, 0
    %v1029 = vsel %vm578, %v979, 0
    %v1032 = vsel %vm578, %v980, 0
    %v1035 = vsel %vm578, %v981, 0
    %v1038 = vsel %vm578, %v982, 0
    %v1041 = vsel %vm578, %v983, 0
    %v1044 = vsel %vm578, %v984, 0
    %v1047 = vsel %vm578, %v985, 0
    %v1050 = vsel %vm578, %v986, 0
    %v1053 = vsel %vm578, %v987, 0
    %v1056 = vsel %vm578, %v988, 0
    %v1059 = vsel %vm578, %v989, 0
    %v1062 = vsel %vm578, %v990, 0
    %1064 = vmatprep.subr.mxu0 %v908
    %1065 = vmatpush1.msra.mxu0 %v907
    %1066 = vmatprep.subr.mxu0 %v929
    %1067 = vmatpush1.msra.mxu0 %v928
    %1068 = vmatprep.subr.mxu0 %v950
    %1069 = vmatpush1.msra.mxu0 %v949
    %1070 = vmatprep.subr.mxu0 %v1005
    %1071 = vmatpush1.msra.mxu0 %v1002
    %1072 = vmatprep.subr.mxu0 0.0
    %1073 = vmatpush1.msra.mxu0 0.0
    %1074 = vmatprep.subr.mxu0 0.0
    %1075 = vmatpush1.msra.mxu0 0.0
    %1076 = vmatprep.subr.mxu0 0.0
    %1077 = vmatpush1.msra.mxu0 0.0
    %1078 = vmatprep.subr.mxu0 0.0
    %1079 = vmatpush1.msra.mxu0 0.0
    %1080 = vmatprep.subr.mxu0 0.0
    %1081 = vmatpush1.msra.mxu0 0.0
    %1082 = vmatprep.subr.mxu0 0.0
    %1083 = vmatpush1.msra.mxu0 0.0
    %1084 = vmatprep.subr.mxu0 0.0
    %1085 = vmatpush1.msra.mxu0 0.0
    %1086 = vmatprep.subr.mxu0 0.0
    %1087 = vmatpush1.msra.mxu0 0.0
    %1088 = vmatprep.subr.mxu0 0.0
    %1089 = vmatpush1.msra.mxu0 0.0
    %1090 = vmatprep.subr.mxu0 0.0
    %1091 = vmatpush1.msra.mxu0 0.0
    %1092 = vmatprep.subr.mxu0 0.0
    %1093 = vmatpush1.msra.mxu0 0.0
    %1094 = vmatprep.subr.mxu0 0.0
    %1095 = vmatpush1.msra.mxu0 0.0
    %1096 = vmatprep.subr.mxu0 0.0
    %1097 = vmatpush1.msra.mxu0 0.0
    %1098 = vmatprep.subr.mxu0 0.0
    %1099 = vmatpush1.msra.mxu0 0.0
    %1100 = vmatprep.subr.mxu0 0.0
    %1101 = vmatpush1.msra.mxu0 0.0
    %1102 = vmatprep.subr.mxu0 0.0
    %1103 = vmatpush1.msra.mxu0 0.0
    %1104 = vmatprep.subr.mxu0 0.0
    %1105 = vmatpush1.msra.mxu0 0.0
    %1106 = vmatprep.subr.mxu0 0.0
    %1107 = vmatpush1.msra.mxu0 0.0
    %1108 = vmatprep.subr.mxu0 0.0
    %1109 = vmatpush1.msra.mxu0 0.0
    %1110 = vmatprep.subr.mxu0 0.0
    %1111 = vmatpush1.msra.mxu0 0.0
    %1112 = vmatprep.subr.mxu0 0.0
    %1113 = vmatpush1.msra.mxu0 0.0
    %1114 = vmatprep.subr.mxu0 0.0
    %1115 = vmatpush1.msra.mxu0 0.0
    %1116 = vmatprep.subr.mxu0 0.0
    %1117 = vmatpush1.msra.mxu0 0.0
    %1118 = vmatprep.subr.mxu0 0.0
    %1119 = vmatpush1.msra.mxu0 0.0
    %1120 = vmatprep.subr.mxu0 0.0
    %1121 = vmatpush1.msra.mxu0 0.0
    %1122 = vmatprep.subr.mxu0 0.0
    %1123 = vmatpush1.msra.mxu0 0.0
    %1124 = vmatprep.subr.mxu0 0.0
    %1125 = vmatpush1.msra.mxu0 0.0
    %1126 = vmatprep.subr.mxu0 0.0
    %1127 = vmatpush1.msra.mxu0 0.0
    %1128 = vmatprep.mubr.f32.mxu0 0.0
    %1129 = vmatmul.mubr.f32.gmra.mrb[0].mxu0 %v999
    %v1130 = vpop.f32.mrb[0].mxu0
    %v1131 = vadd.f32 %v995, %v1130
    %v1132 = vpop.f32.mrb[0].mxu0
    %v1133 = vadd.f32 %v995, %v1132
    %1134 = vdwg.mxu0
    %1135 = vmatprep.subr.mxu0 %v910
    %1136 = vmatpush1.msra.mxu0 %v909
    %1137 = vmatprep.subr.mxu0 %v931
    %1138 = vmatpush1.msra.mxu0 %v930
    %1139 = vmatprep.subr.mxu0 %v952
    %1140 = vmatpush1.msra.mxu0 %v951
    %1141 = vmatprep.subr.mxu0 %v1011
    %1142 = vmatpush1.msra.mxu0 %v1008
    %1143 = vmatprep.subr.mxu0 0.0
    %1144 = vmatpush1.msra.mxu0 0.0
    %1145 = vmatprep.subr.mxu0 0.0
    %1146 = vmatpush1.msra.mxu0 0.0
    %1147 = vmatprep.subr.mxu0 0.0
    %1148 = vmatpush1.msra.mxu0 0.0
    %1149 = vmatprep.subr.mxu0 0.0
    %1150 = vmatpush1.msra.mxu0 0.0
    %1151 = vmatprep.subr.mxu0 0.0
    %1152 = vmatpush1.msra.mxu0 0.0
    %1153 = vmatprep.subr.mxu0 0.0
    %1154 = vmatpush1.msra.mxu0 0.0
    %1155 = vmatprep.subr.mxu0 0.0
    %1156 = vmatpush1.msra.mxu0 0.0
    %1157 = vmatprep.subr.mxu0 0.0
    %1158 = vmatpush1.msra.mxu0 0.0
    %1159 = vmatprep.subr.mxu0 0.0
    %1160 = vmatpush1.msra.mxu0 0.0
    %1161 = vmatprep.subr.mxu0 0.0
    %1162 = vmatpush1.msra.mxu0 0.0
    %1163 = vmatprep.subr.mxu0 0.0
    %1164 = vmatpush1.msra.mxu0 0.0
    %1165 = vmatprep.subr.mxu0 0.0
    %1166 = vmatpush1.msra.mxu0 0.0
    %1167 = vmatprep.subr.mxu0 0.0
    %1168 = vmatpush1.msra.mxu0 0.0
    %1169 = vmatprep.subr.mxu0 0.0
    %1170 = vmatpush1.msra.mxu0 0.0
    %1171 = vmatprep.subr.mxu0 0.0
    %1172 = vmatpush1.msra.mxu0 0.0
    %1173 = vmatprep.subr.mxu0 0.0
    %1174 = vmatpush1.msra.mxu0 0.0
    %1175 = vmatprep.subr.mxu0 0.0
    %1176 = vmatpush1.msra.mxu0 0.0
    %1177 = vmatprep.subr.mxu0 0.0
    %1178 = vmatpush1.msra.mxu0 0.0
    %1179 = vmatprep.subr.mxu0 0.0
    %1180 = vmatpush1.msra.mxu0 0.0
    %1181 = vmatprep.subr.mxu0 0.0
    %1182 = vmatpush1.msra.mxu0 0.0
    %1183 = vmatprep.subr.mxu0 0.0
    %1184 = vmatpush1.msra.mxu0 0.0
    %1185 = vmatprep.subr.mxu0 0.0
    %1186 = vmatpush1.msra.mxu0 0.0
    %1187 = vmatprep.subr.mxu0 0.0
    %1188 = vmatpush1.msra.mxu0 0.0
    %1189 = vmatprep.subr.mxu0 0.0
    %1190 = vmatpush1.msra.mxu0 0.0
    %1191 = vmatprep.subr.mxu0 0.0
    %1192 = vmatpush1.msra.mxu0 0.0
    %1193 = vmatprep.subr.mxu0 0.0
    %1194 = vmatpush1.msra.mxu0 0.0
    %1195 = vmatprep.subr.mxu0 0.0
    %1196 = vmatpush1.msra.mxu0 0.0
    %1197 = vmatprep.subr.mxu0 0.0
    %1198 = vmatpush1.msra.mxu0 0.0
    %1199 = vmatprep.mubr.f32.mxu0 0.0
    %1200 = vmatmul.mubr.f32.gmra.mrb[0].mxu0 %v999
    %v1201 = vpop.f32.mrb[0].mxu0
    %v1202 = vadd.f32 %v995, %v1201
    %v1203 = vpop.f32.mrb[0].mxu0
    %v1204 = vadd.f32 %v995, %v1203
    %1205 = vdwg.mxu0
    %1206 = vmatprep.subr.mxu0 %v912
    %1207 = vmatpush1.msra.mxu0 %v911
    %1208 = vmatprep.subr.mxu0 %v933
    %1209 = vmatpush1.msra.mxu0 %v932
    %1210 = vmatprep.subr.mxu0 %v954
    %1211 = vmatpush1.msra.mxu0 %v953
    %1212 = vmatprep.subr.mxu0 %v1017
    %1213 = vmatpush1.msra.mxu0 %v1014
    %1214 = vmatprep.subr.mxu0 0.0
    %1215 = vmatpush1.msra.mxu0 0.0
    %1216 = vmatprep.subr.mxu0 0.0
    %1217 = vmatpush1.msra.mxu0 0.0
    %1218 = vmatprep.subr.mxu0 0.0
    %1219 = vmatpush1.msra.mxu0 0.0
    %1220 = vmatprep.subr.mxu0 0.0
    %1221 = vmatpush1.msra.mxu0 0.0
    %1222 = vmatprep.subr.mxu0 0.0
    %1223 = vmatpush1.msra.mxu0 0.0
    %1224 = vmatprep.subr.mxu0 0.0
    %1225 = vmatpush1.msra.mxu0 0.0
    %1226 = vmatprep.subr.mxu0 0.0
    %1227 = vmatpush1.msra.mxu0 0.0
    %1228 = vmatprep.subr.mxu0 0.0
    %1229 = vmatpush1.msra.mxu0 0.0
    %1230 = vmatprep.subr.mxu0 0.0
    %1231 = vmatpush1.msra.mxu0 0.0
    %1232 = vmatprep.subr.mxu0 0.0
    %1233 = vmatpush1.msra.mxu0 0.0
    %1234 = vmatprep.subr.mxu0 0.0
    %1235 = vmatpush1.msra.mxu0 0.0
    %1236 = vmatprep.subr.mxu0 0.0
    %1237 = vmatpush1.msra.mxu0 0.0
    %1238 = vmatprep.subr.mxu0 0.0
    %1239 = vmatpush1.msra.mxu0 0.0
    %1240 = vmatprep.subr.mxu0 0.0
    %1241 = vmatpush1.msra.mxu0 0.0
    %1242 = vmatprep.subr.mxu0 0.0
    %1243 = vmatpush1.msra.mxu0 0.0
    %1244 = vmatprep.subr.mxu0 0.0
    %1245 = vmatpush1.msra.mxu0 0.0
    %1246 = vmatprep.subr.mxu0 0.0
    %1247 = vmatpush1.msra.mxu0 0.0
    %1248 = vmatprep.subr.mxu0 0.0
    %1249 = vmatpush1.msra.mxu0 0.0
    %1250 = vmatprep.subr.mxu0 0.0
    %1251 = vmatpush1.msra.mxu0 0.0
    %1252 = vmatprep.subr.mxu0 0.0
    %1253 = vmatpush1.msra.mxu0 0.0
    %1254 = vmatprep.subr.mxu0 0.0
    %1255 = vmatpush1.msra.mxu0 0.0
    %1256 = vmatprep.subr.mxu0 0.0
    %1257 = vmatpush1.msra.mxu0 0.0
    %1258 = vmatprep.subr.mxu0 0.0
    %1259 = vmatpush1.msra.mxu0 0.0
    %1260 = vmatprep.subr.mxu0 0.0
    %1261 = vmatpush1.msra.mxu0 0.0
    %1262 = vmatprep.subr.mxu0 0.0
    %1263 = vmatpush1.msra.mxu0 0.0
    %1264 = vmatprep.subr.mxu0 0.0
    %1265 = vmatpush1.msra.mxu0 0.0
    %1266 = vmatprep.subr.mxu0 0.0
    %1267 = vmatpush1.msra.mxu0 0.0
    %1268 = vmatprep.subr.mxu0 0.0
    %1269 = vmatpush1.msra.mxu0 0.0
    %1270 = vmatprep.mubr.f32.mxu0 0.0
    %1271 = vmatmul.mubr.f32.gmra.mrb[0].mxu0 %v999
    %v1272 = vpop.f32.mrb[0].mxu0
    %v1273 = vadd.f32 %v995, %v1272
    %v1274 = vpop.f32.mrb[0].mxu0
    %v1275 = vadd.f32 %v995, %v1274
    %1276 = vdwg.mxu0
    %1277 = vmatprep.subr.mxu0 %v914
    %1278 = vmatpush1.msra.mxu0 %v913
    %1279 = vmatprep.subr.mxu0 %v935
    %1280 = vmatpush1.msra.mxu0 %v934
    %1281 = vmatprep.subr.mxu0 %v956
    %1282 = vmatpush1.msra.mxu0 %v955
    %1283 = vmatprep.subr.mxu0 %v1023
    %1284 = vmatpush1.msra.mxu0 %v1020
    %1285 = vmatprep.subr.mxu0 0.0
    %1286 = vmatpush1.msra.mxu0 0.0
    %1287 = vmatprep.subr.mxu0 0.0
    %1288 = vmatpush1.msra.mxu0 0.0
    %1289 = vmatprep.subr.mxu0 0.0
    %1290 = vmatpush1.msra.mxu0 0.0
    %1291 = vmatprep.subr.mxu0 0.0
    %1292 = vmatpush1.msra.mxu0 0.0
    %1293 = vmatprep.subr.mxu0 0.0
    %1294 = vmatpush1.msra.mxu0 0.0
    %1295 = vmatprep.subr.mxu0 0.0
    %1296 = vmatpush1.msra.mxu0 0.0
    %1297 = vmatprep.subr.mxu0 0.0
    %1298 = vmatpush1.msra.mxu0 0.0
    %1299 = vmatprep.subr.mxu0 0.0
    %1300 = vmatpush1.msra.mxu0 0.0
    %1301 = vmatprep.subr.mxu0 0.0
    %1302 = vmatpush1.msra.mxu0 0.0
    %1303 = vmatprep.subr.mxu0 0.0
    %1304 = vmatpush1.msra.mxu0 0.0
    %1305 = vmatprep.subr.mxu0 0.0
    %1306 = vmatpush1.msra.mxu0 0.0
    %1307 = vmatprep.subr.mxu0 0.0
    %1308 = vmatpush1.msra.mxu0 0.0
    %1309 = vmatprep.subr.mxu0 0.0
    %1310 = vmatpush1.msra.mxu0 0.0
    %1311 = vmatprep.subr.mxu0 0.0
    %1312 = vmatpush1.msra.mxu0 0.0
    %1313 = vmatprep.subr.mxu0 0.0
    %1314 = vmatpush1.msra.mxu0 0.0
    %1315 = vmatprep.subr.mxu0 0.0
    %1316 = vmatpush1.msra.mxu0 0.0
    %1317 = vmatprep.subr.mxu0 0.0
    %1318 = vmatpush1.msra.mxu0 0.0
    %1319 = vmatprep.subr.mxu0 0.0
    %1320 = vmatpush1.msra.mxu0 0.0
    %1321 = vmatprep.subr.mxu0 0.0
    %1322 = vmatpush1.msra.mxu0 0.0
    %1323 = vmatprep.subr.mxu0 0.0
    %1324 = vmatpush1.msra.mxu0 0.0
    %1325 = vmatprep.subr.mxu0 0.0
    %1326 = vmatpush1.msra.mxu0 0.0
    %1327 = vmatprep.subr.mxu0 0.0
    %1328 = vmatpush1.msra.mxu0 0.0
    %1329 = vmatprep.subr.mxu0 0.0
    %1330 = vmatpush1.msra.mxu0 0.0
    %1331 = vmatprep.subr.mxu0 0.0
    %1332 = vmatpush1.msra.mxu0 0.0
    %1333 = vmatprep.subr.mxu0 0.0
    %1334 = vmatpush1.msra.mxu0 0.0
    %1335 = vmatprep.subr.mxu0 0.0
    %1336 = vmatpush1.msra.mxu0 0.0
    %1337 = vmatprep.subr.mxu0 0.0
    %1338 = vmatpush1.msra.mxu0 0.0
    %1339 = vmatprep.subr.mxu0 0.0
    %1340 = vmatpush1.msra.mxu0 0.0
    %1341 = vmatprep.mubr.f32.mxu0 0.0
    %1342 = vmatmul.mubr.f32.gmra.mrb[0].mxu0 %v999
    %v1343 = vpop.f32.mrb[0].mxu0
    %v1344 = vadd.f32 %v995, %v1343
    %v1345 = vpop.f32.mrb[0].mxu0
    %v1346 = vadd.f32 %v995, %v1345
    %1347 = vdwg.mxu0
    %1348 = vmatprep.subr.mxu0 %v916
    %1349 = vmatpush1.msra.mxu0 %v915
    %1350 = vmatprep.subr.mxu0 %v937
    %1351 = vmatpush1.msra.mxu0 %v936
    %1352 = vmatprep.subr.mxu0 %v958
    %1353 = vmatpush1.msra.mxu0 %v957
    %1354 = vmatprep.subr.mxu0 %v1029
    %1355 = vmatpush1.msra.mxu0 %v1026
    %1356 = vmatprep.subr.mxu0 0.0
    %1357 = vmatpush1.msra.mxu0 0.0
    %1358 = vmatprep.subr.mxu0 0.0
    %1359 = vmatpush1.msra.mxu0 0.0
    %1360 = vmatprep.subr.mxu0 0.0
    %1361 = vmatpush1.msra.mxu0 0.0
    %1362 = vmatprep.subr.mxu0 0.0
    %1363 = vmatpush1.msra.mxu0 0.0
    %1364 = vmatprep.subr.mxu0 0.0
    %1365 = vmatpush1.msra.mxu0 0.0
    %1366 = vmatprep.subr.mxu0 0.0
    %1367 = vmatpush1.msra.mxu0 0.0
    %1368 = vmatprep.subr.mxu0 0.0
    %1369 = vmatpush1.msra.mxu0 0.0
    %1370 = vmatprep.subr.mxu0 0.0
    %1371 = vmatpush1.msra.mxu0 0.0
    %1372 = vmatprep.subr.mxu0 0.0
    %1373 = vmatpush1.msra.mxu0 0.0
    %1374 = vmatprep.subr.mxu0 0.0
    %1375 = vmatpush1.msra.mxu0 0.0
    %1376 = vmatprep.subr.mxu0 0.0
    %1377 = vmatpush1.msra.mxu0 0.0
    %1378 = vmatprep.subr.mxu0 0.0
    %1379 = vmatpush1.msra.mxu0 0.0
    %1380 = vmatprep.subr.mxu0 0.0
    %1381 = vmatpush1.msra.mxu0 0.0
    %1382 = vmatprep.subr.mxu0 0.0
    %1383 = vmatpush1.msra.mxu0 0.0
    %1384 = vmatprep.subr.mxu0 0.0
    %1385 = vmatpush1.msra.mxu0 0.0
    %1386 = vmatprep.subr.mxu0 0.0
    %1387 = vmatpush1.msra.mxu0 0.0
    %1388 = vmatprep.subr.mxu0 0.0
    %1389 = vmatpush1.msra.mxu0 0.0
    %1390 = vmatprep.subr.mxu0 0.0
    %1391 = vmatpush1.msra.mxu0 0.0
    %1392 = vmatprep.subr.mxu0 0.0
    %1393 = vmatpush1.msra.mxu0 0.0
    %1394 = vmatprep.subr.mxu0 0.0
    %1395 = vmatpush1.msra.mxu0 0.0
    %1396 = vmatprep.subr.mxu0 0.0
    %1397 = vmatpush1.msra.mxu0 0.0
    %1398 = vmatprep.subr.mxu0 0.0
    %1399 = vmatpush1.msra.mxu0 0.0
    %1400 = vmatprep.subr.mxu0 0.0
    %1401 = vmatpush1.msra.mxu0 0.0
    %1402 = vmatprep.subr.mxu0 0.0
    %1403 = vmatpush1.msra.mxu0 0.0
    %1404 = vmatprep.subr.mxu0 0.0
    %1405 = vmatpush1.msra.mxu0 0.0
    %1406 = vmatprep.subr.mxu0 0.0
    %1407 = vmatpush1.msra.mxu0 0.0
    %1408 = vmatprep.subr.mxu0 0.0
    %1409 = vmatpush1.msra.mxu0 0.0
    %1410 = vmatprep.subr.mxu0 0.0
    %1411 = vmatpush1.msra.mxu0 0.0
    %1412 = vmatprep.mubr.f32.mxu0 0.0
    %1413 = vmatmul.mubr.f32.gmra.mrb[0].mxu0 %v999
    %v1414 = vpop.f32.mrb[0].mxu0
    %v1415 = vadd.f32 %v995, %v1414
    %v1416 = vpop.f32.mrb[0].mxu0
    %v1417 = vadd.f32 %v995, %v1416
    %1418 = vdwg.mxu0
    %1419 = vmatprep.subr.mxu0 %v918
    %1420 = vmatpush1.msra.mxu0 %v917
    %1421 = vmatprep.subr.mxu0 %v939
    %1422 = vmatpush1.msra.mxu0 %v938
    %1423 = vmatprep.subr.mxu0 %v960
    %1424 = vmatpush1.msra.mxu0 %v959
    %1425 = vmatprep.subr.mxu0 %v1035
    %1426 = vmatpush1.msra.mxu0 %v1032
    %1427 = vmatprep.subr.mxu0 0.0
    %1428 = vmatpush1.msra.mxu0 0.0
    %1429 = vmatprep.subr.mxu0 0.0
    %1430 = vmatpush1.msra.mxu0 0.0
    %1431 = vmatprep.subr.mxu0 0.0
    %1432 = vmatpush1.msra.mxu0 0.0
    %1433 = vmatprep.subr.mxu0 0.0
    %1434 = vmatpush1.msra.mxu0 0.0
    %1435 = vmatprep.subr.mxu0 0.0
    %1436 = vmatpush1.msra.mxu0 0.0
    %1437 = vmatprep.subr.mxu0 0.0
    %1438 = vmatpush1.msra.mxu0 0.0
    %1439 = vmatprep.subr.mxu0 0.0
    %1440 = vmatpush1.msra.mxu0 0.0
    %1441 = vmatprep.subr.mxu0 0.0
    %1442 = vmatpush1.msra.mxu0 0.0
    %1443 = vmatprep.subr.mxu0 0.0
    %1444 = vmatpush1.msra.mxu0 0.0
    %1445 = vmatprep.subr.mxu0 0.0
    %1446 = vmatpush1.msra.mxu0 0.0
    %1447 = vmatprep.subr.mxu0 0.0
    %1448 = vmatpush1.msra.mxu0 0.0
    %1449 = vmatprep.subr.mxu0 0.0
    %1450 = vmatpush1.msra.mxu0 0.0
    %1451 = vmatprep.subr.mxu0 0.0
    %1452 = vmatpush1.msra.mxu0 0.0
    %1453 = vmatprep.subr.mxu0 0.0
    %1454 = vmatpush1.msra.mxu0 0.0
    %1455 = vmatprep.subr.mxu0 0.0
    %1456 = vmatpush1.msra.mxu0 0.0
    %1457 = vmatprep.subr.mxu0 0.0
    %1458 = vmatpush1.msra.mxu0 0.0
    %1459 = vmatprep.subr.mxu0 0.0
    %1460 = vmatpush1.msra.mxu0 0.0
    %1461 = vmatprep.subr.mxu0 0.0
    %1462 = vmatpush1.msra.mxu0 0.0
    %1463 = vmatprep.subr.mxu0 0.0
    %1464 = vmatpush1.msra.mxu0 0.0
    %1465 = vmatprep.subr.mxu0 0.0
    %1466 = vmatpush1.msra.mxu0 0.0
    %1467 = vmatprep.subr.mxu0 0.0
    %1468 = vmatpush1.msra.mxu0 0.0
    %1469 = vmatprep.subr.mxu0 0.0
    %1470 = vmatpush1.msra.mxu0 0.0
    %1471 = vmatprep.subr.mxu0 0.0
    %1472 = vmatpush1.msra.mxu0 0.0
    %1473 = vmatprep.subr.mxu0 0.0
    %1474 = vmatpush1.msra.mxu0 0.0
    %1475 = vmatprep.subr.mxu0 0.0
    %1476 = vmatpush1.msra.mxu0 0.0
    %1477 = vmatprep.subr.mxu0 0.0
    %1478 = vmatpush1.msra.mxu0 0.0
    %1479 = vmatprep.subr.mxu0 0.0
    %1480 = vmatpush1.msra.mxu0 0.0
    %1481 = vmatprep.subr.mxu0 0.0
    %1482 = vmatpush1.msra.mxu0 0.0
    %1483 = vmatprep.mubr.f32.mxu0 0.0
    %1484 = vmatmul.mubr.f32.gmra.mrb[0].mxu0 %v999
    %v1485 = vpop.f32.mrb[0].mxu0
    %v1486 = vadd.f32 %v995, %v1485
    %v1487 = vpop.f32.mrb[0].mxu0
    %v1488 = vadd.f32 %v995, %v1487
    %1489 = vdwg.mxu0
    %1490 = vmatprep.subr.mxu0 %v920
    %1491 = vmatpush1.msra.mxu0 %v919
    %1492 = vmatprep.subr.mxu0 %v941
    %1493 = vmatpush1.msra.mxu0 %v940
    %1494 = vmatprep.subr.mxu0 %v962
    %1495 = vmatpush1.msra.mxu0 %v961
    %1496 = vmatprep.subr.mxu0 %v1041
    %1497 = vmatpush1.msra.mxu0 %v1038
    %1498 = vmatprep.subr.mxu0 0.0
    %1499 = vmatpush1.msra.mxu0 0.0
    %1500 = vmatprep.subr.mxu0 0.0
    %1501 = vmatpush1.msra.mxu0 0.0
    %1502 = vmatprep.subr.mxu0 0.0
    %1503 = vmatpush1.msra.mxu0 0.0
    %1504 = vmatprep.subr.mxu0 0.0
    %1505 = vmatpush1.msra.mxu0 0.0
    %1506 = vmatprep.subr.mxu0 0.0
    %1507 = vmatpush1.msra.mxu0 0.0
    %1508 = vmatprep.subr.mxu0 0.0
    %1509 = vmatpush1.msra.mxu0 0.0
    %1510 = vmatprep.subr.mxu0 0.0
    %1511 = vmatpush1.msra.mxu0 0.0
    %1512 = vmatprep.subr.mxu0 0.0
    %1513 = vmatpush1.msra.mxu0 0.0
    %1514 = vmatprep.subr.mxu0 0.0
    %1515 = vmatpush1.msra.mxu0 0.0
    %1516 = vmatprep.subr.mxu0 0.0
    %1517 = vmatpush1.msra.mxu0 0.0
    %1518 = vmatprep.subr.mxu0 0.0
    %1519 = vmatpush1.msra.mxu0 0.0
    %1520 = vmatprep.subr.mxu0 0.0
    %1521 = vmatpush1.msra.mxu0 0.0
    %1522 = vmatprep.subr.mxu0 0.0
    %1523 = vmatpush1.msra.mxu0 0.0
    %1524 = vmatprep.subr.mxu0 0.0
    %1525 = vmatpush1.msra.mxu0 0.0
    %1526 = vmatprep.subr.mxu0 0.0
    %1527 = vmatpush1.msra.mxu0 0.0
    %1528 = vmatprep.subr.mxu0 0.0
    %1529 = vmatpush1.msra.mxu0 0.0
    %1530 = vmatprep.subr.mxu0 0.0
    %1531 = vmatpush1.msra.mxu0 0.0
    %1532 = vmatprep.subr.mxu0 0.0
    %1533 = vmatpush1.msra.mxu0 0.0
    %1534 = vmatprep.subr.mxu0 0.0
    %1535 = vmatpush1.msra.mxu0 0.0
    %1536 = vmatprep.subr.mxu0 0.0
    %1537 = vmatpush1.msra.mxu0 0.0
    %1538 = vmatprep.subr.mxu0 0.0
    %1539 = vmatpush1.msra.mxu0 0.0
    %1540 = vmatprep.subr.mxu0 0.0
    %1541 = vmatpush1.msra.mxu0 0.0
    %1542 = vmatprep.subr.mxu0 0.0
    %1543 = vmatpush1.msra.mxu0 0.0
    %1544 = vmatprep.subr.mxu0 0.0
    %1545 = vmatpush1.msra.mxu0 0.0
    %1546 = vmatprep.subr.mxu0 0.0
    %1547 = vmatpush1.msra.mxu0 0.0
    %1548 = vmatprep.subr.mxu0 0.0
    %1549 = vmatpush1.msra.mxu0 0.0
    %1550 = vmatprep.subr.mxu0 0.0
    %1551 = vmatpush1.msra.mxu0 0.0
    %1552 = vmatprep.subr.mxu0 0.0
    %1553 = vmatpush1.msra.mxu0 0.0
    %1554 = vmatprep.mubr.f32.mxu0 0.0
    %1555 = vmatmul.mubr.f32.gmra.mrb[0].mxu0 %v999
    %v1556 = vpop.f32.mrb[0].mxu0
    %v1557 = vadd.f32 %v995, %v1556
    %v1558 = vpop.f32.mrb[0].mxu0
    %v1559 = vadd.f32 %v995, %v1558
    %1560 = vdwg.mxu0
    %1561 = vmatprep.subr.mxu0 %v922
    %1562 = vmatpush1.msra.mxu0 %v921
    %1563 = vmatprep.subr.mxu0 %v943
    %1564 = vmatpush1.msra.mxu0 %v942
    %1565 = vmatprep.subr.mxu0 %v964
    %1566 = vmatpush1.msra.mxu0 %v963
    %1567 = vmatprep.subr.mxu0 %v1047
    %1568 = vmatpush1.msra.mxu0 %v1044
    %1569 = vmatprep.subr.mxu0 0.0
    %1570 = vmatpush1.msra.mxu0 0.0
    %1571 = vmatprep.subr.mxu0 0.0
    %1572 = vmatpush1.msra.mxu0 0.0
    %1573 = vmatprep.subr.mxu0 0.0
    %1574 = vmatpush1.msra.mxu0 0.0
    %1575 = vmatprep.subr.mxu0 0.0
    %1576 = vmatpush1.msra.mxu0 0.0
    %1577 = vmatprep.subr.mxu0 0.0
    %1578 = vmatpush1.msra.mxu0 0.0
    %1579 = vmatprep.subr.mxu0 0.0
    %1580 = vmatpush1.msra.mxu0 0.0
    %1581 = vmatprep.subr.mxu0 0.0
    %1582 = vmatpush1.msra.mxu0 0.0
    %1583 = vmatprep.subr.mxu0 0.0
    %1584 = vmatpush1.msra.mxu0 0.0
    %1585 = vmatprep.subr.mxu0 0.0
    %1586 = vmatpush1.msra.mxu0 0.0
    %1587 = vmatprep.subr.mxu0 0.0
    %1588 = vmatpush1.msra.mxu0 0.0
    %1589 = vmatprep.subr.mxu0 0.0
    %1590 = vmatpush1.msra.mxu0 0.0
    %1591 = vmatprep.subr.mxu0 0.0
    %1592 = vmatpush1.msra.mxu0 0.0
    %1593 = vmatprep.subr.mxu0 0.0
    %1594 = vmatpush1.msra.mxu0 0.0
    %1595 = vmatprep.subr.mxu0 0.0
    %1596 = vmatpush1.msra.mxu0 0.0
    %1597 = vmatprep.subr.mxu0 0.0
    %1598 = vmatpush1.msra.mxu0 0.0
    %1599 = vmatprep.subr.mxu0 0.0
    %1600 = vmatpush1.msra.mxu0 0.0
    %1601 = vmatprep.subr.mxu0 0.0
    %1602 = vmatpush1.msra.mxu0 0.0
    %1603 = vmatprep.subr.mxu0 0.0
    %1604 = vmatpush1.msra.mxu0 0.0
    %1605 = vmatprep.subr.mxu0 0.0
    %1606 = vmatpush1.msra.mxu0 0.0
    %1607 = vmatprep.subr.mxu0 0.0
    %1608 = vmatpush1.msra.mxu0 0.0
    %1609 = vmatprep.subr.mxu0 0.0
    %1610 = vmatpush1.msra.mxu0 0.0
    %1611 = vmatprep.subr.mxu0 0.0
    %1612 = vmatpush1.msra.mxu0 0.0
    %1613 = vmatprep.subr.mxu0 0.0
    %1614 = vmatpush1.msra.mxu0 0.0
    %1615 = vmatprep.subr.mxu0 0.0
    %1616 = vmatpush1.msra.mxu0 0.0
    %1617 = vmatprep.subr.mxu0 0.0
    %1618 = vmatpush1.msra.mxu0 0.0
    %1619 = vmatprep.subr.mxu0 0.0
    %1620 = vmatpush1.msra.mxu0 0.0
    %1621 = vmatprep.subr.mxu0 0.0
    %1622 = vmatpush1.msra.mxu0 0.0
    %1623 = vmatprep.subr.mxu0 0.0
    %1624 = vmatpush1.msra.mxu0 0.0
    %1625 = vmatprep.mubr.f32.mxu0 0.0
    %1626 = vmatmul.mubr.f32.gmra.mrb[0].mxu0 %v999
    %v1627 = vpop.f32.mrb[0].mxu0
    %v1628 = vadd.f32 %v995, %v1627
    %v1629 = vpop.f32.mrb[0].mxu0
    %v1630 = vadd.f32 %v995, %v1629
    %1631 = vdwg.mxu0
    %1632 = vmatprep.subr.mxu0 %v924
    %1633 = vmatpush1.msra.mxu0 %v923
    %1634 = vmatprep.subr.mxu0 %v945
    %1635 = vmatpush1.msra.mxu0 %v944
    %1636 = vmatprep.subr.mxu0 %v966
    %1637 = vmatpush1.msra.mxu0 %v965
    %1638 = vmatprep.subr.mxu0 %v1053
    %1639 = vmatpush1.msra.mxu0 %v1050
    %1640 = vmatprep.subr.mxu0 0.0
    %1641 = vmatpush1.msra.mxu0 0.0
    %1642 = vmatprep.subr.mxu0 0.0
    %1643 = vmatpush1.msra.mxu0 0.0
    %1644 = vmatprep.subr.mxu0 0.0
    %1645 = vmatpush1.msra.mxu0 0.0
    %1646 = vmatprep.subr.mxu0 0.0
    %1647 = vmatpush1.msra.mxu0 0.0
    %1648 = vmatprep.subr.mxu0 0.0
    %1649 = vmatpush1.msra.mxu0 0.0
    %1650 = vmatprep.subr.mxu0 0.0
    %1651 = vmatpush1.msra.mxu0 0.0
    %1652 = vmatprep.subr.mxu0 0.0
    %1653 = vmatpush1.msra.mxu0 0.0
    %1654 = vmatprep.subr.mxu0 0.0
    %1655 = vmatpush1.msra.mxu0 0.0
    %1656 = vmatprep.subr.mxu0 0.0
    %1657 = vmatpush1.msra.mxu0 0.0
    %1658 = vmatprep.subr.mxu0 0.0
    %1659 = vmatpush1.msra.mxu0 0.0
    %1660 = vmatprep.subr.mxu0 0.0
    %1661 = vmatpush1.msra.mxu0 0.0
    %1662 = vmatprep.subr.mxu0 0.0
    %1663 = vmatpush1.msra.mxu0 0.0
    %1664 = vmatprep.subr.mxu0 0.0
    %1665 = vmatpush1.msra.mxu0 0.0
    %1666 = vmatprep.subr.mxu0 0.0
    %1667 = vmatpush1.msra.mxu0 0.0
    %1668 = vmatprep.subr.mxu0 0.0
    %1669 = vmatpush1.msra.mxu0 0.0
    %1670 = vmatprep.subr.mxu0 0.0
    %1671 = vmatpush1.msra.mxu0 0.0
    %1672 = vmatprep.subr.mxu0 0.0
    %1673 = vmatpush1.msra.mxu0 0.0
    %1674 = vmatprep.subr.mxu0 0.0
    %1675 = vmatpush1.msra.mxu0 0.0
    %1676 = vmatprep.subr.mxu0 0.0
    %1677 = vmatpush1.msra.mxu0 0.0
    %1678 = vmatprep.subr.mxu0 0.0
    %1679 = vmatpush1.msra.mxu0 0.0
    %1680 = vmatprep.subr.mxu0 0.0
    %1681 = vmatpush1.msra.mxu0 0.0
    %1682 = vmatprep.subr.mxu0 0.0
    %1683 = vmatpush1.msra.mxu0 0.0
    %1684 = vmatprep.subr.mxu0 0.0
    %1685 = vmatpush1.msra.mxu0 0.0
    %1686 = vmatprep.subr.mxu0 0.0
    %1687 = vmatpush1.msra.mxu0 0.0
    %1688 = vmatprep.subr.mxu0 0.0
    %1689 = vmatpush1.msra.mxu0 0.0
    %1690 = vmatprep.subr.mxu0 0.0
    %1691 = vmatpush1.msra.mxu0 0.0
    %1692 = vmatprep.subr.mxu0 0.0
    %1693 = vmatpush1.msra.mxu0 0.0
    %1694 = vmatprep.subr.mxu0 0.0
    %1695 = vmatpush1.msra.mxu0 0.0
    %1696 = vmatprep.mubr.f32.mxu0 0.0
    %1697 = vmatmul.mubr.f32.gmra.mrb[0].mxu0 %v999
    %v1698 = vpop.f32.mrb[0].mxu0
    %v1699 = vadd.f32 %v995, %v1698
    %v1700 = vpop.f32.mrb[0].mxu0
    %v1701 = vadd.f32 %v995, %v1700
    %1702 = vdwg.mxu0
    %1703 = vmatprep.subr.mxu0 %v926
    %1704 = vmatpush1.msra.mxu0 %v925
    %1705 = vmatprep.subr.mxu0 %v947
    %1706 = vmatpush1.msra.mxu0 %v946
    %1707 = vmatprep.subr.mxu0 %v968
    %1708 = vmatpush1.msra.mxu0 %v967
    %1709 = vmatprep.subr.mxu0 %v1059
    %1710 = vmatpush1.msra.mxu0 %v1056
    %1711 = vmatprep.subr.mxu0 0.0
    %1712 = vmatpush1.msra.mxu0 0.0
    %1713 = vmatprep.subr.mxu0 0.0
    %1714 = vmatpush1.msra.mxu0 0.0
    %1715 = vmatprep.subr.mxu0 0.0
    %1716 = vmatpush1.msra.mxu0 0.0
    %1717 = vmatprep.subr.mxu0 0.0
    %1718 = vmatpush1.msra.mxu0 0.0
    %1719 = vmatprep.subr.mxu0 0.0
    %1720 = vmatpush1.msra.mxu0 0.0
    %1721 = vmatprep.subr.mxu0 0.0
    %1722 = vmatpush1.msra.mxu0 0.0
    %1723 = vmatprep.subr.mxu0 0.0
    %1724 = vmatpush1.msra.mxu0 0.0
    %1725 = vmatprep.subr.mxu0 0.0
    %1726 = vmatpush1.msra.mxu0 0.0
    %1727 = vmatprep.subr.mxu0 0.0
    %1728 = vmatpush1.msra.mxu0 0.0
    %1729 = vmatprep.subr.mxu0 0.0
    %1730 = vmatpush1.msra.mxu0 0.0
    %1731 = vmatprep.subr.mxu0 0.0
    %1732 = vmatpush1.msra.mxu0 0.0
    %1733 = vmatprep.subr.mxu0 0.0
    %1734 = vmatpush1.msra.mxu0 0.0
    %1735 = vmatprep.subr.mxu0 0.0
    %1736 = vmatpush1.msra.mxu0 0.0
    %1737 = vmatprep.subr.mxu0 0.0
    %1738 = vmatpush1.msra.mxu0 0.0
    %1739 = vmatprep.subr.mxu0 0.0
    %1740 = vmatpush1.msra.mxu0 0.0
    %1741 = vmatprep.subr.mxu0 0.0
    %1742 = vmatpush1.msra.mxu0 0.0
    %1743 = vmatprep.subr.mxu0 0.0
    %1744 = vmatpush1.msra.mxu0 0.0
    %1745 = vmatprep.subr.mxu0 0.0
    %1746 = vmatpush1.msra.mxu0 0.0
    %1747 = vmatprep.subr.mxu0 0.0
    %1748 = vmatpush1.msra.mxu0 0.0
    %1749 = vmatprep.subr.mxu0 0.0
    %1750 = vmatpush1.msra.mxu0 0.0
    %1751 = vmatprep.subr.mxu0 0.0
    %1752 = vmatpush1.msra.mxu0 0.0
    %1753 = vmatprep.subr.mxu0 0.0
    %1754 = vmatpush1.msra.mxu0 0.0
    %1755 = vmatprep.subr.mxu0 0.0
    %1756 = vmatpush1.msra.mxu0 0.0
    %1757 = vmatprep.subr.mxu0 0.0
    %1758 = vmatpush1.msra.mxu0 0.0
    %1759 = vmatprep.subr.mxu0 0.0
    %1760 = vmatpush1.msra.mxu0 0.0
    %1761 = vmatprep.subr.mxu0 0.0
    %1762 = vmatpush1.msra.mxu0 0.0
    %1763 = vmatprep.subr.mxu0 0.0
    %1764 = vmatpush1.msra.mxu0 0.0
    %1765 = vmatprep.subr.mxu0 0.0
    %1766 = vmatpush1.msra.mxu0 0.0
    %1767 = vmatprep.mubr.f32.mxu0 0.0
    %1768 = vmatmul.mubr.f32.gmra.mrb[0].mxu0 %v999
    %v1769 = vpop.f32.mrb[0].mxu0
    %v1770 = vadd.f32 %v995, %v1769
    %v1771 = vpop.f32.mrb[0].mxu0
    %v1772 = vadd.f32 %v995, %v1771
    %1773 = vdwg.mxu0
    %1774 = vmatprep.subr.mxu0 0.0
    %1775 = vmatpush1.msra.mxu0 %v927
    %1776 = vmatprep.subr.mxu0 0.0
    %1777 = vmatpush1.msra.mxu0 %v948
    %1778 = vmatprep.subr.mxu0 0.0
    %1779 = vmatpush1.msra.mxu0 %v969
    %1780 = vmatprep.subr.mxu0 0.0
    %1781 = vmatpush1.msra.mxu0 %v1062
    %1782 = vmatprep.subr.mxu0 0.0
    %1783 = vmatpush1.msra.mxu0 0.0
    %1784 = vmatprep.subr.mxu0 0.0
    %1785 = vmatpush1.msra.mxu0 0.0
    %1786 = vmatprep.subr.mxu0 0.0
    %1787 = vmatpush1.msra.mxu0 0.0
    %1788 = vmatprep.subr.mxu0 0.0
    %1789 = vmatpush1.msra.mxu0 0.0
    %1790 = vmatprep.subr.mxu0 0.0
    %1791 = vmatpush1.msra.mxu0 0.0
    %1792 = vmatprep.subr.mxu0 0.0
    %1793 = vmatpush1.msra.mxu0 0.0
    %1794 = vmatprep.subr.mxu0 0.0
    %1795 = vmatpush1.msra.mxu0 0.0
    %1796 = vmatprep.subr.mxu0 0.0
    %1797 = vmatpush1.msra.mxu0 0.0
    %1798 = vmatprep.subr.mxu0 0.0
    %1799 = vmatpush1.msra.mxu0 0.0
    %1800 = vmatprep.subr.mxu0 0.0
    %1801 = vmatpush1.msra.mxu0 0.0
    %1802 = vmatprep.subr.mxu0 0.0
    %1803 = vmatpush1.msra.mxu0 0.0
    %1804 = vmatprep.subr.mxu0 0.0
    %1805 = vmatpush1.msra.mxu0 0.0
    %1806 = vmatprep.subr.mxu0 0.0
    %1807 = vmatpush1.msra.mxu0 0.0
    %1808 = vmatprep.subr.mxu0 0.0
    %1809 = vmatpush1.msra.mxu0 0.0
    %1810 = vmatprep.subr.mxu0 0.0
    %1811 = vmatpush1.msra.mxu0 0.0
    %1812 = vmatprep.subr.mxu0 0.0
    %1813 = vmatpush1.msra.mxu0 0.0
    %1814 = vmatprep.subr.mxu0 0.0
    %1815 = vmatpush1.msra.mxu0 0.0
    %1816 = vmatprep.subr.mxu0 0.0
    %1817 = vmatpush1.msra.mxu0 0.0
    %1818 = vmatprep.subr.mxu0 0.0
    %1819 = vmatpush1.msra.mxu0 0.0
    %1820 = vmatprep.subr.mxu0 0.0
    %1821 = vmatpush1.msra.mxu0 0.0
    %1822 = vmatprep.subr.mxu0 0.0
    %1823 = vmatpush1.msra.mxu0 0.0
    %1824 = vmatprep.subr.mxu0 0.0
    %1825 = vmatpush1.msra.mxu0 0.0
    %1826 = vmatprep.subr.mxu0 0.0
    %1827 = vmatpush1.msra.mxu0 0.0
    %1828 = vmatprep.subr.mxu0 0.0
    %1829 = vmatpush1.msra.mxu0 0.0
    %1830 = vmatprep.subr.mxu0 0.0
    %1831 = vmatpush1.msra.mxu0 0.0
    %1832 = vmatprep.subr.mxu0 0.0
    %1833 = vmatpush1.msra.mxu0 0.0
    %1834 = vmatprep.subr.mxu0 0.0
    %1835 = vmatpush1.msra.mxu0 0.0
    %1836 = vmatprep.subr.mxu0 0.0
    %1837 = vmatpush1.msra.mxu0 0.0
    %1838 = vmatprep.mubr.f32.mxu0 0.0
    %1839 = vmatmul.mubr.f32.gmra.mrb[0].mxu0 %v999
    %v1840 = vpop.f32.mrb[0].mxu0
    %v1841 = vadd.f32 %v995, %v1840
    %v1842 = vpop.f32.mrb[0].mxu0
    %1843 = vdwg.mxu0
    %v1844 = vmax.f32 %v1131, 0.0
    %v1845 = vmax.f32 %v1133, 0.0
    %v1846 = vmax.f32 %v1202, 0.0
    %v1847 = vmax.f32 %v1204, 0.0
    %v1848 = vmax.f32 %v1273, 0.0
    %v1849 = vmax.f32 %v1275, 0.0
    %v1850 = vmax.f32 %v1344, 0.0
    %v1851 = vmax.f32 %v1346, 0.0
    %v1852 = vmax.f32 %v1415, 0.0
    %v1853 = vmax.f32 %v1417, 0.0
    %v1854 = vmax.f32 %v1486, 0.0
    %v1855 = vmax.f32 %v1488, 0.0
    %v1856 = vmax.f32 %v1557, 0.0
    %v1857 = vmax.f32 %v1559, 0.0
    %v1858 = vmax.f32 %v1628, 0.0
    %v1859 = vmax.f32 %v1630, 0.0
    %v1860 = vmax.f32 %v1699, 0.0
    %v1861 = vmax.f32 %v1701, 0.0
    %v1862 = vmax.f32 %v1770, 0.0
    %v1863 = vmax.f32 %v1772, 0.0
    %v1864 = vmax.f32 %v1841, 0.0
    %v1865 = vld [vmem:[#allocation4] sm:$0xff]
    %v1866 = vld [vmem:[#allocation4 + $0x8] sm:$0xff]
    %v1867 = vld [vmem:[#allocation4 + $0x10] sm:$0x1f]
    %v1871 = vlaneseq
    %v1872 = vshrl.u32 %v1871, 7
    %v1873 = vsub.s32 0, %v1872
    %v1874 = vrot.slane %v1865, %v1873
    %v1875 = vlaneseq
    %v1876 = vshrl.u32 %v1875, 7
    %v1877 = vsub.s32 1, %v1876
    %v1878 = vrot.slane %v1865, %v1877
    %v1879 = vlaneseq
    %v1880 = vshrl.u32 %v1879, 7
    %v1881 = vsub.s32 2, %v1880
    %v1882 = vrot.slane %v1865, %v1881
    %v1883 = vlaneseq
    %v1884 = vshrl.u32 %v1883, 7
    %v1885 = vsub.s32 3, %v1884
    %v1886 = vrot.slane %v1865, %v1885
    %v1887 = vlaneseq
    %v1888 = vshrl.u32 %v1887, 7
    %v1889 = vsub.s32 4, %v1888
    %v1890 = vrot.slane %v1865, %v1889
    %v1891 = vlaneseq
    %v1892 = vshrl.u32 %v1891, 7
    %v1893 = vsub.s32 5, %v1892
    %v1894 = vrot.slane %v1865, %v1893
    %v1895 = vlaneseq
    %v1896 = vshrl.u32 %v1895, 7
    %v1897 = vsub.s32 6, %v1896
    %v1898 = vrot.slane %v1865, %v1897
    %v1899 = vlaneseq
    %v1900 = vshrl.u32 %v1899, 7
    %v1901 = vsub.s32 7, %v1900
    %v1902 = vrot.slane %v1865, %v1901
    %v1903 = vlaneseq
    %v1904 = vshrl.u32 %v1903, 7
    %v1905 = vsub.s32 0, %v1904
    %v1906 = vrot.slane %v1866, %v1905
    %v1907 = vlaneseq
    %v1908 = vshrl.u32 %v1907, 7
    %v1909 = vsub.s32 1, %v1908
    %v1910 = vrot.slane %v1866, %v1909
    %v1911 = vlaneseq
    %v1912 = vshrl.u32 %v1911, 7
    %v1913 = vsub.s32 2, %v1912
    %v1914 = vrot.slane %v1866, %v1913
    %v1915 = vlaneseq
    %v1916 = vshrl.u32 %v1915, 7
    %v1917 = vsub.s32 3, %v1916
    %v1918 = vrot.slane %v1866, %v1917
    %v1919 = vlaneseq
    %v1920 = vshrl.u32 %v1919, 7
    %v1921 = vsub.s32 4, %v1920
    %v1922 = vrot.slane %v1866, %v1921
    %v1923 = vlaneseq
    %v1924 = vshrl.u32 %v1923, 7
    %v1925 = vsub.s32 5, %v1924
    %v1926 = vrot.slane %v1866, %v1925
    %v1927 = vlaneseq
    %v1928 = vshrl.u32 %v1927, 7
    %v1929 = vsub.s32 6, %v1928
    %v1930 = vrot.slane %v1866, %v1929
    %v1931 = vlaneseq
    %v1932 = vshrl.u32 %v1931, 7
    %v1933 = vsub.s32 7, %v1932
    %v1934 = vrot.slane %v1866, %v1933
    %v1935 = vlaneseq
    %v1936 = vshrl.u32 %v1935, 7
    %v1937 = vsub.s32 0, %v1936
    %v1938 = vrot.slane %v1867, %v1937
    %v1939 = vlaneseq
    %v1940 = vshrl.u32 %v1939, 7
    %v1941 = vsub.s32 1, %v1940
    %v1942 = vrot.slane %v1867, %v1941
    %v1943 = vlaneseq
    %v1944 = vshrl.u32 %v1943, 7
    %v1945 = vsub.s32 2, %v1944
    %v1946 = vrot.slane %v1867, %v1945
    %v1947 = vlaneseq
    %v1948 = vshrl.u32 %v1947, 7
    %v1949 = vsub.s32 3, %v1948
    %v1950 = vrot.slane %v1867, %v1949
    %v1951 = vlaneseq
    %v1952 = vshrl.u32 %v1951, 7
    %v1953 = vsub.s32 4, %v1952
    %v1954 = vrot.slane %v1867, %v1953
    %v1976 = vmul.f32 %v1844, %v1874
    %v1977 = vmul.f32 %v1845, %v1878
    %v1978 = vmul.f32 %v1846, %v1882
    %v1979 = vmul.f32 %v1847, %v1886
    %v1980 = vmul.f32 %v1848, %v1890
    %v1981 = vmul.f32 %v1849, %v1894
    %v1982 = vmul.f32 %v1850, %v1898
    %v1983 = vmul.f32 %v1851, %v1902
    %v1984 = vmul.f32 %v1852, %v1906
    %v1985 = vmul.f32 %v1853, %v1910
    %v1986 = vmul.f32 %v1854, %v1914
    %v1987 = vmul.f32 %v1855, %v1918
    %v1988 = vmul.f32 %v1856, %v1922
    %v1989 = vmul.f32 %v1857, %v1926
    %v1990 = vmul.f32 %v1858, %v1930
    %v1991 = vmul.f32 %v1859, %v1934
    %v1992 = vmul.f32 %v1860, %v1938
    %v1993 = vmul.f32 %v1861, %v1942
    %v1994 = vmul.f32 %v1862, %v1946
    %v1995 = vmul.f32 %v1863, %v1950
    %v1996 = vmul.f32 %v1864, %v1954
    %1997 = vst [vmem:[#allocation2] sm:$0xff] 0.0
    %1998 = vst [vmem:[#allocation2 + $0x8] sm:$0xff] 0.0
    %1999 = vst [vmem:[#allocation2 + $0x10] sm:$0xff] 0.0
    %2000 = vst [vmem:[#allocation2 + $0x18] sm:$0xff] 0.0
    %2001 = vst [vmem:[#allocation2 + $0x20] sm:$0xff] 0.0
    %2002 = vst [vmem:[#allocation2 + $0x28] sm:$0xff] 0.0
    %2003 = vst [vmem:[#allocation2 + $0x30] sm:$0xff] 0.0
    %2004 = vst [vmem:[#allocation2 + $0x38] sm:$0xff] 0.0
    %2005 = vst [vmem:[#allocation2 + $0x40] sm:$0xff] 0.0
    %2006 = vst [vmem:[#allocation2 + $0x48] sm:$0xff] 0.0
    %2007 = vst [vmem:[#allocation2 + $0x50] sm:$0xff] 0.0
    %2008 = vst [vmem:[#allocation2 + $0x58] sm:$0xff] 0.0
    %2009 = vst [vmem:[#allocation2 + $0x60] sm:$0xff] 0.0
    %2010 = vst [vmem:[#allocation2 + $0x68] sm:$0xff] 0.0
    %2011 = vst [vmem:[#allocation2 + $0x70] sm:$0xff] 0.0
    %2012 = vst [vmem:[#allocation2 + $0x78] sm:$0xff] 0.0
    %2013 = vst [vmem:[#allocation2 + $0x80] sm:$0xff] 0.0
    %2014 = vst [vmem:[#allocation2 + $0x88] sm:$0xff] 0.0
    %2015 = vst [vmem:[#allocation2 + $0x90] sm:$0xff] 0.0
    %2016 = vst [vmem:[#allocation2 + $0x98] sm:$0xff] 0.0
    %2017 = vst [vmem:[#allocation2 + $0xa0] sm:$0xff] 0.0
    %2018 = vst [vmem:[#allocation2 + $0xa8] sm:$0xff] 0.0
    %2019 = vst [vmem:[#allocation2 + $0xb0] sm:$0xff] 0.0
    %2020 = vst [vmem:[#allocation2 + $0xb8] sm:$0xff] 0.0
    %2021 = vst [vmem:[#allocation2 + $0xc0] sm:$0xff] 0.0
    %vm2022 = vcmask 637952
    %2023 = vst.msk [vmem:[#allocation2 + $0xc8] sm:$0xff] %vm2022, 0.0
    %2045 = vrot.lane.b32.xlu0 %v1976, 87
    %v2046 = vpop.permute.xlu0 %2045
    %2047 = vrot.lane.b32.xlu0 %v1977, 87
    %v2048 = vpop.permute.xlu0 %2047
    %2049 = vrot.lane.b32.xlu0 %v1978, 87
    %v2050 = vpop.permute.xlu0 %2049
    %2051 = vrot.lane.b32.xlu0 %v1979, 87
    %v2052 = vpop.permute.xlu0 %2051
    %2053 = vrot.lane.b32.xlu0 %v1980, 87
    %v2054 = vpop.permute.xlu0 %2053
    %2055 = vrot.lane.b32.xlu0 %v1981, 87
    %v2056 = vpop.permute.xlu0 %2055
    %2057 = vrot.lane.b32.xlu0 %v1982, 87
    %v2058 = vpop.permute.xlu0 %2057
    %2059 = vrot.lane.b32.xlu0 %v1983, 87
    %v2060 = vpop.permute.xlu0 %2059
    %2061 = vrot.lane.b32.xlu0 %v1984, 87
    %v2062 = vpop.permute.xlu0 %2061
    %2063 = vrot.lane.b32.xlu0 %v1985, 87
    %v2064 = vpop.permute.xlu0 %2063
    %2065 = vrot.lane.b32.xlu0 %v1986, 87
    %v2066 = vpop.permute.xlu0 %2065
    %2067 = vrot.lane.b32.xlu0 %v1987, 87
    %v2068 = vpop.permute.xlu0 %2067
    %2069 = vrot.lane.b32.xlu0 %v1988, 87
    %v2070 = vpop.permute.xlu0 %2069
    %2071 = vrot.lane.b32.xlu0 %v1989, 87
    %v2072 = vpop.permute.xlu0 %2071
    %2073 = vrot.lane.b32.xlu0 %v1990, 87
    %v2074 = vpop.permute.xlu0 %2073
    %2075 = vrot.lane.b32.xlu0 %v1991, 87
    %v2076 = vpop.permute.xlu0 %2075
    %2077 = vrot.lane.b32.xlu0 %v1992, 87
    %v2078 = vpop.permute.xlu0 %2077
    %2079 = vrot.lane.b32.xlu0 %v1993, 87
    %v2080 = vpop.permute.xlu0 %2079
    %2081 = vrot.lane.b32.xlu0 %v1994, 87
    %v2082 = vpop.permute.xlu0 %2081
    %2083 = vrot.lane.b32.xlu0 %v1995, 87
    %v2084 = vpop.permute.xlu0 %2083
    %2085 = vrot.lane.b32.xlu0 %v1996, 87
    %v2086 = vpop.permute.xlu0 %2085
    %vm2087 = vcmask 711680
    %v2088 = vsel %vm2087, %v2046, %v2048
    %v2089 = vsel %vm2087, %v2048, %v2050
    %v2090 = vsel %vm2087, %v2050, %v2052
    %v2091 = vsel %vm2087, %v2052, %v2054
    %v2092 = vsel %vm2087, %v2054, %v2056
    %v2093 = vsel %vm2087, %v2056, %v2058
    %v2094 = vsel %vm2087, %v2058, %v2060
    %v2095 = vsel %vm2087, %v2060, %v2062
    %v2096 = vsel %vm2087, %v2062, %v2064
    %v2097 = vsel %vm2087, %v2064, %v2066
    %v2098 = vsel %vm2087, %v2066, %v2068
    %v2099 = vsel %vm2087, %v2068, %v2070
    %v2100 = vsel %vm2087, %v2070, %v2072
    %v2101 = vsel %vm2087, %v2072, %v2074
    %v2102 = vsel %vm2087, %v2074, %v2076
    %v2103 = vsel %vm2087, %v2076, %v2078
    %v2104 = vsel %vm2087, %v2078, %v2080
    %v2105 = vsel %vm2087, %v2080, %v2082
    %v2106 = vsel %vm2087, %v2082, %v2084
    %v2107 = vsel %vm2087, %v2084, %v2086
    %vm2129 = vcmask 1048248
    %2130 = vst.msk [vmem:[#allocation2 + $0x10] sm:$0xff] %vm2129, %v2046
    %2131 = vst [vmem:[#allocation2 + $0x18] sm:$0xff] %v2088
    %2132 = vst [vmem:[#allocation2 + $0x20] sm:$0xff] %v2089
    %2133 = vst [vmem:[#allocation2 + $0x28] sm:$0xff] %v2090
    %2134 = vst [vmem:[#allocation2 + $0x30] sm:$0xff] %v2091
    %2135 = vst [vmem:[#allocation2 + $0x38] sm:$0xff] %v2092
    %2136 = vst [vmem:[#allocation2 + $0x40] sm:$0xff] %v2093
    %2137 = vst [vmem:[#allocation2 + $0x48] sm:$0xff] %v2094
    %2138 = vst [vmem:[#allocation2 + $0x50] sm:$0xff] %v2095
    %2139 = vst [vmem:[#allocation2 + $0x58] sm:$0xff] %v2096
    %2140 = vst [vmem:[#allocation2 + $0x60] sm:$0xff] %v2097
    %2141 = vst [vmem:[#allocation2 + $0x68] sm:$0xff] %v2098
    %2142 = vst [vmem:[#allocation2 + $0x70] sm:$0xff] %v2099
    %2143 = vst [vmem:[#allocation2 + $0x78] sm:$0xff] %v2100
    %2144 = vst [vmem:[#allocation2 + $0x80] sm:$0xff] %v2101
    %2145 = vst [vmem:[#allocation2 + $0x88] sm:$0xff] %v2102
    %2146 = vst [vmem:[#allocation2 + $0x90] sm:$0xff] %v2103
    %2147 = vst [vmem:[#allocation2 + $0x98] sm:$0xff] %v2104
    %2148 = vst [vmem:[#allocation2 + $0xa0] sm:$0xff] %v2105
    %2149 = vst [vmem:[#allocation2 + $0xa8] sm:$0xff] %v2106
    %2150 = vst.msk [vmem:[#allocation2 + $0xb0] sm:$0xff] %vm620, %v2107
    %v2151 = vld [vmem:[#allocation2] sm:$0xff]
    %v2152 = vld [vmem:[#allocation2 + $0x8] sm:$0xff]
    %v2153 = vld [vmem:[#allocation2 + $0x10] sm:$0xff]
    %v2154 = vld [vmem:[#allocation2 + $0x18] sm:$0xff]
    %v2155 = vld [vmem:[#allocation2 + $0x20] sm:$0xff]
    %v2156 = vld [vmem:[#allocation2 + $0x28] sm:$0xff]
    %v2157 = vld [vmem:[#allocation2 + $0x30] sm:$0xff]
    %v2158 = vld [vmem:[#allocation2 + $0x38] sm:$0xff]
    %v2159 = vld [vmem:[#allocation2 + $0x40] sm:$0xff]
    %v2160 = vld [vmem:[#allocation2 + $0x48] sm:$0xff]
    %v2161 = vld [vmem:[#allocation2 + $0x50] sm:$0xff]
    %v2162 = vld [vmem:[#allocation2 + $0x58] sm:$0xff]
    %v2163 = vld [vmem:[#allocation2 + $0x60] sm:$0xff]
    %v2164 = vld [vmem:[#allocation2 + $0x68] sm:$0xff]
    %v2165 = vld [vmem:[#allocation2 + $0x70] sm:$0xff]
    %v2166 = vld [vmem:[#allocation2 + $0x78] sm:$0xff]
    %v2167 = vld [vmem:[#allocation2 + $0x80] sm:$0xff]
    %v2168 = vld [vmem:[#allocation2 + $0x88] sm:$0xff]
    %v2169 = vld [vmem:[#allocation2 + $0x90] sm:$0xff]
    %v2170 = vld [vmem:[#allocation2 + $0x98] sm:$0xff]
    %v2171 = vld [vmem:[#allocation2 + $0xa0] sm:$0xff]
    %2172 = vst [vmem:[#allocation3] sm:$0xff] %v2151
    %2173 = vst [vmem:[#allocation3 + $0x8] sm:$0xff] %v2152
    %2174 = vst [vmem:[#allocation3 + $0x10] sm:$0xff] %v2153
    %2175 = vst [vmem:[#allocation3 + $0x18] sm:$0xff] %v2154
    %2176 = vst [vmem:[#allocation3 + $0x20] sm:$0xff] %v2155
    %2177 = vst [vmem:[#allocation3 + $0x28] sm:$0xff] %v2156
    %2178 = vst [vmem:[#allocation3 + $0x30] sm:$0xff] %v2157
    %2179 = vst [vmem:[#allocation3 + $0x38] sm:$0xff] %v2158
    %2180 = vst [vmem:[#allocation3 + $0x40] sm:$0xff] %v2159
    %2181 = vst [vmem:[#allocation3 + $0x48] sm:$0xff] %v2160
    %2182 = vst [vmem:[#allocation3 + $0x50] sm:$0xff] %v2161
    %2183 = vst [vmem:[#allocation3 + $0x58] sm:$0xff] %v2162
    %2184 = vst [vmem:[#allocation3 + $0x60] sm:$0xff] %v2163
    %2185 = vst [vmem:[#allocation3 + $0x68] sm:$0xff] %v2164
    %2186 = vst [vmem:[#allocation3 + $0x70] sm:$0xff] %v2165
    %2187 = vst [vmem:[#allocation3 + $0x78] sm:$0xff] %v2166
    %2188 = vst [vmem:[#allocation3 + $0x80] sm:$0xff] %v2167
    %2189 = vst [vmem:[#allocation3 + $0x88] sm:$0xff] %v2168
    %2190 = vst [vmem:[#allocation3 + $0x90] sm:$0xff] %v2169
    %2191 = vst [vmem:[#allocation3 + $0x98] sm:$0xff] %v2170
    %vm2192 = vcmask 261120
    %2193 = vst.msk [vmem:[#allocation3 + $0xa0] sm:$0xff] %vm2192, %v2171
    %v2194 = vld [vmem:[#allocation2] sm:$0xff]
    %v2195 = vld [vmem:[#allocation2 + $0x8] sm:$0xff]
    %v2196 = vld [vmem:[#allocation2 + $0x10] sm:$0xff]
    %v2197 = vld [vmem:[#allocation2 + $0x18] sm:$0xff]
    %v2198 = vld [vmem:[#allocation2 + $0x20] sm:$0xff]
    %v2199 = vld [vmem:[#allocation2 + $0x28] sm:$0xff]
    %v2200 = vld [vmem:[#allocation2 + $0x30] sm:$0xff]
    %v2201 = vld [vmem:[#allocation2 + $0x38] sm:$0xff]
    %v2202 = vld [vmem:[#allocation2 + $0x40] sm:$0xff]
    %v2203 = vld [vmem:[#allocation2 + $0x48] sm:$0xff]
    %v2204 = vld [vmem:[#allocation2 + $0x50] sm:$0xff]
    %v2205 = vld [vmem:[#allocation2 + $0x58] sm:$0xff]
    %v2206 = vld [vmem:[#allocation2 + $0x60] sm:$0xff]
    %v2207 = vld [vmem:[#allocation2 + $0x68] sm:$0xff]
    %v2208 = vld [vmem:[#allocation2 + $0x70] sm:$0xff]
    %v2209 = vld [vmem:[#allocation2 + $0x78] sm:$0xff]
    %v2210 = vld [vmem:[#allocation2 + $0x80] sm:$0xff]
    %v2211 = vld [vmem:[#allocation2 + $0x88] sm:$0xff]
    %v2212 = vld [vmem:[#allocation2 + $0x90] sm:$0xff]
    %v2213 = vld [vmem:[#allocation2 + $0x98] sm:$0xff]
    %v2214 = vld [vmem:[#allocation2 + $0xa0] sm:$0xff]
    %2236 = vrot.lane.b32.xlu0 %v2194, 127
    %v2237 = vpop.permute.xlu0 %2236
    %2238 = vrot.lane.b32.xlu0 %v2195, 127
    %v2239 = vpop.permute.xlu0 %2238
    %2240 = vrot.lane.b32.xlu0 %v2196, 127
    %v2241 = vpop.permute.xlu0 %2240
    %2242 = vrot.lane.b32.xlu0 %v2197, 127
    %v2243 = vpop.permute.xlu0 %2242
    %2244 = vrot.lane.b32.xlu0 %v2198, 127
    %v2245 = vpop.permute.xlu0 %2244
    %2246 = vrot.lane.b32.xlu0 %v2199, 127
    %v2247 = vpop.permute.xlu0 %2246
    %2248 = vrot.lane.b32.xlu0 %v2200, 127
    %v2249 = vpop.permute.xlu0 %2248
    %2250 = vrot.lane.b32.xlu0 %v2201, 127
    %v2251 = vpop.permute.xlu0 %2250
    %2252 = vrot.lane.b32.xlu0 %v2202, 127
    %v2253 = vpop.permute.xlu0 %2252
    %2254 = vrot.lane.b32.xlu0 %v2203, 127
    %v2255 = vpop.permute.xlu0 %2254
    %2256 = vrot.lane.b32.xlu0 %v2204, 127
    %v2257 = vpop.permute.xlu0 %2256
    %2258 = vrot.lane.b32.xlu0 %v2205, 127
    %v2259 = vpop.permute.xlu0 %2258
    %2260 = vrot.lane.b32.xlu0 %v2206, 127
    %v2261 = vpop.permute.xlu0 %2260
    %2262 = vrot.lane.b32.xlu0 %v2207, 127
    %v2263 = vpop.permute.xlu0 %2262
    %2264 = vrot.lane.b32.xlu0 %v2208, 127
    %v2265 = vpop.permute.xlu0 %2264
    %2266 = vrot.lane.b32.xlu0 %v2209, 127
    %v2267 = vpop.permute.xlu0 %2266
    %2268 = vrot.lane.b32.xlu0 %v2210, 127
    %v2269 = vpop.permute.xlu0 %2268
    %2270 = vrot.lane.b32.xlu0 %v2211, 127
    %v2271 = vpop.permute.xlu0 %2270
    %2272 = vrot.lane.b32.xlu0 %v2212, 127
    %v2273 = vpop.permute.xlu0 %2272
    %2274 = vrot.lane.b32.xlu0 %v2213, 127
    %v2275 = vpop.permute.xlu0 %2274
    %2276 = vrot.lane.b32.xlu0 %v2214, 127
    %v2277 = vpop.permute.xlu0 %2276
    %v2278 = vsel %vm65, %v2237, %v2239
    %v2279 = vsel %vm65, %v2239, %v2241
    %v2280 = vsel %vm65, %v2241, %v2243
    %v2281 = vsel %vm65, %v2243, %v2245
    %v2282 = vsel %vm65, %v2245, %v2247
    %v2283 = vsel %vm65, %v2247, %v2249
    %v2284 = vsel %vm65, %v2249, %v2251
    %v2285 = vsel %vm65, %v2251, %v2253
    %v2286 = vsel %vm65, %v2253, %v2255
    %v2287 = vsel %vm65, %v2255, %v2257
    %v2288 = vsel %vm65, %v2257, %v2259
    %v2289 = vsel %vm65, %v2259, %v2261
    %v2290 = vsel %vm65, %v2261, %v2263
    %v2291 = vsel %vm65, %v2263, %v2265
    %v2292 = vsel %vm65, %v2265, %v2267
    %v2293 = vsel %vm65, %v2267, %v2269
    %v2294 = vsel %vm65, %v2269, %v2271
    %v2295 = vsel %vm65, %v2271, %v2273
    %v2296 = vsel %vm65, %v2273, %v2275
    %v2297 = vsel %vm65, %v2275, %v2277
    %2319 = vst [vmem:[#allocation3 + $0xa8] sm:$0xff] %v2278
    %2320 = vst [vmem:[#allocation3 + $0xb0] sm:$0xff] %v2279
    %2321 = vst [vmem:[#allocation3 + $0xb8] sm:$0xff] %v2280
    %2322 = vst [vmem:[#allocation3 + $0xc0] sm:$0xff] %v2281
    %2323 = vst [vmem:[#allocation3 + $0xc8] sm:$0xff] %v2282
    %2324 = vst [vmem:[#allocation3 + $0xd0] sm:$0xff] %v2283
    %2325 = vst [vmem:[#allocation3 + $0xd8] sm:$0xff] %v2284
    %2326 = vst [vmem:[#allocation3 + $0xe0] sm:$0xff] %v2285
    %2327 = vst [vmem:[#allocation3 + $0xe8] sm:$0xff] %v2286
    %2328 = vst [vmem:[#allocation3 + $0xf0] sm:$0xff] %v2287
    %2329 = vst [vmem:[#allocation3 + $0xf8] sm:$0xff] %v2288
    %2330 = vst [vmem:[#allocation3 + $0x100] sm:$0xff] %v2289
    %2331 = vst [vmem:[#allocation3 + $0x108] sm:$0xff] %v2290
    %2332 = vst [vmem:[#allocation3 + $0x110] sm:$0xff] %v2291
    %2333 = vst [vmem:[#allocation3 + $0x118] sm:$0xff] %v2292
    %2334 = vst [vmem:[#allocation3 + $0x120] sm:$0xff] %v2293
    %2335 = vst [vmem:[#allocation3 + $0x128] sm:$0xff] %v2294
    %2336 = vst [vmem:[#allocation3 + $0x130] sm:$0xff] %v2295
    %2337 = vst [vmem:[#allocation3 + $0x138] sm:$0xff] %v2296
    %2338 = vst [vmem:[#allocation3 + $0x140] sm:$0xff] %v2297
    %2339 = vst.msk [vmem:[#allocation3 + $0x148] sm:$0xff] %vm2192, %v2277
    %v2340 = vld [vmem:[#allocation2] sm:$0xff]
    %v2341 = vld [vmem:[#allocation2 + $0x8] sm:$0xff]
    %v2342 = vld [vmem:[#allocation2 + $0x10] sm:$0xff]
    %v2343 = vld [vmem:[#allocation2 + $0x18] sm:$0xff]
    %v2344 = vld [vmem:[#allocation2 + $0x20] sm:$0xff]
    %v2345 = vld [vmem:[#allocation2 + $0x28] sm:$0xff]
    %v2346 = vld [vmem:[#allocation2 + $0x30] sm:$0xff]
    %v2347 = vld [vmem:[#allocation2 + $0x38] sm:$0xff]
    %v2348 = vld [vmem:[#allocation2 + $0x40] sm:$0xff]
    %v2349 = vld [vmem:[#allocation2 + $0x48] sm:$0xff]
    %v2350 = vld [vmem:[#allocation2 + $0x50] sm:$0xff]
    %v2351 = vld [vmem:[#allocation2 + $0x58] sm:$0xff]
    %v2352 = vld [vmem:[#allocation2 + $0x60] sm:$0xff]
    %v2353 = vld [vmem:[#allocation2 + $0x68] sm:$0xff]
    %v2354 = vld [vmem:[#allocation2 + $0x70] sm:$0xff]
    %v2355 = vld [vmem:[#allocation2 + $0x78] sm:$0xff]
    %v2356 = vld [vmem:[#allocation2 + $0x80] sm:$0xff]
    %v2357 = vld [vmem:[#allocation2 + $0x88] sm:$0xff]
    %v2358 = vld [vmem:[#allocation2 + $0x90] sm:$0xff]
    %v2359 = vld [vmem:[#allocation2 + $0x98] sm:$0xff]
    %v2360 = vld [vmem:[#allocation2 + $0xa0] sm:$0xff]
    %2382 = vrot.lane.b32.xlu0 %v2340, 126
    %v2383 = vpop.permute.xlu0 %2382
    %2384 = vrot.lane.b32.xlu0 %v2341, 126
    %v2385 = vpop.permute.xlu0 %2384
    %2386 = vrot.lane.b32.xlu0 %v2342, 126
    %v2387 = vpop.permute.xlu0 %2386
    %2388 = vrot.lane.b32.xlu0 %v2343, 126
    %v2389 = vpop.permute.xlu0 %2388
    %2390 = vrot.lane.b32.xlu0 %v2344, 126
    %v2391 = vpop.permute.xlu0 %2390
    %2392 = vrot.lane.b32.xlu0 %v2345, 126
    %v2393 = vpop.permute.xlu0 %2392
    %2394 = vrot.lane.b32.xlu0 %v2346, 126
    %v2395 = vpop.permute.xlu0 %2394
    %2396 = vrot.lane.b32.xlu0 %v2347, 126
    %v2397 = vpop.permute.xlu0 %2396
    %2398 = vrot.lane.b32.xlu0 %v2348, 126
    %v2399 = vpop.permute.xlu0 %2398
    %2400 = vrot.lane.b32.xlu0 %v2349, 126
    %v2401 = vpop.permute.xlu0 %2400
    %2402 = vrot.lane.b32.xlu0 %v2350, 126
    %v2403 = vpop.permute.xlu0 %2402
    %2404 = vrot.lane.b32.xlu0 %v2351, 126
    %v2405 = vpop.permute.xlu0 %2404
    %2406 = vrot.lane.b32.xlu0 %v2352, 126
    %v2407 = vpop.permute.xlu0 %2406
    %2408 = vrot.lane.b32.xlu0 %v2353, 126
    %v2409 = vpop.permute.xlu0 %2408
    %2410 = vrot.lane.b32.xlu0 %v2354, 126
    %v2411 = vpop.permute.xlu0 %2410
    %2412 = vrot.lane.b32.xlu0 %v2355, 126
    %v2413 = vpop.permute.xlu0 %2412
    %2414 = vrot.lane.b32.xlu0 %v2356, 126
    %v2415 = vpop.permute.xlu0 %2414
    %2416 = vrot.lane.b32.xlu0 %v2357, 126
    %v2417 = vpop.permute.xlu0 %2416
    %2418 = vrot.lane.b32.xlu0 %v2358, 126
    %v2419 = vpop.permute.xlu0 %2418
    %2420 = vrot.lane.b32.xlu0 %v2359, 126
    %v2421 = vpop.permute.xlu0 %2420
    %2422 = vrot.lane.b32.xlu0 %v2360, 126
    %v2423 = vpop.permute.xlu0 %2422
    %v2424 = vsel %vm92, %v2383, %v2385
    %v2425 = vsel %vm92, %v2385, %v2387
    %v2426 = vsel %vm92, %v2387, %v2389
    %v2427 = vsel %vm92, %v2389, %v2391
    %v2428 = vsel %vm92, %v2391, %v2393
    %v2429 = vsel %vm92, %v2393, %v2395
    %v2430 = vsel %vm92, %v2395, %v2397
    %v2431 = vsel %vm92, %v2397, %v2399
    %v2432 = vsel %vm92, %v2399, %v2401
    %v2433 = vsel %vm92, %v2401, %v2403
    %v2434 = vsel %vm92, %v2403, %v2405
    %v2435 = vsel %vm92, %v2405, %v2407
    %v2436 = vsel %vm92, %v2407, %v2409
    %v2437 = vsel %vm92, %v2409, %v2411
    %v2438 = vsel %vm92, %v2411, %v2413
    %v2439 = vsel %vm92, %v2413, %v2415
    %v2440 = vsel %vm92, %v2415, %v2417
    %v2441 = vsel %vm92, %v2417, %v2419
    %v2442 = vsel %vm92, %v2419, %v2421
    %v2443 = vsel %vm92, %v2421, %v2423
    %2465 = vst [vmem:[#allocation3 + $0x150] sm:$0xff] %v2424
    %2466 = vst [vmem:[#allocation3 + $0x158] sm:$0xff] %v2425
    %2467 = vst [vmem:[#allocation3 + $0x160] sm:$0xff] %v2426
    %2468 = vst [vmem:[#allocation3 + $0x168] sm:$0xff] %v2427
    %2469 = vst [vmem:[#allocation3 + $0x170] sm:$0xff] %v2428
    %2470 = vst [vmem:[#allocation3 + $0x178] sm:$0xff] %v2429
    %2471 = vst [vmem:[#allocation3 + $0x180] sm:$0xff] %v2430
    %2472 = vst [vmem:[#allocation3 + $0x188] sm:$0xff] %v2431
    %2473 = vst [vmem:[#allocation3 + $0x190] sm:$0xff] %v2432
    %2474 = vst [vmem:[#allocation3 + $0x198] sm:$0xff] %v2433
    %2475 = vst [vmem:[#allocation3 + $0x1a0] sm:$0xff] %v2434
    %2476 = vst [vmem:[#allocation3 + $0x1a8] sm:$0xff] %v2435
    %2477 = vst [vmem:[#allocation3 + $0x1b0] sm:$0xff] %v2436
    %2478 = vst [vmem:[#allocation3 + $0x1b8] sm:$0xff] %v2437
    %2479 = vst [vmem:[#allocation3 + $0x1c0] sm:$0xff] %v2438
    %2480 = vst [vmem:[#allocation3 + $0x1c8] sm:$0xff] %v2439
    %2481 = vst [vmem:[#allocation3 + $0x1d0] sm:$0xff] %v2440
    %2482 = vst [vmem:[#allocation3 + $0x1d8] sm:$0xff] %v2441
    %2483 = vst [vmem:[#allocation3 + $0x1e0] sm:$0xff] %v2442
    %2484 = vst [vmem:[#allocation3 + $0x1e8] sm:$0xff] %v2443
    %2485 = vst.msk [vmem:[#allocation3 + $0x1f0] sm:$0xff] %vm2192, %v2423
    %v2486 = vld [vmem:[#allocation2] sm:$0xff]
    %v2487 = vld [vmem:[#allocation2 + $0x8] sm:$0xff]
    %v2488 = vld [vmem:[#allocation2 + $0x10] sm:$0xff]
    %v2489 = vld [vmem:[#allocation2 + $0x18] sm:$0xff]
    %v2490 = vld [vmem:[#allocation2 + $0x20] sm:$0xff]
    %v2491 = vld [vmem:[#allocation2 + $0x28] sm:$0xff]
    %v2492 = vld [vmem:[#allocation2 + $0x30] sm:$0xff]
    %v2493 = vld [vmem:[#allocation2 + $0x38] sm:$0xff]
    %v2494 = vld [vmem:[#allocation2 + $0x40] sm:$0xff]
    %v2495 = vld [vmem:[#allocation2 + $0x48] sm:$0xff]
    %v2496 = vld [vmem:[#allocation2 + $0x50] sm:$0xff]
    %v2497 = vld [vmem:[#allocation2 + $0x58] sm:$0xff]
    %v2498 = vld [vmem:[#allocation2 + $0x60] sm:$0xff]
    %v2499 = vld [vmem:[#allocation2 + $0x68] sm:$0xff]
    %v2500 = vld [vmem:[#allocation2 + $0x70] sm:$0xff]
    %v2501 = vld [vmem:[#allocation2 + $0x78] sm:$0xff]
    %v2502 = vld [vmem:[#allocation2 + $0x80] sm:$0xff]
    %v2503 = vld [vmem:[#allocation2 + $0x88] sm:$0xff]
    %v2504 = vld [vmem:[#allocation2 + $0x90] sm:$0xff]
    %v2505 = vld [vmem:[#allocation2 + $0x98] sm:$0xff]
    %v2506 = vld [vmem:[#allocation2 + $0xa0] sm:$0xff]
    %2528 = vrot.lane.b32.xlu0 %v2486, 110
    %v2529 = vpop.permute.xlu0 %2528
    %2530 = vrot.lane.b32.xlu0 %v2487, 110
    %v2531 = vpop.permute.xlu0 %2530
    %2532 = vrot.lane.b32.xlu0 %v2488, 110
    %v2533 = vpop.permute.xlu0 %2532
    %2534 = vrot.lane.b32.xlu0 %v2489, 110
    %v2535 = vpop.permute.xlu0 %2534
    %2536 = vrot.lane.b32.xlu0 %v2490, 110
    %v2537 = vpop.permute.xlu0 %2536
    %2538 = vrot.lane.b32.xlu0 %v2491, 110
    %v2539 = vpop.permute.xlu0 %2538
    %2540 = vrot.lane.b32.xlu0 %v2492, 110
    %v2541 = vpop.permute.xlu0 %2540
    %2542 = vrot.lane.b32.xlu0 %v2493, 110
    %v2543 = vpop.permute.xlu0 %2542
    %2544 = vrot.lane.b32.xlu0 %v2494, 110
    %v2545 = vpop.permute.xlu0 %2544
    %2546 = vrot.lane.b32.xlu0 %v2495, 110
    %v2547 = vpop.permute.xlu0 %2546
    %2548 = vrot.lane.b32.xlu0 %v2496, 110
    %v2549 = vpop.permute.xlu0 %2548
    %2550 = vrot.lane.b32.xlu0 %v2497, 110
    %v2551 = vpop.permute.xlu0 %2550
    %2552 = vrot.lane.b32.xlu0 %v2498, 110
    %v2553 = vpop.permute.xlu0 %2552
    %2554 = vrot.lane.b32.xlu0 %v2499, 110
    %v2555 = vpop.permute.xlu0 %2554
    %2556 = vrot.lane.b32.xlu0 %v2500, 110
    %v2557 = vpop.permute.xlu0 %2556
    %2558 = vrot.lane.b32.xlu0 %v2501, 110
    %v2559 = vpop.permute.xlu0 %2558
    %2560 = vrot.lane.b32.xlu0 %v2502, 110
    %v2561 = vpop.permute.xlu0 %2560
    %2562 = vrot.lane.b32.xlu0 %v2503, 110
    %v2563 = vpop.permute.xlu0 %2562
    %2564 = vrot.lane.b32.xlu0 %v2504, 110
    %v2565 = vpop.permute.xlu0 %2564
    %2566 = vrot.lane.b32.xlu0 %v2505, 110
    %v2567 = vpop.permute.xlu0 %2566
    %2568 = vrot.lane.b32.xlu0 %v2506, 110
    %v2569 = vpop.permute.xlu0 %2568
    %v2570 = vsel %vm119, %v2529, %v2531
    %v2571 = vsel %vm119, %v2531, %v2533
    %v2572 = vsel %vm119, %v2533, %v2535
    %v2573 = vsel %vm119, %v2535, %v2537
    %v2574 = vsel %vm119, %v2537, %v2539
    %v2575 = vsel %vm119, %v2539, %v2541
    %v2576 = vsel %vm119, %v2541, %v2543
    %v2577 = vsel %vm119, %v2543, %v2545
    %v2578 = vsel %vm119, %v2545, %v2547
    %v2579 = vsel %vm119, %v2547, %v2549
    %v2580 = vsel %vm119, %v2549, %v2551
    %v2581 = vsel %vm119, %v2551, %v2553
    %v2582 = vsel %vm119, %v2553, %v2555
    %v2583 = vsel %vm119, %v2555, %v2557
    %v2584 = vsel %vm119, %v2557, %v2559
    %v2585 = vsel %vm119, %v2559, %v2561
    %v2586 = vsel %vm119, %v2561, %v2563
    %v2587 = vsel %vm119, %v2563, %v2565
    %v2588 = vsel %vm119, %v2565, %v2567
    %v2589 = vsel %vm119, %v2567, %v2569
    %2611 = vst [vmem:[#allocation3 + $0x1f8] sm:$0xff] %v2570
    %2612 = vst [vmem:[#allocation3 + $0x200] sm:$0xff] %v2571
    %2613 = vst [vmem:[#allocation3 + $0x208] sm:$0xff] %v2572
    %2614 = vst [vmem:[#allocation3 + $0x210] sm:$0xff] %v2573
    %2615 = vst [vmem:[#allocation3 + $0x218] sm:$0xff] %v2574
    %2616 = vst [vmem:[#allocation3 + $0x220] sm:$0xff] %v2575
    %2617 = vst [vmem:[#allocation3 + $0x228] sm:$0xff] %v2576
    %2618 = vst [vmem:[#allocation3 + $0x230] sm:$0xff] %v2577
    %2619 = vst [vmem:[#allocation3 + $0x238] sm:$0xff] %v2578
    %2620 = vst [vmem:[#allocation3 + $0x240] sm:$0xff] %v2579
    %2621 = vst [vmem:[#allocation3 + $0x248] sm:$0xff] %v2580
    %2622 = vst [vmem:[#allocation3 + $0x250] sm:$0xff] %v2581
    %2623 = vst [vmem:[#allocation3 + $0x258] sm:$0xff] %v2582
    %2624 = vst [vmem:[#allocation3 + $0x260] sm:$0xff] %v2583
    %2625 = vst [vmem:[#allocation3 + $0x268] sm:$0xff] %v2584
    %2626 = vst [vmem:[#allocation3 + $0x270] sm:$0xff] %v2585
    %2627 = vst [vmem:[#allocation3 + $0x278] sm:$0xff] %v2586
    %2628 = vst [vmem:[#allocation3 + $0x280] sm:$0xff] %v2587
    %2629 = vst [vmem:[#allocation3 + $0x288] sm:$0xff] %v2588
    %2630 = vst [vmem:[#allocation3 + $0x290] sm:$0xff] %v2589
    %2631 = vst.msk [vmem:[#allocation3 + $0x298] sm:$0xff] %vm2192, %v2569
    %v2632 = vld [vmem:[#allocation2] sm:$0xff]
    %v2633 = vld [vmem:[#allocation2 + $0x8] sm:$0xff]
    %v2634 = vld [vmem:[#allocation2 + $0x10] sm:$0xff]
    %v2635 = vld [vmem:[#allocation2 + $0x18] sm:$0xff]
    %v2636 = vld [vmem:[#allocation2 + $0x20] sm:$0xff]
    %v2637 = vld [vmem:[#allocation2 + $0x28] sm:$0xff]
    %v2638 = vld [vmem:[#allocation2 + $0x30] sm:$0xff]
    %v2639 = vld [vmem:[#allocation2 + $0x38] sm:$0xff]
    %v2640 = vld [vmem:[#allocation2 + $0x40] sm:$0xff]
    %v2641 = vld [vmem:[#allocation2 + $0x48] sm:$0xff]
    %v2642 = vld [vmem:[#allocation2 + $0x50] sm:$0xff]
    %v2643 = vld [vmem:[#allocation2 + $0x58] sm:$0xff]
    %v2644 = vld [vmem:[#allocation2 + $0x60] sm:$0xff]
    %v2645 = vld [vmem:[#allocation2 + $0x68] sm:$0xff]
    %v2646 = vld [vmem:[#allocation2 + $0x70] sm:$0xff]
    %v2647 = vld [vmem:[#allocation2 + $0x78] sm:$0xff]
    %v2648 = vld [vmem:[#allocation2 + $0x80] sm:$0xff]
    %v2649 = vld [vmem:[#allocation2 + $0x88] sm:$0xff]
    %v2650 = vld [vmem:[#allocation2 + $0x90] sm:$0xff]
    %v2651 = vld [vmem:[#allocation2 + $0x98] sm:$0xff]
    %v2652 = vld [vmem:[#allocation2 + $0xa0] sm:$0xff]
    %2674 = vrot.lane.b32.xlu0 %v2632, 109
    %v2675 = vpop.permute.xlu0 %2674
    %2676 = vrot.lane.b32.xlu0 %v2633, 109
    %v2677 = vpop.permute.xlu0 %2676
    %2678 = vrot.lane.b32.xlu0 %v2634, 109
    %v2679 = vpop.permute.xlu0 %2678
    %2680 = vrot.lane.b32.xlu0 %v2635, 109
    %v2681 = vpop.permute.xlu0 %2680
    %2682 = vrot.lane.b32.xlu0 %v2636, 109
    %v2683 = vpop.permute.xlu0 %2682
    %2684 = vrot.lane.b32.xlu0 %v2637, 109
    %v2685 = vpop.permute.xlu0 %2684
    %2686 = vrot.lane.b32.xlu0 %v2638, 109
    %v2687 = vpop.permute.xlu0 %2686
    %2688 = vrot.lane.b32.xlu0 %v2639, 109
    %v2689 = vpop.permute.xlu0 %2688
    %2690 = vrot.lane.b32.xlu0 %v2640, 109
    %v2691 = vpop.permute.xlu0 %2690
    %2692 = vrot.lane.b32.xlu0 %v2641, 109
    %v2693 = vpop.permute.xlu0 %2692
    %2694 = vrot.lane.b32.xlu0 %v2642, 109
    %v2695 = vpop.permute.xlu0 %2694
    %2696 = vrot.lane.b32.xlu0 %v2643, 109
    %v2697 = vpop.permute.xlu0 %2696
    %2698 = vrot.lane.b32.xlu0 %v2644, 109
    %v2699 = vpop.permute.xlu0 %2698
    %2700 = vrot.lane.b32.xlu0 %v2645, 109
    %v2701 = vpop.permute.xlu0 %2700
    %2702 = vrot.lane.b32.xlu0 %v2646, 109
    %v2703 = vpop.permute.xlu0 %2702
    %2704 = vrot.lane.b32.xlu0 %v2647, 109
    %v2705 = vpop.permute.xlu0 %2704
    %2706 = vrot.lane.b32.xlu0 %v2648, 109
    %v2707 = vpop.permute.xlu0 %2706
    %2708 = vrot.lane.b32.xlu0 %v2649, 109
    %v2709 = vpop.permute.xlu0 %2708
    %2710 = vrot.lane.b32.xlu0 %v2650, 109
    %v2711 = vpop.permute.xlu0 %2710
    %2712 = vrot.lane.b32.xlu0 %v2651, 109
    %v2713 = vpop.permute.xlu0 %2712
    %2714 = vrot.lane.b32.xlu0 %v2652, 109
    %v2715 = vpop.permute.xlu0 %2714
    %v2716 = vsel %vm146, %v2675, %v2677
    %v2717 = vsel %vm146, %v2677, %v2679
    %v2718 = vsel %vm146, %v2679, %v2681
    %v2719 = vsel %vm146, %v2681, %v2683
    %v2720 = vsel %vm146, %v2683, %v2685
    %v2721 = vsel %vm146, %v2685, %v2687
    %v2722 = vsel %vm146, %v2687, %v2689
    %v2723 = vsel %vm146, %v2689, %v2691
    %v2724 = vsel %vm146, %v2691, %v2693
    %v2725 = vsel %vm146, %v2693, %v2695
    %v2726 = vsel %vm146, %v2695, %v2697
    %v2727 = vsel %vm146, %v2697, %v2699
    %v2728 = vsel %vm146, %v2699, %v2701
    %v2729 = vsel %vm146, %v2701, %v2703
    %v2730 = vsel %vm146, %v2703, %v2705
    %v2731 = vsel %vm146, %v2705, %v2707
    %v2732 = vsel %vm146, %v2707, %v2709
    %v2733 = vsel %vm146, %v2709, %v2711
    %v2734 = vsel %vm146, %v2711, %v2713
    %v2735 = vsel %vm146, %v2713, %v2715
    %2757 = vst [vmem:[#allocation3 + $0x2a0] sm:$0xff] %v2716
    %2758 = vst [vmem:[#allocation3 + $0x2a8] sm:$0xff] %v2717
    %2759 = vst [vmem:[#allocation3 + $0x2b0] sm:$0xff] %v2718
    %2760 = vst [vmem:[#allocation3 + $0x2b8] sm:$0xff] %v2719
    %2761 = vst [vmem:[#allocation3 + $0x2c0] sm:$0xff] %v2720
    %2762 = vst [vmem:[#allocation3 + $0x2c8] sm:$0xff] %v2721
    %2763 = vst [vmem:[#allocation3 + $0x2d0] sm:$0xff] %v2722
    %2764 = vst [vmem:[#allocation3 + $0x2d8] sm:$0xff] %v2723
    %2765 = vst [vmem:[#allocation3 + $0x2e0] sm:$0xff] %v2724
    %2766 = vst [vmem:[#allocation3 + $0x2e8] sm:$0xff] %v2725
    %2767 = vst [vmem:[#allocation3 + $0x2f0] sm:$0xff] %v2726
    %2768 = vst [vmem:[#allocation3 + $0x2f8] sm:$0xff] %v2727
    %2769 = vst [vmem:[#allocation3 + $0x300] sm:$0xff] %v2728
    %2770 = vst [vmem:[#allocation3 + $0x308] sm:$0xff] %v2729
    %2771 = vst [vmem:[#allocation3 + $0x310] sm:$0xff] %v2730
    %2772 = vst [vmem:[#allocation3 + $0x318] sm:$0xff] %v2731
    %2773 = vst [vmem:[#allocation3 + $0x320] sm:$0xff] %v2732
    %2774 = vst [vmem:[#allocation3 + $0x328] sm:$0xff] %v2733
    %2775 = vst [vmem:[#allocation3 + $0x330] sm:$0xff] %v2734
    %2776 = vst [vmem:[#allocation3 + $0x338] sm:$0xff] %v2735
    %2777 = vst.msk [vmem:[#allocation3 + $0x340] sm:$0xff] %vm2192, %v2715
    %v2778 = vld [vmem:[#allocation2] sm:$0xff]
    %v2779 = vld [vmem:[#allocation2 + $0x8] sm:$0xff]
    %v2780 = vld [vmem:[#allocation2 + $0x10] sm:$0xff]
    %v2781 = vld [vmem:[#allocation2 + $0x18] sm:$0xff]
    %v2782 = vld [vmem:[#allocation2 + $0x20] sm:$0xff]
    %v2783 = vld [vmem:[#allocation2 + $0x28] sm:$0xff]
    %v2784 = vld [vmem:[#allocation2 + $0x30] sm:$0xff]
    %v2785 = vld [vmem:[#allocation2 + $0x38] sm:$0xff]
    %v2786 = vld [vmem:[#allocation2 + $0x40] sm:$0xff]
    %v2787 = vld [vmem:[#allocation2 + $0x48] sm:$0xff]
    %v2788 = vld [vmem:[#allocation2 + $0x50] sm:$0xff]
    %v2789 = vld [vmem:[#allocation2 + $0x58] sm:$0xff]
    %v2790 = vld [vmem:[#allocation2 + $0x60] sm:$0xff]
    %v2791 = vld [vmem:[#allocation2 + $0x68] sm:$0xff]
    %v2792 = vld [vmem:[#allocation2 + $0x70] sm:$0xff]
    %v2793 = vld [vmem:[#allocation2 + $0x78] sm:$0xff]
    %v2794 = vld [vmem:[#allocation2 + $0x80] sm:$0xff]
    %v2795 = vld [vmem:[#allocation2 + $0x88] sm:$0xff]
    %v2796 = vld [vmem:[#allocation2 + $0x90] sm:$0xff]
    %v2797 = vld [vmem:[#allocation2 + $0x98] sm:$0xff]
    %v2798 = vld [vmem:[#allocation2 + $0xa0] sm:$0xff]
    %2820 = vrot.lane.b32.xlu0 %v2778, 108
    %v2821 = vpop.permute.xlu0 %2820
    %2822 = vrot.lane.b32.xlu0 %v2779, 108
    %v2823 = vpop.permute.xlu0 %2822
    %2824 = vrot.lane.b32.xlu0 %v2780, 108
    %v2825 = vpop.permute.xlu0 %2824
    %2826 = vrot.lane.b32.xlu0 %v2781, 108
    %v2827 = vpop.permute.xlu0 %2826
    %2828 = vrot.lane.b32.xlu0 %v2782, 108
    %v2829 = vpop.permute.xlu0 %2828
    %2830 = vrot.lane.b32.xlu0 %v2783, 108
    %v2831 = vpop.permute.xlu0 %2830
    %2832 = vrot.lane.b32.xlu0 %v2784, 108
    %v2833 = vpop.permute.xlu0 %2832
    %2834 = vrot.lane.b32.xlu0 %v2785, 108
    %v2835 = vpop.permute.xlu0 %2834
    %2836 = vrot.lane.b32.xlu0 %v2786, 108
    %v2837 = vpop.permute.xlu0 %2836
    %2838 = vrot.lane.b32.xlu0 %v2787, 108
    %v2839 = vpop.permute.xlu0 %2838
    %2840 = vrot.lane.b32.xlu0 %v2788, 108
    %v2841 = vpop.permute.xlu0 %2840
    %2842 = vrot.lane.b32.xlu0 %v2789, 108
    %v2843 = vpop.permute.xlu0 %2842
    %2844 = vrot.lane.b32.xlu0 %v2790, 108
    %v2845 = vpop.permute.xlu0 %2844
    %2846 = vrot.lane.b32.xlu0 %v2791, 108
    %v2847 = vpop.permute.xlu0 %2846
    %2848 = vrot.lane.b32.xlu0 %v2792, 108
    %v2849 = vpop.permute.xlu0 %2848
    %2850 = vrot.lane.b32.xlu0 %v2793, 108
    %v2851 = vpop.permute.xlu0 %2850
    %2852 = vrot.lane.b32.xlu0 %v2794, 108
    %v2853 = vpop.permute.xlu0 %2852
    %2854 = vrot.lane.b32.xlu0 %v2795, 108
    %v2855 = vpop.permute.xlu0 %2854
    %2856 = vrot.lane.b32.xlu0 %v2796, 108
    %v2857 = vpop.permute.xlu0 %2856
    %2858 = vrot.lane.b32.xlu0 %v2797, 108
    %v2859 = vpop.permute.xlu0 %2858
    %2860 = vrot.lane.b32.xlu0 %v2798, 108
    %v2861 = vpop.permute.xlu0 %2860
    %v2862 = vsel %vm173, %v2821, %v2823
    %v2863 = vsel %vm173, %v2823, %v2825
    %v2864 = vsel %vm173, %v2825, %v2827
    %v2865 = vsel %vm173, %v2827, %v2829
    %v2866 = vsel %vm173, %v2829, %v2831
    %v2867 = vsel %vm173, %v2831, %v2833
    %v2868 = vsel %vm173, %v2833, %v2835
    %v2869 = vsel %vm173, %v2835, %v2837
    %v2870 = vsel %vm173, %v2837, %v2839
    %v2871 = vsel %vm173, %v2839, %v2841
    %v2872 = vsel %vm173, %v2841, %v2843
    %v2873 = vsel %vm173, %v2843, %v2845
    %v2874 = vsel %vm173, %v2845, %v2847
    %v2875 = vsel %vm173, %v2847, %v2849
    %v2876 = vsel %vm173, %v2849, %v2851
    %v2877 = vsel %vm173, %v2851, %v2853
    %v2878 = vsel %vm173, %v2853, %v2855
    %v2879 = vsel %vm173, %v2855, %v2857
    %v2880 = vsel %vm173, %v2857, %v2859
    %v2881 = vsel %vm173, %v2859, %v2861
    %2903 = vst [vmem:[#allocation3 + $0x348] sm:$0xff] %v2862
    %2904 = vst [vmem:[#allocation3 + $0x350] sm:$0xff] %v2863
    %2905 = vst [vmem:[#allocation3 + $0x358] sm:$0xff] %v2864
    %2906 = vst [vmem:[#allocation3 + $0x360] sm:$0xff] %v2865
    %2907 = vst [vmem:[#allocation3 + $0x368] sm:$0xff] %v2866
    %2908 = vst [vmem:[#allocation3 + $0x370] sm:$0xff] %v2867
    %2909 = vst [vmem:[#allocation3 + $0x378] sm:$0xff] %v2868
    %2910 = vst [vmem:[#allocation3 + $0x380] sm:$0xff] %v2869
    %2911 = vst [vmem:[#allocation3 + $0x388] sm:$0xff] %v2870
    %2912 = vst [vmem:[#allocation3 + $0x390] sm:$0xff] %v2871
    %2913 = vst [vmem:[#allocation3 + $0x398] sm:$0xff] %v2872
    %2914 = vst [vmem:[#allocation3 + $0x3a0] sm:$0xff] %v2873
    %2915 = vst [vmem:[#allocation3 + $0x3a8] sm:$0xff] %v2874
    %2916 = vst [vmem:[#allocation3 + $0x3b0] sm:$0xff] %v2875
    %2917 = vst [vmem:[#allocation3 + $0x3b8] sm:$0xff] %v2876
    %2918 = vst [vmem:[#allocation3 + $0x3c0] sm:$0xff] %v2877
    %2919 = vst [vmem:[#allocation3 + $0x3c8] sm:$0xff] %v2878
    %2920 = vst [vmem:[#allocation3 + $0x3d0] sm:$0xff] %v2879
    %2921 = vst [vmem:[#allocation3 + $0x3d8] sm:$0xff] %v2880
    %2922 = vst [vmem:[#allocation3 + $0x3e0] sm:$0xff] %v2881
    %2923 = vst.msk [vmem:[#allocation3 + $0x3e8] sm:$0xff] %vm2192, %v2861
    %v2924 = vld [vmem:[#allocation2] sm:$0xff]
    %v2925 = vld [vmem:[#allocation2 + $0x8] sm:$0xff]
    %v2926 = vld [vmem:[#allocation2 + $0x10] sm:$0xff]
    %v2927 = vld [vmem:[#allocation2 + $0x18] sm:$0xff]
    %v2928 = vld [vmem:[#allocation2 + $0x20] sm:$0xff]
    %v2929 = vld [vmem:[#allocation2 + $0x28] sm:$0xff]
    %v2930 = vld [vmem:[#allocation2 + $0x30] sm:$0xff]
    %v2931 = vld [vmem:[#allocation2 + $0x38] sm:$0xff]
    %v2932 = vld [vmem:[#allocation2 + $0x40] sm:$0xff]
    %v2933 = vld [vmem:[#allocation2 + $0x48] sm:$0xff]
    %v2934 = vld [vmem:[#allocation2 + $0x50] sm:$0xff]
    %v2935 = vld [vmem:[#allocation2 + $0x58] sm:$0xff]
    %v2936 = vld [vmem:[#allocation2 + $0x60] sm:$0xff]
    %v2937 = vld [vmem:[#allocation2 + $0x68] sm:$0xff]
    %v2938 = vld [vmem:[#allocation2 + $0x70] sm:$0xff]
    %v2939 = vld [vmem:[#allocation2 + $0x78] sm:$0xff]
    %v2940 = vld [vmem:[#allocation2 + $0x80] sm:$0xff]
    %v2941 = vld [vmem:[#allocation2 + $0x88] sm:$0xff]
    %v2942 = vld [vmem:[#allocation2 + $0x90] sm:$0xff]
    %v2943 = vld [vmem:[#allocation2 + $0x98] sm:$0xff]
    %v2944 = vld [vmem:[#allocation2 + $0xa0] sm:$0xff]
    %2966 = vrot.lane.b32.xlu0 %v2924, 92
    %v2967 = vpop.permute.xlu0 %2966
    %2968 = vrot.lane.b32.xlu0 %v2925, 92
    %v2969 = vpop.permute.xlu0 %2968
    %2970 = vrot.lane.b32.xlu0 %v2926, 92
    %v2971 = vpop.permute.xlu0 %2970
    %2972 = vrot.lane.b32.xlu0 %v2927, 92
    %v2973 = vpop.permute.xlu0 %2972
    %2974 = vrot.lane.b32.xlu0 %v2928, 92
    %v2975 = vpop.permute.xlu0 %2974
    %2976 = vrot.lane.b32.xlu0 %v2929, 92
    %v2977 = vpop.permute.xlu0 %2976
    %2978 = vrot.lane.b32.xlu0 %v2930, 92
    %v2979 = vpop.permute.xlu0 %2978
    %2980 = vrot.lane.b32.xlu0 %v2931, 92
    %v2981 = vpop.permute.xlu0 %2980
    %2982 = vrot.lane.b32.xlu0 %v2932, 92
    %v2983 = vpop.permute.xlu0 %2982
    %2984 = vrot.lane.b32.xlu0 %v2933, 92
    %v2985 = vpop.permute.xlu0 %2984
    %2986 = vrot.lane.b32.xlu0 %v2934, 92
    %v2987 = vpop.permute.xlu0 %2986
    %2988 = vrot.lane.b32.xlu0 %v2935, 92
    %v2989 = vpop.permute.xlu0 %2988
    %2990 = vrot.lane.b32.xlu0 %v2936, 92
    %v2991 = vpop.permute.xlu0 %2990
    %2992 = vrot.lane.b32.xlu0 %v2937, 92
    %v2993 = vpop.permute.xlu0 %2992
    %2994 = vrot.lane.b32.xlu0 %v2938, 92
    %v2995 = vpop.permute.xlu0 %2994
    %2996 = vrot.lane.b32.xlu0 %v2939, 92
    %v2997 = vpop.permute.xlu0 %2996
    %2998 = vrot.lane.b32.xlu0 %v2940, 92
    %v2999 = vpop.permute.xlu0 %2998
    %3000 = vrot.lane.b32.xlu0 %v2941, 92
    %v3001 = vpop.permute.xlu0 %3000
    %3002 = vrot.lane.b32.xlu0 %v2942, 92
    %v3003 = vpop.permute.xlu0 %3002
    %3004 = vrot.lane.b32.xlu0 %v2943, 92
    %v3005 = vpop.permute.xlu0 %3004
    %3006 = vrot.lane.b32.xlu0 %v2944, 92
    %v3007 = vpop.permute.xlu0 %3006
    %v3008 = vsel %vm200, %v2967, %v2969
    %v3009 = vsel %vm200, %v2969, %v2971
    %v3010 = vsel %vm200, %v2971, %v2973
    %v3011 = vsel %vm200, %v2973, %v2975
    %v3012 = vsel %vm200, %v2975, %v2977
    %v3013 = vsel %vm200, %v2977, %v2979
    %v3014 = vsel %vm200, %v2979, %v2981
    %v3015 = vsel %vm200, %v2981, %v2983
    %v3016 = vsel %vm200, %v2983, %v2985
    %v3017 = vsel %vm200, %v2985, %v2987
    %v3018 = vsel %vm200, %v2987, %v2989
    %v3019 = vsel %vm200, %v2989, %v2991
    %v3020 = vsel %vm200, %v2991, %v2993
    %v3021 = vsel %vm200, %v2993, %v2995
    %v3022 = vsel %vm200, %v2995, %v2997
    %v3023 = vsel %vm200, %v2997, %v2999
    %v3024 = vsel %vm200, %v2999, %v3001
    %v3025 = vsel %vm200, %v3001, %v3003
    %v3026 = vsel %vm200, %v3003, %v3005
    %v3027 = vsel %vm200, %v3005, %v3007
    %3049 = vst [vmem:[#allocation3 + $0x3f0] sm:$0xff] %v3008
    %3050 = vst [vmem:[#allocation3 + $0x3f8] sm:$0xff] %v3009
    %3051 = vst [vmem:[#allocation3 + $0x400] sm:$0xff] %v3010
    %3052 = vst [vmem:[#allocation3 + $0x408] sm:$0xff] %v3011
    %3053 = vst [vmem:[#allocation3 + $0x410] sm:$0xff] %v3012
    %3054 = vst [vmem:[#allocation3 + $0x418] sm:$0xff] %v3013
    %3055 = vst [vmem:[#allocation3 + $0x420] sm:$0xff] %v3014
    %3056 = vst [vmem:[#allocation3 + $0x428] sm:$0xff] %v3015
    %3057 = vst [vmem:[#allocation3 + $0x430] sm:$0xff] %v3016
    %3058 = vst [vmem:[#allocation3 + $0x438] sm:$0xff] %v3017
    %3059 = vst [vmem:[#allocation3 + $0x440] sm:$0xff] %v3018
    %3060 = vst [vmem:[#allocation3 + $0x448] sm:$0xff] %v3019
    %3061 = vst [vmem:[#allocation3 + $0x450] sm:$0xff] %v3020
    %3062 = vst [vmem:[#allocation3 + $0x458] sm:$0xff] %v3021
    %3063 = vst [vmem:[#allocation3 + $0x460] sm:$0xff] %v3022
    %3064 = vst [vmem:[#allocation3 + $0x468] sm:$0xff] %v3023
    %3065 = vst [vmem:[#allocation3 + $0x470] sm:$0xff] %v3024
    %3066 = vst [vmem:[#allocation3 + $0x478] sm:$0xff] %v3025
    %3067 = vst [vmem:[#allocation3 + $0x480] sm:$0xff] %v3026
    %3068 = vst [vmem:[#allocation3 + $0x488] sm:$0xff] %v3027
    %3069 = vst.msk [vmem:[#allocation3 + $0x490] sm:$0xff] %vm2192, %v3007
    %v3070 = vld [vmem:[#allocation2] sm:$0xff]
    %v3071 = vld [vmem:[#allocation2 + $0x8] sm:$0xff]
    %v3072 = vld [vmem:[#allocation2 + $0x10] sm:$0xff]
    %v3073 = vld [vmem:[#allocation2 + $0x18] sm:$0xff]
    %v3074 = vld [vmem:[#allocation2 + $0x20] sm:$0xff]
    %v3075 = vld [vmem:[#allocation2 + $0x28] sm:$0xff]
    %v3076 = vld [vmem:[#allocation2 + $0x30] sm:$0xff]
    %v3077 = vld [vmem:[#allocation2 + $0x38] sm:$0xff]
    %v3078 = vld [vmem:[#allocation2 + $0x40] sm:$0xff]
    %v3079 = vld [vmem:[#allocation2 + $0x48] sm:$0xff]
    %v3080 = vld [vmem:[#allocation2 + $0x50] sm:$0xff]
    %v3081 = vld [vmem:[#allocation2 + $0x58] sm:$0xff]
    %v3082 = vld [vmem:[#allocation2 + $0x60] sm:$0xff]
    %v3083 = vld [vmem:[#allocation2 + $0x68] sm:$0xff]
    %v3084 = vld [vmem:[#allocation2 + $0x70] sm:$0xff]
    %v3085 = vld [vmem:[#allocation2 + $0x78] sm:$0xff]
    %v3086 = vld [vmem:[#allocation2 + $0x80] sm:$0xff]
    %v3087 = vld [vmem:[#allocation2 + $0x88] sm:$0xff]
    %v3088 = vld [vmem:[#allocation2 + $0x90] sm:$0xff]
    %v3089 = vld [vmem:[#allocation2 + $0x98] sm:$0xff]
    %v3090 = vld [vmem:[#allocation2 + $0xa0] sm:$0xff]
    %3112 = vrot.lane.b32.xlu0 %v3070, 91
    %v3113 = vpop.permute.xlu0 %3112
    %3114 = vrot.lane.b32.xlu0 %v3071, 91
    %v3115 = vpop.permute.xlu0 %3114
    %3116 = vrot.lane.b32.xlu0 %v3072, 91
    %v3117 = vpop.permute.xlu0 %3116
    %3118 = vrot.lane.b32.xlu0 %v3073, 91
    %v3119 = vpop.permute.xlu0 %3118
    %3120 = vrot.lane.b32.xlu0 %v3074, 91
    %v3121 = vpop.permute.xlu0 %3120
    %3122 = vrot.lane.b32.xlu0 %v3075, 91
    %v3123 = vpop.permute.xlu0 %3122
    %3124 = vrot.lane.b32.xlu0 %v3076, 91
    %v3125 = vpop.permute.xlu0 %3124
    %3126 = vrot.lane.b32.xlu0 %v3077, 91
    %v3127 = vpop.permute.xlu0 %3126
    %3128 = vrot.lane.b32.xlu0 %v3078, 91
    %v3129 = vpop.permute.xlu0 %3128
    %3130 = vrot.lane.b32.xlu0 %v3079, 91
    %v3131 = vpop.permute.xlu0 %3130
    %3132 = vrot.lane.b32.xlu0 %v3080, 91
    %v3133 = vpop.permute.xlu0 %3132
    %3134 = vrot.lane.b32.xlu0 %v3081, 91
    %v3135 = vpop.permute.xlu0 %3134
    %3136 = vrot.lane.b32.xlu0 %v3082, 91
    %v3137 = vpop.permute.xlu0 %3136
    %3138 = vrot.lane.b32.xlu0 %v3083, 91
    %v3139 = vpop.permute.xlu0 %3138
    %3140 = vrot.lane.b32.xlu0 %v3084, 91
    %v3141 = vpop.permute.xlu0 %3140
    %3142 = vrot.lane.b32.xlu0 %v3085, 91
    %v3143 = vpop.permute.xlu0 %3142
    %3144 = vrot.lane.b32.xlu0 %v3086, 91
    %v3145 = vpop.permute.xlu0 %3144
    %3146 = vrot.lane.b32.xlu0 %v3087, 91
    %v3147 = vpop.permute.xlu0 %3146
    %3148 = vrot.lane.b32.xlu0 %v3088, 91
    %v3149 = vpop.permute.xlu0 %3148
    %3150 = vrot.lane.b32.xlu0 %v3089, 91
    %v3151 = vpop.permute.xlu0 %3150
    %3152 = vrot.lane.b32.xlu0 %v3090, 91
    %v3153 = vpop.permute.xlu0 %3152
    %v3154 = vsel %vm227, %v3113, %v3115
    %v3155 = vsel %vm227, %v3115, %v3117
    %v3156 = vsel %vm227, %v3117, %v3119
    %v3157 = vsel %vm227, %v3119, %v3121
    %v3158 = vsel %vm227, %v3121, %v3123
    %v3159 = vsel %vm227, %v3123, %v3125
    %v3160 = vsel %vm227, %v3125, %v3127
    %v3161 = vsel %vm227, %v3127, %v3129
    %v3162 = vsel %vm227, %v3129, %v3131
    %v3163 = vsel %vm227, %v3131, %v3133
    %v3164 = vsel %vm227, %v3133, %v3135
    %v3165 = vsel %vm227, %v3135, %v3137
    %v3166 = vsel %vm227, %v3137, %v3139
    %v3167 = vsel %vm227, %v3139, %v3141
    %v3168 = vsel %vm227, %v3141, %v3143
    %v3169 = vsel %vm227, %v3143, %v3145
    %v3170 = vsel %vm227, %v3145, %v3147
    %v3171 = vsel %vm227, %v3147, %v3149
    %v3172 = vsel %vm227, %v3149, %v3151
    %v3173 = vsel %vm227, %v3151, %v3153
    %3195 = vst [vmem:[#allocation3 + $0x498] sm:$0xff] %v3154
    %3196 = vst [vmem:[#allocation3 + $0x4a0] sm:$0xff] %v3155
    %3197 = vst [vmem:[#allocation3 + $0x4a8] sm:$0xff] %v3156
    %3198 = vst [vmem:[#allocation3 + $0x4b0] sm:$0xff] %v3157
    %3199 = vst [vmem:[#allocation3 + $0x4b8] sm:$0xff] %v3158
    %3200 = vst [vmem:[#allocation3 + $0x4c0] sm:$0xff] %v3159
    %3201 = vst [vmem:[#allocation3 + $0x4c8] sm:$0xff] %v3160
    %3202 = vst [vmem:[#allocation3 + $0x4d0] sm:$0xff] %v3161
    %3203 = vst [vmem:[#allocation3 + $0x4d8] sm:$0xff] %v3162
    %3204 = vst [vmem:[#allocation3 + $0x4e0] sm:$0xff] %v3163
    %3205 = vst [vmem:[#allocation3 + $0x4e8] sm:$0xff] %v3164
    %3206 = vst [vmem:[#allocation3 + $0x4f0] sm:$0xff] %v3165
    %3207 = vst [vmem:[#allocation3 + $0x4f8] sm:$0xff] %v3166
    %3208 = vst [vmem:[#allocation3 + $0x500] sm:$0xff] %v3167
    %3209 = vst [vmem:[#allocation3 + $0x508] sm:$0xff] %v3168
    %3210 = vst [vmem:[#allocation3 + $0x510] sm:$0xff] %v3169
    %3211 = vst [vmem:[#allocation3 + $0x518] sm:$0xff] %v3170
    %3212 = vst [vmem:[#allocation3 + $0x520] sm:$0xff] %v3171
    %3213 = vst [vmem:[#allocation3 + $0x528] sm:$0xff] %v3172
    %3214 = vst [vmem:[#allocation3 + $0x530] sm:$0xff] %v3173
    %3215 = vst.msk [vmem:[#allocation3 + $0x538] sm:$0xff] %vm2192, %v3153
    %v3216 = vld [vmem:[#allocation2] sm:$0xff]
    %v3217 = vld [vmem:[#allocation2 + $0x8] sm:$0xff]
    %v3218 = vld [vmem:[#allocation2 + $0x10] sm:$0xff]
    %v3219 = vld [vmem:[#allocation2 + $0x18] sm:$0xff]
    %v3220 = vld [vmem:[#allocation2 + $0x20] sm:$0xff]
    %v3221 = vld [vmem:[#allocation2 + $0x28] sm:$0xff]
    %v3222 = vld [vmem:[#allocation2 + $0x30] sm:$0xff]
    %v3223 = vld [vmem:[#allocation2 + $0x38] sm:$0xff]
    %v3224 = vld [vmem:[#allocation2 + $0x40] sm:$0xff]
    %v3225 = vld [vmem:[#allocation2 + $0x48] sm:$0xff]
    %v3226 = vld [vmem:[#allocation2 + $0x50] sm:$0xff]
    %v3227 = vld [vmem:[#allocation2 + $0x58] sm:$0xff]
    %v3228 = vld [vmem:[#allocation2 + $0x60] sm:$0xff]
    %v3229 = vld [vmem:[#allocation2 + $0x68] sm:$0xff]
    %v3230 = vld [vmem:[#allocation2 + $0x70] sm:$0xff]
    %v3231 = vld [vmem:[#allocation2 + $0x78] sm:$0xff]
    %v3232 = vld [vmem:[#allocation2 + $0x80] sm:$0xff]
    %v3233 = vld [vmem:[#allocation2 + $0x88] sm:$0xff]
    %v3234 = vld [vmem:[#allocation2 + $0x90] sm:$0xff]
    %v3235 = vld [vmem:[#allocation2 + $0x98] sm:$0xff]
    %v3236 = vld [vmem:[#allocation2 + $0xa0] sm:$0xff]
    %3258 = vrot.lane.b32.xlu0 %v3216, 90
    %v3259 = vpop.permute.xlu0 %3258
    %3260 = vrot.lane.b32.xlu0 %v3217, 90
    %v3261 = vpop.permute.xlu0 %3260
    %3262 = vrot.lane.b32.xlu0 %v3218, 90
    %v3263 = vpop.permute.xlu0 %3262
    %3264 = vrot.lane.b32.xlu0 %v3219, 90
    %v3265 = vpop.permute.xlu0 %3264
    %3266 = vrot.lane.b32.xlu0 %v3220, 90
    %v3267 = vpop.permute.xlu0 %3266
    %3268 = vrot.lane.b32.xlu0 %v3221, 90
    %v3269 = vpop.permute.xlu0 %3268
    %3270 = vrot.lane.b32.xlu0 %v3222, 90
    %v3271 = vpop.permute.xlu0 %3270
    %3272 = vrot.lane.b32.xlu0 %v3223, 90
    %v3273 = vpop.permute.xlu0 %3272
    %3274 = vrot.lane.b32.xlu0 %v3224, 90
    %v3275 = vpop.permute.xlu0 %3274
    %3276 = vrot.lane.b32.xlu0 %v3225, 90
    %v3277 = vpop.permute.xlu0 %3276
    %3278 = vrot.lane.b32.xlu0 %v3226, 90
    %v3279 = vpop.permute.xlu0 %3278
    %3280 = vrot.lane.b32.xlu0 %v3227, 90
    %v3281 = vpop.permute.xlu0 %3280
    %3282 = vrot.lane.b32.xlu0 %v3228, 90
    %v3283 = vpop.permute.xlu0 %3282
    %3284 = vrot.lane.b32.xlu0 %v3229, 90
    %v3285 = vpop.permute.xlu0 %3284
    %3286 = vrot.lane.b32.xlu0 %v3230, 90
    %v3287 = vpop.permute.xlu0 %3286
    %3288 = vrot.lane.b32.xlu0 %v3231, 90
    %v3289 = vpop.permute.xlu0 %3288
    %3290 = vrot.lane.b32.xlu0 %v3232, 90
    %v3291 = vpop.permute.xlu0 %3290
    %3292 = vrot.lane.b32.xlu0 %v3233, 90
    %v3293 = vpop.permute.xlu0 %3292
    %3294 = vrot.lane.b32.xlu0 %v3234, 90
    %v3295 = vpop.permute.xlu0 %3294
    %3296 = vrot.lane.b32.xlu0 %v3235, 90
    %v3297 = vpop.permute.xlu0 %3296
    %3298 = vrot.lane.b32.xlu0 %v3236, 90
    %v3299 = vpop.permute.xlu0 %3298
    %v3300 = vsel %vm254, %v3259, %v3261
    %v3301 = vsel %vm254, %v3261, %v3263
    %v3302 = vsel %vm254, %v3263, %v3265
    %v3303 = vsel %vm254, %v3265, %v3267
    %v3304 = vsel %vm254, %v3267, %v3269
    %v3305 = vsel %vm254, %v3269, %v3271
    %v3306 = vsel %vm254, %v3271, %v3273
    %v3307 = vsel %vm254, %v3273, %v3275
    %v3308 = vsel %vm254, %v3275, %v3277
    %v3309 = vsel %vm254, %v3277, %v3279
    %v3310 = vsel %vm254, %v3279, %v3281
    %v3311 = vsel %vm254, %v3281, %v3283
    %v3312 = vsel %vm254, %v3283, %v3285
    %v3313 = vsel %vm254, %v3285, %v3287
    %v3314 = vsel %vm254, %v3287, %v3289
    %v3315 = vsel %vm254, %v3289, %v3291
    %v3316 = vsel %vm254, %v3291, %v3293
    %v3317 = vsel %vm254, %v3293, %v3295
    %v3318 = vsel %vm254, %v3295, %v3297
    %v3319 = vsel %vm254, %v3297, %v3299
    %3341 = vst [vmem:[#allocation3 + $0x540] sm:$0xff] %v3300
    %3342 = vst [vmem:[#allocation3 + $0x548] sm:$0xff] %v3301
    %3343 = vst [vmem:[#allocation3 + $0x550] sm:$0xff] %v3302
    %3344 = vst [vmem:[#allocation3 + $0x558] sm:$0xff] %v3303
    %3345 = vst [vmem:[#allocation3 + $0x560] sm:$0xff] %v3304
    %3346 = vst [vmem:[#allocation3 + $0x568] sm:$0xff] %v3305
    %3347 = vst [vmem:[#allocation3 + $0x570] sm:$0xff] %v3306
    %3348 = vst [vmem:[#allocation3 + $0x578] sm:$0xff] %v3307
    %3349 = vst [vmem:[#allocation3 + $0x580] sm:$0xff] %v3308
    %3350 = vst [vmem:[#allocation3 + $0x588] sm:$0xff] %v3309
    %3351 = vst [vmem:[#allocation3 + $0x590] sm:$0xff] %v3310
    %3352 = vst [vmem:[#allocation3 + $0x598] sm:$0xff] %v3311
    %3353 = vst [vmem:[#allocation3 + $0x5a0] sm:$0xff] %v3312
    %3354 = vst [vmem:[#allocation3 + $0x5a8] sm:$0xff] %v3313
    %3355 = vst [vmem:[#allocation3 + $0x5b0] sm:$0xff] %v3314
    %3356 = vst [vmem:[#allocation3 + $0x5b8] sm:$0xff] %v3315
    %3357 = vst [vmem:[#allocation3 + $0x5c0] sm:$0xff] %v3316
    %3358 = vst [vmem:[#allocation3 + $0x5c8] sm:$0xff] %v3317
    %3359 = vst [vmem:[#allocation3 + $0x5d0] sm:$0xff] %v3318
    %3360 = vst [vmem:[#allocation3 + $0x5d8] sm:$0xff] %v3319
    %3361 = vst.msk [vmem:[#allocation3 + $0x5e0] sm:$0xff] %vm2192, %v3299
    %v3362 = vld [vmem:[#allocation2 + $0x10] sm:$0xff]
    %v3363 = vld [vmem:[#allocation2 + $0x18] sm:$0xff]
    %v3364 = vld [vmem:[#allocation2 + $0x20] sm:$0xff]
    %v3365 = vld [vmem:[#allocation2 + $0x28] sm:$0xff]
    %v3366 = vld [vmem:[#allocation2 + $0x30] sm:$0xff]
    %v3367 = vld [vmem:[#allocation2 + $0x38] sm:$0xff]
    %v3368 = vld [vmem:[#allocation2 + $0x40] sm:$0xff]
    %v3369 = vld [vmem:[#allocation2 + $0x48] sm:$0xff]
    %v3370 = vld [vmem:[#allocation2 + $0x50] sm:$0xff]
    %v3371 = vld [vmem:[#allocation2 + $0x58] sm:$0xff]
    %v3372 = vld [vmem:[#allocation2 + $0x60] sm:$0xff]
    %v3373 = vld [vmem:[#allocation2 + $0x68] sm:$0xff]
    %v3374 = vld [vmem:[#allocation2 + $0x70] sm:$0xff]
    %v3375 = vld [vmem:[#allocation2 + $0x78] sm:$0xff]
    %v3376 = vld [vmem:[#allocation2 + $0x80] sm:$0xff]
    %v3377 = vld [vmem:[#allocation2 + $0x88] sm:$0xff]
    %v3378 = vld [vmem:[#allocation2 + $0x90] sm:$0xff]
    %v3379 = vld [vmem:[#allocation2 + $0x98] sm:$0xff]
    %v3380 = vld [vmem:[#allocation2 + $0xa0] sm:$0xff]
    %v3381 = vld [vmem:[#allocation2 + $0xa8] sm:$0xff]
    %v3382 = vld [vmem:[#allocation2 + $0xb0] sm:$0xff]
    %3404 = vrot.lane.b32.xlu0 %v3362, 60
    %v3405 = vpop.permute.xlu0 %3404
    %3406 = vrot.lane.b32.xlu0 %v3363, 60
    %v3407 = vpop.permute.xlu0 %3406
    %3408 = vrot.lane.b32.xlu0 %v3364, 60
    %v3409 = vpop.permute.xlu0 %3408
    %3410 = vrot.lane.b32.xlu0 %v3365, 60
    %v3411 = vpop.permute.xlu0 %3410
    %3412 = vrot.lane.b32.xlu0 %v3366, 60
    %v3413 = vpop.permute.xlu0 %3412
    %3414 = vrot.lane.b32.xlu0 %v3367, 60
    %v3415 = vpop.permute.xlu0 %3414
    %3416 = vrot.lane.b32.xlu0 %v3368, 60
    %v3417 = vpop.permute.xlu0 %3416
    %3418 = vrot.lane.b32.xlu0 %v3369, 60
    %v3419 = vpop.permute.xlu0 %3418
    %3420 = vrot.lane.b32.xlu0 %v3370, 60
    %v3421 = vpop.permute.xlu0 %3420
    %3422 = vrot.lane.b32.xlu0 %v3371, 60
    %v3423 = vpop.permute.xlu0 %3422
    %3424 = vrot.lane.b32.xlu0 %v3372, 60
    %v3425 = vpop.permute.xlu0 %3424
    %3426 = vrot.lane.b32.xlu0 %v3373, 60
    %v3427 = vpop.permute.xlu0 %3426
    %3428 = vrot.lane.b32.xlu0 %v3374, 60
    %v3429 = vpop.permute.xlu0 %3428
    %3430 = vrot.lane.b32.xlu0 %v3375, 60
    %v3431 = vpop.permute.xlu0 %3430
    %3432 = vrot.lane.b32.xlu0 %v3376, 60
    %v3433 = vpop.permute.xlu0 %3432
    %3434 = vrot.lane.b32.xlu0 %v3377, 60
    %v3435 = vpop.permute.xlu0 %3434
    %3436 = vrot.lane.b32.xlu0 %v3378, 60
    %v3437 = vpop.permute.xlu0 %3436
    %3438 = vrot.lane.b32.xlu0 %v3379, 60
    %v3439 = vpop.permute.xlu0 %3438
    %3440 = vrot.lane.b32.xlu0 %v3380, 60
    %v3441 = vpop.permute.xlu0 %3440
    %3442 = vrot.lane.b32.xlu0 %v3381, 60
    %v3443 = vpop.permute.xlu0 %3442
    %3444 = vrot.lane.b32.xlu0 %v3382, 60
    %v3445 = vpop.permute.xlu0 %3444
    %v3446 = vsel %vm287, %v3405, %v3407
    %v3447 = vsel %vm287, %v3407, %v3409
    %v3448 = vsel %vm287, %v3409, %v3411
    %v3449 = vsel %vm287, %v3411, %v3413
    %v3450 = vsel %vm287, %v3413, %v3415
    %v3451 = vsel %vm287, %v3415, %v3417
    %v3452 = vsel %vm287, %v3417, %v3419
    %v3453 = vsel %vm287, %v3419, %v3421
    %v3454 = vsel %vm287, %v3421, %v3423
    %v3455 = vsel %vm287, %v3423, %v3425
    %v3456 = vsel %vm287, %v3425, %v3427
    %v3457 = vsel %vm287, %v3427, %v3429
    %v3458 = vsel %vm287, %v3429, %v3431
    %v3459 = vsel %vm287, %v3431, %v3433
    %v3460 = vsel %vm287, %v3433, %v3435
    %v3461 = vsel %vm287, %v3435, %v3437
    %v3462 = vsel %vm287, %v3437, %v3439
    %v3463 = vsel %vm287, %v3439, %v3441
    %v3464 = vsel %vm287, %v3441, %v3443
    %v3465 = vsel %vm287, %v3443, %v3445
    %3487 = vst [vmem:[#allocation3 + $0x5e8] sm:$0xff] %v3446
    %3488 = vst [vmem:[#allocation3 + $0x5f0] sm:$0xff] %v3447
    %3489 = vst [vmem:[#allocation3 + $0x5f8] sm:$0xff] %v3448
    %3490 = vst [vmem:[#allocation3 + $0x600] sm:$0xff] %v3449
    %3491 = vst [vmem:[#allocation3 + $0x608] sm:$0xff] %v3450
    %3492 = vst [vmem:[#allocation3 + $0x610] sm:$0xff] %v3451
    %3493 = vst [vmem:[#allocation3 + $0x618] sm:$0xff] %v3452
    %3494 = vst [vmem:[#allocation3 + $0x620] sm:$0xff] %v3453
    %3495 = vst [vmem:[#allocation3 + $0x628] sm:$0xff] %v3454
    %3496 = vst [vmem:[#allocation3 + $0x630] sm:$0xff] %v3455
    %3497 = vst [vmem:[#allocation3 + $0x638] sm:$0xff] %v3456
    %3498 = vst [vmem:[#allocation3 + $0x640] sm:$0xff] %v3457
    %3499 = vst [vmem:[#allocation3 + $0x648] sm:$0xff] %v3458
    %3500 = vst [vmem:[#allocation3 + $0x650] sm:$0xff] %v3459
    %3501 = vst [vmem:[#allocation3 + $0x658] sm:$0xff] %v3460
    %3502 = vst [vmem:[#allocation3 + $0x660] sm:$0xff] %v3461
    %3503 = vst [vmem:[#allocation3 + $0x668] sm:$0xff] %v3462
    %3504 = vst [vmem:[#allocation3 + $0x670] sm:$0xff] %v3463
    %3505 = vst [vmem:[#allocation3 + $0x678] sm:$0xff] %v3464
    %3506 = vst [vmem:[#allocation3 + $0x680] sm:$0xff] %v3465
    %3507 = vst.msk [vmem:[#allocation3 + $0x688] sm:$0xff] %vm2192, %v3445
    %v3508 = vld [vmem:[#allocation2 + $0x10] sm:$0xff]
    %v3509 = vld [vmem:[#allocation2 + $0x18] sm:$0xff]
    %v3510 = vld [vmem:[#allocation2 + $0x20] sm:$0xff]
    %v3511 = vld [vmem:[#allocation2 + $0x28] sm:$0xff]
    %v3512 = vld [vmem:[#allocation2 + $0x30] sm:$0xff]
    %v3513 = vld [vmem:[#allocation2 + $0x38] sm:$0xff]
    %v3514 = vld [vmem:[#allocation2 + $0x40] sm:$0xff]
    %v3515 = vld [vmem:[#allocation2 + $0x48] sm:$0xff]
    %v3516 = vld [vmem:[#allocation2 + $0x50] sm:$0xff]
    %v3517 = vld [vmem:[#allocation2 + $0x58] sm:$0xff]
    %v3518 = vld [vmem:[#allocation2 + $0x60] sm:$0xff]
    %v3519 = vld [vmem:[#allocation2 + $0x68] sm:$0xff]
    %v3520 = vld [vmem:[#allocation2 + $0x70] sm:$0xff]
    %v3521 = vld [vmem:[#allocation2 + $0x78] sm:$0xff]
    %v3522 = vld [vmem:[#allocation2 + $0x80] sm:$0xff]
    %v3523 = vld [vmem:[#allocation2 + $0x88] sm:$0xff]
    %v3524 = vld [vmem:[#allocation2 + $0x90] sm:$0xff]
    %v3525 = vld [vmem:[#allocation2 + $0x98] sm:$0xff]
    %v3526 = vld [vmem:[#allocation2 + $0xa0] sm:$0xff]
    %v3527 = vld [vmem:[#allocation2 + $0xa8] sm:$0xff]
    %v3528 = vld [vmem:[#allocation2 + $0xb0] sm:$0xff]
    %3550 = vrot.lane.b32.xlu0 %v3508, 59
    %v3551 = vpop.permute.xlu0 %3550
    %3552 = vrot.lane.b32.xlu0 %v3509, 59
    %v3553 = vpop.permute.xlu0 %3552
    %3554 = vrot.lane.b32.xlu0 %v3510, 59
    %v3555 = vpop.permute.xlu0 %3554
    %3556 = vrot.lane.b32.xlu0 %v3511, 59
    %v3557 = vpop.permute.xlu0 %3556
    %3558 = vrot.lane.b32.xlu0 %v3512, 59
    %v3559 = vpop.permute.xlu0 %3558
    %3560 = vrot.lane.b32.xlu0 %v3513, 59
    %v3561 = vpop.permute.xlu0 %3560
    %3562 = vrot.lane.b32.xlu0 %v3514, 59
    %v3563 = vpop.permute.xlu0 %3562
    %3564 = vrot.lane.b32.xlu0 %v3515, 59
    %v3565 = vpop.permute.xlu0 %3564
    %3566 = vrot.lane.b32.xlu0 %v3516, 59
    %v3567 = vpop.permute.xlu0 %3566
    %3568 = vrot.lane.b32.xlu0 %v3517, 59
    %v3569 = vpop.permute.xlu0 %3568
    %3570 = vrot.lane.b32.xlu0 %v3518, 59
    %v3571 = vpop.permute.xlu0 %3570
    %3572 = vrot.lane.b32.xlu0 %v3519, 59
    %v3573 = vpop.permute.xlu0 %3572
    %3574 = vrot.lane.b32.xlu0 %v3520, 59
    %v3575 = vpop.permute.xlu0 %3574
    %3576 = vrot.lane.b32.xlu0 %v3521, 59
    %v3577 = vpop.permute.xlu0 %3576
    %3578 = vrot.lane.b32.xlu0 %v3522, 59
    %v3579 = vpop.permute.xlu0 %3578
    %3580 = vrot.lane.b32.xlu0 %v3523, 59
    %v3581 = vpop.permute.xlu0 %3580
    %3582 = vrot.lane.b32.xlu0 %v3524, 59
    %v3583 = vpop.permute.xlu0 %3582
    %3584 = vrot.lane.b32.xlu0 %v3525, 59
    %v3585 = vpop.permute.xlu0 %3584
    %3586 = vrot.lane.b32.xlu0 %v3526, 59
    %v3587 = vpop.permute.xlu0 %3586
    %3588 = vrot.lane.b32.xlu0 %v3527, 59
    %v3589 = vpop.permute.xlu0 %3588
    %3590 = vrot.lane.b32.xlu0 %v3528, 59
    %v3591 = vpop.permute.xlu0 %3590
    %v3592 = vsel %vm319, %v3551, %v3553
    %v3593 = vsel %vm319, %v3553, %v3555
    %v3594 = vsel %vm319, %v3555, %v3557
    %v3595 = vsel %vm319, %v3557, %v3559
    %v3596 = vsel %vm319, %v3559, %v3561
    %v3597 = vsel %vm319, %v3561, %v3563
    %v3598 = vsel %vm319, %v3563, %v3565
    %v3599 = vsel %vm319, %v3565, %v3567
    %v3600 = vsel %vm319, %v3567, %v3569
    %v3601 = vsel %vm319, %v3569, %v3571
    %v3602 = vsel %vm319, %v3571, %v3573
    %v3603 = vsel %vm319, %v3573, %v3575
    %v3604 = vsel %vm319, %v3575, %v3577
    %v3605 = vsel %vm319, %v3577, %v3579
    %v3606 = vsel %vm319, %v3579, %v3581
    %v3607 = vsel %vm319, %v3581, %v3583
    %v3608 = vsel %vm319, %v3583, %v3585
    %v3609 = vsel %vm319, %v3585, %v3587
    %v3610 = vsel %vm319, %v3587, %v3589
    %v3611 = vsel %vm319, %v3589, %v3591
    %3633 = vst [vmem:[#allocation3 + $0x690] sm:$0xff] %v3592
    %3634 = vst [vmem:[#allocation3 + $0x698] sm:$0xff] %v3593
    %3635 = vst [vmem:[#allocation3 + $0x6a0] sm:$0xff] %v3594
    %3636 = vst [vmem:[#allocation3 + $0x6a8] sm:$0xff] %v3595
    %3637 = vst [vmem:[#allocation3 + $0x6b0] sm:$0xff] %v3596
    %3638 = vst [vmem:[#allocation3 + $0x6b8] sm:$0xff] %v3597
    %3639 = vst [vmem:[#allocation3 + $0x6c0] sm:$0xff] %v3598
    %3640 = vst [vmem:[#allocation3 + $0x6c8] sm:$0xff] %v3599
    %3641 = vst [vmem:[#allocation3 + $0x6d0] sm:$0xff] %v3600
    %3642 = vst [vmem:[#allocation3 + $0x6d8] sm:$0xff] %v3601
    %3643 = vst [vmem:[#allocation3 + $0x6e0] sm:$0xff] %v3602
    %3644 = vst [vmem:[#allocation3 + $0x6e8] sm:$0xff] %v3603
    %3645 = vst [vmem:[#allocation3 + $0x6f0] sm:$0xff] %v3604
    %3646 = vst [vmem:[#allocation3 + $0x6f8] sm:$0xff] %v3605
    %3647 = vst [vmem:[#allocation3 + $0x700] sm:$0xff] %v3606
    %3648 = vst [vmem:[#allocation3 + $0x708] sm:$0xff] %v3607
    %3649 = vst [vmem:[#allocation3 + $0x710] sm:$0xff] %v3608
    %3650 = vst [vmem:[#allocation3 + $0x718] sm:$0xff] %v3609
    %3651 = vst [vmem:[#allocation3 + $0x720] sm:$0xff] %v3610
    %3652 = vst [vmem:[#allocation3 + $0x728] sm:$0xff] %v3611
    %3653 = vst.msk [vmem:[#allocation3 + $0x730] sm:$0xff] %vm2192, %v3591
    %v3654 = vld [vmem:[#allocation2 + $0x10] sm:$0xff]
    %v3655 = vld [vmem:[#allocation2 + $0x18] sm:$0xff]
    %v3656 = vld [vmem:[#allocation2 + $0x20] sm:$0xff]
    %v3657 = vld [vmem:[#allocation2 + $0x28] sm:$0xff]
    %v3658 = vld [vmem:[#allocation2 + $0x30] sm:$0xff]
    %v3659 = vld [vmem:[#allocation2 + $0x38] sm:$0xff]
    %v3660 = vld [vmem:[#allocation2 + $0x40] sm:$0xff]
    %v3661 = vld [vmem:[#allocation2 + $0x48] sm:$0xff]
    %v3662 = vld [vmem:[#allocation2 + $0x50] sm:$0xff]
    %v3663 = vld [vmem:[#allocation2 + $0x58] sm:$0xff]
    %v3664 = vld [vmem:[#allocation2 + $0x60] sm:$0xff]
    %v3665 = vld [vmem:[#allocation2 + $0x68] sm:$0xff]
    %v3666 = vld [vmem:[#allocation2 + $0x70] sm:$0xff]
    %v3667 = vld [vmem:[#allocation2 + $0x78] sm:$0xff]
    %v3668 = vld [vmem:[#allocation2 + $0x80] sm:$0xff]
    %v3669 = vld [vmem:[#allocation2 + $0x88] sm:$0xff]
    %v3670 = vld [vmem:[#allocation2 + $0x90] sm:$0xff]
    %v3671 = vld [vmem:[#allocation2 + $0x98] sm:$0xff]
    %v3672 = vld [vmem:[#allocation2 + $0xa0] sm:$0xff]
    %v3673 = vld [vmem:[#allocation2 + $0xa8] sm:$0xff]
    %v3674 = vld [vmem:[#allocation2 + $0xb0] sm:$0xff]
    %3696 = vrot.lane.b32.xlu0 %v3654, 58
    %v3697 = vpop.permute.xlu0 %3696
    %3698 = vrot.lane.b32.xlu0 %v3655, 58
    %v3699 = vpop.permute.xlu0 %3698
    %3700 = vrot.lane.b32.xlu0 %v3656, 58
    %v3701 = vpop.permute.xlu0 %3700
    %3702 = vrot.lane.b32.xlu0 %v3657, 58
    %v3703 = vpop.permute.xlu0 %3702
    %3704 = vrot.lane.b32.xlu0 %v3658, 58
    %v3705 = vpop.permute.xlu0 %3704
    %3706 = vrot.lane.b32.xlu0 %v3659, 58
    %v3707 = vpop.permute.xlu0 %3706
    %3708 = vrot.lane.b32.xlu0 %v3660, 58
    %v3709 = vpop.permute.xlu0 %3708
    %3710 = vrot.lane.b32.xlu0 %v3661, 58
    %v3711 = vpop.permute.xlu0 %3710
    %3712 = vrot.lane.b32.xlu0 %v3662, 58
    %v3713 = vpop.permute.xlu0 %3712
    %3714 = vrot.lane.b32.xlu0 %v3663, 58
    %v3715 = vpop.permute.xlu0 %3714
    %3716 = vrot.lane.b32.xlu0 %v3664, 58
    %v3717 = vpop.permute.xlu0 %3716
    %3718 = vrot.lane.b32.xlu0 %v3665, 58
    %v3719 = vpop.permute.xlu0 %3718
    %3720 = vrot.lane.b32.xlu0 %v3666, 58
    %v3721 = vpop.permute.xlu0 %3720
    %3722 = vrot.lane.b32.xlu0 %v3667, 58
    %v3723 = vpop.permute.xlu0 %3722
    %3724 = vrot.lane.b32.xlu0 %v3668, 58
    %v3725 = vpop.permute.xlu0 %3724
    %3726 = vrot.lane.b32.xlu0 %v3669, 58
    %v3727 = vpop.permute.xlu0 %3726
    %3728 = vrot.lane.b32.xlu0 %v3670, 58
    %v3729 = vpop.permute.xlu0 %3728
    %3730 = vrot.lane.b32.xlu0 %v3671, 58
    %v3731 = vpop.permute.xlu0 %3730
    %3732 = vrot.lane.b32.xlu0 %v3672, 58
    %v3733 = vpop.permute.xlu0 %3732
    %3734 = vrot.lane.b32.xlu0 %v3673, 58
    %v3735 = vpop.permute.xlu0 %3734
    %3736 = vrot.lane.b32.xlu0 %v3674, 58
    %v3737 = vpop.permute.xlu0 %3736
    %v3738 = vsel %vm351, %v3697, %v3699
    %v3739 = vsel %vm351, %v3699, %v3701
    %v3740 = vsel %vm351, %v3701, %v3703
    %v3741 = vsel %vm351, %v3703, %v3705
    %v3742 = vsel %vm351, %v3705, %v3707
    %v3743 = vsel %vm351, %v3707, %v3709
    %v3744 = vsel %vm351, %v3709, %v3711
    %v3745 = vsel %vm351, %v3711, %v3713
    %v3746 = vsel %vm351, %v3713, %v3715
    %v3747 = vsel %vm351, %v3715, %v3717
    %v3748 = vsel %vm351, %v3717, %v3719
    %v3749 = vsel %vm351, %v3719, %v3721
    %v3750 = vsel %vm351, %v3721, %v3723
    %v3751 = vsel %vm351, %v3723, %v3725
    %v3752 = vsel %vm351, %v3725, %v3727
    %v3753 = vsel %vm351, %v3727, %v3729
    %v3754 = vsel %vm351, %v3729, %v3731
    %v3755 = vsel %vm351, %v3731, %v3733
    %v3756 = vsel %vm351, %v3733, %v3735
    %v3757 = vsel %vm351, %v3735, %v3737
    %3779 = vst [vmem:[#allocation3 + $0x738] sm:$0xff] %v3738
    %3780 = vst [vmem:[#allocation3 + $0x740] sm:$0xff] %v3739
    %3781 = vst [vmem:[#allocation3 + $0x748] sm:$0xff] %v3740
    %3782 = vst [vmem:[#allocation3 + $0x750] sm:$0xff] %v3741
    %3783 = vst [vmem:[#allocation3 + $0x758] sm:$0xff] %v3742
    %3784 = vst [vmem:[#allocation3 + $0x760] sm:$0xff] %v3743
    %3785 = vst [vmem:[#allocation3 + $0x768] sm:$0xff] %v3744
    %3786 = vst [vmem:[#allocation3 + $0x770] sm:$0xff] %v3745
    %3787 = vst [vmem:[#allocation3 + $0x778] sm:$0xff] %v3746
    %3788 = vst [vmem:[#allocation3 + $0x780] sm:$0xff] %v3747
    %3789 = vst [vmem:[#allocation3 + $0x788] sm:$0xff] %v3748
    %3790 = vst [vmem:[#allocation3 + $0x790] sm:$0xff] %v3749
    %3791 = vst [vmem:[#allocation3 + $0x798] sm:$0xff] %v3750
    %3792 = vst [vmem:[#allocation3 + $0x7a0] sm:$0xff] %v3751
    %3793 = vst [vmem:[#allocation3 + $0x7a8] sm:$0xff] %v3752
    %3794 = vst [vmem:[#allocation3 + $0x7b0] sm:$0xff] %v3753
    %3795 = vst [vmem:[#allocation3 + $0x7b8] sm:$0xff] %v3754
    %3796 = vst [vmem:[#allocation3 + $0x7c0] sm:$0xff] %v3755
    %3797 = vst [vmem:[#allocation3 + $0x7c8] sm:$0xff] %v3756
    %3798 = vst [vmem:[#allocation3 + $0x7d0] sm:$0xff] %v3757
    %3799 = vst.msk [vmem:[#allocation3 + $0x7d8] sm:$0xff] %vm2192, %v3737
    %v3800 = vld [vmem:[#allocation2 + $0x10] sm:$0xff]
    %v3801 = vld [vmem:[#allocation2 + $0x18] sm:$0xff]
    %v3802 = vld [vmem:[#allocation2 + $0x20] sm:$0xff]
    %v3803 = vld [vmem:[#allocation2 + $0x28] sm:$0xff]
    %v3804 = vld [vmem:[#allocation2 + $0x30] sm:$0xff]
    %v3805 = vld [vmem:[#allocation2 + $0x38] sm:$0xff]
    %v3806 = vld [vmem:[#allocation2 + $0x40] sm:$0xff]
    %v3807 = vld [vmem:[#allocation2 + $0x48] sm:$0xff]
    %v3808 = vld [vmem:[#allocation2 + $0x50] sm:$0xff]
    %v3809 = vld [vmem:[#allocation2 + $0x58] sm:$0xff]
    %v3810 = vld [vmem:[#allocation2 + $0x60] sm:$0xff]
    %v3811 = vld [vmem:[#allocation2 + $0x68] sm:$0xff]
    %v3812 = vld [vmem:[#allocation2 + $0x70] sm:$0xff]
    %v3813 = vld [vmem:[#allocation2 + $0x78] sm:$0xff]
    %v3814 = vld [vmem:[#allocation2 + $0x80] sm:$0xff]
    %v3815 = vld [vmem:[#allocation2 + $0x88] sm:$0xff]
    %v3816 = vld [vmem:[#allocation2 + $0x90] sm:$0xff]
    %v3817 = vld [vmem:[#allocation2 + $0x98] sm:$0xff]
    %v3818 = vld [vmem:[#allocation2 + $0xa0] sm:$0xff]
    %v3819 = vld [vmem:[#allocation2 + $0xa8] sm:$0xff]
    %v3820 = vld [vmem:[#allocation2 + $0xb0] sm:$0xff]
    %3842 = vrot.lane.b32.xlu0 %v3800, 42
    %v3843 = vpop.permute.xlu0 %3842
    %3844 = vrot.lane.b32.xlu0 %v3801, 42
    %v3845 = vpop.permute.xlu0 %3844
    %3846 = vrot.lane.b32.xlu0 %v3802, 42
    %v3847 = vpop.permute.xlu0 %3846
    %3848 = vrot.lane.b32.xlu0 %v3803, 42
    %v3849 = vpop.permute.xlu0 %3848
    %3850 = vrot.lane.b32.xlu0 %v3804, 42
    %v3851 = vpop.permute.xlu0 %3850
    %3852 = vrot.lane.b32.xlu0 %v3805, 42
    %v3853 = vpop.permute.xlu0 %3852
    %3854 = vrot.lane.b32.xlu0 %v3806, 42
    %v3855 = vpop.permute.xlu0 %3854
    %3856 = vrot.lane.b32.xlu0 %v3807, 42
    %v3857 = vpop.permute.xlu0 %3856
    %3858 = vrot.lane.b32.xlu0 %v3808, 42
    %v3859 = vpop.permute.xlu0 %3858
    %3860 = vrot.lane.b32.xlu0 %v3809, 42
    %v3861 = vpop.permute.xlu0 %3860
    %3862 = vrot.lane.b32.xlu0 %v3810, 42
    %v3863 = vpop.permute.xlu0 %3862
    %3864 = vrot.lane.b32.xlu0 %v3811, 42
    %v3865 = vpop.permute.xlu0 %3864
    %3866 = vrot.lane.b32.xlu0 %v3812, 42
    %v3867 = vpop.permute.xlu0 %3866
    %3868 = vrot.lane.b32.xlu0 %v3813, 42
    %v3869 = vpop.permute.xlu0 %3868
    %3870 = vrot.lane.b32.xlu0 %v3814, 42
    %v3871 = vpop.permute.xlu0 %3870
    %3872 = vrot.lane.b32.xlu0 %v3815, 42
    %v3873 = vpop.permute.xlu0 %3872
    %3874 = vrot.lane.b32.xlu0 %v3816, 42
    %v3875 = vpop.permute.xlu0 %3874
    %3876 = vrot.lane.b32.xlu0 %v3817, 42
    %v3877 = vpop.permute.xlu0 %3876
    %3878 = vrot.lane.b32.xlu0 %v3818, 42
    %v3879 = vpop.permute.xlu0 %3878
    %3880 = vrot.lane.b32.xlu0 %v3819, 42
    %v3881 = vpop.permute.xlu0 %3880
    %3882 = vrot.lane.b32.xlu0 %v3820, 42
    %v3883 = vpop.permute.xlu0 %3882
    %v3884 = vsel %vm383, %v3843, %v3845
    %v3885 = vsel %vm383, %v3845, %v3847
    %v3886 = vsel %vm383, %v3847, %v3849
    %v3887 = vsel %vm383, %v3849, %v3851
    %v3888 = vsel %vm383, %v3851, %v3853
    %v3889 = vsel %vm383, %v3853, %v3855
    %v3890 = vsel %vm383, %v3855, %v3857
    %v3891 = vsel %vm383, %v3857, %v3859
    %v3892 = vsel %vm383, %v3859, %v3861
    %v3893 = vsel %vm383, %v3861, %v3863
    %v3894 = vsel %vm383, %v3863, %v3865
    %v3895 = vsel %vm383, %v3865, %v3867
    %v3896 = vsel %vm383, %v3867, %v3869
    %v3897 = vsel %vm383, %v3869, %v3871
    %v3898 = vsel %vm383, %v3871, %v3873
    %v3899 = vsel %vm383, %v3873, %v3875
    %v3900 = vsel %vm383, %v3875, %v3877
    %v3901 = vsel %vm383, %v3877, %v3879
    %v3902 = vsel %vm383, %v3879, %v3881
    %v3903 = vsel %vm383, %v3881, %v3883
    %3925 = vst [vmem:[#allocation3 + $0x7e0] sm:$0xff] %v3884
    %3926 = vst [vmem:[#allocation3 + $0x7e8] sm:$0xff] %v3885
    %3927 = vst [vmem:[#allocation3 + $0x7f0] sm:$0xff] %v3886
    %3928 = vst [vmem:[#allocation3 + $0x7f8] sm:$0xff] %v3887
    %3929 = vst [vmem:[#allocation3 + $0x800] sm:$0xff] %v3888
    %3930 = vst [vmem:[#allocation3 + $0x808] sm:$0xff] %v3889
    %3931 = vst [vmem:[#allocation3 + $0x810] sm:$0xff] %v3890
    %3932 = vst [vmem:[#allocation3 + $0x818] sm:$0xff] %v3891
    %3933 = vst [vmem:[#allocation3 + $0x820] sm:$0xff] %v3892
    %3934 = vst [vmem:[#allocation3 + $0x828] sm:$0xff] %v3893
    %3935 = vst [vmem:[#allocation3 + $0x830] sm:$0xff] %v3894
    %3936 = vst [vmem:[#allocation3 + $0x838] sm:$0xff] %v3895
    %3937 = vst [vmem:[#allocation3 + $0x840] sm:$0xff] %v3896
    %3938 = vst [vmem:[#allocation3 + $0x848] sm:$0xff] %v3897
    %3939 = vst [vmem:[#allocation3 + $0x850] sm:$0xff] %v3898
    %3940 = vst [vmem:[#allocation3 + $0x858] sm:$0xff] %v3899
    %3941 = vst [vmem:[#allocation3 + $0x860] sm:$0xff] %v3900
    %3942 = vst [vmem:[#allocation3 + $0x868] sm:$0xff] %v3901
    %3943 = vst [vmem:[#allocation3 + $0x870] sm:$0xff] %v3902
    %3944 = vst [vmem:[#allocation3 + $0x878] sm:$0xff] %v3903
    %3945 = vst.msk [vmem:[#allocation3 + $0x880] sm:$0xff] %vm2192, %v3883
    %v3946 = vld [vmem:[#allocation2 + $0x10] sm:$0xff]
    %v3947 = vld [vmem:[#allocation2 + $0x18] sm:$0xff]
    %v3948 = vld [vmem:[#allocation2 + $0x20] sm:$0xff]
    %v3949 = vld [vmem:[#allocation2 + $0x28] sm:$0xff]
    %v3950 = vld [vmem:[#allocation2 + $0x30] sm:$0xff]
    %v3951 = vld [vmem:[#allocation2 + $0x38] sm:$0xff]
    %v3952 = vld [vmem:[#allocation2 + $0x40] sm:$0xff]
    %v3953 = vld [vmem:[#allocation2 + $0x48] sm:$0xff]
    %v3954 = vld [vmem:[#allocation2 + $0x50] sm:$0xff]
    %v3955 = vld [vmem:[#allocation2 + $0x58] sm:$0xff]
    %v3956 = vld [vmem:[#allocation2 + $0x60] sm:$0xff]
    %v3957 = vld [vmem:[#allocation2 + $0x68] sm:$0xff]
    %v3958 = vld [vmem:[#allocation2 + $0x70] sm:$0xff]
    %v3959 = vld [vmem:[#allocation2 + $0x78] sm:$0xff]
    %v3960 = vld [vmem:[#allocation2 + $0x80] sm:$0xff]
    %v3961 = vld [vmem:[#allocation2 + $0x88] sm:$0xff]
    %v3962 = vld [vmem:[#allocation2 + $0x90] sm:$0xff]
    %v3963 = vld [vmem:[#allocation2 + $0x98] sm:$0xff]
    %v3964 = vld [vmem:[#allocation2 + $0xa0] sm:$0xff]
    %v3965 = vld [vmem:[#allocation2 + $0xa8] sm:$0xff]
    %v3966 = vld [vmem:[#allocation2 + $0xb0] sm:$0xff]
    %3988 = vrot.lane.b32.xlu0 %v3946, 41
    %v3989 = vpop.permute.xlu0 %3988
    %3990 = vrot.lane.b32.xlu0 %v3947, 41
    %v3991 = vpop.permute.xlu0 %3990
    %3992 = vrot.lane.b32.xlu0 %v3948, 41
    %v3993 = vpop.permute.xlu0 %3992
    %3994 = vrot.lane.b32.xlu0 %v3949, 41
    %v3995 = vpop.permute.xlu0 %3994
    %3996 = vrot.lane.b32.xlu0 %v3950, 41
    %v3997 = vpop.permute.xlu0 %3996
    %3998 = vrot.lane.b32.xlu0 %v3951, 41
    %v3999 = vpop.permute.xlu0 %3998
    %4000 = vrot.lane.b32.xlu0 %v3952, 41
    %v4001 = vpop.permute.xlu0 %4000
    %4002 = vrot.lane.b32.xlu0 %v3953, 41
    %v4003 = vpop.permute.xlu0 %4002
    %4004 = vrot.lane.b32.xlu0 %v3954, 41
    %v4005 = vpop.permute.xlu0 %4004
    %4006 = vrot.lane.b32.xlu0 %v3955, 41
    %v4007 = vpop.permute.xlu0 %4006
    %4008 = vrot.lane.b32.xlu0 %v3956, 41
    %v4009 = vpop.permute.xlu0 %4008
    %4010 = vrot.lane.b32.xlu0 %v3957, 41
    %v4011 = vpop.permute.xlu0 %4010
    %4012 = vrot.lane.b32.xlu0 %v3958, 41
    %v4013 = vpop.permute.xlu0 %4012
    %4014 = vrot.lane.b32.xlu0 %v3959, 41
    %v4015 = vpop.permute.xlu0 %4014
    %4016 = vrot.lane.b32.xlu0 %v3960, 41
    %v4017 = vpop.permute.xlu0 %4016
    %4018 = vrot.lane.b32.xlu0 %v3961, 41
    %v4019 = vpop.permute.xlu0 %4018
    %4020 = vrot.lane.b32.xlu0 %v3962, 41
    %v4021 = vpop.permute.xlu0 %4020
    %4022 = vrot.lane.b32.xlu0 %v3963, 41
    %v4023 = vpop.permute.xlu0 %4022
    %4024 = vrot.lane.b32.xlu0 %v3964, 41
    %v4025 = vpop.permute.xlu0 %4024
    %4026 = vrot.lane.b32.xlu0 %v3965, 41
    %v4027 = vpop.permute.xlu0 %4026
    %4028 = vrot.lane.b32.xlu0 %v3966, 41
    %v4029 = vpop.permute.xlu0 %4028
    %v4030 = vsel %vm415, %v3989, %v3991
    %v4031 = vsel %vm415, %v3991, %v3993
    %v4032 = vsel %vm415, %v3993, %v3995
    %v4033 = vsel %vm415, %v3995, %v3997
    %v4034 = vsel %vm415, %v3997, %v3999
    %v4035 = vsel %vm415, %v3999, %v4001
    %v4036 = vsel %vm415, %v4001, %v4003
    %v4037 = vsel %vm415, %v4003, %v4005
    %v4038 = vsel %vm415, %v4005, %v4007
    %v4039 = vsel %vm415, %v4007, %v4009
    %v4040 = vsel %vm415, %v4009, %v4011
    %v4041 = vsel %vm415, %v4011, %v4013
    %v4042 = vsel %vm415, %v4013, %v4015
    %v4043 = vsel %vm415, %v4015, %v4017
    %v4044 = vsel %vm415, %v4017, %v4019
    %v4045 = vsel %vm415, %v4019, %v4021
    %v4046 = vsel %vm415, %v4021, %v4023
    %v4047 = vsel %vm415, %v4023, %v4025
    %v4048 = vsel %vm415, %v4025, %v4027
    %v4049 = vsel %vm415, %v4027, %v4029
    %4071 = vst [vmem:[#allocation3 + $0x888] sm:$0xff] %v4030
    %4072 = vst [vmem:[#allocation3 + $0x890] sm:$0xff] %v4031
    %4073 = vst [vmem:[#allocation3 + $0x898] sm:$0xff] %v4032
    %4074 = vst [vmem:[#allocation3 + $0x8a0] sm:$0xff] %v4033
    %4075 = vst [vmem:[#allocation3 + $0x8a8] sm:$0xff] %v4034
    %4076 = vst [vmem:[#allocation3 + $0x8b0] sm:$0xff] %v4035
    %4077 = vst [vmem:[#allocation3 + $0x8b8] sm:$0xff] %v4036
    %4078 = vst [vmem:[#allocation3 + $0x8c0] sm:$0xff] %v4037
    %4079 = vst [vmem:[#allocation3 + $0x8c8] sm:$0xff] %v4038
    %4080 = vst [vmem:[#allocation3 + $0x8d0] sm:$0xff] %v4039
    %4081 = vst [vmem:[#allocation3 + $0x8d8] sm:$0xff] %v4040
    %4082 = vst [vmem:[#allocation3 + $0x8e0] sm:$0xff] %v4041
    %4083 = vst [vmem:[#allocation3 + $0x8e8] sm:$0xff] %v4042
    %4084 = vst [vmem:[#allocation3 + $0x8f0] sm:$0xff] %v4043
    %4085 = vst [vmem:[#allocation3 + $0x8f8] sm:$0xff] %v4044
    %4086 = vst [vmem:[#allocation3 + $0x900] sm:$0xff] %v4045
    %4087 = vst [vmem:[#allocation3 + $0x908] sm:$0xff] %v4046
    %4088 = vst [vmem:[#allocation3 + $0x910] sm:$0xff] %v4047
    %4089 = vst [vmem:[#allocation3 + $0x918] sm:$0xff] %v4048
    %4090 = vst [vmem:[#allocation3 + $0x920] sm:$0xff] %v4049
    %4091 = vst.msk [vmem:[#allocation3 + $0x928] sm:$0xff] %vm2192, %v4029
    %v4092 = vld [vmem:[#allocation2 + $0x10] sm:$0xff]
    %v4093 = vld [vmem:[#allocation2 + $0x18] sm:$0xff]
    %v4094 = vld [vmem:[#allocation2 + $0x20] sm:$0xff]
    %v4095 = vld [vmem:[#allocation2 + $0x28] sm:$0xff]
    %v4096 = vld [vmem:[#allocation2 + $0x30] sm:$0xff]
    %v4097 = vld [vmem:[#allocation2 + $0x38] sm:$0xff]
    %v4098 = vld [vmem:[#allocation2 + $0x40] sm:$0xff]
    %v4099 = vld [vmem:[#allocation2 + $0x48] sm:$0xff]
    %v4100 = vld [vmem:[#allocation2 + $0x50] sm:$0xff]
    %v4101 = vld [vmem:[#allocation2 + $0x58] sm:$0xff]
    %v4102 = vld [vmem:[#allocation2 + $0x60] sm:$0xff]
    %v4103 = vld [vmem:[#allocation2 + $0x68] sm:$0xff]
    %v4104 = vld [vmem:[#allocation2 + $0x70] sm:$0xff]
    %v4105 = vld [vmem:[#allocation2 + $0x78] sm:$0xff]
    %v4106 = vld [vmem:[#allocation2 + $0x80] sm:$0xff]
    %v4107 = vld [vmem:[#allocation2 + $0x88] sm:$0xff]
    %v4108 = vld [vmem:[#allocation2 + $0x90] sm:$0xff]
    %v4109 = vld [vmem:[#allocation2 + $0x98] sm:$0xff]
    %v4110 = vld [vmem:[#allocation2 + $0xa0] sm:$0xff]
    %v4111 = vld [vmem:[#allocation2 + $0xa8] sm:$0xff]
    %v4112 = vld [vmem:[#allocation2 + $0xb0] sm:$0xff]
    %4134 = vrot.lane.b32.xlu0 %v4092, 40
    %v4135 = vpop.permute.xlu0 %4134
    %4136 = vrot.lane.b32.xlu0 %v4093, 40
    %v4137 = vpop.permute.xlu0 %4136
    %4138 = vrot.lane.b32.xlu0 %v4094, 40
    %v4139 = vpop.permute.xlu0 %4138
    %4140 = vrot.lane.b32.xlu0 %v4095, 40
    %v4141 = vpop.permute.xlu0 %4140
    %4142 = vrot.lane.b32.xlu0 %v4096, 40
    %v4143 = vpop.permute.xlu0 %4142
    %4144 = vrot.lane.b32.xlu0 %v4097, 40
    %v4145 = vpop.permute.xlu0 %4144
    %4146 = vrot.lane.b32.xlu0 %v4098, 40
    %v4147 = vpop.permute.xlu0 %4146
    %4148 = vrot.lane.b32.xlu0 %v4099, 40
    %v4149 = vpop.permute.xlu0 %4148
    %4150 = vrot.lane.b32.xlu0 %v4100, 40
    %v4151 = vpop.permute.xlu0 %4150
    %4152 = vrot.lane.b32.xlu0 %v4101, 40
    %v4153 = vpop.permute.xlu0 %4152
    %4154 = vrot.lane.b32.xlu0 %v4102, 40
    %v4155 = vpop.permute.xlu0 %4154
    %4156 = vrot.lane.b32.xlu0 %v4103, 40
    %v4157 = vpop.permute.xlu0 %4156
    %4158 = vrot.lane.b32.xlu0 %v4104, 40
    %v4159 = vpop.permute.xlu0 %4158
    %4160 = vrot.lane.b32.xlu0 %v4105, 40
    %v4161 = vpop.permute.xlu0 %4160
    %4162 = vrot.lane.b32.xlu0 %v4106, 40
    %v4163 = vpop.permute.xlu0 %4162
    %4164 = vrot.lane.b32.xlu0 %v4107, 40
    %v4165 = vpop.permute.xlu0 %4164
    %4166 = vrot.lane.b32.xlu0 %v4108, 40
    %v4167 = vpop.permute.xlu0 %4166
    %4168 = vrot.lane.b32.xlu0 %v4109, 40
    %v4169 = vpop.permute.xlu0 %4168
    %4170 = vrot.lane.b32.xlu0 %v4110, 40
    %v4171 = vpop.permute.xlu0 %4170
    %4172 = vrot.lane.b32.xlu0 %v4111, 40
    %v4173 = vpop.permute.xlu0 %4172
    %4174 = vrot.lane.b32.xlu0 %v4112, 40
    %v4175 = vpop.permute.xlu0 %4174
    %v4176 = vsel %vm447, %v4135, %v4137
    %v4177 = vsel %vm447, %v4137, %v4139
    %v4178 = vsel %vm447, %v4139, %v4141
    %v4179 = vsel %vm447, %v4141, %v4143
    %v4180 = vsel %vm447, %v4143, %v4145
    %v4181 = vsel %vm447, %v4145, %v4147
    %v4182 = vsel %vm447, %v4147, %v4149
    %v4183 = vsel %vm447, %v4149, %v4151
    %v4184 = vsel %vm447, %v4151, %v4153
    %v4185 = vsel %vm447, %v4153, %v4155
    %v4186 = vsel %vm447, %v4155, %v4157
    %v4187 = vsel %vm447, %v4157, %v4159
    %v4188 = vsel %vm447, %v4159, %v4161
    %v4189 = vsel %vm447, %v4161, %v4163
    %v4190 = vsel %vm447, %v4163, %v4165
    %v4191 = vsel %vm447, %v4165, %v4167
    %v4192 = vsel %vm447, %v4167, %v4169
    %v4193 = vsel %vm447, %v4169, %v4171
    %v4194 = vsel %vm447, %v4171, %v4173
    %v4195 = vsel %vm447, %v4173, %v4175
    %4217 = vst [vmem:[#allocation3 + $0x930] sm:$0xff] %v4176
    %4218 = vst [vmem:[#allocation3 + $0x938] sm:$0xff] %v4177
    %4219 = vst [vmem:[#allocation3 + $0x940] sm:$0xff] %v4178
    %4220 = vst [vmem:[#allocation3 + $0x948] sm:$0xff] %v4179
    %4221 = vst [vmem:[#allocation3 + $0x950] sm:$0xff] %v4180
    %4222 = vst [vmem:[#allocation3 + $0x958] sm:$0xff] %v4181
    %4223 = vst [vmem:[#allocation3 + $0x960] sm:$0xff] %v4182
    %4224 = vst [vmem:[#allocation3 + $0x968] sm:$0xff] %v4183
    %4225 = vst [vmem:[#allocation3 + $0x970] sm:$0xff] %v4184
    %4226 = vst [vmem:[#allocation3 + $0x978] sm:$0xff] %v4185
    %4227 = vst [vmem:[#allocation3 + $0x980] sm:$0xff] %v4186
    %4228 = vst [vmem:[#allocation3 + $0x988] sm:$0xff] %v4187
    %4229 = vst [vmem:[#allocation3 + $0x990] sm:$0xff] %v4188
    %4230 = vst [vmem:[#allocation3 + $0x998] sm:$0xff] %v4189
    %4231 = vst [vmem:[#allocation3 + $0x9a0] sm:$0xff] %v4190
    %4232 = vst [vmem:[#allocation3 + $0x9a8] sm:$0xff] %v4191
    %4233 = vst [vmem:[#allocation3 + $0x9b0] sm:$0xff] %v4192
    %4234 = vst [vmem:[#allocation3 + $0x9b8] sm:$0xff] %v4193
    %4235 = vst [vmem:[#allocation3 + $0x9c0] sm:$0xff] %v4194
    %4236 = vst [vmem:[#allocation3 + $0x9c8] sm:$0xff] %v4195
    %4237 = vst.msk [vmem:[#allocation3 + $0x9d0] sm:$0xff] %vm2192, %v4175
    %v4238 = vld [vmem:[#allocation2 + $0x10] sm:$0xff]
    %v4239 = vld [vmem:[#allocation2 + $0x18] sm:$0xff]
    %v4240 = vld [vmem:[#allocation2 + $0x20] sm:$0xff]
    %v4241 = vld [vmem:[#allocation2 + $0x28] sm:$0xff]
    %v4242 = vld [vmem:[#allocation2 + $0x30] sm:$0xff]
    %v4243 = vld [vmem:[#allocation2 + $0x38] sm:$0xff]
    %v4244 = vld [vmem:[#allocation2 + $0x40] sm:$0xff]
    %v4245 = vld [vmem:[#allocation2 + $0x48] sm:$0xff]
    %v4246 = vld [vmem:[#allocation2 + $0x50] sm:$0xff]
    %v4247 = vld [vmem:[#allocation2 + $0x58] sm:$0xff]
    %v4248 = vld [vmem:[#allocation2 + $0x60] sm:$0xff]
    %v4249 = vld [vmem:[#allocation2 + $0x68] sm:$0xff]
    %v4250 = vld [vmem:[#allocation2 + $0x70] sm:$0xff]
    %v4251 = vld [vmem:[#allocation2 + $0x78] sm:$0xff]
    %v4252 = vld [vmem:[#allocation2 + $0x80] sm:$0xff]
    %v4253 = vld [vmem:[#allocation2 + $0x88] sm:$0xff]
    %v4254 = vld [vmem:[#allocation2 + $0x90] sm:$0xff]
    %v4255 = vld [vmem:[#allocation2 + $0x98] sm:$0xff]
    %v4256 = vld [vmem:[#allocation2 + $0xa0] sm:$0xff]
    %v4257 = vld [vmem:[#allocation2 + $0xa8] sm:$0xff]
    %v4258 = vld [vmem:[#allocation2 + $0xb0] sm:$0xff]
    %v4259 = vld [vmem:[#allocation2 + $0xb8] sm:$0xff]
    %4282 = vrot.lane.b32.xlu0 %v4238, 24
    %v4283 = vpop.permute.xlu0 %4282
    %4284 = vrot.lane.b32.xlu0 %v4239, 24
    %v4285 = vpop.permute.xlu0 %4284
    %4286 = vrot.lane.b32.xlu0 %v4240, 24
    %v4287 = vpop.permute.xlu0 %4286
    %4288 = vrot.lane.b32.xlu0 %v4241, 24
    %v4289 = vpop.permute.xlu0 %4288
    %4290 = vrot.lane.b32.xlu0 %v4242, 24
    %v4291 = vpop.permute.xlu0 %4290
    %4292 = vrot.lane.b32.xlu0 %v4243, 24
    %v4293 = vpop.permute.xlu0 %4292
    %4294 = vrot.lane.b32.xlu0 %v4244, 24
    %v4295 = vpop.permute.xlu0 %4294
    %4296 = vrot.lane.b32.xlu0 %v4245, 24
    %v4297 = vpop.permute.xlu0 %4296
    %4298 = vrot.lane.b32.xlu0 %v4246, 24
    %v4299 = vpop.permute.xlu0 %4298
    %4300 = vrot.lane.b32.xlu0 %v4247, 24
    %v4301 = vpop.permute.xlu0 %4300
    %4302 = vrot.lane.b32.xlu0 %v4248, 24
    %v4303 = vpop.permute.xlu0 %4302
    %4304 = vrot.lane.b32.xlu0 %v4249, 24
    %v4305 = vpop.permute.xlu0 %4304
    %4306 = vrot.lane.b32.xlu0 %v4250, 24
    %v4307 = vpop.permute.xlu0 %4306
    %4308 = vrot.lane.b32.xlu0 %v4251, 24
    %v4309 = vpop.permute.xlu0 %4308
    %4310 = vrot.lane.b32.xlu0 %v4252, 24
    %v4311 = vpop.permute.xlu0 %4310
    %4312 = vrot.lane.b32.xlu0 %v4253, 24
    %v4313 = vpop.permute.xlu0 %4312
    %4314 = vrot.lane.b32.xlu0 %v4254, 24
    %v4315 = vpop.permute.xlu0 %4314
    %4316 = vrot.lane.b32.xlu0 %v4255, 24
    %v4317 = vpop.permute.xlu0 %4316
    %4318 = vrot.lane.b32.xlu0 %v4256, 24
    %v4319 = vpop.permute.xlu0 %4318
    %4320 = vrot.lane.b32.xlu0 %v4257, 24
    %v4321 = vpop.permute.xlu0 %4320
    %4322 = vrot.lane.b32.xlu0 %v4258, 24
    %v4323 = vpop.permute.xlu0 %4322
    %4324 = vrot.lane.b32.xlu0 %v4259, 24
    %v4325 = vpop.permute.xlu0 %4324
    %v4326 = vsel %vm479, %v4283, %v4285
    %v4327 = vsel %vm479, %v4285, %v4287
    %v4328 = vsel %vm479, %v4287, %v4289
    %v4329 = vsel %vm479, %v4289, %v4291
    %v4330 = vsel %vm479, %v4291, %v4293
    %v4331 = vsel %vm479, %v4293, %v4295
    %v4332 = vsel %vm479, %v4295, %v4297
    %v4333 = vsel %vm479, %v4297, %v4299
    %v4334 = vsel %vm479, %v4299, %v4301
    %v4335 = vsel %vm479, %v4301, %v4303
    %v4336 = vsel %vm479, %v4303, %v4305
    %v4337 = vsel %vm479, %v4305, %v4307
    %v4338 = vsel %vm479, %v4307, %v4309
    %v4339 = vsel %vm479, %v4309, %v4311
    %v4340 = vsel %vm479, %v4311, %v4313
    %v4341 = vsel %vm479, %v4313, %v4315
    %v4342 = vsel %vm479, %v4315, %v4317
    %v4343 = vsel %vm479, %v4317, %v4319
    %v4344 = vsel %vm479, %v4319, %v4321
    %v4345 = vsel %vm479, %v4321, %v4323
    %v4346 = vsel %vm479, %v4323, %v4325
    %4368 = vst [vmem:[#allocation3 + $0x9d8] sm:$0xff] %v4326
    %4369 = vst [vmem:[#allocation3 + $0x9e0] sm:$0xff] %v4327
    %4370 = vst [vmem:[#allocation3 + $0x9e8] sm:$0xff] %v4328
    %4371 = vst [vmem:[#allocation3 + $0x9f0] sm:$0xff] %v4329
    %4372 = vst [vmem:[#allocation3 + $0x9f8] sm:$0xff] %v4330
    %4373 = vst [vmem:[#allocation3 + $0xa00] sm:$0xff] %v4331
    %4374 = vst [vmem:[#allocation3 + $0xa08] sm:$0xff] %v4332
    %4375 = vst [vmem:[#allocation3 + $0xa10] sm:$0xff] %v4333
    %4376 = vst [vmem:[#allocation3 + $0xa18] sm:$0xff] %v4334
    %4377 = vst [vmem:[#allocation3 + $0xa20] sm:$0xff] %v4335
    %4378 = vst [vmem:[#allocation3 + $0xa28] sm:$0xff] %v4336
    %4379 = vst [vmem:[#allocation3 + $0xa30] sm:$0xff] %v4337
    %4380 = vst [vmem:[#allocation3 + $0xa38] sm:$0xff] %v4338
    %4381 = vst [vmem:[#allocation3 + $0xa40] sm:$0xff] %v4339
    %4382 = vst [vmem:[#allocation3 + $0xa48] sm:$0xff] %v4340
    %4383 = vst [vmem:[#allocation3 + $0xa50] sm:$0xff] %v4341
    %4384 = vst [vmem:[#allocation3 + $0xa58] sm:$0xff] %v4342
    %4385 = vst [vmem:[#allocation3 + $0xa60] sm:$0xff] %v4343
    %4386 = vst [vmem:[#allocation3 + $0xa68] sm:$0xff] %v4344
    %4387 = vst [vmem:[#allocation3 + $0xa70] sm:$0xff] %v4345
    %4388 = vst.msk [vmem:[#allocation3 + $0xa78] sm:$0xff] %vm2192, %v4346
    %v4389 = vld [vmem:[#allocation2 + $0x10] sm:$0xff]
    %v4390 = vld [vmem:[#allocation2 + $0x18] sm:$0xff]
    %v4391 = vld [vmem:[#allocation2 + $0x20] sm:$0xff]
    %v4392 = vld [vmem:[#allocation2 + $0x28] sm:$0xff]
    %v4393 = vld [vmem:[#allocation2 + $0x30] sm:$0xff]
    %v4394 = vld [vmem:[#allocation2 + $0x38] sm:$0xff]
    %v4395 = vld [vmem:[#allocation2 + $0x40] sm:$0xff]
    %v4396 = vld [vmem:[#allocation2 + $0x48] sm:$0xff]
    %v4397 = vld [vmem:[#allocation2 + $0x50] sm:$0xff]
    %v4398 = vld [vmem:[#allocation2 + $0x58] sm:$0xff]
    %v4399 = vld [vmem:[#allocation2 + $0x60] sm:$0xff]
    %v4400 = vld [vmem:[#allocation2 + $0x68] sm:$0xff]
    %v4401 = vld [vmem:[#allocation2 + $0x70] sm:$0xff]
    %v4402 = vld [vmem:[#allocation2 + $0x78] sm:$0xff]
    %v4403 = vld [vmem:[#allocation2 + $0x80] sm:$0xff]
    %v4404 = vld [vmem:[#allocation2 + $0x88] sm:$0xff]
    %v4405 = vld [vmem:[#allocation2 + $0x90] sm:$0xff]
    %v4406 = vld [vmem:[#allocation2 + $0x98] sm:$0xff]
    %v4407 = vld [vmem:[#allocation2 + $0xa0] sm:$0xff]
    %v4408 = vld [vmem:[#allocation2 + $0xa8] sm:$0xff]
    %v4409 = vld [vmem:[#allocation2 + $0xb0] sm:$0xff]
    %v4410 = vld [vmem:[#allocation2 + $0xb8] sm:$0xff]
    %4433 = vrot.lane.b32.xlu0 %v4389, 23
    %v4434 = vpop.permute.xlu0 %4433
    %4435 = vrot.lane.b32.xlu0 %v4390, 23
    %v4436 = vpop.permute.xlu0 %4435
    %4437 = vrot.lane.b32.xlu0 %v4391, 23
    %v4438 = vpop.permute.xlu0 %4437
    %4439 = vrot.lane.b32.xlu0 %v4392, 23
    %v4440 = vpop.permute.xlu0 %4439
    %4441 = vrot.lane.b32.xlu0 %v4393, 23
    %v4442 = vpop.permute.xlu0 %4441
    %4443 = vrot.lane.b32.xlu0 %v4394, 23
    %v4444 = vpop.permute.xlu0 %4443
    %4445 = vrot.lane.b32.xlu0 %v4395, 23
    %v4446 = vpop.permute.xlu0 %4445
    %4447 = vrot.lane.b32.xlu0 %v4396, 23
    %v4448 = vpop.permute.xlu0 %4447
    %4449 = vrot.lane.b32.xlu0 %v4397, 23
    %v4450 = vpop.permute.xlu0 %4449
    %4451 = vrot.lane.b32.xlu0 %v4398, 23
    %v4452 = vpop.permute.xlu0 %4451
    %4453 = vrot.lane.b32.xlu0 %v4399, 23
    %v4454 = vpop.permute.xlu0 %4453
    %4455 = vrot.lane.b32.xlu0 %v4400, 23
    %v4456 = vpop.permute.xlu0 %4455
    %4457 = vrot.lane.b32.xlu0 %v4401, 23
    %v4458 = vpop.permute.xlu0 %4457
    %4459 = vrot.lane.b32.xlu0 %v4402, 23
    %v4460 = vpop.permute.xlu0 %4459
    %4461 = vrot.lane.b32.xlu0 %v4403, 23
    %v4462 = vpop.permute.xlu0 %4461
    %4463 = vrot.lane.b32.xlu0 %v4404, 23
    %v4464 = vpop.permute.xlu0 %4463
    %4465 = vrot.lane.b32.xlu0 %v4405, 23
    %v4466 = vpop.permute.xlu0 %4465
    %4467 = vrot.lane.b32.xlu0 %v4406, 23
    %v4468 = vpop.permute.xlu0 %4467
    %4469 = vrot.lane.b32.xlu0 %v4407, 23
    %v4470 = vpop.permute.xlu0 %4469
    %4471 = vrot.lane.b32.xlu0 %v4408, 23
    %v4472 = vpop.permute.xlu0 %4471
    %4473 = vrot.lane.b32.xlu0 %v4409, 23
    %v4474 = vpop.permute.xlu0 %4473
    %4475 = vrot.lane.b32.xlu0 %v4410, 23
    %v4476 = vpop.permute.xlu0 %4475
    %v4477 = vsel %vm511, %v4434, %v4436
    %v4478 = vsel %vm511, %v4436, %v4438
    %v4479 = vsel %vm511, %v4438, %v4440
    %v4480 = vsel %vm511, %v4440, %v4442
    %v4481 = vsel %vm511, %v4442, %v4444
    %v4482 = vsel %vm511, %v4444, %v4446
    %v4483 = vsel %vm511, %v4446, %v4448
    %v4484 = vsel %vm511, %v4448, %v4450
    %v4485 = vsel %vm511, %v4450, %v4452
    %v4486 = vsel %vm511, %v4452, %v4454
    %v4487 = vsel %vm511, %v4454, %v4456
    %v4488 = vsel %vm511, %v4456, %v4458
    %v4489 = vsel %vm511, %v4458, %v4460
    %v4490 = vsel %vm511, %v4460, %v4462
    %v4491 = vsel %vm511, %v4462, %v4464
    %v4492 = vsel %vm511, %v4464, %v4466
    %v4493 = vsel %vm511, %v4466, %v4468
    %v4494 = vsel %vm511, %v4468, %v4470
    %v4495 = vsel %vm511, %v4470, %v4472
    %v4496 = vsel %vm511, %v4472, %v4474
    %v4497 = vsel %vm511, %v4474, %v4476
    %4519 = vst [vmem:[#allocation3 + $0xa80] sm:$0xff] %v4477
    %4520 = vst [vmem:[#allocation3 + $0xa88] sm:$0xff] %v4478
    %4521 = vst [vmem:[#allocation3 + $0xa90] sm:$0xff] %v4479
    %4522 = vst [vmem:[#allocation3 + $0xa98] sm:$0xff] %v4480
    %4523 = vst [vmem:[#allocation3 + $0xaa0] sm:$0xff] %v4481
    %4524 = vst [vmem:[#allocation3 + $0xaa8] sm:$0xff] %v4482
    %4525 = vst [vmem:[#allocation3 + $0xab0] sm:$0xff] %v4483
    %4526 = vst [vmem:[#allocation3 + $0xab8] sm:$0xff] %v4484
    %4527 = vst [vmem:[#allocation3 + $0xac0] sm:$0xff] %v4485
    %4528 = vst [vmem:[#allocation3 + $0xac8] sm:$0xff] %v4486
    %4529 = vst [vmem:[#allocation3 + $0xad0] sm:$0xff] %v4487
    %4530 = vst [vmem:[#allocation3 + $0xad8] sm:$0xff] %v4488
    %4531 = vst [vmem:[#allocation3 + $0xae0] sm:$0xff] %v4489
    %4532 = vst [vmem:[#allocation3 + $0xae8] sm:$0xff] %v4490
    %4533 = vst [vmem:[#allocation3 + $0xaf0] sm:$0xff] %v4491
    %4534 = vst [vmem:[#allocation3 + $0xaf8] sm:$0xff] %v4492
    %4535 = vst [vmem:[#allocation3 + $0xb00] sm:$0xff] %v4493
    %4536 = vst [vmem:[#allocation3 + $0xb08] sm:$0xff] %v4494
    %4537 = vst [vmem:[#allocation3 + $0xb10] sm:$0xff] %v4495
    %4538 = vst [vmem:[#allocation3 + $0xb18] sm:$0xff] %v4496
    %4539 = vst.msk [vmem:[#allocation3 + $0xb20] sm:$0xff] %vm2192, %v4497
    %v4540 = vld [vmem:[#allocation2 + $0x10] sm:$0xff]
    %v4541 = vld [vmem:[#allocation2 + $0x18] sm:$0xff]
    %v4542 = vld [vmem:[#allocation2 + $0x20] sm:$0xff]
    %v4543 = vld [vmem:[#allocation2 + $0x28] sm:$0xff]
    %v4544 = vld [vmem:[#allocation2 + $0x30] sm:$0xff]
    %v4545 = vld [vmem:[#allocation2 + $0x38] sm:$0xff]
    %v4546 = vld [vmem:[#allocation2 + $0x40] sm:$0xff]
    %v4547 = vld [vmem:[#allocation2 + $0x48] sm:$0xff]
    %v4548 = vld [vmem:[#allocation2 + $0x50] sm:$0xff]
    %v4549 = vld [vmem:[#allocation2 + $0x58] sm:$0xff]
    %v4550 = vld [vmem:[#allocation2 + $0x60] sm:$0xff]
    %v4551 = vld [vmem:[#allocation2 + $0x68] sm:$0xff]
    %v4552 = vld [vmem:[#allocation2 + $0x70] sm:$0xff]
    %v4553 = vld [vmem:[#allocation2 + $0x78] sm:$0xff]
    %v4554 = vld [vmem:[#allocation2 + $0x80] sm:$0xff]
    %v4555 = vld [vmem:[#allocation2 + $0x88] sm:$0xff]
    %v4556 = vld [vmem:[#allocation2 + $0x90] sm:$0xff]
    %v4557 = vld [vmem:[#allocation2 + $0x98] sm:$0xff]
    %v4558 = vld [vmem:[#allocation2 + $0xa0] sm:$0xff]
    %v4559 = vld [vmem:[#allocation2 + $0xa8] sm:$0xff]
    %v4560 = vld [vmem:[#allocation2 + $0xb0] sm:$0xff]
    %v4561 = vld [vmem:[#allocation2 + $0xb8] sm:$0xff]
    %4584 = vrot.lane.b32.xlu0 %v4540, 22
    %v4585 = vpop.permute.xlu0 %4584
    %4586 = vrot.lane.b32.xlu0 %v4541, 22
    %v4587 = vpop.permute.xlu0 %4586
    %4588 = vrot.lane.b32.xlu0 %v4542, 22
    %v4589 = vpop.permute.xlu0 %4588
    %4590 = vrot.lane.b32.xlu0 %v4543, 22
    %v4591 = vpop.permute.xlu0 %4590
    %4592 = vrot.lane.b32.xlu0 %v4544, 22
    %v4593 = vpop.permute.xlu0 %4592
    %4594 = vrot.lane.b32.xlu0 %v4545, 22
    %v4595 = vpop.permute.xlu0 %4594
    %4596 = vrot.lane.b32.xlu0 %v4546, 22
    %v4597 = vpop.permute.xlu0 %4596
    %4598 = vrot.lane.b32.xlu0 %v4547, 22
    %v4599 = vpop.permute.xlu0 %4598
    %4600 = vrot.lane.b32.xlu0 %v4548, 22
    %v4601 = vpop.permute.xlu0 %4600
    %4602 = vrot.lane.b32.xlu0 %v4549, 22
    %v4603 = vpop.permute.xlu0 %4602
    %4604 = vrot.lane.b32.xlu0 %v4550, 22
    %v4605 = vpop.permute.xlu0 %4604
    %4606 = vrot.lane.b32.xlu0 %v4551, 22
    %v4607 = vpop.permute.xlu0 %4606
    %4608 = vrot.lane.b32.xlu0 %v4552, 22
    %v4609 = vpop.permute.xlu0 %4608
    %4610 = vrot.lane.b32.xlu0 %v4553, 22
    %v4611 = vpop.permute.xlu0 %4610
    %4612 = vrot.lane.b32.xlu0 %v4554, 22
    %v4613 = vpop.permute.xlu0 %4612
    %4614 = vrot.lane.b32.xlu0 %v4555, 22
    %v4615 = vpop.permute.xlu0 %4614
    %4616 = vrot.lane.b32.xlu0 %v4556, 22
    %v4617 = vpop.permute.xlu0 %4616
    %4618 = vrot.lane.b32.xlu0 %v4557, 22
    %v4619 = vpop.permute.xlu0 %4618
    %4620 = vrot.lane.b32.xlu0 %v4558, 22
    %v4621 = vpop.permute.xlu0 %4620
    %4622 = vrot.lane.b32.xlu0 %v4559, 22
    %v4623 = vpop.permute.xlu0 %4622
    %4624 = vrot.lane.b32.xlu0 %v4560, 22
    %v4625 = vpop.permute.xlu0 %4624
    %4626 = vrot.lane.b32.xlu0 %v4561, 22
    %v4627 = vpop.permute.xlu0 %4626
    %v4628 = vsel %vm543, %v4585, %v4587
    %v4629 = vsel %vm543, %v4587, %v4589
    %v4630 = vsel %vm543, %v4589, %v4591
    %v4631 = vsel %vm543, %v4591, %v4593
    %v4632 = vsel %vm543, %v4593, %v4595
    %v4633 = vsel %vm543, %v4595, %v4597
    %v4634 = vsel %vm543, %v4597, %v4599
    %v4635 = vsel %vm543, %v4599, %v4601
    %v4636 = vsel %vm543, %v4601, %v4603
    %v4637 = vsel %vm543, %v4603, %v4605
    %v4638 = vsel %vm543, %v4605, %v4607
    %v4639 = vsel %vm543, %v4607, %v4609
    %v4640 = vsel %vm543, %v4609, %v4611
    %v4641 = vsel %vm543, %v4611, %v4613
    %v4642 = vsel %vm543, %v4613, %v4615
    %v4643 = vsel %vm543, %v4615, %v4617
    %v4644 = vsel %vm543, %v4617, %v4619
    %v4645 = vsel %vm543, %v4619, %v4621
    %v4646 = vsel %vm543, %v4621, %v4623
    %v4647 = vsel %vm543, %v4623, %v4625
    %v4648 = vsel %vm543, %v4625, %v4627
    %4670 = vst [vmem:[#allocation3 + $0xb28] sm:$0xff] %v4628
    %4671 = vst [vmem:[#allocation3 + $0xb30] sm:$0xff] %v4629
    %4672 = vst [vmem:[#allocation3 + $0xb38] sm:$0xff] %v4630
    %4673 = vst [vmem:[#allocation3 + $0xb40] sm:$0xff] %v4631
    %4674 = vst [vmem:[#allocation3 + $0xb48] sm:$0xff] %v4632
    %4675 = vst [vmem:[#allocation3 + $0xb50] sm:$0xff] %v4633
    %4676 = vst [vmem:[#allocation3 + $0xb58] sm:$0xff] %v4634
    %4677 = vst [vmem:[#allocation3 + $0xb60] sm:$0xff] %v4635
    %4678 = vst [vmem:[#allocation3 + $0xb68] sm:$0xff] %v4636
    %4679 = vst [vmem:[#allocation3 + $0xb70] sm:$0xff] %v4637
    %4680 = vst [vmem:[#allocation3 + $0xb78] sm:$0xff] %v4638
    %4681 = vst [vmem:[#allocation3 + $0xb80] sm:$0xff] %v4639
    %4682 = vst [vmem:[#allocation3 + $0xb88] sm:$0xff] %v4640
    %4683 = vst [vmem:[#allocation3 + $0xb90] sm:$0xff] %v4641
    %4684 = vst [vmem:[#allocation3 + $0xb98] sm:$0xff] %v4642
    %4685 = vst [vmem:[#allocation3 + $0xba0] sm:$0xff] %v4643
    %4686 = vst [vmem:[#allocation3 + $0xba8] sm:$0xff] %v4644
    %4687 = vst [vmem:[#allocation3 + $0xbb0] sm:$0xff] %v4645
    %4688 = vst [vmem:[#allocation3 + $0xbb8] sm:$0xff] %v4646
    %4689 = vst [vmem:[#allocation3 + $0xbc0] sm:$0xff] %v4647
    %4690 = vst.msk [vmem:[#allocation3 + $0xbc8] sm:$0xff] %vm2192, %v4648
    %v4691 = vld [vmem:[#allocation2 + $0x28] sm:$0xff]
    %v4692 = vld [vmem:[#allocation2 + $0x30] sm:$0xff]
    %v4693 = vld [vmem:[#allocation2 + $0x38] sm:$0xff]
    %v4694 = vld [vmem:[#allocation2 + $0x40] sm:$0xff]
    %v4695 = vld [vmem:[#allocation2 + $0x48] sm:$0xff]
    %v4696 = vld [vmem:[#allocation2 + $0x50] sm:$0xff]
    %v4697 = vld [vmem:[#allocation2 + $0x58] sm:$0xff]
    %v4698 = vld [vmem:[#allocation2 + $0x60] sm:$0xff]
    %v4699 = vld [vmem:[#allocation2 + $0x68] sm:$0xff]
    %v4700 = vld [vmem:[#allocation2 + $0x70] sm:$0xff]
    %v4701 = vld [vmem:[#allocation2 + $0x78] sm:$0xff]
    %v4702 = vld [vmem:[#allocation2 + $0x80] sm:$0xff]
    %v4703 = vld [vmem:[#allocation2 + $0x88] sm:$0xff]
    %v4704 = vld [vmem:[#allocation2 + $0x90] sm:$0xff]
    %v4705 = vld [vmem:[#allocation2 + $0x98] sm:$0xff]
    %v4706 = vld [vmem:[#allocation2 + $0xa0] sm:$0xff]
    %v4707 = vld [vmem:[#allocation2 + $0xa8] sm:$0xff]
    %v4708 = vld [vmem:[#allocation2 + $0xb0] sm:$0xff]
    %v4709 = vld [vmem:[#allocation2 + $0xb8] sm:$0xff]
    %v4710 = vld [vmem:[#allocation2 + $0xc0] sm:$0xff]
    %v4711 = vld [vmem:[#allocation2 + $0xc8] sm:$0xff]
    %4733 = vrot.lane.b32.xlu0 %v4691, 120
    %v4734 = vpop.permute.xlu0 %4733
    %4735 = vrot.lane.b32.xlu0 %v4692, 120
    %v4736 = vpop.permute.xlu0 %4735
    %4737 = vrot.lane.b32.xlu0 %v4693, 120
    %v4738 = vpop.permute.xlu0 %4737
    %4739 = vrot.lane.b32.xlu0 %v4694, 120
    %v4740 = vpop.permute.xlu0 %4739
    %4741 = vrot.lane.b32.xlu0 %v4695, 120
    %v4742 = vpop.permute.xlu0 %4741
    %4743 = vrot.lane.b32.xlu0 %v4696, 120
    %v4744 = vpop.permute.xlu0 %4743
    %4745 = vrot.lane.b32.xlu0 %v4697, 120
    %v4746 = vpop.permute.xlu0 %4745
    %4747 = vrot.lane.b32.xlu0 %v4698, 120
    %v4748 = vpop.permute.xlu0 %4747
    %4749 = vrot.lane.b32.xlu0 %v4699, 120
    %v4750 = vpop.permute.xlu0 %4749
    %4751 = vrot.lane.b32.xlu0 %v4700, 120
    %v4752 = vpop.permute.xlu0 %4751
    %4753 = vrot.lane.b32.xlu0 %v4701, 120
    %v4754 = vpop.permute.xlu0 %4753
    %4755 = vrot.lane.b32.xlu0 %v4702, 120
    %v4756 = vpop.permute.xlu0 %4755
    %4757 = vrot.lane.b32.xlu0 %v4703, 120
    %v4758 = vpop.permute.xlu0 %4757
    %4759 = vrot.lane.b32.xlu0 %v4704, 120
    %v4760 = vpop.permute.xlu0 %4759
    %4761 = vrot.lane.b32.xlu0 %v4705, 120
    %v4762 = vpop.permute.xlu0 %4761
    %4763 = vrot.lane.b32.xlu0 %v4706, 120
    %v4764 = vpop.permute.xlu0 %4763
    %4765 = vrot.lane.b32.xlu0 %v4707, 120
    %v4766 = vpop.permute.xlu0 %4765
    %4767 = vrot.lane.b32.xlu0 %v4708, 120
    %v4768 = vpop.permute.xlu0 %4767
    %4769 = vrot.lane.b32.xlu0 %v4709, 120
    %v4770 = vpop.permute.xlu0 %4769
    %4771 = vrot.lane.b32.xlu0 %v4710, 120
    %v4772 = vpop.permute.xlu0 %4771
    %4773 = vrot.lane.b32.xlu0 %v4711, 120
    %v4774 = vpop.permute.xlu0 %4773
    %v4775 = vsel %vm582, %v4734, %v4736
    %v4776 = vsel %vm582, %v4736, %v4738
    %v4777 = vsel %vm582, %v4738, %v4740
    %v4778 = vsel %vm582, %v4740, %v4742
    %v4779 = vsel %vm582, %v4742, %v4744
    %v4780 = vsel %vm582, %v4744, %v4746
    %v4781 = vsel %vm582, %v4746, %v4748
    %v4782 = vsel %vm582, %v4748, %v4750
    %v4783 = vsel %vm582, %v4750, %v4752
    %v4784 = vsel %vm582, %v4752, %v4754
    %v4785 = vsel %vm582, %v4754, %v4756
    %v4786 = vsel %vm582, %v4756, %v4758
    %v4787 = vsel %vm582, %v4758, %v4760
    %v4788 = vsel %vm582, %v4760, %v4762
    %v4789 = vsel %vm582, %v4762, %v4764
    %v4790 = vsel %vm582, %v4764, %v4766
    %v4791 = vsel %vm582, %v4766, %v4768
    %v4792 = vsel %vm582, %v4768, %v4770
    %v4793 = vsel %vm582, %v4770, %v4772
    %v4794 = vsel %vm582, %v4772, %v4774
    %4816 = vst [vmem:[#allocation3 + $0xbd0] sm:$0xff] %v4775
    %4817 = vst [vmem:[#allocation3 + $0xbd8] sm:$0xff] %v4776
    %4818 = vst [vmem:[#allocation3 + $0xbe0] sm:$0xff] %v4777
    %4819 = vst [vmem:[#allocation3 + $0xbe8] sm:$0xff] %v4778
    %4820 = vst [vmem:[#allocation3 + $0xbf0] sm:$0xff] %v4779
    %4821 = vst [vmem:[#allocation3 + $0xbf8] sm:$0xff] %v4780
    %4822 = vst [vmem:[#allocation3 + $0xc00] sm:$0xff] %v4781
    %4823 = vst [vmem:[#allocation3 + $0xc08] sm:$0xff] %v4782
    %4824 = vst [vmem:[#allocation3 + $0xc10] sm:$0xff] %v4783
    %4825 = vst [vmem:[#allocation3 + $0xc18] sm:$0xff] %v4784
    %4826 = vst [vmem:[#allocation3 + $0xc20] sm:$0xff] %v4785
    %4827 = vst [vmem:[#allocation3 + $0xc28] sm:$0xff] %v4786
    %4828 = vst [vmem:[#allocation3 + $0xc30] sm:$0xff] %v4787
    %4829 = vst [vmem:[#allocation3 + $0xc38] sm:$0xff] %v4788
    %4830 = vst [vmem:[#allocation3 + $0xc40] sm:$0xff] %v4789
    %4831 = vst [vmem:[#allocation3 + $0xc48] sm:$0xff] %v4790
    %4832 = vst [vmem:[#allocation3 + $0xc50] sm:$0xff] %v4791
    %4833 = vst [vmem:[#allocation3 + $0xc58] sm:$0xff] %v4792
    %4834 = vst [vmem:[#allocation3 + $0xc60] sm:$0xff] %v4793
    %4835 = vst [vmem:[#allocation3 + $0xc68] sm:$0xff] %v4794
    %4836 = vst.msk [vmem:[#allocation3 + $0xc70] sm:$0xff] %vm2192, %v4774
    %v4837 = vld [vmem:[#allocation2 + $0x28] sm:$0xff]
    %v4838 = vld [vmem:[#allocation2 + $0x30] sm:$0xff]
    %v4839 = vld [vmem:[#allocation2 + $0x38] sm:$0xff]
    %v4840 = vld [vmem:[#allocation2 + $0x40] sm:$0xff]
    %v4841 = vld [vmem:[#allocation2 + $0x48] sm:$0xff]
    %v4842 = vld [vmem:[#allocation2 + $0x50] sm:$0xff]
    %v4843 = vld [vmem:[#allocation2 + $0x58] sm:$0xff]
    %v4844 = vld [vmem:[#allocation2 + $0x60] sm:$0xff]
    %v4845 = vld [vmem:[#allocation2 + $0x68] sm:$0xff]
    %v4846 = vld [vmem:[#allocation2 + $0x70] sm:$0xff]
    %v4847 = vld [vmem:[#allocation2 + $0x78] sm:$0xff]
    %v4848 = vld [vmem:[#allocation2 + $0x80] sm:$0xff]
    %v4849 = vld [vmem:[#allocation2 + $0x88] sm:$0xff]
    %v4850 = vld [vmem:[#allocation2 + $0x90] sm:$0xff]
    %v4851 = vld [vmem:[#allocation2 + $0x98] sm:$0xff]
    %v4852 = vld [vmem:[#allocation2 + $0xa0] sm:$0xff]
    %v4853 = vld [vmem:[#allocation2 + $0xa8] sm:$0xff]
    %v4854 = vld [vmem:[#allocation2 + $0xb0] sm:$0xff]
    %v4855 = vld [vmem:[#allocation2 + $0xb8] sm:$0xff]
    %v4856 = vld [vmem:[#allocation2 + $0xc0] sm:$0xff]
    %v4857 = vld [vmem:[#allocation2 + $0xc8] sm:$0xff]
    %4879 = vrot.lane.b32.xlu0 %v4837, 119
    %v4880 = vpop.permute.xlu0 %4879
    %4881 = vrot.lane.b32.xlu0 %v4838, 119
    %v4882 = vpop.permute.xlu0 %4881
    %4883 = vrot.lane.b32.xlu0 %v4839, 119
    %v4884 = vpop.permute.xlu0 %4883
    %4885 = vrot.lane.b32.xlu0 %v4840, 119
    %v4886 = vpop.permute.xlu0 %4885
    %4887 = vrot.lane.b32.xlu0 %v4841, 119
    %v4888 = vpop.permute.xlu0 %4887
    %4889 = vrot.lane.b32.xlu0 %v4842, 119
    %v4890 = vpop.permute.xlu0 %4889
    %4891 = vrot.lane.b32.xlu0 %v4843, 119
    %v4892 = vpop.permute.xlu0 %4891
    %4893 = vrot.lane.b32.xlu0 %v4844, 119
    %v4894 = vpop.permute.xlu0 %4893
    %4895 = vrot.lane.b32.xlu0 %v4845, 119
    %v4896 = vpop.permute.xlu0 %4895
    %4897 = vrot.lane.b32.xlu0 %v4846, 119
    %v4898 = vpop.permute.xlu0 %4897
    %4899 = vrot.lane.b32.xlu0 %v4847, 119
    %v4900 = vpop.permute.xlu0 %4899
    %4901 = vrot.lane.b32.xlu0 %v4848, 119
    %v4902 = vpop.permute.xlu0 %4901
    %4903 = vrot.lane.b32.xlu0 %v4849, 119
    %v4904 = vpop.permute.xlu0 %4903
    %4905 = vrot.lane.b32.xlu0 %v4850, 119
    %v4906 = vpop.permute.xlu0 %4905
    %4907 = vrot.lane.b32.xlu0 %v4851, 119
    %v4908 = vpop.permute.xlu0 %4907
    %4909 = vrot.lane.b32.xlu0 %v4852, 119
    %v4910 = vpop.permute.xlu0 %4909
    %4911 = vrot.lane.b32.xlu0 %v4853, 119
    %v4912 = vpop.permute.xlu0 %4911
    %4913 = vrot.lane.b32.xlu0 %v4854, 119
    %v4914 = vpop.permute.xlu0 %4913
    %4915 = vrot.lane.b32.xlu0 %v4855, 119
    %v4916 = vpop.permute.xlu0 %4915
    %4917 = vrot.lane.b32.xlu0 %v4856, 119
    %v4918 = vpop.permute.xlu0 %4917
    %4919 = vrot.lane.b32.xlu0 %v4857, 119
    %v4920 = vpop.permute.xlu0 %4919
    %v4921 = vsel %vm620, %v4880, %v4882
    %v4922 = vsel %vm620, %v4882, %v4884
    %v4923 = vsel %vm620, %v4884, %v4886
    %v4924 = vsel %vm620, %v4886, %v4888
    %v4925 = vsel %vm620, %v4888, %v4890
    %v4926 = vsel %vm620, %v4890, %v4892
    %v4927 = vsel %vm620, %v4892, %v4894
    %v4928 = vsel %vm620, %v4894, %v4896
    %v4929 = vsel %vm620, %v4896, %v4898
    %v4930 = vsel %vm620, %v4898, %v4900
    %v4931 = vsel %vm620, %v4900, %v4902
    %v4932 = vsel %vm620, %v4902, %v4904
    %v4933 = vsel %vm620, %v4904, %v4906
    %v4934 = vsel %vm620, %v4906, %v4908
    %v4935 = vsel %vm620, %v4908, %v4910
    %v4936 = vsel %vm620, %v4910, %v4912
    %v4937 = vsel %vm620, %v4912, %v4914
    %v4938 = vsel %vm620, %v4914, %v4916
    %v4939 = vsel %vm620, %v4916, %v4918
    %v4940 = vsel %vm620, %v4918, %v4920
    %4962 = vst [vmem:[#allocation3 + $0xc78] sm:$0xff] %v4921
    %4963 = vst [vmem:[#allocation3 + $0xc80] sm:$0xff] %v4922
    %4964 = vst [vmem:[#allocation3 + $0xc88] sm:$0xff] %v4923
    %4965 = vst [vmem:[#allocation3 + $0xc90] sm:$0xff] %v4924
    %4966 = vst [vmem:[#allocation3 + $0xc98] sm:$0xff] %v4925
    %4967 = vst [vmem:[#allocation3 + $0xca0] sm:$0xff] %v4926
    %4968 = vst [vmem:[#allocation3 + $0xca8] sm:$0xff] %v4927
    %4969 = vst [vmem:[#allocation3 + $0xcb0] sm:$0xff] %v4928
    %4970 = vst [vmem:[#allocation3 + $0xcb8] sm:$0xff] %v4929
    %4971 = vst [vmem:[#allocation3 + $0xcc0] sm:$0xff] %v4930
    %4972 = vst [vmem:[#allocation3 + $0xcc8] sm:$0xff] %v4931
    %4973 = vst [vmem:[#allocation3 + $0xcd0] sm:$0xff] %v4932
    %4974 = vst [vmem:[#allocation3 + $0xcd8] sm:$0xff] %v4933
    %4975 = vst [vmem:[#allocation3 + $0xce0] sm:$0xff] %v4934
    %4976 = vst [vmem:[#allocation3 + $0xce8] sm:$0xff] %v4935
    %4977 = vst [vmem:[#allocation3 + $0xcf0] sm:$0xff] %v4936
    %4978 = vst [vmem:[#allocation3 + $0xcf8] sm:$0xff] %v4937
    %4979 = vst [vmem:[#allocation3 + $0xd00] sm:$0xff] %v4938
    %4980 = vst [vmem:[#allocation3 + $0xd08] sm:$0xff] %v4939
    %4981 = vst [vmem:[#allocation3 + $0xd10] sm:$0xff] %v4940
    %4982 = vst.msk [vmem:[#allocation3 + $0xd18] sm:$0xff] %vm2192, %v4920
    %v4983 = vld [vmem:[#allocation2 + $0x28] sm:$0xff]
    %v4984 = vld [vmem:[#allocation2 + $0x30] sm:$0xff]
    %v4985 = vld [vmem:[#allocation2 + $0x38] sm:$0xff]
    %v4986 = vld [vmem:[#allocation2 + $0x40] sm:$0xff]
    %v4987 = vld [vmem:[#allocation2 + $0x48] sm:$0xff]
    %v4988 = vld [vmem:[#allocation2 + $0x50] sm:$0xff]
    %v4989 = vld [vmem:[#allocation2 + $0x58] sm:$0xff]
    %v4990 = vld [vmem:[#allocation2 + $0x60] sm:$0xff]
    %v4991 = vld [vmem:[#allocation2 + $0x68] sm:$0xff]
    %v4992 = vld [vmem:[#allocation2 + $0x70] sm:$0xff]
    %v4993 = vld [vmem:[#allocation2 + $0x78] sm:$0xff]
    %v4994 = vld [vmem:[#allocation2 + $0x80] sm:$0xff]
    %v4995 = vld [vmem:[#allocation2 + $0x88] sm:$0xff]
    %v4996 = vld [vmem:[#allocation2 + $0x90] sm:$0xff]
    %v4997 = vld [vmem:[#allocation2 + $0x98] sm:$0xff]
    %v4998 = vld [vmem:[#allocation2 + $0xa0] sm:$0xff]
    %v4999 = vld [vmem:[#allocation2 + $0xa8] sm:$0xff]
    %v5000 = vld [vmem:[#allocation2 + $0xb0] sm:$0xff]
    %v5001 = vld [vmem:[#allocation2 + $0xb8] sm:$0xff]
    %v5002 = vld [vmem:[#allocation2 + $0xc0] sm:$0xff]
    %v5003 = vld [vmem:[#allocation2 + $0xc8] sm:$0xff]
    %5025 = vrot.lane.b32.xlu0 %v4983, 118
    %v5026 = vpop.permute.xlu0 %5025
    %5027 = vrot.lane.b32.xlu0 %v4984, 118
    %v5028 = vpop.permute.xlu0 %5027
    %5029 = vrot.lane.b32.xlu0 %v4985, 118
    %v5030 = vpop.permute.xlu0 %5029
    %5031 = vrot.lane.b32.xlu0 %v4986, 118
    %v5032 = vpop.permute.xlu0 %5031
    %5033 = vrot.lane.b32.xlu0 %v4987, 118
    %v5034 = vpop.permute.xlu0 %5033
    %5035 = vrot.lane.b32.xlu0 %v4988, 118
    %v5036 = vpop.permute.xlu0 %5035
    %5037 = vrot.lane.b32.xlu0 %v4989, 118
    %v5038 = vpop.permute.xlu0 %5037
    %5039 = vrot.lane.b32.xlu0 %v4990, 118
    %v5040 = vpop.permute.xlu0 %5039
    %5041 = vrot.lane.b32.xlu0 %v4991, 118
    %v5042 = vpop.permute.xlu0 %5041
    %5043 = vrot.lane.b32.xlu0 %v4992, 118
    %v5044 = vpop.permute.xlu0 %5043
    %5045 = vrot.lane.b32.xlu0 %v4993, 118
    %v5046 = vpop.permute.xlu0 %5045
    %5047 = vrot.lane.b32.xlu0 %v4994, 118
    %v5048 = vpop.permute.xlu0 %5047
    %5049 = vrot.lane.b32.xlu0 %v4995, 118
    %v5050 = vpop.permute.xlu0 %5049
    %5051 = vrot.lane.b32.xlu0 %v4996, 118
    %v5052 = vpop.permute.xlu0 %5051
    %5053 = vrot.lane.b32.xlu0 %v4997, 118
    %v5054 = vpop.permute.xlu0 %5053
    %5055 = vrot.lane.b32.xlu0 %v4998, 118
    %v5056 = vpop.permute.xlu0 %5055
    %5057 = vrot.lane.b32.xlu0 %v4999, 118
    %v5058 = vpop.permute.xlu0 %5057
    %5059 = vrot.lane.b32.xlu0 %v5000, 118
    %v5060 = vpop.permute.xlu0 %5059
    %5061 = vrot.lane.b32.xlu0 %v5001, 118
    %v5062 = vpop.permute.xlu0 %5061
    %5063 = vrot.lane.b32.xlu0 %v5002, 118
    %v5064 = vpop.permute.xlu0 %5063
    %5065 = vrot.lane.b32.xlu0 %v5003, 118
    %v5066 = vpop.permute.xlu0 %5065
    %v5067 = vsel %vm658, %v5026, %v5028
    %v5068 = vsel %vm658, %v5028, %v5030
    %v5069 = vsel %vm658, %v5030, %v5032
    %v5070 = vsel %vm658, %v5032, %v5034
    %v5071 = vsel %vm658, %v5034, %v5036
    %v5072 = vsel %vm658, %v5036, %v5038
    %v5073 = vsel %vm658, %v5038, %v5040
    %v5074 = vsel %vm658, %v5040, %v5042
    %v5075 = vsel %vm658, %v5042, %v5044
    %v5076 = vsel %vm658, %v5044, %v5046
    %v5077 = vsel %vm658, %v5046, %v5048
    %v5078 = vsel %vm658, %v5048, %v5050
    %v5079 = vsel %vm658, %v5050, %v5052
    %v5080 = vsel %vm658, %v5052, %v5054
    %v5081 = vsel %vm658, %v5054, %v5056
    %v5082 = vsel %vm658, %v5056, %v5058
    %v5083 = vsel %vm658, %v5058, %v5060
    %v5084 = vsel %vm658, %v5060, %v5062
    %v5085 = vsel %vm658, %v5062, %v5064
    %v5086 = vsel %vm658, %v5064, %v5066
    %5108 = vst [vmem:[#allocation3 + $0xd20] sm:$0xff] %v5067
    %5109 = vst [vmem:[#allocation3 + $0xd28] sm:$0xff] %v5068
    %5110 = vst [vmem:[#allocation3 + $0xd30] sm:$0xff] %v5069
    %5111 = vst [vmem:[#allocation3 + $0xd38] sm:$0xff] %v5070
    %5112 = vst [vmem:[#allocation3 + $0xd40] sm:$0xff] %v5071
    %5113 = vst [vmem:[#allocation3 + $0xd48] sm:$0xff] %v5072
    %5114 = vst [vmem:[#allocation3 + $0xd50] sm:$0xff] %v5073
    %5115 = vst [vmem:[#allocation3 + $0xd58] sm:$0xff] %v5074
    %5116 = vst [vmem:[#allocation3 + $0xd60] sm:$0xff] %v5075
    %5117 = vst [vmem:[#allocation3 + $0xd68] sm:$0xff] %v5076
    %5118 = vst [vmem:[#allocation3 + $0xd70] sm:$0xff] %v5077
    %5119 = vst [vmem:[#allocation3 + $0xd78] sm:$0xff] %v5078
    %5120 = vst [vmem:[#allocation3 + $0xd80] sm:$0xff] %v5079
    %5121 = vst [vmem:[#allocation3 + $0xd88] sm:$0xff] %v5080
    %5122 = vst [vmem:[#allocation3 + $0xd90] sm:$0xff] %v5081
    %5123 = vst [vmem:[#allocation3 + $0xd98] sm:$0xff] %v5082
    %5124 = vst [vmem:[#allocation3 + $0xda0] sm:$0xff] %v5083
    %5125 = vst [vmem:[#allocation3 + $0xda8] sm:$0xff] %v5084
    %5126 = vst [vmem:[#allocation3 + $0xdb0] sm:$0xff] %v5085
    %5127 = vst [vmem:[#allocation3 + $0xdb8] sm:$0xff] %v5086
    %5128 = vst.msk [vmem:[#allocation3 + $0xdc0] sm:$0xff] %vm2192, %v5066
    %v5129 = vld [vmem:[#allocation2 + $0x28] sm:$0xff]
    %v5130 = vld [vmem:[#allocation2 + $0x30] sm:$0xff]
    %v5131 = vld [vmem:[#allocation2 + $0x38] sm:$0xff]
    %v5132 = vld [vmem:[#allocation2 + $0x40] sm:$0xff]
    %v5133 = vld [vmem:[#allocation2 + $0x48] sm:$0xff]
    %v5134 = vld [vmem:[#allocation2 + $0x50] sm:$0xff]
    %v5135 = vld [vmem:[#allocation2 + $0x58] sm:$0xff]
    %v5136 = vld [vmem:[#allocation2 + $0x60] sm:$0xff]
    %v5137 = vld [vmem:[#allocation2 + $0x68] sm:$0xff]
    %v5138 = vld [vmem:[#allocation2 + $0x70] sm:$0xff]
    %v5139 = vld [vmem:[#allocation2 + $0x78] sm:$0xff]
    %v5140 = vld [vmem:[#allocation2 + $0x80] sm:$0xff]
    %v5141 = vld [vmem:[#allocation2 + $0x88] sm:$0xff]
    %v5142 = vld [vmem:[#allocation2 + $0x90] sm:$0xff]
    %v5143 = vld [vmem:[#allocation2 + $0x98] sm:$0xff]
    %v5144 = vld [vmem:[#allocation2 + $0xa0] sm:$0xff]
    %v5145 = vld [vmem:[#allocation2 + $0xa8] sm:$0xff]
    %v5146 = vld [vmem:[#allocation2 + $0xb0] sm:$0xff]
    %v5147 = vld [vmem:[#allocation2 + $0xb8] sm:$0xff]
    %v5148 = vld [vmem:[#allocation2 + $0xc0] sm:$0xff]
    %v5149 = vld [vmem:[#allocation2 + $0xc8] sm:$0xff]
    %5171 = vrot.lane.b32.xlu0 %v5129, 102
    %v5172 = vpop.permute.xlu0 %5171
    %5173 = vrot.lane.b32.xlu0 %v5130, 102
    %v5174 = vpop.permute.xlu0 %5173
    %5175 = vrot.lane.b32.xlu0 %v5131, 102
    %v5176 = vpop.permute.xlu0 %5175
    %5177 = vrot.lane.b32.xlu0 %v5132, 102
    %v5178 = vpop.permute.xlu0 %5177
    %5179 = vrot.lane.b32.xlu0 %v5133, 102
    %v5180 = vpop.permute.xlu0 %5179
    %5181 = vrot.lane.b32.xlu0 %v5134, 102
    %v5182 = vpop.permute.xlu0 %5181
    %5183 = vrot.lane.b32.xlu0 %v5135, 102
    %v5184 = vpop.permute.xlu0 %5183
    %5185 = vrot.lane.b32.xlu0 %v5136, 102
    %v5186 = vpop.permute.xlu0 %5185
    %5187 = vrot.lane.b32.xlu0 %v5137, 102
    %v5188 = vpop.permute.xlu0 %5187
    %5189 = vrot.lane.b32.xlu0 %v5138, 102
    %v5190 = vpop.permute.xlu0 %5189
    %5191 = vrot.lane.b32.xlu0 %v5139, 102
    %v5192 = vpop.permute.xlu0 %5191
    %5193 = vrot.lane.b32.xlu0 %v5140, 102
    %v5194 = vpop.permute.xlu0 %5193
    %5195 = vrot.lane.b32.xlu0 %v5141, 102
    %v5196 = vpop.permute.xlu0 %5195
    %5197 = vrot.lane.b32.xlu0 %v5142, 102
    %v5198 = vpop.permute.xlu0 %5197
    %5199 = vrot.lane.b32.xlu0 %v5143, 102
    %v5200 = vpop.permute.xlu0 %5199
    %5201 = vrot.lane.b32.xlu0 %v5144, 102
    %v5202 = vpop.permute.xlu0 %5201
    %5203 = vrot.lane.b32.xlu0 %v5145, 102
    %v5204 = vpop.permute.xlu0 %5203
    %5205 = vrot.lane.b32.xlu0 %v5146, 102
    %v5206 = vpop.permute.xlu0 %5205
    %5207 = vrot.lane.b32.xlu0 %v5147, 102
    %v5208 = vpop.permute.xlu0 %5207
    %5209 = vrot.lane.b32.xlu0 %v5148, 102
    %v5210 = vpop.permute.xlu0 %5209
    %5211 = vrot.lane.b32.xlu0 %v5149, 102
    %v5212 = vpop.permute.xlu0 %5211
    %v5213 = vsel %vm696, %v5172, %v5174
    %v5214 = vsel %vm696, %v5174, %v5176
    %v5215 = vsel %vm696, %v5176, %v5178
    %v5216 = vsel %vm696, %v5178, %v5180
    %v5217 = vsel %vm696, %v5180, %v5182
    %v5218 = vsel %vm696, %v5182, %v5184
    %v5219 = vsel %vm696, %v5184, %v5186
    %v5220 = vsel %vm696, %v5186, %v5188
    %v5221 = vsel %vm696, %v5188, %v5190
    %v5222 = vsel %vm696, %v5190, %v5192
    %v5223 = vsel %vm696, %v5192, %v5194
    %v5224 = vsel %vm696, %v5194, %v5196
    %v5225 = vsel %vm696, %v5196, %v5198
    %v5226 = vsel %vm696, %v5198, %v5200
    %v5227 = vsel %vm696, %v5200, %v5202
    %v5228 = vsel %vm696, %v5202, %v5204
    %v5229 = vsel %vm696, %v5204, %v5206
    %v5230 = vsel %vm696, %v5206, %v5208
    %v5231 = vsel %vm696, %v5208, %v5210
    %v5232 = vsel %vm696, %v5210, %v5212
    %5254 = vst [vmem:[#allocation3 + $0xdc8] sm:$0xff] %v5213
    %5255 = vst [vmem:[#allocation3 + $0xdd0] sm:$0xff] %v5214
    %5256 = vst [vmem:[#allocation3 + $0xdd8] sm:$0xff] %v5215
    %5257 = vst [vmem:[#allocation3 + $0xde0] sm:$0xff] %v5216
    %5258 = vst [vmem:[#allocation3 + $0xde8] sm:$0xff] %v5217
    %5259 = vst [vmem:[#allocation3 + $0xdf0] sm:$0xff] %v5218
    %5260 = vst [vmem:[#allocation3 + $0xdf8] sm:$0xff] %v5219
    %5261 = vst [vmem:[#allocation3 + $0xe00] sm:$0xff] %v5220
    %5262 = vst [vmem:[#allocation3 + $0xe08] sm:$0xff] %v5221
    %5263 = vst [vmem:[#allocation3 + $0xe10] sm:$0xff] %v5222
    %5264 = vst [vmem:[#allocation3 + $0xe18] sm:$0xff] %v5223
    %5265 = vst [vmem:[#allocation3 + $0xe20] sm:$0xff] %v5224
    %5266 = vst [vmem:[#allocation3 + $0xe28] sm:$0xff] %v5225
    %5267 = vst [vmem:[#allocation3 + $0xe30] sm:$0xff] %v5226
    %5268 = vst [vmem:[#allocation3 + $0xe38] sm:$0xff] %v5227
    %5269 = vst [vmem:[#allocation3 + $0xe40] sm:$0xff] %v5228
    %5270 = vst [vmem:[#allocation3 + $0xe48] sm:$0xff] %v5229
    %5271 = vst [vmem:[#allocation3 + $0xe50] sm:$0xff] %v5230
    %5272 = vst [vmem:[#allocation3 + $0xe58] sm:$0xff] %v5231
    %5273 = vst [vmem:[#allocation3 + $0xe60] sm:$0xff] %v5232
    %5274 = vst.msk [vmem:[#allocation3 + $0xe68] sm:$0xff] %vm2192, %v5212
    %v5275 = vld [vmem:[#allocation2 + $0x28] sm:$0xff]
    %v5276 = vld [vmem:[#allocation2 + $0x30] sm:$0xff]
    %v5277 = vld [vmem:[#allocation2 + $0x38] sm:$0xff]
    %v5278 = vld [vmem:[#allocation2 + $0x40] sm:$0xff]
    %v5279 = vld [vmem:[#allocation2 + $0x48] sm:$0xff]
    %v5280 = vld [vmem:[#allocation2 + $0x50] sm:$0xff]
    %v5281 = vld [vmem:[#allocation2 + $0x58] sm:$0xff]
    %v5282 = vld [vmem:[#allocation2 + $0x60] sm:$0xff]
    %v5283 = vld [vmem:[#allocation2 + $0x68] sm:$0xff]
    %v5284 = vld [vmem:[#allocation2 + $0x70] sm:$0xff]
    %v5285 = vld [vmem:[#allocation2 + $0x78] sm:$0xff]
    %v5286 = vld [vmem:[#allocation2 + $0x80] sm:$0xff]
    %v5287 = vld [vmem:[#allocation2 + $0x88] sm:$0xff]
    %v5288 = vld [vmem:[#allocation2 + $0x90] sm:$0xff]
    %v5289 = vld [vmem:[#allocation2 + $0x98] sm:$0xff]
    %v5290 = vld [vmem:[#allocation2 + $0xa0] sm:$0xff]
    %v5291 = vld [vmem:[#allocation2 + $0xa8] sm:$0xff]
    %v5292 = vld [vmem:[#allocation2 + $0xb0] sm:$0xff]
    %v5293 = vld [vmem:[#allocation2 + $0xb8] sm:$0xff]
    %v5294 = vld [vmem:[#allocation2 + $0xc0] sm:$0xff]
    %v5295 = vld [vmem:[#allocation2 + $0xc8] sm:$0xff]
    %5317 = vrot.lane.b32.xlu0 %v5275, 101
    %v5318 = vpop.permute.xlu0 %5317
    %5319 = vrot.lane.b32.xlu0 %v5276, 101
    %v5320 = vpop.permute.xlu0 %5319
    %5321 = vrot.lane.b32.xlu0 %v5277, 101
    %v5322 = vpop.permute.xlu0 %5321
    %5323 = vrot.lane.b32.xlu0 %v5278, 101
    %v5324 = vpop.permute.xlu0 %5323
    %5325 = vrot.lane.b32.xlu0 %v5279, 101
    %v5326 = vpop.permute.xlu0 %5325
    %5327 = vrot.lane.b32.xlu0 %v5280, 101
    %v5328 = vpop.permute.xlu0 %5327
    %5329 = vrot.lane.b32.xlu0 %v5281, 101
    %v5330 = vpop.permute.xlu0 %5329
    %5331 = vrot.lane.b32.xlu0 %v5282, 101
    %v5332 = vpop.permute.xlu0 %5331
    %5333 = vrot.lane.b32.xlu0 %v5283, 101
    %v5334 = vpop.permute.xlu0 %5333
    %5335 = vrot.lane.b32.xlu0 %v5284, 101
    %v5336 = vpop.permute.xlu0 %5335
    %5337 = vrot.lane.b32.xlu0 %v5285, 101
    %v5338 = vpop.permute.xlu0 %5337
    %5339 = vrot.lane.b32.xlu0 %v5286, 101
    %v5340 = vpop.permute.xlu0 %5339
    %5341 = vrot.lane.b32.xlu0 %v5287, 101
    %v5342 = vpop.permute.xlu0 %5341
    %5343 = vrot.lane.b32.xlu0 %v5288, 101
    %v5344 = vpop.permute.xlu0 %5343
    %5345 = vrot.lane.b32.xlu0 %v5289, 101
    %v5346 = vpop.permute.xlu0 %5345
    %5347 = vrot.lane.b32.xlu0 %v5290, 101
    %v5348 = vpop.permute.xlu0 %5347
    %5349 = vrot.lane.b32.xlu0 %v5291, 101
    %v5350 = vpop.permute.xlu0 %5349
    %5351 = vrot.lane.b32.xlu0 %v5292, 101
    %v5352 = vpop.permute.xlu0 %5351
    %5353 = vrot.lane.b32.xlu0 %v5293, 101
    %v5354 = vpop.permute.xlu0 %5353
    %5355 = vrot.lane.b32.xlu0 %v5294, 101
    %v5356 = vpop.permute.xlu0 %5355
    %5357 = vrot.lane.b32.xlu0 %v5295, 101
    %v5358 = vpop.permute.xlu0 %5357
    %v5359 = vsel %vm734, %v5318, %v5320
    %v5360 = vsel %vm734, %v5320, %v5322
    %v5361 = vsel %vm734, %v5322, %v5324
    %v5362 = vsel %vm734, %v5324, %v5326
    %v5363 = vsel %vm734, %v5326, %v5328
    %v5364 = vsel %vm734, %v5328, %v5330
    %v5365 = vsel %vm734, %v5330, %v5332
    %v5366 = vsel %vm734, %v5332, %v5334
    %v5367 = vsel %vm734, %v5334, %v5336
    %v5368 = vsel %vm734, %v5336, %v5338
    %v5369 = vsel %vm734, %v5338, %v5340
    %v5370 = vsel %vm734, %v5340, %v5342
    %v5371 = vsel %vm734, %v5342, %v5344
    %v5372 = vsel %vm734, %v5344, %v5346
    %v5373 = vsel %vm734, %v5346, %v5348
    %v5374 = vsel %vm734, %v5348, %v5350
    %v5375 = vsel %vm734, %v5350, %v5352
    %v5376 = vsel %vm734, %v5352, %v5354
    %v5377 = vsel %vm734, %v5354, %v5356
    %v5378 = vsel %vm734, %v5356, %v5358
    %5400 = vst [vmem:[#allocation3 + $0xe70] sm:$0xff] %v5359
    %5401 = vst [vmem:[#allocation3 + $0xe78] sm:$0xff] %v5360
    %5402 = vst [vmem:[#allocation3 + $0xe80] sm:$0xff] %v5361
    %5403 = vst [vmem:[#allocation3 + $0xe88] sm:$0xff] %v5362
    %5404 = vst [vmem:[#allocation3 + $0xe90] sm:$0xff] %v5363
    %5405 = vst [vmem:[#allocation3 + $0xe98] sm:$0xff] %v5364
    %5406 = vst [vmem:[#allocation3 + $0xea0] sm:$0xff] %v5365
    %5407 = vst [vmem:[#allocation3 + $0xea8] sm:$0xff] %v5366
    %5408 = vst [vmem:[#allocation3 + $0xeb0] sm:$0xff] %v5367
    %5409 = vst [vmem:[#allocation3 + $0xeb8] sm:$0xff] %v5368
    %5410 = vst [vmem:[#allocation3 + $0xec0] sm:$0xff] %v5369
    %5411 = vst [vmem:[#allocation3 + $0xec8] sm:$0xff] %v5370
    %5412 = vst [vmem:[#allocation3 + $0xed0] sm:$0xff] %v5371
    %5413 = vst [vmem:[#allocation3 + $0xed8] sm:$0xff] %v5372
    %5414 = vst [vmem:[#allocation3 + $0xee0] sm:$0xff] %v5373
    %5415 = vst [vmem:[#allocation3 + $0xee8] sm:$0xff] %v5374
    %5416 = vst [vmem:[#allocation3 + $0xef0] sm:$0xff] %v5375
    %5417 = vst [vmem:[#allocation3 + $0xef8] sm:$0xff] %v5376
    %5418 = vst [vmem:[#allocation3 + $0xf00] sm:$0xff] %v5377
    %5419 = vst [vmem:[#allocation3 + $0xf08] sm:$0xff] %v5378
    %5420 = vst.msk [vmem:[#allocation3 + $0xf10] sm:$0xff] %vm2192, %v5358
    %v5421 = vld [vmem:[#allocation2 + $0x28] sm:$0xff]
    %v5422 = vld [vmem:[#allocation2 + $0x30] sm:$0xff]
    %v5423 = vld [vmem:[#allocation2 + $0x38] sm:$0xff]
    %v5424 = vld [vmem:[#allocation2 + $0x40] sm:$0xff]
    %v5425 = vld [vmem:[#allocation2 + $0x48] sm:$0xff]
    %v5426 = vld [vmem:[#allocation2 + $0x50] sm:$0xff]
    %v5427 = vld [vmem:[#allocation2 + $0x58] sm:$0xff]
    %v5428 = vld [vmem:[#allocation2 + $0x60] sm:$0xff]
    %v5429 = vld [vmem:[#allocation2 + $0x68] sm:$0xff]
    %v5430 = vld [vmem:[#allocation2 + $0x70] sm:$0xff]
    %v5431 = vld [vmem:[#allocation2 + $0x78] sm:$0xff]
    %v5432 = vld [vmem:[#allocation2 + $0x80] sm:$0xff]
    %v5433 = vld [vmem:[#allocation2 + $0x88] sm:$0xff]
    %v5434 = vld [vmem:[#allocation2 + $0x90] sm:$0xff]
    %v5435 = vld [vmem:[#allocation2 + $0x98] sm:$0xff]
    %v5436 = vld [vmem:[#allocation2 + $0xa0] sm:$0xff]
    %v5437 = vld [vmem:[#allocation2 + $0xa8] sm:$0xff]
    %v5438 = vld [vmem:[#allocation2 + $0xb0] sm:$0xff]
    %v5439 = vld [vmem:[#allocation2 + $0xb8] sm:$0xff]
    %v5440 = vld [vmem:[#allocation2 + $0xc0] sm:$0xff]
    %v5441 = vld [vmem:[#allocation2 + $0xc8] sm:$0xff]
    %5463 = vrot.lane.b32.xlu0 %v5421, 100
    %v5464 = vpop.permute.xlu0 %5463
    %5465 = vrot.lane.b32.xlu0 %v5422, 100
    %v5466 = vpop.permute.xlu0 %5465
    %5467 = vrot.lane.b32.xlu0 %v5423, 100
    %v5468 = vpop.permute.xlu0 %5467
    %5469 = vrot.lane.b32.xlu0 %v5424, 100
    %v5470 = vpop.permute.xlu0 %5469
    %5471 = vrot.lane.b32.xlu0 %v5425, 100
    %v5472 = vpop.permute.xlu0 %5471
    %5473 = vrot.lane.b32.xlu0 %v5426, 100
    %v5474 = vpop.permute.xlu0 %5473
    %5475 = vrot.lane.b32.xlu0 %v5427, 100
    %v5476 = vpop.permute.xlu0 %5475
    %5477 = vrot.lane.b32.xlu0 %v5428, 100
    %v5478 = vpop.permute.xlu0 %5477
    %5479 = vrot.lane.b32.xlu0 %v5429, 100
    %v5480 = vpop.permute.xlu0 %5479
    %5481 = vrot.lane.b32.xlu0 %v5430, 100
    %v5482 = vpop.permute.xlu0 %5481
    %5483 = vrot.lane.b32.xlu0 %v5431, 100
    %v5484 = vpop.permute.xlu0 %5483
    %5485 = vrot.lane.b32.xlu0 %v5432, 100
    %v5486 = vpop.permute.xlu0 %5485
    %5487 = vrot.lane.b32.xlu0 %v5433, 100
    %v5488 = vpop.permute.xlu0 %5487
    %5489 = vrot.lane.b32.xlu0 %v5434, 100
    %v5490 = vpop.permute.xlu0 %5489
    %5491 = vrot.lane.b32.xlu0 %v5435, 100
    %v5492 = vpop.permute.xlu0 %5491
    %5493 = vrot.lane.b32.xlu0 %v5436, 100
    %v5494 = vpop.permute.xlu0 %5493
    %5495 = vrot.lane.b32.xlu0 %v5437, 100
    %v5496 = vpop.permute.xlu0 %5495
    %5497 = vrot.lane.b32.xlu0 %v5438, 100
    %v5498 = vpop.permute.xlu0 %5497
    %5499 = vrot.lane.b32.xlu0 %v5439, 100
    %v5500 = vpop.permute.xlu0 %5499
    %5501 = vrot.lane.b32.xlu0 %v5440, 100
    %v5502 = vpop.permute.xlu0 %5501
    %5503 = vrot.lane.b32.xlu0 %v5441, 100
    %v5504 = vpop.permute.xlu0 %5503
    %v5505 = vsel %vm772, %v5464, %v5466
    %v5506 = vsel %vm772, %v5466, %v5468
    %v5507 = vsel %vm772, %v5468, %v5470
    %v5508 = vsel %vm772, %v5470, %v5472
    %v5509 = vsel %vm772, %v5472, %v5474
    %v5510 = vsel %vm772, %v5474, %v5476
    %v5511 = vsel %vm772, %v5476, %v5478
    %v5512 = vsel %vm772, %v5478, %v5480
    %v5513 = vsel %vm772, %v5480, %v5482
    %v5514 = vsel %vm772, %v5482, %v5484
    %v5515 = vsel %vm772, %v5484, %v5486
    %v5516 = vsel %vm772, %v5486, %v5488
    %v5517 = vsel %vm772, %v5488, %v5490
    %v5518 = vsel %vm772, %v5490, %v5492
    %v5519 = vsel %vm772, %v5492, %v5494
    %v5520 = vsel %vm772, %v5494, %v5496
    %v5521 = vsel %vm772, %v5496, %v5498
    %v5522 = vsel %vm772, %v5498, %v5500
    %v5523 = vsel %vm772, %v5500, %v5502
    %v5524 = vsel %vm772, %v5502, %v5504
    %5546 = vst [vmem:[#allocation3 + $0xf18] sm:$0xff] %v5505
    %5547 = vst [vmem:[#allocation3 + $0xf20] sm:$0xff] %v5506
    %5548 = vst [vmem:[#allocation3 + $0xf28] sm:$0xff] %v5507
    %5549 = vst [vmem:[#allocation3 + $0xf30] sm:$0xff] %v5508
    %5550 = vst [vmem:[#allocation3 + $0xf38] sm:$0xff] %v5509
    %5551 = vst [vmem:[#allocation3 + $0xf40] sm:$0xff] %v5510
    %5552 = vst [vmem:[#allocation3 + $0xf48] sm:$0xff] %v5511
    %5553 = vst [vmem:[#allocation3 + $0xf50] sm:$0xff] %v5512
    %5554 = vst [vmem:[#allocation3 + $0xf58] sm:$0xff] %v5513
    %5555 = vst [vmem:[#allocation3 + $0xf60] sm:$0xff] %v5514
    %5556 = vst [vmem:[#allocation3 + $0xf68] sm:$0xff] %v5515
    %5557 = vst [vmem:[#allocation3 + $0xf70] sm:$0xff] %v5516
    %5558 = vst [vmem:[#allocation3 + $0xf78] sm:$0xff] %v5517
    %5559 = vst [vmem:[#allocation3 + $0xf80] sm:$0xff] %v5518
    %5560 = vst [vmem:[#allocation3 + $0xf88] sm:$0xff] %v5519
    %5561 = vst [vmem:[#allocation3 + $0xf90] sm:$0xff] %v5520
    %5562 = vst [vmem:[#allocation3 + $0xf98] sm:$0xff] %v5521
    %5563 = vst [vmem:[#allocation3 + $0xfa0] sm:$0xff] %v5522
    %5564 = vst [vmem:[#allocation3 + $0xfa8] sm:$0xff] %v5523
    %5565 = vst [vmem:[#allocation3 + $0xfb0] sm:$0xff] %v5524
    %5566 = vst.msk [vmem:[#allocation3 + $0xfb8] sm:$0xff] %vm2192, %v5504
    %v5567 = vld [vmem:[#allocation2 + $0x28] sm:$0xff]
    %v5568 = vld [vmem:[#allocation2 + $0x30] sm:$0xff]
    %v5569 = vld [vmem:[#allocation2 + $0x38] sm:$0xff]
    %v5570 = vld [vmem:[#allocation2 + $0x40] sm:$0xff]
    %v5571 = vld [vmem:[#allocation2 + $0x48] sm:$0xff]
    %v5572 = vld [vmem:[#allocation2 + $0x50] sm:$0xff]
    %v5573 = vld [vmem:[#allocation2 + $0x58] sm:$0xff]
    %v5574 = vld [vmem:[#allocation2 + $0x60] sm:$0xff]
    %v5575 = vld [vmem:[#allocation2 + $0x68] sm:$0xff]
    %v5576 = vld [vmem:[#allocation2 + $0x70] sm:$0xff]
    %v5577 = vld [vmem:[#allocation2 + $0x78] sm:$0xff]
    %v5578 = vld [vmem:[#allocation2 + $0x80] sm:$0xff]
    %v5579 = vld [vmem:[#allocation2 + $0x88] sm:$0xff]
    %v5580 = vld [vmem:[#allocation2 + $0x90] sm:$0xff]
    %v5581 = vld [vmem:[#allocation2 + $0x98] sm:$0xff]
    %v5582 = vld [vmem:[#allocation2 + $0xa0] sm:$0xff]
    %v5583 = vld [vmem:[#allocation2 + $0xa8] sm:$0xff]
    %v5584 = vld [vmem:[#allocation2 + $0xb0] sm:$0xff]
    %v5585 = vld [vmem:[#allocation2 + $0xb8] sm:$0xff]
    %v5586 = vld [vmem:[#allocation2 + $0xc0] sm:$0xff]
    %v5587 = vld [vmem:[#allocation2 + $0xc8] sm:$0xff]
    %5609 = vrot.lane.b32.xlu0 %v5567, 84
    %v5610 = vpop.permute.xlu0 %5609
    %5611 = vrot.lane.b32.xlu0 %v5568, 84
    %v5612 = vpop.permute.xlu0 %5611
    %5613 = vrot.lane.b32.xlu0 %v5569, 84
    %v5614 = vpop.permute.xlu0 %5613
    %5615 = vrot.lane.b32.xlu0 %v5570, 84
    %v5616 = vpop.permute.xlu0 %5615
    %5617 = vrot.lane.b32.xlu0 %v5571, 84
    %v5618 = vpop.permute.xlu0 %5617
    %5619 = vrot.lane.b32.xlu0 %v5572, 84
    %v5620 = vpop.permute.xlu0 %5619
    %5621 = vrot.lane.b32.xlu0 %v5573, 84
    %v5622 = vpop.permute.xlu0 %5621
    %5623 = vrot.lane.b32.xlu0 %v5574, 84
    %v5624 = vpop.permute.xlu0 %5623
    %5625 = vrot.lane.b32.xlu0 %v5575, 84
    %v5626 = vpop.permute.xlu0 %5625
    %5627 = vrot.lane.b32.xlu0 %v5576, 84
    %v5628 = vpop.permute.xlu0 %5627
    %5629 = vrot.lane.b32.xlu0 %v5577, 84
    %v5630 = vpop.permute.xlu0 %5629
    %5631 = vrot.lane.b32.xlu0 %v5578, 84
    %v5632 = vpop.permute.xlu0 %5631
    %5633 = vrot.lane.b32.xlu0 %v5579, 84
    %v5634 = vpop.permute.xlu0 %5633
    %5635 = vrot.lane.b32.xlu0 %v5580, 84
    %v5636 = vpop.permute.xlu0 %5635
    %5637 = vrot.lane.b32.xlu0 %v5581, 84
    %v5638 = vpop.permute.xlu0 %5637
    %5639 = vrot.lane.b32.xlu0 %v5582, 84
    %v5640 = vpop.permute.xlu0 %5639
    %5641 = vrot.lane.b32.xlu0 %v5583, 84
    %v5642 = vpop.permute.xlu0 %5641
    %5643 = vrot.lane.b32.xlu0 %v5584, 84
    %v5644 = vpop.permute.xlu0 %5643
    %5645 = vrot.lane.b32.xlu0 %v5585, 84
    %v5646 = vpop.permute.xlu0 %5645
    %5647 = vrot.lane.b32.xlu0 %v5586, 84
    %v5648 = vpop.permute.xlu0 %5647
    %5649 = vrot.lane.b32.xlu0 %v5587, 84
    %v5650 = vpop.permute.xlu0 %5649
    %v5651 = vsel %vm810, %v5610, %v5612
    %v5652 = vsel %vm810, %v5612, %v5614
    %v5653 = vsel %vm810, %v5614, %v5616
    %v5654 = vsel %vm810, %v5616, %v5618
    %v5655 = vsel %vm810, %v5618, %v5620
    %v5656 = vsel %vm810, %v5620, %v5622
    %v5657 = vsel %vm810, %v5622, %v5624
    %v5658 = vsel %vm810, %v5624, %v5626
    %v5659 = vsel %vm810, %v5626, %v5628
    %v5660 = vsel %vm810, %v5628, %v5630
    %v5661 = vsel %vm810, %v5630, %v5632
    %v5662 = vsel %vm810, %v5632, %v5634
    %v5663 = vsel %vm810, %v5634, %v5636
    %v5664 = vsel %vm810, %v5636, %v5638
    %v5665 = vsel %vm810, %v5638, %v5640
    %v5666 = vsel %vm810, %v5640, %v5642
    %v5667 = vsel %vm810, %v5642, %v5644
    %v5668 = vsel %vm810, %v5644, %v5646
    %v5669 = vsel %vm810, %v5646, %v5648
    %v5670 = vsel %vm810, %v5648, %v5650
    %5692 = vst [vmem:[#allocation3 + $0xfc0] sm:$0xff] %v5651
    %5693 = vst [vmem:[#allocation3 + $0xfc8] sm:$0xff] %v5652
    %5694 = vst [vmem:[#allocation3 + $0xfd0] sm:$0xff] %v5653
    %5695 = vst [vmem:[#allocation3 + $0xfd8] sm:$0xff] %v5654
    %5696 = vst [vmem:[#allocation3 + $0xfe0] sm:$0xff] %v5655
    %5697 = vst [vmem:[#allocation3 + $0xfe8] sm:$0xff] %v5656
    %5698 = vst [vmem:[#allocation3 + $0xff0] sm:$0xff] %v5657
    %5699 = vst [vmem:[#allocation3 + $0xff8] sm:$0xff] %v5658
    %5700 = vst [vmem:[#allocation3 + $0x1000] sm:$0xff] %v5659
    %5701 = vst [vmem:[#allocation3 + $0x1008] sm:$0xff] %v5660
    %5702 = vst [vmem:[#allocation3 + $0x1010] sm:$0xff] %v5661
    %5703 = vst [vmem:[#allocation3 + $0x1018] sm:$0xff] %v5662
    %5704 = vst [vmem:[#allocation3 + $0x1020] sm:$0xff] %v5663
    %5705 = vst [vmem:[#allocation3 + $0x1028] sm:$0xff] %v5664
    %5706 = vst [vmem:[#allocation3 + $0x1030] sm:$0xff] %v5665
    %5707 = vst [vmem:[#allocation3 + $0x1038] sm:$0xff] %v5666
    %5708 = vst [vmem:[#allocation3 + $0x1040] sm:$0xff] %v5667
    %5709 = vst [vmem:[#allocation3 + $0x1048] sm:$0xff] %v5668
    %5710 = vst [vmem:[#allocation3 + $0x1050] sm:$0xff] %v5669
    %5711 = vst [vmem:[#allocation3 + $0x1058] sm:$0xff] %v5670
    %5712 = vst.msk [vmem:[#allocation3 + $0x1060] sm:$0xff] %vm2192, %v5650
    %v5713 = vld [vmem:[#allocation2 + $0x28] sm:$0xff]
    %v5714 = vld [vmem:[#allocation2 + $0x30] sm:$0xff]
    %v5715 = vld [vmem:[#allocation2 + $0x38] sm:$0xff]
    %v5716 = vld [vmem:[#allocation2 + $0x40] sm:$0xff]
    %v5717 = vld [vmem:[#allocation2 + $0x48] sm:$0xff]
    %v5718 = vld [vmem:[#allocation2 + $0x50] sm:$0xff]
    %v5719 = vld [vmem:[#allocation2 + $0x58] sm:$0xff]
    %v5720 = vld [vmem:[#allocation2 + $0x60] sm:$0xff]
    %v5721 = vld [vmem:[#allocation2 + $0x68] sm:$0xff]
    %v5722 = vld [vmem:[#allocation2 + $0x70] sm:$0xff]
    %v5723 = vld [vmem:[#allocation2 + $0x78] sm:$0xff]
    %v5724 = vld [vmem:[#allocation2 + $0x80] sm:$0xff]
    %v5725 = vld [vmem:[#allocation2 + $0x88] sm:$0xff]
    %v5726 = vld [vmem:[#allocation2 + $0x90] sm:$0xff]
    %v5727 = vld [vmem:[#allocation2 + $0x98] sm:$0xff]
    %v5728 = vld [vmem:[#allocation2 + $0xa0] sm:$0xff]
    %v5729 = vld [vmem:[#allocation2 + $0xa8] sm:$0xff]
    %v5730 = vld [vmem:[#allocation2 + $0xb0] sm:$0xff]
    %v5731 = vld [vmem:[#allocation2 + $0xb8] sm:$0xff]
    %v5732 = vld [vmem:[#allocation2 + $0xc0] sm:$0xff]
    %v5733 = vld [vmem:[#allocation2 + $0xc8] sm:$0xff]
    %5755 = vrot.lane.b32.xlu0 %v5713, 83
    %v5756 = vpop.permute.xlu0 %5755
    %5757 = vrot.lane.b32.xlu0 %v5714, 83
    %v5758 = vpop.permute.xlu0 %5757
    %5759 = vrot.lane.b32.xlu0 %v5715, 83
    %v5760 = vpop.permute.xlu0 %5759
    %5761 = vrot.lane.b32.xlu0 %v5716, 83
    %v5762 = vpop.permute.xlu0 %5761
    %5763 = vrot.lane.b32.xlu0 %v5717, 83
    %v5764 = vpop.permute.xlu0 %5763
    %5765 = vrot.lane.b32.xlu0 %v5718, 83
    %v5766 = vpop.permute.xlu0 %5765
    %5767 = vrot.lane.b32.xlu0 %v5719, 83
    %v5768 = vpop.permute.xlu0 %5767
    %5769 = vrot.lane.b32.xlu0 %v5720, 83
    %v5770 = vpop.permute.xlu0 %5769
    %5771 = vrot.lane.b32.xlu0 %v5721, 83
    %v5772 = vpop.permute.xlu0 %5771
    %5773 = vrot.lane.b32.xlu0 %v5722, 83
    %v5774 = vpop.permute.xlu0 %5773
    %5775 = vrot.lane.b32.xlu0 %v5723, 83
    %v5776 = vpop.permute.xlu0 %5775
    %5777 = vrot.lane.b32.xlu0 %v5724, 83
    %v5778 = vpop.permute.xlu0 %5777
    %5779 = vrot.lane.b32.xlu0 %v5725, 83
    %v5780 = vpop.permute.xlu0 %5779
    %5781 = vrot.lane.b32.xlu0 %v5726, 83
    %v5782 = vpop.permute.xlu0 %5781
    %5783 = vrot.lane.b32.xlu0 %v5727, 83
    %v5784 = vpop.permute.xlu0 %5783
    %5785 = vrot.lane.b32.xlu0 %v5728, 83
    %v5786 = vpop.permute.xlu0 %5785
    %5787 = vrot.lane.b32.xlu0 %v5729, 83
    %v5788 = vpop.permute.xlu0 %5787
    %5789 = vrot.lane.b32.xlu0 %v5730, 83
    %v5790 = vpop.permute.xlu0 %5789
    %5791 = vrot.lane.b32.xlu0 %v5731, 83
    %v5792 = vpop.permute.xlu0 %5791
    %5793 = vrot.lane.b32.xlu0 %v5732, 83
    %v5794 = vpop.permute.xlu0 %5793
    %5795 = vrot.lane.b32.xlu0 %v5733, 83
    %v5796 = vpop.permute.xlu0 %5795
    %v5797 = vsel %vm848, %v5756, %v5758
    %v5798 = vsel %vm848, %v5758, %v5760
    %v5799 = vsel %vm848, %v5760, %v5762
    %v5800 = vsel %vm848, %v5762, %v5764
    %v5801 = vsel %vm848, %v5764, %v5766
    %v5802 = vsel %vm848, %v5766, %v5768
    %v5803 = vsel %vm848, %v5768, %v5770
    %v5804 = vsel %vm848, %v5770, %v5772
    %v5805 = vsel %vm848, %v5772, %v5774
    %v5806 = vsel %vm848, %v5774, %v5776
    %v5807 = vsel %vm848, %v5776, %v5778
    %v5808 = vsel %vm848, %v5778, %v5780
    %v5809 = vsel %vm848, %v5780, %v5782
    %v5810 = vsel %vm848, %v5782, %v5784
    %v5811 = vsel %vm848, %v5784, %v5786
    %v5812 = vsel %vm848, %v5786, %v5788
    %v5813 = vsel %vm848, %v5788, %v5790
    %v5814 = vsel %vm848, %v5790, %v5792
    %v5815 = vsel %vm848, %v5792, %v5794
    %v5816 = vsel %vm848, %v5794, %v5796
    %5838 = vst [vmem:[#allocation3 + $0x1068] sm:$0xff] %v5797
    %5839 = vst [vmem:[#allocation3 + $0x1070] sm:$0xff] %v5798
    %5840 = vst [vmem:[#allocation3 + $0x1078] sm:$0xff] %v5799
    %5841 = vst [vmem:[#allocation3 + $0x1080] sm:$0xff] %v5800
    %5842 = vst [vmem:[#allocation3 + $0x1088] sm:$0xff] %v5801
    %5843 = vst [vmem:[#allocation3 + $0x1090] sm:$0xff] %v5802
    %5844 = vst [vmem:[#allocation3 + $0x1098] sm:$0xff] %v5803
    %5845 = vst [vmem:[#allocation3 + $0x10a0] sm:$0xff] %v5804
    %5846 = vst [vmem:[#allocation3 + $0x10a8] sm:$0xff] %v5805
    %5847 = vst [vmem:[#allocation3 + $0x10b0] sm:$0xff] %v5806
    %5848 = vst [vmem:[#allocation3 + $0x10b8] sm:$0xff] %v5807
    %5849 = vst [vmem:[#allocation3 + $0x10c0] sm:$0xff] %v5808
    %5850 = vst [vmem:[#allocation3 + $0x10c8] sm:$0xff] %v5809
    %5851 = vst [vmem:[#allocation3 + $0x10d0] sm:$0xff] %v5810
    %5852 = vst [vmem:[#allocation3 + $0x10d8] sm:$0xff] %v5811
    %5853 = vst [vmem:[#allocation3 + $0x10e0] sm:$0xff] %v5812
    %5854 = vst [vmem:[#allocation3 + $0x10e8] sm:$0xff] %v5813
    %5855 = vst [vmem:[#allocation3 + $0x10f0] sm:$0xff] %v5814
    %5856 = vst [vmem:[#allocation3 + $0x10f8] sm:$0xff] %v5815
    %5857 = vst [vmem:[#allocation3 + $0x1100] sm:$0xff] %v5816
    %5858 = vst.msk [vmem:[#allocation3 + $0x1108] sm:$0xff] %vm2192, %v5796
    %v5859 = vld [vmem:[#allocation2 + $0x28] sm:$0xff]
    %v5860 = vld [vmem:[#allocation2 + $0x30] sm:$0xff]
    %v5861 = vld [vmem:[#allocation2 + $0x38] sm:$0xff]
    %v5862 = vld [vmem:[#allocation2 + $0x40] sm:$0xff]
    %v5863 = vld [vmem:[#allocation2 + $0x48] sm:$0xff]
    %v5864 = vld [vmem:[#allocation2 + $0x50] sm:$0xff]
    %v5865 = vld [vmem:[#allocation2 + $0x58] sm:$0xff]
    %v5866 = vld [vmem:[#allocation2 + $0x60] sm:$0xff]
    %v5867 = vld [vmem:[#allocation2 + $0x68] sm:$0xff]
    %v5868 = vld [vmem:[#allocation2 + $0x70] sm:$0xff]
    %v5869 = vld [vmem:[#allocation2 + $0x78] sm:$0xff]
    %v5870 = vld [vmem:[#allocation2 + $0x80] sm:$0xff]
    %v5871 = vld [vmem:[#allocation2 + $0x88] sm:$0xff]
    %v5872 = vld [vmem:[#allocation2 + $0x90] sm:$0xff]
    %v5873 = vld [vmem:[#allocation2 + $0x98] sm:$0xff]
    %v5874 = vld [vmem:[#allocation2 + $0xa0] sm:$0xff]
    %v5875 = vld [vmem:[#allocation2 + $0xa8] sm:$0xff]
    %v5876 = vld [vmem:[#allocation2 + $0xb0] sm:$0xff]
    %v5877 = vld [vmem:[#allocation2 + $0xb8] sm:$0xff]
    %v5878 = vld [vmem:[#allocation2 + $0xc0] sm:$0xff]
    %v5879 = vld [vmem:[#allocation2 + $0xc8] sm:$0xff]
    %5901 = vrot.lane.b32.xlu0 %v5859, 82
    %v5902 = vpop.permute.xlu0 %5901
    %5903 = vrot.lane.b32.xlu0 %v5860, 82
    %v5904 = vpop.permute.xlu0 %5903
    %5905 = vrot.lane.b32.xlu0 %v5861, 82
    %v5906 = vpop.permute.xlu0 %5905
    %5907 = vrot.lane.b32.xlu0 %v5862, 82
    %v5908 = vpop.permute.xlu0 %5907
    %5909 = vrot.lane.b32.xlu0 %v5863, 82
    %v5910 = vpop.permute.xlu0 %5909
    %5911 = vrot.lane.b32.xlu0 %v5864, 82
    %v5912 = vpop.permute.xlu0 %5911
    %5913 = vrot.lane.b32.xlu0 %v5865, 82
    %v5914 = vpop.permute.xlu0 %5913
    %5915 = vrot.lane.b32.xlu0 %v5866, 82
    %v5916 = vpop.permute.xlu0 %5915
    %5917 = vrot.lane.b32.xlu0 %v5867, 82
    %v5918 = vpop.permute.xlu0 %5917
    %5919 = vrot.lane.b32.xlu0 %v5868, 82
    %v5920 = vpop.permute.xlu0 %5919
    %5921 = vrot.lane.b32.xlu0 %v5869, 82
    %v5922 = vpop.permute.xlu0 %5921
    %5923 = vrot.lane.b32.xlu0 %v5870, 82
    %v5924 = vpop.permute.xlu0 %5923
    %5925 = vrot.lane.b32.xlu0 %v5871, 82
    %v5926 = vpop.permute.xlu0 %5925
    %5927 = vrot.lane.b32.xlu0 %v5872, 82
    %v5928 = vpop.permute.xlu0 %5927
    %5929 = vrot.lane.b32.xlu0 %v5873, 82
    %v5930 = vpop.permute.xlu0 %5929
    %5931 = vrot.lane.b32.xlu0 %v5874, 82
    %v5932 = vpop.permute.xlu0 %5931
    %5933 = vrot.lane.b32.xlu0 %v5875, 82
    %v5934 = vpop.permute.xlu0 %5933
    %5935 = vrot.lane.b32.xlu0 %v5876, 82
    %v5936 = vpop.permute.xlu0 %5935
    %5937 = vrot.lane.b32.xlu0 %v5877, 82
    %v5938 = vpop.permute.xlu0 %5937
    %5939 = vrot.lane.b32.xlu0 %v5878, 82
    %v5940 = vpop.permute.xlu0 %5939
    %5941 = vrot.lane.b32.xlu0 %v5879, 82
    %v5942 = vpop.permute.xlu0 %5941
    %v5943 = vsel %vm886, %v5902, %v5904
    %v5944 = vsel %vm886, %v5904, %v5906
    %v5945 = vsel %vm886, %v5906, %v5908
    %v5946 = vsel %vm886, %v5908, %v5910
    %v5947 = vsel %vm886, %v5910, %v5912
    %v5948 = vsel %vm886, %v5912, %v5914
    %v5949 = vsel %vm886, %v5914, %v5916
    %v5950 = vsel %vm886, %v5916, %v5918
    %v5951 = vsel %vm886, %v5918, %v5920
    %v5952 = vsel %vm886, %v5920, %v5922
    %v5953 = vsel %vm886, %v5922, %v5924
    %v5954 = vsel %vm886, %v5924, %v5926
    %v5955 = vsel %vm886, %v5926, %v5928
    %v5956 = vsel %vm886, %v5928, %v5930
    %v5957 = vsel %vm886, %v5930, %v5932
    %v5958 = vsel %vm886, %v5932, %v5934
    %v5959 = vsel %vm886, %v5934, %v5936
    %v5960 = vsel %vm886, %v5936, %v5938
    %v5961 = vsel %vm886, %v5938, %v5940
    %v5962 = vsel %vm886, %v5940, %v5942
    %5984 = vst [vmem:[#allocation3 + $0x1110] sm:$0xff] %v5943
    %5985 = vst [vmem:[#allocation3 + $0x1118] sm:$0xff] %v5944
    %5986 = vst [vmem:[#allocation3 + $0x1120] sm:$0xff] %v5945
    %5987 = vst [vmem:[#allocation3 + $0x1128] sm:$0xff] %v5946
    %5988 = vst [vmem:[#allocation3 + $0x1130] sm:$0xff] %v5947
    %5989 = vst [vmem:[#allocation3 + $0x1138] sm:$0xff] %v5948
    %5990 = vst [vmem:[#allocation3 + $0x1140] sm:$0xff] %v5949
    %5991 = vst [vmem:[#allocation3 + $0x1148] sm:$0xff] %v5950
    %5992 = vst [vmem:[#allocation3 + $0x1150] sm:$0xff] %v5951
    %5993 = vst [vmem:[#allocation3 + $0x1158] sm:$0xff] %v5952
    %5994 = vst [vmem:[#allocation3 + $0x1160] sm:$0xff] %v5953
    %5995 = vst [vmem:[#allocation3 + $0x1168] sm:$0xff] %v5954
    %5996 = vst [vmem:[#allocation3 + $0x1170] sm:$0xff] %v5955
    %5997 = vst [vmem:[#allocation3 + $0x1178] sm:$0xff] %v5956
    %5998 = vst [vmem:[#allocation3 + $0x1180] sm:$0xff] %v5957
    %5999 = vst [vmem:[#allocation3 + $0x1188] sm:$0xff] %v5958
    %6000 = vst [vmem:[#allocation3 + $0x1190] sm:$0xff] %v5959
    %6001 = vst [vmem:[#allocation3 + $0x1198] sm:$0xff] %v5960
    %6002 = vst [vmem:[#allocation3 + $0x11a0] sm:$0xff] %v5961
    %6003 = vst [vmem:[#allocation3 + $0x11a8] sm:$0xff] %v5962
    %6004 = vst.msk [vmem:[#allocation3 + $0x11b0] sm:$0xff] %vm2192, %v5942
    %v6005 = vld [vmem:[%s3] sm:$0xff]
    %v6006 = vld [vmem:[%s3 + $0x8] sm:$0xff]
    %v6007 = vld [vmem:[#allocation3] sm:$0xff]
    %v6008 = vld [vmem:[#allocation3 + $0x8] sm:$0xff]
    %v6009 = vld [vmem:[#allocation3 + $0x10] sm:$0xff]
    %v6010 = vld [vmem:[#allocation3 + $0x18] sm:$0xff]
    %v6011 = vld [vmem:[#allocation3 + $0x20] sm:$0xff]
    %v6012 = vld [vmem:[#allocation3 + $0x28] sm:$0xff]
    %v6013 = vld [vmem:[#allocation3 + $0x30] sm:$0xff]
    %v6014 = vld [vmem:[#allocation3 + $0x38] sm:$0xff]
    %v6015 = vld [vmem:[#allocation3 + $0x40] sm:$0xff]
    %v6016 = vld [vmem:[#allocation3 + $0x48] sm:$0xff]
    %v6017 = vld [vmem:[#allocation3 + $0x50] sm:$0xff]
    %v6018 = vld [vmem:[#allocation3 + $0x58] sm:$0xff]
    %v6019 = vld [vmem:[#allocation3 + $0x60] sm:$0xff]
    %v6020 = vld [vmem:[#allocation3 + $0x68] sm:$0xff]
    %v6021 = vld [vmem:[#allocation3 + $0x70] sm:$0xff]
    %v6022 = vld [vmem:[#allocation3 + $0x78] sm:$0xff]
    %v6023 = vld [vmem:[#allocation3 + $0x80] sm:$0xff]
    %v6024 = vld [vmem:[#allocation3 + $0x88] sm:$0xff]
    %v6025 = vld [vmem:[#allocation3 + $0x90] sm:$0xff]
    %v6026 = vld [vmem:[#allocation3 + $0x98] sm:$0xff]
    %v6027 = vld [vmem:[#allocation3 + $0xa0] sm:$0xff]
    %v6028 = vld [vmem:[#allocation3 + $0xa8] sm:$0xff]
    %v6029 = vld [vmem:[#allocation3 + $0xb0] sm:$0xff]
    %v6030 = vld [vmem:[#allocation3 + $0xb8] sm:$0xff]
    %v6031 = vld [vmem:[#allocation3 + $0xc0] sm:$0xff]
    %v6032 = vld [vmem:[#allocation3 + $0xc8] sm:$0xff]
    %v6033 = vld [vmem:[#allocation3 + $0xd0] sm:$0xff]
    %v6034 = vld [vmem:[#allocation3 + $0xd8] sm:$0xff]
    %v6035 = vld [vmem:[#allocation3 + $0xe0] sm:$0xff]
    %v6036 = vld [vmem:[#allocation3 + $0xe8] sm:$0xff]
    %v6037 = vld [vmem:[#allocation3 + $0xf0] sm:$0xff]
    %v6038 = vld [vmem:[#allocation3 + $0xf8] sm:$0xff]
    %v6039 = vld [vmem:[#allocation3 + $0x100] sm:$0xff]
    %v6040 = vld [vmem:[#allocation3 + $0x108] sm:$0xff]
    %v6041 = vld [vmem:[#allocation3 + $0x110] sm:$0xff]
    %v6042 = vld [vmem:[#allocation3 + $0x118] sm:$0xff]
    %v6043 = vld [vmem:[#allocation3 + $0x120] sm:$0xff]
    %v6044 = vld [vmem:[#allocation3 + $0x128] sm:$0xff]
    %v6045 = vld [vmem:[#allocation3 + $0x130] sm:$0xff]
    %v6046 = vld [vmem:[#allocation3 + $0x138] sm:$0xff]
    %v6047 = vld [vmem:[#allocation3 + $0x140] sm:$0xff]
    %v6048 = vld [vmem:[#allocation3 + $0x148] sm:$0xff]
    %v6049 = vld [vmem:[#allocation3 + $0x150] sm:$0xff]
    %v6050 = vld [vmem:[#allocation3 + $0x158] sm:$0xff]
    %v6051 = vld [vmem:[#allocation3 + $0x160] sm:$0xff]
    %v6052 = vld [vmem:[#allocation3 + $0x168] sm:$0xff]
    %v6053 = vld [vmem:[#allocation3 + $0x170] sm:$0xff]
    %v6054 = vld [vmem:[#allocation3 + $0x178] sm:$0xff]
    %v6055 = vld [vmem:[#allocation3 + $0x180] sm:$0xff]
    %v6056 = vld [vmem:[#allocation3 + $0x188] sm:$0xff]
    %v6057 = vld [vmem:[#allocation3 + $0x190] sm:$0xff]
    %v6058 = vld [vmem:[#allocation3 + $0x198] sm:$0xff]
    %v6059 = vld [vmem:[#allocation3 + $0x1a0] sm:$0xff]
    %v6060 = vld [vmem:[#allocation3 + $0x1a8] sm:$0xff]
    %v6061 = vld [vmem:[#allocation3 + $0x1b0] sm:$0xff]
    %v6062 = vld [vmem:[#allocation3 + $0x1b8] sm:$0xff]
    %v6063 = vld [vmem:[#allocation3 + $0x1c0] sm:$0xff]
    %v6064 = vld [vmem:[#allocation3 + $0x1c8] sm:$0xff]
    %v6065 = vld [vmem:[#allocation3 + $0x1d0] sm:$0xff]
    %v6066 = vld [vmem:[#allocation3 + $0x1d8] sm:$0xff]
    %v6067 = vld [vmem:[#allocation3 + $0x1e0] sm:$0xff]
    %v6068 = vld [vmem:[#allocation3 + $0x1e8] sm:$0xff]
    %v6069 = vld [vmem:[#allocation3 + $0x1f0] sm:$0xff]
    %v6070 = vld [vmem:[#allocation3 + $0x1f8] sm:$0xff]
    %v6071 = vld [vmem:[#allocation3 + $0x200] sm:$0xff]
    %v6072 = vld [vmem:[#allocation3 + $0x208] sm:$0xff]
    %v6073 = vld [vmem:[#allocation3 + $0x210] sm:$0xff]
    %v6074 = vld [vmem:[#allocation3 + $0x218] sm:$0xff]
    %v6075 = vld [vmem:[#allocation3 + $0x220] sm:$0xff]
    %v6076 = vld [vmem:[#allocation3 + $0x228] sm:$0xff]
    %v6077 = vld [vmem:[#allocation3 + $0x230] sm:$0xff]
    %v6078 = vld [vmem:[#allocation3 + $0x238] sm:$0xff]
    %v6079 = vld [vmem:[#allocation3 + $0x240] sm:$0xff]
    %v6080 = vld [vmem:[#allocation3 + $0x248] sm:$0xff]
    %v6081 = vld [vmem:[#allocation3 + $0x250] sm:$0xff]
    %v6082 = vld [vmem:[#allocation3 + $0x258] sm:$0xff]
    %v6083 = vld [vmem:[#allocation3 + $0x260] sm:$0xff]
    %v6084 = vld [vmem:[#allocation3 + $0x268] sm:$0xff]
    %v6085 = vld [vmem:[#allocation3 + $0x270] sm:$0xff]
    %v6086 = vld [vmem:[#allocation3 + $0x278] sm:$0xff]
    %v6087 = vld [vmem:[#allocation3 + $0x280] sm:$0xff]
    %v6088 = vld [vmem:[#allocation3 + $0x288] sm:$0xff]
    %v6089 = vld [vmem:[#allocation3 + $0x290] sm:$0xff]
    %v6090 = vld [vmem:[#allocation3 + $0x298] sm:$0xff]
    %v6091 = vld [vmem:[#allocation3 + $0x2a0] sm:$0xff]
    %v6092 = vld [vmem:[#allocation3 + $0x2a8] sm:$0xff]
    %v6093 = vld [vmem:[#allocation3 + $0x2b0] sm:$0xff]
    %v6094 = vld [vmem:[#allocation3 + $0x2b8] sm:$0xff]
    %v6095 = vld [vmem:[#allocation3 + $0x2c0] sm:$0xff]
    %v6096 = vld [vmem:[#allocation3 + $0x2c8] sm:$0xff]
    %v6097 = vld [vmem:[#allocation3 + $0x2d0] sm:$0xff]
    %v6098 = vld [vmem:[#allocation3 + $0x2d8] sm:$0xff]
    %v6099 = vld [vmem:[#allocation3 + $0x2e0] sm:$0xff]
    %v6100 = vld [vmem:[#allocation3 + $0x2e8] sm:$0xff]
    %v6101 = vld [vmem:[#allocation3 + $0x2f0] sm:$0xff]
    %v6102 = vld [vmem:[#allocation3 + $0x2f8] sm:$0xff]
    %v6103 = vld [vmem:[#allocation3 + $0x300] sm:$0xff]
    %v6104 = vld [vmem:[#allocation3 + $0x308] sm:$0xff]
    %v6105 = vld [vmem:[#allocation3 + $0x310] sm:$0xff]
    %v6106 = vld [vmem:[#allocation3 + $0x318] sm:$0xff]
    %v6107 = vld [vmem:[#allocation3 + $0x320] sm:$0xff]
    %v6108 = vld [vmem:[#allocation3 + $0x328] sm:$0xff]
    %v6109 = vld [vmem:[#allocation3 + $0x330] sm:$0xff]
    %v6110 = vld [vmem:[#allocation3 + $0x338] sm:$0xff]
    %v6111 = vld [vmem:[#allocation3 + $0x340] sm:$0xff]
    %v6112 = vld [vmem:[#allocation3 + $0x348] sm:$0xff]
    %v6113 = vld [vmem:[#allocation3 + $0x350] sm:$0xff]
    %v6114 = vld [vmem:[#allocation3 + $0x358] sm:$0xff]
    %v6115 = vld [vmem:[#allocation3 + $0x360] sm:$0xff]
    %v6116 = vld [vmem:[#allocation3 + $0x368] sm:$0xff]
    %v6117 = vld [vmem:[#allocation3 + $0x370] sm:$0xff]
    %v6118 = vld [vmem:[#allocation3 + $0x378] sm:$0xff]
    %v6119 = vld [vmem:[#allocation3 + $0x380] sm:$0xff]
    %v6120 = vld [vmem:[#allocation3 + $0x388] sm:$0xff]
    %v6121 = vld [vmem:[#allocation3 + $0x390] sm:$0xff]
    %v6122 = vld [vmem:[#allocation3 + $0x398] sm:$0xff]
    %v6123 = vld [vmem:[#allocation3 + $0x3a0] sm:$0xff]
    %v6124 = vld [vmem:[#allocation3 + $0x3a8] sm:$0xff]
    %v6125 = vld [vmem:[#allocation3 + $0x3b0] sm:$0xff]
    %v6126 = vld [vmem:[#allocation3 + $0x3b8] sm:$0xff]
    %v6127 = vld [vmem:[#allocation3 + $0x3c0] sm:$0xff]
    %v6128 = vld [vmem:[#allocation3 + $0x3c8] sm:$0xff]
    %v6129 = vld [vmem:[#allocation3 + $0x3d0] sm:$0xff]
    %v6130 = vld [vmem:[#allocation3 + $0x3d8] sm:$0xff]
    %v6131 = vld [vmem:[#allocation3 + $0x3e0] sm:$0xff]
    %v6132 = vld [vmem:[#allocation3 + $0x3e8] sm:$0xff]
    %v6133 = vld [vmem:[#allocation3 + $0x3f0] sm:$0xff]
    %v6134 = vld [vmem:[#allocation3 + $0x3f8] sm:$0xff]
    %v6135 = vld [vmem:[#allocation3 + $0x400] sm:$0xff]
    %v6136 = vld [vmem:[#allocation3 + $0x408] sm:$0xff]
    %v6137 = vld [vmem:[#allocation3 + $0x410] sm:$0xff]
    %v6138 = vld [vmem:[#allocation3 + $0x418] sm:$0xff]
    %v6139 = vld [vmem:[#allocation3 + $0x420] sm:$0xff]
    %v6140 = vld [vmem:[#allocation3 + $0x428] sm:$0xff]
    %v6141 = vld [vmem:[#allocation3 + $0x430] sm:$0xff]
    %v6142 = vld [vmem:[#allocation3 + $0x438] sm:$0xff]
    %v6143 = vld [vmem:[#allocation3 + $0x440] sm:$0xff]
    %v6144 = vld [vmem:[#allocation3 + $0x448] sm:$0xff]
    %v6145 = vld [vmem:[#allocation3 + $0x450] sm:$0xff]
    %v6146 = vld [vmem:[#allocation3 + $0x458] sm:$0xff]
    %v6147 = vld [vmem:[#allocation3 + $0x460] sm:$0xff]
    %v6148 = vld [vmem:[#allocation3 + $0x468] sm:$0xff]
    %v6149 = vld [vmem:[#allocation3 + $0x470] sm:$0xff]
    %v6150 = vld [vmem:[#allocation3 + $0x478] sm:$0xff]
    %v6151 = vld [vmem:[#allocation3 + $0x480] sm:$0xff]
    %v6152 = vld [vmem:[#allocation3 + $0x488] sm:$0xff]
    %v6153 = vld [vmem:[#allocation3 + $0x490] sm:$0xff]
    %v6154 = vld [vmem:[#allocation3 + $0x498] sm:$0xff]
    %v6155 = vld [vmem:[#allocation3 + $0x4a0] sm:$0xff]
    %v6156 = vld [vmem:[#allocation3 + $0x4a8] sm:$0xff]
    %v6157 = vld [vmem:[#allocation3 + $0x4b0] sm:$0xff]
    %v6158 = vld [vmem:[#allocation3 + $0x4b8] sm:$0xff]
    %v6159 = vld [vmem:[#allocation3 + $0x4c0] sm:$0xff]
    %v6160 = vld [vmem:[#allocation3 + $0x4c8] sm:$0xff]
    %v6161 = vld [vmem:[#allocation3 + $0x4d0] sm:$0xff]
    %v6162 = vld [vmem:[#allocation3 + $0x4d8] sm:$0xff]
    %v6163 = vld [vmem:[#allocation3 + $0x4e0] sm:$0xff]
    %v6164 = vld [vmem:[#allocation3 + $0x4e8] sm:$0xff]
    %v6165 = vld [vmem:[#allocation3 + $0x4f0] sm:$0xff]
    %v6166 = vld [vmem:[#allocation3 + $0x4f8] sm:$0xff]
    %v6167 = vld [vmem:[#allocation3 + $0x500] sm:$0xff]
    %v6168 = vld [vmem:[#allocation3 + $0x508] sm:$0xff]
    %v6169 = vld [vmem:[#allocation3 + $0x510] sm:$0xff]
    %v6170 = vld [vmem:[#allocation3 + $0x518] sm:$0xff]
    %v6171 = vld [vmem:[#allocation3 + $0x520] sm:$0xff]
    %v6172 = vld [vmem:[#allocation3 + $0x528] sm:$0xff]
    %v6173 = vld [vmem:[#allocation3 + $0x530] sm:$0xff]
    %v6174 = vld [vmem:[#allocation3 + $0x538] sm:$0xff]
    %v6175 = vld [vmem:[#allocation3 + $0x540] sm:$0xff]
    %v6176 = vld [vmem:[#allocation3 + $0x548] sm:$0xff]
    %v6177 = vld [vmem:[#allocation3 + $0x550] sm:$0xff]
    %v6178 = vld [vmem:[#allocation3 + $0x558] sm:$0xff]
    %v6179 = vld [vmem:[#allocation3 + $0x560] sm:$0xff]
    %v6180 = vld [vmem:[#allocation3 + $0x568] sm:$0xff]
    %v6181 = vld [vmem:[#allocation3 + $0x570] sm:$0xff]
    %v6182 = vld [vmem:[#allocation3 + $0x578] sm:$0xff]
    %v6183 = vld [vmem:[#allocation3 + $0x580] sm:$0xff]
    %v6184 = vld [vmem:[#allocation3 + $0x588] sm:$0xff]
    %v6185 = vld [vmem:[#allocation3 + $0x590] sm:$0xff]
    %v6186 = vld [vmem:[#allocation3 + $0x598] sm:$0xff]
    %v6187 = vld [vmem:[#allocation3 + $0x5a0] sm:$0xff]
    %v6188 = vld [vmem:[#allocation3 + $0x5a8] sm:$0xff]
    %v6189 = vld [vmem:[#allocation3 + $0x5b0] sm:$0xff]
    %v6190 = vld [vmem:[#allocation3 + $0x5b8] sm:$0xff]
    %v6191 = vld [vmem:[#allocation3 + $0x5c0] sm:$0xff]
    %v6192 = vld [vmem:[#allocation3 + $0x5c8] sm:$0xff]
    %v6193 = vld [vmem:[#allocation3 + $0x5d0] sm:$0xff]
    %v6194 = vld [vmem:[#allocation3 + $0x5d8] sm:$0xff]
    %v6195 = vld [vmem:[#allocation3 + $0x5e0] sm:$0xff]
    %v6196 = vld [vmem:[#allocation3 + $0x5e8] sm:$0xff]
    %v6197 = vld [vmem:[#allocation3 + $0x5f0] sm:$0xff]
    %v6198 = vld [vmem:[#allocation3 + $0x5f8] sm:$0xff]
    %v6199 = vld [vmem:[#allocation3 + $0x600] sm:$0xff]
    %v6200 = vld [vmem:[#allocation3 + $0x608] sm:$0xff]
    %v6201 = vld [vmem:[#allocation3 + $0x610] sm:$0xff]
    %v6202 = vld [vmem:[#allocation3 + $0x618] sm:$0xff]
    %v6203 = vld [vmem:[#allocation3 + $0x620] sm:$0xff]
    %v6204 = vld [vmem:[#allocation3 + $0x628] sm:$0xff]
    %v6205 = vld [vmem:[#allocation3 + $0x630] sm:$0xff]
    %v6206 = vld [vmem:[#allocation3 + $0x638] sm:$0xff]
    %v6207 = vld [vmem:[#allocation3 + $0x640] sm:$0xff]
    %v6208 = vld [vmem:[#allocation3 + $0x648] sm:$0xff]
    %v6209 = vld [vmem:[#allocation3 + $0x650] sm:$0xff]
    %v6210 = vld [vmem:[#allocation3 + $0x658] sm:$0xff]
    %v6211 = vld [vmem:[#allocation3 + $0x660] sm:$0xff]
    %v6212 = vld [vmem:[#allocation3 + $0x668] sm:$0xff]
    %v6213 = vld [vmem:[#allocation3 + $0x670] sm:$0xff]
    %v6214 = vld [vmem:[#allocation3 + $0x678] sm:$0xff]
    %v6215 = vld [vmem:[#allocation3 + $0x680] sm:$0xff]
    %v6216 = vld [vmem:[#allocation3 + $0x688] sm:$0xff]
    %v6217 = vld [vmem:[#allocation3 + $0x690] sm:$0xff]
    %v6218 = vld [vmem:[#allocation3 + $0x698] sm:$0xff]
    %v6219 = vld [vmem:[#allocation3 + $0x6a0] sm:$0xff]
    %v6220 = vld [vmem:[#allocation3 + $0x6a8] sm:$0xff]
    %v6221 = vld [vmem:[#allocation3 + $0x6b0] sm:$0xff]
    %v6222 = vld [vmem:[#allocation3 + $0x6b8] sm:$0xff]
    %v6223 = vld [vmem:[#allocation3 + $0x6c0] sm:$0xff]
    %v6224 = vld [vmem:[#allocation3 + $0x6c8] sm:$0xff]
    %v6225 = vld [vmem:[#allocation3 + $0x6d0] sm:$0xff]
    %v6226 = vld [vmem:[#allocation3 + $0x6d8] sm:$0xff]
    %v6227 = vld [vmem:[#allocation3 + $0x6e0] sm:$0xff]
    %v6228 = vld [vmem:[#allocation3 + $0x6e8] sm:$0xff]
    %v6229 = vld [vmem:[#allocation3 + $0x6f0] sm:$0xff]
    %v6230 = vld [vmem:[#allocation3 + $0x6f8] sm:$0xff]
    %v6231 = vld [vmem:[#allocation3 + $0x700] sm:$0xff]
    %v6232 = vld [vmem:[#allocation3 + $0x708] sm:$0xff]
    %v6233 = vld [vmem:[#allocation3 + $0x710] sm:$0xff]
    %v6234 = vld [vmem:[#allocation3 + $0x718] sm:$0xff]
    %v6235 = vld [vmem:[#allocation3 + $0x720] sm:$0xff]
    %v6236 = vld [vmem:[#allocation3 + $0x728] sm:$0xff]
    %v6237 = vld [vmem:[#allocation3 + $0x730] sm:$0xff]
    %v6238 = vld [vmem:[#allocation3 + $0x738] sm:$0xff]
    %v6239 = vld [vmem:[#allocation3 + $0x740] sm:$0xff]
    %v6240 = vld [vmem:[#allocation3 + $0x748] sm:$0xff]
    %v6241 = vld [vmem:[#allocation3 + $0x750] sm:$0xff]
    %v6242 = vld [vmem:[#allocation3 + $0x758] sm:$0xff]
    %v6243 = vld [vmem:[#allocation3 + $0x760] sm:$0xff]
    %v6244 = vld [vmem:[#allocation3 + $0x768] sm:$0xff]
    %v6245 = vld [vmem:[#allocation3 + $0x770] sm:$0xff]
    %v6246 = vld [vmem:[#allocation3 + $0x778] sm:$0xff]
    %v6247 = vld [vmem:[#allocation3 + $0x780] sm:$0xff]
    %v6248 = vld [vmem:[#allocation3 + $0x788] sm:$0xff]
    %v6249 = vld [vmem:[#allocation3 + $0x790] sm:$0xff]
    %v6250 = vld [vmem:[#allocation3 + $0x798] sm:$0xff]
    %v6251 = vld [vmem:[#allocation3 + $0x7a0] sm:$0xff]
    %v6252 = vld [vmem:[#allocation3 + $0x7a8] sm:$0xff]
    %v6253 = vld [vmem:[#allocation3 + $0x7b0] sm:$0xff]
    %v6254 = vld [vmem:[#allocation3 + $0x7b8] sm:$0xff]
    %v6255 = vld [vmem:[#allocation3 + $0x7c0] sm:$0xff]
    %v6256 = vld [vmem:[#allocation3 + $0x7c8] sm:$0xff]
    %v6257 = vld [vmem:[#allocation3 + $0x7d0] sm:$0xff]
    %v6258 = vld [vmem:[#allocation3 + $0x7d8] sm:$0xff]
    %v6259 = vld [vmem:[#allocation3 + $0x7e0] sm:$0xff]
    %v6260 = vld [vmem:[#allocation3 + $0x7e8] sm:$0xff]
    %v6261 = vld [vmem:[#allocation3 + $0x7f0] sm:$0xff]
    %v6262 = vld [vmem:[#allocation3 + $0x7f8] sm:$0xff]
    %v6263 = vld [vmem:[#allocation3 + $0x800] sm:$0xff]
    %v6264 = vld [vmem:[#allocation3 + $0x808] sm:$0xff]
    %v6265 = vld [vmem:[#allocation3 + $0x810] sm:$0xff]
    %v6266 = vld [vmem:[#allocation3 + $0x818] sm:$0xff]
    %v6267 = vld [vmem:[#allocation3 + $0x820] sm:$0xff]
    %v6268 = vld [vmem:[#allocation3 + $0x828] sm:$0xff]
    %v6269 = vld [vmem:[#allocation3 + $0x830] sm:$0xff]
    %v6270 = vld [vmem:[#allocation3 + $0x838] sm:$0xff]
    %v6271 = vld [vmem:[#allocation3 + $0x840] sm:$0xff]
    %v6272 = vld [vmem:[#allocation3 + $0x848] sm:$0xff]
    %v6273 = vld [vmem:[#allocation3 + $0x850] sm:$0xff]
    %v6274 = vld [vmem:[#allocation3 + $0x858] sm:$0xff]
    %v6275 = vld [vmem:[#allocation3 + $0x860] sm:$0xff]
    %v6276 = vld [vmem:[#allocation3 + $0x868] sm:$0xff]
    %v6277 = vld [vmem:[#allocation3 + $0x870] sm:$0xff]
    %v6278 = vld [vmem:[#allocation3 + $0x878] sm:$0xff]
    %v6279 = vld [vmem:[#allocation3 + $0x880] sm:$0xff]
    %v6280 = vld [vmem:[#allocation3 + $0x888] sm:$0xff]
    %v6281 = vld [vmem:[#allocation3 + $0x890] sm:$0xff]
    %v6282 = vld [vmem:[#allocation3 + $0x898] sm:$0xff]
    %v6283 = vld [vmem:[#allocation3 + $0x8a0] sm:$0xff]
    %v6284 = vld [vmem:[#allocation3 + $0x8a8] sm:$0xff]
    %v6285 = vld [vmem:[#allocation3 + $0x8b0] sm:$0xff]
    %v6286 = vld [vmem:[#allocation3 + $0x8b8] sm:$0xff]
    %v6287 = vld [vmem:[#allocation3 + $0x8c0] sm:$0xff]
    %v6288 = vld [vmem:[#allocation3 + $0x8c8] sm:$0xff]
    %v6289 = vld [vmem:[#allocation3 + $0x8d0] sm:$0xff]
    %v6290 = vld [vmem:[#allocation3 + $0x8d8] sm:$0xff]
    %v6291 = vld [vmem:[#allocation3 + $0x8e0] sm:$0xff]
    %v6292 = vld [vmem:[#allocation3 + $0x8e8] sm:$0xff]
    %v6293 = vld [vmem:[#allocation3 + $0x8f0] sm:$0xff]
    %v6294 = vld [vmem:[#allocation3 + $0x8f8] sm:$0xff]
    %v6295 = vld [vmem:[#allocation3 + $0x900] sm:$0xff]
    %v6296 = vld [vmem:[#allocation3 + $0x908] sm:$0xff]
    %v6297 = vld [vmem:[#allocation3 + $0x910] sm:$0xff]
    %v6298 = vld [vmem:[#allocation3 + $0x918] sm:$0xff]
    %v6299 = vld [vmem:[#allocation3 + $0x920] sm:$0xff]
    %v6300 = vld [vmem:[#allocation3 + $0x928] sm:$0xff]
    %v6301 = vld [vmem:[#allocation3 + $0x930] sm:$0xff]
    %v6302 = vld [vmem:[#allocation3 + $0x938] sm:$0xff]
    %v6303 = vld [vmem:[#allocation3 + $0x940] sm:$0xff]
    %v6304 = vld [vmem:[#allocation3 + $0x948] sm:$0xff]
    %v6305 = vld [vmem:[#allocation3 + $0x950] sm:$0xff]
    %v6306 = vld [vmem:[#allocation3 + $0x958] sm:$0xff]
    %v6307 = vld [vmem:[#allocation3 + $0x960] sm:$0xff]
    %v6308 = vld [vmem:[#allocation3 + $0x968] sm:$0xff]
    %v6309 = vld [vmem:[#allocation3 + $0x970] sm:$0xff]
    %v6310 = vld [vmem:[#allocation3 + $0x978] sm:$0xff]
    %v6311 = vld [vmem:[#allocation3 + $0x980] sm:$0xff]
    %v6312 = vld [vmem:[#allocation3 + $0x988] sm:$0xff]
    %v6313 = vld [vmem:[#allocation3 + $0x990] sm:$0xff]
    %v6314 = vld [vmem:[#allocation3 + $0x998] sm:$0xff]
    %v6315 = vld [vmem:[#allocation3 + $0x9a0] sm:$0xff]
    %v6316 = vld [vmem:[#allocation3 + $0x9a8] sm:$0xff]
    %v6317 = vld [vmem:[#allocation3 + $0x9b0] sm:$0xff]
    %v6318 = vld [vmem:[#allocation3 + $0x9b8] sm:$0xff]
    %v6319 = vld [vmem:[#allocation3 + $0x9c0] sm:$0xff]
    %v6320 = vld [vmem:[#allocation3 + $0x9c8] sm:$0xff]
    %v6321 = vld [vmem:[#allocation3 + $0x9d0] sm:$0xff]
    %v6322 = vld [vmem:[#allocation3 + $0x9d8] sm:$0xff]
    %v6323 = vld [vmem:[#allocation3 + $0x9e0] sm:$0xff]
    %v6324 = vld [vmem:[#allocation3 + $0x9e8] sm:$0xff]
    %v6325 = vld [vmem:[#allocation3 + $0x9f0] sm:$0xff]
    %v6326 = vld [vmem:[#allocation3 + $0x9f8] sm:$0xff]
    %v6327 = vld [vmem:[#allocation3 + $0xa00] sm:$0xff]
    %v6328 = vld [vmem:[#allocation3 + $0xa08] sm:$0xff]
    %v6329 = vld [vmem:[#allocation3 + $0xa10] sm:$0xff]
    %v6330 = vld [vmem:[#allocation3 + $0xa18] sm:$0xff]
    %v6331 = vld [vmem:[#allocation3 + $0xa20] sm:$0xff]
    %v6332 = vld [vmem:[#allocation3 + $0xa28] sm:$0xff]
    %v6333 = vld [vmem:[#allocation3 + $0xa30] sm:$0xff]
    %v6334 = vld [vmem:[#allocation3 + $0xa38] sm:$0xff]
    %v6335 = vld [vmem:[#allocation3 + $0xa40] sm:$0xff]
    %v6336 = vld [vmem:[#allocation3 + $0xa48] sm:$0xff]
    %v6337 = vld [vmem:[#allocation3 + $0xa50] sm:$0xff]
    %v6338 = vld [vmem:[#allocation3 + $0xa58] sm:$0xff]
    %v6339 = vld [vmem:[#allocation3 + $0xa60] sm:$0xff]
    %v6340 = vld [vmem:[#allocation3 + $0xa68] sm:$0xff]
    %v6341 = vld [vmem:[#allocation3 + $0xa70] sm:$0xff]
    %v6342 = vld [vmem:[#allocation3 + $0xa78] sm:$0xff]
    %v6343 = vld [vmem:[#allocation3 + $0xa80] sm:$0xff]
    %v6344 = vld [vmem:[#allocation3 + $0xa88] sm:$0xff]
    %v6345 = vld [vmem:[#allocation3 + $0xa90] sm:$0xff]
    %v6346 = vld [vmem:[#allocation3 + $0xa98] sm:$0xff]
    %v6347 = vld [vmem:[#allocation3 + $0xaa0] sm:$0xff]
    %v6348 = vld [vmem:[#allocation3 + $0xaa8] sm:$0xff]
    %v6349 = vld [vmem:[#allocation3 + $0xab0] sm:$0xff]
    %v6350 = vld [vmem:[#allocation3 + $0xab8] sm:$0xff]
    %v6351 = vld [vmem:[#allocation3 + $0xac0] sm:$0xff]
    %v6352 = vld [vmem:[#allocation3 + $0xac8] sm:$0xff]
    %v6353 = vld [vmem:[#allocation3 + $0xad0] sm:$0xff]
    %v6354 = vld [vmem:[#allocation3 + $0xad8] sm:$0xff]
    %v6355 = vld [vmem:[#allocation3 + $0xae0] sm:$0xff]
    %v6356 = vld [vmem:[#allocation3 + $0xae8] sm:$0xff]
    %v6357 = vld [vmem:[#allocation3 + $0xaf0] sm:$0xff]
    %v6358 = vld [vmem:[#allocation3 + $0xaf8] sm:$0xff]
    %v6359 = vld [vmem:[#allocation3 + $0xb00] sm:$0xff]
    %v6360 = vld [vmem:[#allocation3 + $0xb08] sm:$0xff]
    %v6361 = vld [vmem:[#allocation3 + $0xb10] sm:$0xff]
    %v6362 = vld [vmem:[#allocation3 + $0xb18] sm:$0xff]
    %v6363 = vld [vmem:[#allocation3 + $0xb20] sm:$0xff]
    %v6364 = vld [vmem:[#allocation3 + $0xb28] sm:$0xff]
    %v6365 = vld [vmem:[#allocation3 + $0xb30] sm:$0xff]
    %v6366 = vld [vmem:[#allocation3 + $0xb38] sm:$0xff]
    %v6367 = vld [vmem:[#allocation3 + $0xb40] sm:$0xff]
    %v6368 = vld [vmem:[#allocation3 + $0xb48] sm:$0xff]
    %v6369 = vld [vmem:[#allocation3 + $0xb50] sm:$0xff]
    %v6370 = vld [vmem:[#allocation3 + $0xb58] sm:$0xff]
    %v6371 = vld [vmem:[#allocation3 + $0xb60] sm:$0xff]
    %v6372 = vld [vmem:[#allocation3 + $0xb68] sm:$0xff]
    %v6373 = vld [vmem:[#allocation3 + $0xb70] sm:$0xff]
    %v6374 = vld [vmem:[#allocation3 + $0xb78] sm:$0xff]
    %v6375 = vld [vmem:[#allocation3 + $0xb80] sm:$0xff]
    %v6376 = vld [vmem:[#allocation3 + $0xb88] sm:$0xff]
    %v6377 = vld [vmem:[#allocation3 + $0xb90] sm:$0xff]
    %v6378 = vld [vmem:[#allocation3 + $0xb98] sm:$0xff]
    %v6379 = vld [vmem:[#allocation3 + $0xba0] sm:$0xff]
    %v6380 = vld [vmem:[#allocation3 + $0xba8] sm:$0xff]
    %v6381 = vld [vmem:[#allocation3 + $0xbb0] sm:$0xff]
    %v6382 = vld [vmem:[#allocation3 + $0xbb8] sm:$0xff]
    %v6383 = vld [vmem:[#allocation3 + $0xbc0] sm:$0xff]
    %v6384 = vld [vmem:[#allocation3 + $0xbc8] sm:$0xff]
    %v6385 = vld [vmem:[#allocation3 + $0xbd0] sm:$0xff]
    %v6386 = vld [vmem:[#allocation3 + $0xbd8] sm:$0xff]
    %v6387 = vld [vmem:[#allocation3 + $0xbe0] sm:$0xff]
    %v6388 = vld [vmem:[#allocation3 + $0xbe8] sm:$0xff]
    %v6389 = vld [vmem:[#allocation3 + $0xbf0] sm:$0xff]
    %v6390 = vld [vmem:[#allocation3 + $0xbf8] sm:$0xff]
    %v6391 = vld [vmem:[#allocation3 + $0xc00] sm:$0xff]
    %v6392 = vld [vmem:[#allocation3 + $0xc08] sm:$0xff]
    %v6393 = vld [vmem:[#allocation3 + $0xc10] sm:$0xff]
    %v6394 = vld [vmem:[#allocation3 + $0xc18] sm:$0xff]
    %v6395 = vld [vmem:[#allocation3 + $0xc20] sm:$0xff]
    %v6396 = vld [vmem:[#allocation3 + $0xc28] sm:$0xff]
    %v6397 = vld [vmem:[#allocation3 + $0xc30] sm:$0xff]
    %v6398 = vld [vmem:[#allocation3 + $0xc38] sm:$0xff]
    %v6399 = vld [vmem:[#allocation3 + $0xc40] sm:$0xff]
    %v6400 = vld [vmem:[#allocation3 + $0xc48] sm:$0xff]
    %v6401 = vld [vmem:[#allocation3 + $0xc50] sm:$0xff]
    %v6402 = vld [vmem:[#allocation3 + $0xc58] sm:$0xff]
    %v6403 = vld [vmem:[#allocation3 + $0xc60] sm:$0xff]
    %v6404 = vld [vmem:[#allocation3 + $0xc68] sm:$0xff]
    %v6405 = vld [vmem:[#allocation3 + $0xc70] sm:$0xff]
    %v6406 = vld [vmem:[#allocation3 + $0xc78] sm:$0xff]
    %v6407 = vld [vmem:[#allocation3 + $0xc80] sm:$0xff]
    %v6408 = vld [vmem:[#allocation3 + $0xc88] sm:$0xff]
    %v6409 = vld [vmem:[#allocation3 + $0xc90] sm:$0xff]
    %v6410 = vld [vmem:[#allocation3 + $0xc98] sm:$0xff]
    %v6411 = vld [vmem:[#allocation3 + $0xca0] sm:$0xff]
    %v6412 = vld [vmem:[#allocation3 + $0xca8] sm:$0xff]
    %v6413 = vld [vmem:[#allocation3 + $0xcb0] sm:$0xff]
    %v6414 = vld [vmem:[#allocation3 + $0xcb8] sm:$0xff]
    %v6415 = vld [vmem:[#allocation3 + $0xcc0] sm:$0xff]
    %v6416 = vld [vmem:[#allocation3 + $0xcc8] sm:$0xff]
    %v6417 = vld [vmem:[#allocation3 + $0xcd0] sm:$0xff]
    %v6418 = vld [vmem:[#allocation3 + $0xcd8] sm:$0xff]
    %v6419 = vld [vmem:[#allocation3 + $0xce0] sm:$0xff]
    %v6420 = vld [vmem:[#allocation3 + $0xce8] sm:$0xff]
    %v6421 = vld [vmem:[#allocation3 + $0xcf0] sm:$0xff]
    %v6422 = vld [vmem:[#allocation3 + $0xcf8] sm:$0xff]
    %v6423 = vld [vmem:[#allocation3 + $0xd00] sm:$0xff]
    %v6424 = vld [vmem:[#allocation3 + $0xd08] sm:$0xff]
    %v6425 = vld [vmem:[#allocation3 + $0xd10] sm:$0xff]
    %v6426 = vld [vmem:[#allocation3 + $0xd18] sm:$0xff]
    %v6427 = vld [vmem:[#allocation3 + $0xd20] sm:$0xff]
    %v6428 = vld [vmem:[#allocation3 + $0xd28] sm:$0xff]
    %v6429 = vld [vmem:[#allocation3 + $0xd30] sm:$0xff]
    %v6430 = vld [vmem:[#allocation3 + $0xd38] sm:$0xff]
    %v6431 = vld [vmem:[#allocation3 + $0xd40] sm:$0xff]
    %v6432 = vld [vmem:[#allocation3 + $0xd48] sm:$0xff]
    %v6433 = vld [vmem:[#allocation3 + $0xd50] sm:$0xff]
    %v6434 = vld [vmem:[#allocation3 + $0xd58] sm:$0xff]
    %v6435 = vld [vmem:[#allocation3 + $0xd60] sm:$0xff]
    %v6436 = vld [vmem:[#allocation3 + $0xd68] sm:$0xff]
    %v6437 = vld [vmem:[#allocation3 + $0xd70] sm:$0xff]
    %v6438 = vld [vmem:[#allocation3 + $0xd78] sm:$0xff]
    %v6439 = vld [vmem:[#allocation3 + $0xd80] sm:$0xff]
    %v6440 = vld [vmem:[#allocation3 + $0xd88] sm:$0xff]
    %v6441 = vld [vmem:[#allocation3 + $0xd90] sm:$0xff]
    %v6442 = vld [vmem:[#allocation3 + $0xd98] sm:$0xff]
    %v6443 = vld [vmem:[#allocation3 + $0xda0] sm:$0xff]
    %v6444 = vld [vmem:[#allocation3 + $0xda8] sm:$0xff]
    %v6445 = vld [vmem:[#allocation3 + $0xdb0] sm:$0xff]
    %v6446 = vld [vmem:[#allocation3 + $0xdb8] sm:$0xff]
    %v6447 = vld [vmem:[#allocation3 + $0xdc0] sm:$0xff]
    %v6448 = vld [vmem:[#allocation3 + $0xdc8] sm:$0xff]
    %v6449 = vld [vmem:[#allocation3 + $0xdd0] sm:$0xff]
    %v6450 = vld [vmem:[#allocation3 + $0xdd8] sm:$0xff]
    %v6451 = vld [vmem:[#allocation3 + $0xde0] sm:$0xff]
    %v6452 = vld [vmem:[#allocation3 + $0xde8] sm:$0xff]
    %v6453 = vld [vmem:[#allocation3 + $0xdf0] sm:$0xff]
    %v6454 = vld [vmem:[#allocation3 + $0xdf8] sm:$0xff]
    %v6455 = vld [vmem:[#allocation3 + $0xe00] sm:$0xff]
    %v6456 = vld [vmem:[#allocation3 + $0xe08] sm:$0xff]
    %v6457 = vld [vmem:[#allocation3 + $0xe10] sm:$0xff]
    %v6458 = vld [vmem:[#allocation3 + $0xe18] sm:$0xff]
    %v6459 = vld [vmem:[#allocation3 + $0xe20] sm:$0xff]
    %v6460 = vld [vmem:[#allocation3 + $0xe28] sm:$0xff]
    %v6461 = vld [vmem:[#allocation3 + $0xe30] sm:$0xff]
    %v6462 = vld [vmem:[#allocation3 + $0xe38] sm:$0xff]
    %v6463 = vld [vmem:[#allocation3 + $0xe40] sm:$0xff]
    %v6464 = vld [vmem:[#allocation3 + $0xe48] sm:$0xff]
    %v6465 = vld [vmem:[#allocation3 + $0xe50] sm:$0xff]
    %v6466 = vld [vmem:[#allocation3 + $0xe58] sm:$0xff]
    %v6467 = vld [vmem:[#allocation3 + $0xe60] sm:$0xff]
    %v6468 = vld [vmem:[#allocation3 + $0xe68] sm:$0xff]
    %v6469 = vld [vmem:[#allocation3 + $0xe70] sm:$0xff]
    %v6470 = vld [vmem:[#allocation3 + $0xe78] sm:$0xff]
    %v6471 = vld [vmem:[#allocation3 + $0xe80] sm:$0xff]
    %v6472 = vld [vmem:[#allocation3 + $0xe88] sm:$0xff]
    %v6473 = vld [vmem:[#allocation3 + $0xe90] sm:$0xff]
    %v6474 = vld [vmem:[#allocation3 + $0xe98] sm:$0xff]
    %v6475 = vld [vmem:[#allocation3 + $0xea0] sm:$0xff]
    %v6476 = vld [vmem:[#allocation3 + $0xea8] sm:$0xff]
    %v6477 = vld [vmem:[#allocation3 + $0xeb0] sm:$0xff]
    %v6478 = vld [vmem:[#allocation3 + $0xeb8] sm:$0xff]
    %v6479 = vld [vmem:[#allocation3 + $0xec0] sm:$0xff]
    %v6480 = vld [vmem:[#allocation3 + $0xec8] sm:$0xff]
    %v6481 = vld [vmem:[#allocation3 + $0xed0] sm:$0xff]
    %v6482 = vld [vmem:[#allocation3 + $0xed8] sm:$0xff]
    %v6483 = vld [vmem:[#allocation3 + $0xee0] sm:$0xff]
    %v6484 = vld [vmem:[#allocation3 + $0xee8] sm:$0xff]
    %v6485 = vld [vmem:[#allocation3 + $0xef0] sm:$0xff]
    %v6486 = vld [vmem:[#allocation3 + $0xef8] sm:$0xff]
    %v6487 = vld [vmem:[#allocation3 + $0xf00] sm:$0xff]
    %v6488 = vld [vmem:[#allocation3 + $0xf08] sm:$0xff]
    %v6489 = vld [vmem:[#allocation3 + $0xf10] sm:$0xff]
    %v6490 = vld [vmem:[#allocation3 + $0xf18] sm:$0xff]
    %v6491 = vld [vmem:[#allocation3 + $0xf20] sm:$0xff]
    %v6492 = vld [vmem:[#allocation3 + $0xf28] sm:$0xff]
    %v6493 = vld [vmem:[#allocation3 + $0xf30] sm:$0xff]
    %v6494 = vld [vmem:[#allocation3 + $0xf38] sm:$0xff]
    %v6495 = vld [vmem:[#allocation3 + $0xf40] sm:$0xff]
    %v6496 = vld [vmem:[#allocation3 + $0xf48] sm:$0xff]
    %v6497 = vld [vmem:[#allocation3 + $0xf50] sm:$0xff]
    %v6498 = vld [vmem:[#allocation3 + $0xf58] sm:$0xff]
    %v6499 = vld [vmem:[#allocation3 + $0xf60] sm:$0xff]
    %v6500 = vld [vmem:[#allocation3 + $0xf68] sm:$0xff]
    %v6501 = vld [vmem:[#allocation3 + $0xf70] sm:$0xff]
    %v6502 = vld [vmem:[#allocation3 + $0xf78] sm:$0xff]
    %v6503 = vld [vmem:[#allocation3 + $0xf80] sm:$0xff]
    %v6504 = vld [vmem:[#allocation3 + $0xf88] sm:$0xff]
    %v6505 = vld [vmem:[#allocation3 + $0xf90] sm:$0xff]
    %v6506 = vld [vmem:[#allocation3 + $0xf98] sm:$0xff]
    %v6507 = vld [vmem:[#allocation3 + $0xfa0] sm:$0xff]
    %v6508 = vld [vmem:[#allocation3 + $0xfa8] sm:$0xff]
    %v6509 = vld [vmem:[#allocation3 + $0xfb0] sm:$0xff]
    %v6510 = vld [vmem:[#allocation3 + $0xfb8] sm:$0xff]
    %v6511 = vld [vmem:[#allocation3 + $0xfc0] sm:$0xff]
    %v6512 = vld [vmem:[#allocation3 + $0xfc8] sm:$0xff]
    %v6513 = vld [vmem:[#allocation3 + $0xfd0] sm:$0xff]
    %v6514 = vld [vmem:[#allocation3 + $0xfd8] sm:$0xff]
    %v6515 = vld [vmem:[#allocation3 + $0xfe0] sm:$0xff]
    %v6516 = vld [vmem:[#allocation3 + $0xfe8] sm:$0xff]
    %v6517 = vld [vmem:[#allocation3 + $0xff0] sm:$0xff]
    %v6518 = vld [vmem:[#allocation3 + $0xff8] sm:$0xff]
    %v6519 = vld [vmem:[#allocation3 + $0x1000] sm:$0xff]
    %v6520 = vld [vmem:[#allocation3 + $0x1008] sm:$0xff]
    %v6521 = vld [vmem:[#allocation3 + $0x1010] sm:$0xff]
    %v6522 = vld [vmem:[#allocation3 + $0x1018] sm:$0xff]
    %v6523 = vld [vmem:[#allocation3 + $0x1020] sm:$0xff]
    %v6524 = vld [vmem:[#allocation3 + $0x1028] sm:$0xff]
    %v6525 = vld [vmem:[#allocation3 + $0x1030] sm:$0xff]
    %v6526 = vld [vmem:[#allocation3 + $0x1038] sm:$0xff]
    %v6527 = vld [vmem:[#allocation3 + $0x1040] sm:$0xff]
    %v6528 = vld [vmem:[#allocation3 + $0x1048] sm:$0xff]
    %v6529 = vld [vmem:[#allocation3 + $0x1050] sm:$0xff]
    %v6530 = vld [vmem:[#allocation3 + $0x1058] sm:$0xff]
    %v6531 = vld [vmem:[#allocation3 + $0x1060] sm:$0xff]
    %v6532 = vld [vmem:[#allocation3 + $0x1068] sm:$0xff]
    %v6533 = vld [vmem:[#allocation3 + $0x1070] sm:$0xff]
    %v6534 = vld [vmem:[#allocation3 + $0x1078] sm:$0xff]
    %v6535 = vld [vmem:[#allocation3 + $0x1080] sm:$0xff]
    %v6536 = vld [vmem:[#allocation3 + $0x1088] sm:$0xff]
    %v6537 = vld [vmem:[#allocation3 + $0x1090] sm:$0xff]
    %v6538 = vld [vmem:[#allocation3 + $0x1098] sm:$0xff]
    %v6539 = vld [vmem:[#allocation3 + $0x10a0] sm:$0xff]
    %v6540 = vld [vmem:[#allocation3 + $0x10a8] sm:$0xff]
    %v6541 = vld [vmem:[#allocation3 + $0x10b0] sm:$0xff]
    %v6542 = vld [vmem:[#allocation3 + $0x10b8] sm:$0xff]
    %v6543 = vld [vmem:[#allocation3 + $0x10c0] sm:$0xff]
    %v6544 = vld [vmem:[#allocation3 + $0x10c8] sm:$0xff]
    %v6545 = vld [vmem:[#allocation3 + $0x10d0] sm:$0xff]
    %v6546 = vld [vmem:[#allocation3 + $0x10d8] sm:$0xff]
    %v6547 = vld [vmem:[#allocation3 + $0x10e0] sm:$0xff]
    %v6548 = vld [vmem:[#allocation3 + $0x10e8] sm:$0xff]
    %v6549 = vld [vmem:[#allocation3 + $0x10f0] sm:$0xff]
    %v6550 = vld [vmem:[#allocation3 + $0x10f8] sm:$0xff]
    %v6551 = vld [vmem:[#allocation3 + $0x1100] sm:$0xff]
    %v6552 = vld [vmem:[#allocation3 + $0x1108] sm:$0xff]
    %v6553 = vld [vmem:[#allocation3 + $0x1110] sm:$0xff]
    %v6554 = vld [vmem:[#allocation3 + $0x1118] sm:$0xff]
    %v6555 = vld [vmem:[#allocation3 + $0x1120] sm:$0xff]
    %v6556 = vld [vmem:[#allocation3 + $0x1128] sm:$0xff]
    %v6557 = vld [vmem:[#allocation3 + $0x1130] sm:$0xff]
    %v6558 = vld [vmem:[#allocation3 + $0x1138] sm:$0xff]
    %v6559 = vld [vmem:[#allocation3 + $0x1140] sm:$0xff]
    %v6560 = vld [vmem:[#allocation3 + $0x1148] sm:$0xff]
    %v6561 = vld [vmem:[#allocation3 + $0x1150] sm:$0xff]
    %v6562 = vld [vmem:[#allocation3 + $0x1158] sm:$0xff]
    %v6563 = vld [vmem:[#allocation3 + $0x1160] sm:$0xff]
    %v6564 = vld [vmem:[#allocation3 + $0x1168] sm:$0xff]
    %v6565 = vld [vmem:[#allocation3 + $0x1170] sm:$0xff]
    %v6566 = vld [vmem:[#allocation3 + $0x1178] sm:$0xff]
    %v6567 = vld [vmem:[#allocation3 + $0x1180] sm:$0xff]
    %v6568 = vld [vmem:[#allocation3 + $0x1188] sm:$0xff]
    %v6569 = vld [vmem:[#allocation3 + $0x1190] sm:$0xff]
    %v6570 = vld [vmem:[#allocation3 + $0x1198] sm:$0xff]
    %v6571 = vld [vmem:[#allocation3 + $0x11a0] sm:$0xff]
    %v6572 = vld [vmem:[#allocation3 + $0x11a8] sm:$0xff]
    %v6573 = vld [vmem:[#allocation3 + $0x11b0] sm:$0xff]
    %v6574 = vld [vmem:[%s4] sm:$0xff]
    %6576 = vset.pattern.permute.xlu0 0
    %6577 = vperm.xlu0 %6576, %v6574
    %v6578 = vpop.permute.xlu0 %6577
    %vm6580 = vcmask 719872
    %v6582 = vsel %vm6580, %v6006, 0
    %6584 = vmatprep.subr.mxu0 %v6008
    %6585 = vmatpush1.msra.mxu0 %v6007
    %6586 = vmatprep.subr.mxu0 %v6029
    %6587 = vmatpush1.msra.mxu0 %v6028
    %6588 = vmatprep.subr.mxu0 %v6050
    %6589 = vmatpush1.msra.mxu0 %v6049
    %6590 = vmatprep.subr.mxu0 %v6071
    %6591 = vmatpush1.msra.mxu0 %v6070
    %6592 = vmatprep.subr.mxu0 %v6092
    %6593 = vmatpush1.msra.mxu0 %v6091
    %6594 = vmatprep.subr.mxu0 %v6113
    %6595 = vmatpush1.msra.mxu0 %v6112
    %6596 = vmatprep.subr.mxu0 %v6134
    %6597 = vmatpush1.msra.mxu0 %v6133
    %6598 = vmatprep.subr.mxu0 %v6155
    %6599 = vmatpush1.msra.mxu0 %v6154
    %6600 = vmatprep.subr.mxu0 %v6176
    %6601 = vmatpush1.msra.mxu0 %v6175
    %6602 = vmatprep.subr.mxu0 %v6197
    %6603 = vmatpush1.msra.mxu0 %v6196
    %6604 = vmatprep.subr.mxu0 %v6218
    %6605 = vmatpush1.msra.mxu0 %v6217
    %6606 = vmatprep.subr.mxu0 %v6239
    %6607 = vmatpush1.msra.mxu0 %v6238
    %6608 = vmatprep.subr.mxu0 %v6260
    %6609 = vmatpush1.msra.mxu0 %v6259
    %6610 = vmatprep.subr.mxu0 %v6281
    %6611 = vmatpush1.msra.mxu0 %v6280
    %6612 = vmatprep.subr.mxu0 %v6302
    %6613 = vmatpush1.msra.mxu0 %v6301
    %6614 = vmatprep.subr.mxu0 %v6323
    %6615 = vmatpush1.msra.mxu0 %v6322
    %6616 = vmatprep.subr.mxu0 %v6344
    %6617 = vmatpush1.msra.mxu0 %v6343
    %6618 = vmatprep.subr.mxu0 %v6365
    %6619 = vmatpush1.msra.mxu0 %v6364
    %6620 = vmatprep.subr.mxu0 %v6386
    %6621 = vmatpush1.msra.mxu0 %v6385
    %6622 = vmatprep.subr.mxu0 %v6407
    %6623 = vmatpush1.msra.mxu0 %v6406
    %6624 = vmatprep.subr.mxu0 %v6428
    %6625 = vmatpush1.msra.mxu0 %v6427
    %6626 = vmatprep.subr.mxu0 %v6449
    %6627 = vmatpush1.msra.mxu0 %v6448
    %6628 = vmatprep.subr.mxu0 %v6470
    %6629 = vmatpush1.msra.mxu0 %v6469
    %6630 = vmatprep.subr.mxu0 %v6491
    %6631 = vmatpush1.msra.mxu0 %v6490
    %6632 = vmatprep.subr.mxu0 %v6512
    %6633 = vmatpush1.msra.mxu0 %v6511
    %6634 = vmatprep.subr.mxu0 %v6533
    %6635 = vmatpush1.msra.mxu0 %v6532
    %6636 = vmatprep.subr.mxu0 %v6554
    %6637 = vmatpush1.msra.mxu0 %v6553
    %6638 = vmatprep.subr.mxu0 0.0
    %6639 = vmatpush1.msra.mxu0 0.0
    %6640 = vmatprep.subr.mxu0 0.0
    %6641 = vmatpush1.msra.mxu0 0.0
    %6642 = vmatprep.subr.mxu0 0.0
    %6643 = vmatpush1.msra.mxu0 0.0
    %6644 = vmatprep.subr.mxu0 0.0
    %6645 = vmatpush1.msra.mxu0 0.0
    %6646 = vmatprep.subr.mxu0 0.0
    %6647 = vmatpush1.msra.mxu0 0.0
    %6648 = vmatprep.mubr.f32.mxu0 %v6582
    %6649 = vmatmul.mubr.f32.gmra.mrb[0].mxu0 %v6005
    %v6650 = vpop.f32.mrb[0].mxu0
    %v6651 = vadd.f32 %v6578, %v6650
    %v6652 = vpop.f32.mrb[0].mxu0
    %v6653 = vadd.f32 %v6578, %v6652
    %6654 = vdwg.mxu0
    %6655 = vmatprep.subr.mxu0 %v6010
    %6656 = vmatpush1.msra.mxu0 %v6009
    %6657 = vmatprep.subr.mxu0 %v6031
    %6658 = vmatpush1.msra.mxu0 %v6030
    %6659 = vmatprep.subr.mxu0 %v6052
    %6660 = vmatpush1.msra.mxu0 %v6051
    %6661 = vmatprep.subr.mxu0 %v6073
    %6662 = vmatpush1.msra.mxu0 %v6072
    %6663 = vmatprep.subr.mxu0 %v6094
    %6664 = vmatpush1.msra.mxu0 %v6093
    %6665 = vmatprep.subr.mxu0 %v6115
    %6666 = vmatpush1.msra.mxu0 %v6114
    %6667 = vmatprep.subr.mxu0 %v6136
    %6668 = vmatpush1.msra.mxu0 %v6135
    %6669 = vmatprep.subr.mxu0 %v6157
    %6670 = vmatpush1.msra.mxu0 %v6156
    %6671 = vmatprep.subr.mxu0 %v6178
    %6672 = vmatpush1.msra.mxu0 %v6177
    %6673 = vmatprep.subr.mxu0 %v6199
    %6674 = vmatpush1.msra.mxu0 %v6198
    %6675 = vmatprep.subr.mxu0 %v6220
    %6676 = vmatpush1.msra.mxu0 %v6219
    %6677 = vmatprep.subr.mxu0 %v6241
    %6678 = vmatpush1.msra.mxu0 %v6240
    %6679 = vmatprep.subr.mxu0 %v6262
    %6680 = vmatpush1.msra.mxu0 %v6261
    %6681 = vmatprep.subr.mxu0 %v6283
    %6682 = vmatpush1.msra.mxu0 %v6282
    %6683 = vmatprep.subr.mxu0 %v6304
    %6684 = vmatpush1.msra.mxu0 %v6303
    %6685 = vmatprep.subr.mxu0 %v6325
    %6686 = vmatpush1.msra.mxu0 %v6324
    %6687 = vmatprep.subr.mxu0 %v6346
    %6688 = vmatpush1.msra.mxu0 %v6345
    %6689 = vmatprep.subr.mxu0 %v6367
    %6690 = vmatpush1.msra.mxu0 %v6366
    %6691 = vmatprep.subr.mxu0 %v6388
    %6692 = vmatpush1.msra.mxu0 %v6387
    %6693 = vmatprep.subr.mxu0 %v6409
    %6694 = vmatpush1.msra.mxu0 %v6408
    %6695 = vmatprep.subr.mxu0 %v6430
    %6696 = vmatpush1.msra.mxu0 %v6429
    %6697 = vmatprep.subr.mxu0 %v6451
    %6698 = vmatpush1.msra.mxu0 %v6450
    %6699 = vmatprep.subr.mxu0 %v6472
    %6700 = vmatpush1.msra.mxu0 %v6471
    %6701 = vmatprep.subr.mxu0 %v6493
    %6702 = vmatpush1.msra.mxu0 %v6492
    %6703 = vmatprep.subr.mxu0 %v6514
    %6704 = vmatpush1.msra.mxu0 %v6513
    %6705 = vmatprep.subr.mxu0 %v6535
    %6706 = vmatpush1.msra.mxu0 %v6534
    %6707 = vmatprep.subr.mxu0 %v6556
    %6708 = vmatpush1.msra.mxu0 %v6555
    %6709 = vmatprep.subr.mxu0 0.0
    %6710 = vmatpush1.msra.mxu0 0.0
    %6711 = vmatprep.subr.mxu0 0.0
    %6712 = vmatpush1.msra.mxu0 0.0
    %6713 = vmatprep.subr.mxu0 0.0
    %6714 = vmatpush1.msra.mxu0 0.0
    %6715 = vmatprep.subr.mxu0 0.0
    %6716 = vmatpush1.msra.mxu0 0.0
    %6717 = vmatprep.subr.mxu0 0.0
    %6718 = vmatpush1.msra.mxu0 0.0
    %6719 = vmatprep.mubr.f32.mxu0 %v6582
    %6720 = vmatmul.mubr.f32.gmra.mrb[0].mxu0 %v6005
    %v6721 = vpop.f32.mrb[0].mxu0
    %v6722 = vadd.f32 %v6578, %v6721
    %v6723 = vpop.f32.mrb[0].mxu0
    %v6724 = vadd.f32 %v6578, %v6723
    %6725 = vdwg.mxu0
    %6726 = vmatprep.subr.mxu0 %v6012
    %6727 = vmatpush1.msra.mxu0 %v6011
    %6728 = vmatprep.subr.mxu0 %v6033
    %6729 = vmatpush1.msra.mxu0 %v6032
    %6730 = vmatprep.subr.mxu0 %v6054
    %6731 = vmatpush1.msra.mxu0 %v6053
    %6732 = vmatprep.subr.mxu0 %v6075
    %6733 = vmatpush1.msra.mxu0 %v6074
    %6734 = vmatprep.subr.mxu0 %v6096
    %6735 = vmatpush1.msra.mxu0 %v6095
    %6736 = vmatprep.subr.mxu0 %v6117
    %6737 = vmatpush1.msra.mxu0 %v6116
    %6738 = vmatprep.subr.mxu0 %v6138
    %6739 = vmatpush1.msra.mxu0 %v6137
    %6740 = vmatprep.subr.mxu0 %v6159
    %6741 = vmatpush1.msra.mxu0 %v6158
    %6742 = vmatprep.subr.mxu0 %v6180
    %6743 = vmatpush1.msra.mxu0 %v6179
    %6744 = vmatprep.subr.mxu0 %v6201
    %6745 = vmatpush1.msra.mxu0 %v6200
    %6746 = vmatprep.subr.mxu0 %v6222
    %6747 = vmatpush1.msra.mxu0 %v6221
    %6748 = vmatprep.subr.mxu0 %v6243
    %6749 = vmatpush1.msra.mxu0 %v6242
    %6750 = vmatprep.subr.mxu0 %v6264
    %6751 = vmatpush1.msra.mxu0 %v6263
    %6752 = vmatprep.subr.mxu0 %v6285
    %6753 = vmatpush1.msra.mxu0 %v6284
    %6754 = vmatprep.subr.mxu0 %v6306
    %6755 = vmatpush1.msra.mxu0 %v6305
    %6756 = vmatprep.subr.mxu0 %v6327
    %6757 = vmatpush1.msra.mxu0 %v6326
    %6758 = vmatprep.subr.mxu0 %v6348
    %6759 = vmatpush1.msra.mxu0 %v6347
    %6760 = vmatprep.subr.mxu0 %v6369
    %6761 = vmatpush1.msra.mxu0 %v6368
    %6762 = vmatprep.subr.mxu0 %v6390
    %6763 = vmatpush1.msra.mxu0 %v6389
    %6764 = vmatprep.subr.mxu0 %v6411
    %6765 = vmatpush1.msra.mxu0 %v6410
    %6766 = vmatprep.subr.mxu0 %v6432
    %6767 = vmatpush1.msra.mxu0 %v6431
    %6768 = vmatprep.subr.mxu0 %v6453
    %6769 = vmatpush1.msra.mxu0 %v6452
    %6770 = vmatprep.subr.mxu0 %v6474
    %6771 = vmatpush1.msra.mxu0 %v6473
    %6772 = vmatprep.subr.mxu0 %v6495
    %6773 = vmatpush1.msra.mxu0 %v6494
    %6774 = vmatprep.subr.mxu0 %v6516
    %6775 = vmatpush1.msra.mxu0 %v6515
    %6776 = vmatprep.subr.mxu0 %v6537
    %6777 = vmatpush1.msra.mxu0 %v6536
    %6778 = vmatprep.subr.mxu0 %v6558
    %6779 = vmatpush1.msra.mxu0 %v6557
    %6780 = vmatprep.subr.mxu0 0.0
    %6781 = vmatpush1.msra.mxu0 0.0
    %6782 = vmatprep.subr.mxu0 0.0
    %6783 = vmatpush1.msra.mxu0 0.0
    %6784 = vmatprep.subr.mxu0 0.0
    %6785 = vmatpush1.msra.mxu0 0.0
    %6786 = vmatprep.subr.mxu0 0.0
    %6787 = vmatpush1.msra.mxu0 0.0
    %6788 = vmatprep.subr.mxu0 0.0
    %6789 = vmatpush1.msra.mxu0 0.0
    %6790 = vmatprep.mubr.f32.mxu0 %v6582
    %6791 = vmatmul.mubr.f32.gmra.mrb[0].mxu0 %v6005
    %v6792 = vpop.f32.mrb[0].mxu0
    %v6793 = vadd.f32 %v6578, %v6792
    %v6794 = vpop.f32.mrb[0].mxu0
    %v6795 = vadd.f32 %v6578, %v6794
    %6796 = vdwg.mxu0
    %6797 = vmatprep.subr.mxu0 %v6014
    %6798 = vmatpush1.msra.mxu0 %v6013
    %6799 = vmatprep.subr.mxu0 %v6035
    %6800 = vmatpush1.msra.mxu0 %v6034
    %6801 = vmatprep.subr.mxu0 %v6056
    %6802 = vmatpush1.msra.mxu0 %v6055
    %6803 = vmatprep.subr.mxu0 %v6077
    %6804 = vmatpush1.msra.mxu0 %v6076
    %6805 = vmatprep.subr.mxu0 %v6098
    %6806 = vmatpush1.msra.mxu0 %v6097
    %6807 = vmatprep.subr.mxu0 %v6119
    %6808 = vmatpush1.msra.mxu0 %v6118
    %6809 = vmatprep.subr.mxu0 %v6140
    %6810 = vmatpush1.msra.mxu0 %v6139
    %6811 = vmatprep.subr.mxu0 %v6161
    %6812 = vmatpush1.msra.mxu0 %v6160
    %6813 = vmatprep.subr.mxu0 %v6182
    %6814 = vmatpush1.msra.mxu0 %v6181
    %6815 = vmatprep.subr.mxu0 %v6203
    %6816 = vmatpush1.msra.mxu0 %v6202
    %6817 = vmatprep.subr.mxu0 %v6224
    %6818 = vmatpush1.msra.mxu0 %v6223
    %6819 = vmatprep.subr.mxu0 %v6245
    %6820 = vmatpush1.msra.mxu0 %v6244
    %6821 = vmatprep.subr.mxu0 %v6266
    %6822 = vmatpush1.msra.mxu0 %v6265
    %6823 = vmatprep.subr.mxu0 %v6287
    %6824 = vmatpush1.msra.mxu0 %v6286
    %6825 = vmatprep.subr.mxu0 %v6308
    %6826 = vmatpush1.msra.mxu0 %v6307
    %6827 = vmatprep.subr.mxu0 %v6329
    %6828 = vmatpush1.msra.mxu0 %v6328
    %6829 = vmatprep.subr.mxu0 %v6350
    %6830 = vmatpush1.msra.mxu0 %v6349
    %6831 = vmatprep.subr.mxu0 %v6371
    %6832 = vmatpush1.msra.mxu0 %v6370
    %6833 = vmatprep.subr.mxu0 %v6392
    %6834 = vmatpush1.msra.mxu0 %v6391
    %6835 = vmatprep.subr.mxu0 %v6413
    %6836 = vmatpush1.msra.mxu0 %v6412
    %6837 = vmatprep.subr.mxu0 %v6434
    %6838 = vmatpush1.msra.mxu0 %v6433
    %6839 = vmatprep.subr.mxu0 %v6455
    %6840 = vmatpush1.msra.mxu0 %v6454
    %6841 = vmatprep.subr.mxu0 %v6476
    %6842 = vmatpush1.msra.mxu0 %v6475
    %6843 = vmatprep.subr.mxu0 %v6497
    %6844 = vmatpush1.msra.mxu0 %v6496
    %6845 = vmatprep.subr.mxu0 %v6518
    %6846 = vmatpush1.msra.mxu0 %v6517
    %6847 = vmatprep.subr.mxu0 %v6539
    %6848 = vmatpush1.msra.mxu0 %v6538
    %6849 = vmatprep.subr.mxu0 %v6560
    %6850 = vmatpush1.msra.mxu0 %v6559
    %6851 = vmatprep.subr.mxu0 0.0
    %6852 = vmatpush1.msra.mxu0 0.0
    %6853 = vmatprep.subr.mxu0 0.0
    %6854 = vmatpush1.msra.mxu0 0.0
    %6855 = vmatprep.subr.mxu0 0.0
    %6856 = vmatpush1.msra.mxu0 0.0
    %6857 = vmatprep.subr.mxu0 0.0
    %6858 = vmatpush1.msra.mxu0 0.0
    %6859 = vmatprep.subr.mxu0 0.0
    %6860 = vmatpush1.msra.mxu0 0.0
    %6861 = vmatprep.mubr.f32.mxu0 %v6582
    %6862 = vmatmul.mubr.f32.gmra.mrb[0].mxu0 %v6005
    %v6863 = vpop.f32.mrb[0].mxu0
    %v6864 = vadd.f32 %v6578, %v6863
    %v6865 = vpop.f32.mrb[0].mxu0
    %v6866 = vadd.f32 %v6578, %v6865
    %6867 = vdwg.mxu0
    %6868 = vmatprep.subr.mxu0 %v6016
    %6869 = vmatpush1.msra.mxu0 %v6015
    %6870 = vmatprep.subr.mxu0 %v6037
    %6871 = vmatpush1.msra.mxu0 %v6036
    %6872 = vmatprep.subr.mxu0 %v6058
    %6873 = vmatpush1.msra.mxu0 %v6057
    %6874 = vmatprep.subr.mxu0 %v6079
    %6875 = vmatpush1.msra.mxu0 %v6078
    %6876 = vmatprep.subr.mxu0 %v6100
    %6877 = vmatpush1.msra.mxu0 %v6099
    %6878 = vmatprep.subr.mxu0 %v6121
    %6879 = vmatpush1.msra.mxu0 %v6120
    %6880 = vmatprep.subr.mxu0 %v6142
    %6881 = vmatpush1.msra.mxu0 %v6141
    %6882 = vmatprep.subr.mxu0 %v6163
    %6883 = vmatpush1.msra.mxu0 %v6162
    %6884 = vmatprep.subr.mxu0 %v6184
    %6885 = vmatpush1.msra.mxu0 %v6183
    %6886 = vmatprep.subr.mxu0 %v6205
    %6887 = vmatpush1.msra.mxu0 %v6204
    %6888 = vmatprep.subr.mxu0 %v6226
    %6889 = vmatpush1.msra.mxu0 %v6225
    %6890 = vmatprep.subr.mxu0 %v6247
    %6891 = vmatpush1.msra.mxu0 %v6246
    %6892 = vmatprep.subr.mxu0 %v6268
    %6893 = vmatpush1.msra.mxu0 %v6267
    %6894 = vmatprep.subr.mxu0 %v6289
    %6895 = vmatpush1.msra.mxu0 %v6288
    %6896 = vmatprep.subr.mxu0 %v6310
    %6897 = vmatpush1.msra.mxu0 %v6309
    %6898 = vmatprep.subr.mxu0 %v6331
    %6899 = vmatpush1.msra.mxu0 %v6330
    %6900 = vmatprep.subr.mxu0 %v6352
    %6901 = vmatpush1.msra.mxu0 %v6351
    %6902 = vmatprep.subr.mxu0 %v6373
    %6903 = vmatpush1.msra.mxu0 %v6372
    %6904 = vmatprep.subr.mxu0 %v6394
    %6905 = vmatpush1.msra.mxu0 %v6393
    %6906 = vmatprep.subr.mxu0 %v6415
    %6907 = vmatpush1.msra.mxu0 %v6414
    %6908 = vmatprep.subr.mxu0 %v6436
    %6909 = vmatpush1.msra.mxu0 %v6435
    %6910 = vmatprep.subr.mxu0 %v6457
    %6911 = vmatpush1.msra.mxu0 %v6456
    %6912 = vmatprep.subr.mxu0 %v6478
    %6913 = vmatpush1.msra.mxu0 %v6477
    %6914 = vmatprep.subr.mxu0 %v6499
    %6915 = vmatpush1.msra.mxu0 %v6498
    %6916 = vmatprep.subr.mxu0 %v6520
    %6917 = vmatpush1.msra.mxu0 %v6519
    %6918 = vmatprep.subr.mxu0 %v6541
    %6919 = vmatpush1.msra.mxu0 %v6540
    %6920 = vmatprep.subr.mxu0 %v6562
    %6921 = vmatpush1.msra.mxu0 %v6561
    %6922 = vmatprep.subr.mxu0 0.0
    %6923 = vmatpush1.msra.mxu0 0.0
    %6924 = vmatprep.subr.mxu0 0.0
    %6925 = vmatpush1.msra.mxu0 0.0
    %6926 = vmatprep.subr.mxu0 0.0
    %6927 = vmatpush1.msra.mxu0 0.0
    %6928 = vmatprep.subr.mxu0 0.0
    %6929 = vmatpush1.msra.mxu0 0.0
    %6930 = vmatprep.subr.mxu0 0.0
    %6931 = vmatpush1.msra.mxu0 0.0
    %6932 = vmatprep.mubr.f32.mxu0 %v6582
    %6933 = vmatmul.mubr.f32.gmra.mrb[0].mxu0 %v6005
    %v6934 = vpop.f32.mrb[0].mxu0
    %v6935 = vadd.f32 %v6578, %v6934
    %v6936 = vpop.f32.mrb[0].mxu0
    %v6937 = vadd.f32 %v6578, %v6936
    %6938 = vdwg.mxu0
    %6939 = vmatprep.subr.mxu0 %v6018
    %6940 = vmatpush1.msra.mxu0 %v6017
    %6941 = vmatprep.subr.mxu0 %v6039
    %6942 = vmatpush1.msra.mxu0 %v6038
    %6943 = vmatprep.subr.mxu0 %v6060
    %6944 = vmatpush1.msra.mxu0 %v6059
    %6945 = vmatprep.subr.mxu0 %v6081
    %6946 = vmatpush1.msra.mxu0 %v6080
    %6947 = vmatprep.subr.mxu0 %v6102
    %6948 = vmatpush1.msra.mxu0 %v6101
    %6949 = vmatprep.subr.mxu0 %v6123
    %6950 = vmatpush1.msra.mxu0 %v6122
    %6951 = vmatprep.subr.mxu0 %v6144
    %6952 = vmatpush1.msra.mxu0 %v6143
    %6953 = vmatprep.subr.mxu0 %v6165
    %6954 = vmatpush1.msra.mxu0 %v6164
    %6955 = vmatprep.subr.mxu0 %v6186
    %6956 = vmatpush1.msra.mxu0 %v6185
    %6957 = vmatprep.subr.mxu0 %v6207
    %6958 = vmatpush1.msra.mxu0 %v6206
    %6959 = vmatprep.subr.mxu0 %v6228
    %6960 = vmatpush1.msra.mxu0 %v6227
    %6961 = vmatprep.subr.mxu0 %v6249
    %6962 = vmatpush1.msra.mxu0 %v6248
    %6963 = vmatprep.subr.mxu0 %v6270
    %6964 = vmatpush1.msra.mxu0 %v6269
    %6965 = vmatprep.subr.mxu0 %v6291
    %6966 = vmatpush1.msra.mxu0 %v6290
    %6967 = vmatprep.subr.mxu0 %v6312
    %6968 = vmatpush1.msra.mxu0 %v6311
    %6969 = vmatprep.subr.mxu0 %v6333
    %6970 = vmatpush1.msra.mxu0 %v6332
    %6971 = vmatprep.subr.mxu0 %v6354
    %6972 = vmatpush1.msra.mxu0 %v6353
    %6973 = vmatprep.subr.mxu0 %v6375
    %6974 = vmatpush1.msra.mxu0 %v6374
    %6975 = vmatprep.subr.mxu0 %v6396
    %6976 = vmatpush1.msra.mxu0 %v6395
    %6977 = vmatprep.subr.mxu0 %v6417
    %6978 = vmatpush1.msra.mxu0 %v6416
    %6979 = vmatprep.subr.mxu0 %v6438
    %6980 = vmatpush1.msra.mxu0 %v6437
    %6981 = vmatprep.subr.mxu0 %v6459
    %6982 = vmatpush1.msra.mxu0 %v6458
    %6983 = vmatprep.subr.mxu0 %v6480
    %6984 = vmatpush1.msra.mxu0 %v6479
    %6985 = vmatprep.subr.mxu0 %v6501
    %6986 = vmatpush1.msra.mxu0 %v6500
    %6987 = vmatprep.subr.mxu0 %v6522
    %6988 = vmatpush1.msra.mxu0 %v6521
    %6989 = vmatprep.subr.mxu0 %v6543
    %6990 = vmatpush1.msra.mxu0 %v6542
    %6991 = vmatprep.subr.mxu0 %v6564
    %6992 = vmatpush1.msra.mxu0 %v6563
    %6993 = vmatprep.subr.mxu0 0.0
    %6994 = vmatpush1.msra.mxu0 0.0
    %6995 = vmatprep.subr.mxu0 0.0
    %6996 = vmatpush1.msra.mxu0 0.0
    %6997 = vmatprep.subr.mxu0 0.0
    %6998 = vmatpush1.msra.mxu0 0.0
    %6999 = vmatprep.subr.mxu0 0.0
    %7000 = vmatpush1.msra.mxu0 0.0
    %7001 = vmatprep.subr.mxu0 0.0
    %7002 = vmatpush1.msra.mxu0 0.0
    %7003 = vmatprep.mubr.f32.mxu0 %v6582
    %7004 = vmatmul.mubr.f32.gmra.mrb[0].mxu0 %v6005
    %v7005 = vpop.f32.mrb[0].mxu0
    %v7006 = vadd.f32 %v6578, %v7005
    %v7007 = vpop.f32.mrb[0].mxu0
    %v7008 = vadd.f32 %v6578, %v7007
    %7009 = vdwg.mxu0
    %7010 = vmatprep.subr.mxu0 %v6020
    %7011 = vmatpush1.msra.mxu0 %v6019
    %7012 = vmatprep.subr.mxu0 %v6041
    %7013 = vmatpush1.msra.mxu0 %v6040
    %7014 = vmatprep.subr.mxu0 %v6062
    %7015 = vmatpush1.msra.mxu0 %v6061
    %7016 = vmatprep.subr.mxu0 %v6083
    %7017 = vmatpush1.msra.mxu0 %v6082
    %7018 = vmatprep.subr.mxu0 %v6104
    %7019 = vmatpush1.msra.mxu0 %v6103
    %7020 = vmatprep.subr.mxu0 %v6125
    %7021 = vmatpush1.msra.mxu0 %v6124
    %7022 = vmatprep.subr.mxu0 %v6146
    %7023 = vmatpush1.msra.mxu0 %v6145
    %7024 = vmatprep.subr.mxu0 %v6167
    %7025 = vmatpush1.msra.mxu0 %v6166
    %7026 = vmatprep.subr.mxu0 %v6188
    %7027 = vmatpush1.msra.mxu0 %v6187
    %7028 = vmatprep.subr.mxu0 %v6209
    %7029 = vmatpush1.msra.mxu0 %v6208
    %7030 = vmatprep.subr.mxu0 %v6230
    %7031 = vmatpush1.msra.mxu0 %v6229
    %7032 = vmatprep.subr.mxu0 %v6251
    %7033 = vmatpush1.msra.mxu0 %v6250
    %7034 = vmatprep.subr.mxu0 %v6272
    %7035 = vmatpush1.msra.mxu0 %v6271
    %7036 = vmatprep.subr.mxu0 %v6293
    %7037 = vmatpush1.msra.mxu0 %v6292
    %7038 = vmatprep.subr.mxu0 %v6314
    %7039 = vmatpush1.msra.mxu0 %v6313
    %7040 = vmatprep.subr.mxu0 %v6335
    %7041 = vmatpush1.msra.mxu0 %v6334
    %7042 = vmatprep.subr.mxu0 %v6356
    %7043 = vmatpush1.msra.mxu0 %v6355
    %7044 = vmatprep.subr.mxu0 %v6377
    %7045 = vmatpush1.msra.mxu0 %v6376
    %7046 = vmatprep.subr.mxu0 %v6398
    %7047 = vmatpush1.msra.mxu0 %v6397
    %7048 = vmatprep.subr.mxu0 %v6419
    %7049 = vmatpush1.msra.mxu0 %v6418
    %7050 = vmatprep.subr.mxu0 %v6440
    %7051 = vmatpush1.msra.mxu0 %v6439
    %7052 = vmatprep.subr.mxu0 %v6461
    %7053 = vmatpush1.msra.mxu0 %v6460
    %7054 = vmatprep.subr.mxu0 %v6482
    %7055 = vmatpush1.msra.mxu0 %v6481
    %7056 = vmatprep.subr.mxu0 %v6503
    %7057 = vmatpush1.msra.mxu0 %v6502
    %7058 = vmatprep.subr.mxu0 %v6524
    %7059 = vmatpush1.msra.mxu0 %v6523
    %7060 = vmatprep.subr.mxu0 %v6545
    %7061 = vmatpush1.msra.mxu0 %v6544
    %7062 = vmatprep.subr.mxu0 %v6566
    %7063 = vmatpush1.msra.mxu0 %v6565
    %7064 = vmatprep.subr.mxu0 0.0
    %7065 = vmatpush1.msra.mxu0 0.0
    %7066 = vmatprep.subr.mxu0 0.0
    %7067 = vmatpush1.msra.mxu0 0.0
    %7068 = vmatprep.subr.mxu0 0.0
    %7069 = vmatpush1.msra.mxu0 0.0
    %7070 = vmatprep.subr.mxu0 0.0
    %7071 = vmatpush1.msra.mxu0 0.0
    %7072 = vmatprep.subr.mxu0 0.0
    %7073 = vmatpush1.msra.mxu0 0.0
    %7074 = vmatprep.mubr.f32.mxu0 %v6582
    %7075 = vmatmul.mubr.f32.gmra.mrb[0].mxu0 %v6005
    %v7076 = vpop.f32.mrb[0].mxu0
    %v7077 = vadd.f32 %v6578, %v7076
    %v7078 = vpop.f32.mrb[0].mxu0
    %v7079 = vadd.f32 %v6578, %v7078
    %7080 = vdwg.mxu0
    %7081 = vmatprep.subr.mxu0 %v6022
    %7082 = vmatpush1.msra.mxu0 %v6021
    %7083 = vmatprep.subr.mxu0 %v6043
    %7084 = vmatpush1.msra.mxu0 %v6042
    %7085 = vmatprep.subr.mxu0 %v6064
    %7086 = vmatpush1.msra.mxu0 %v6063
    %7087 = vmatprep.subr.mxu0 %v6085
    %7088 = vmatpush1.msra.mxu0 %v6084
    %7089 = vmatprep.subr.mxu0 %v6106
    %7090 = vmatpush1.msra.mxu0 %v6105
    %7091 = vmatprep.subr.mxu0 %v6127
    %7092 = vmatpush1.msra.mxu0 %v6126
    %7093 = vmatprep.subr.mxu0 %v6148
    %7094 = vmatpush1.msra.mxu0 %v6147
    %7095 = vmatprep.subr.mxu0 %v6169
    %7096 = vmatpush1.msra.mxu0 %v6168
    %7097 = vmatprep.subr.mxu0 %v6190
    %7098 = vmatpush1.msra.mxu0 %v6189
    %7099 = vmatprep.subr.mxu0 %v6211
    %7100 = vmatpush1.msra.mxu0 %v6210
    %7101 = vmatprep.subr.mxu0 %v6232
    %7102 = vmatpush1.msra.mxu0 %v6231
    %7103 = vmatprep.subr.mxu0 %v6253
    %7104 = vmatpush1.msra.mxu0 %v6252
    %7105 = vmatprep.subr.mxu0 %v6274
    %7106 = vmatpush1.msra.mxu0 %v6273
    %7107 = vmatprep.subr.mxu0 %v6295
    %7108 = vmatpush1.msra.mxu0 %v6294
    %7109 = vmatprep.subr.mxu0 %v6316
    %7110 = vmatpush1.msra.mxu0 %v6315
    %7111 = vmatprep.subr.mxu0 %v6337
    %7112 = vmatpush1.msra.mxu0 %v6336
    %7113 = vmatprep.subr.mxu0 %v6358
    %7114 = vmatpush1.msra.mxu0 %v6357
    %7115 = vmatprep.subr.mxu0 %v6379
    %7116 = vmatpush1.msra.mxu0 %v6378
    %7117 = vmatprep.subr.mxu0 %v6400
    %7118 = vmatpush1.msra.mxu0 %v6399
    %7119 = vmatprep.subr.mxu0 %v6421
    %7120 = vmatpush1.msra.mxu0 %v6420
    %7121 = vmatprep.subr.mxu0 %v6442
    %7122 = vmatpush1.msra.mxu0 %v6441
    %7123 = vmatprep.subr.mxu0 %v6463
    %7124 = vmatpush1.msra.mxu0 %v6462
    %7125 = vmatprep.subr.mxu0 %v6484
    %7126 = vmatpush1.msra.mxu0 %v6483
    %7127 = vmatprep.subr.mxu0 %v6505
    %7128 = vmatpush1.msra.mxu0 %v6504
    %7129 = vmatprep.subr.mxu0 %v6526
    %7130 = vmatpush1.msra.mxu0 %v6525
    %7131 = vmatprep.subr.mxu0 %v6547
    %7132 = vmatpush1.msra.mxu0 %v6546
    %7133 = vmatprep.subr.mxu0 %v6568
    %7134 = vmatpush1.msra.mxu0 %v6567
    %7135 = vmatprep.subr.mxu0 0.0
    %7136 = vmatpush1.msra.mxu0 0.0
    %7137 = vmatprep.subr.mxu0 0.0
    %7138 = vmatpush1.msra.mxu0 0.0
    %7139 = vmatprep.subr.mxu0 0.0
    %7140 = vmatpush1.msra.mxu0 0.0
    %7141 = vmatprep.subr.mxu0 0.0
    %7142 = vmatpush1.msra.mxu0 0.0
    %7143 = vmatprep.subr.mxu0 0.0
    %7144 = vmatpush1.msra.mxu0 0.0
    %7145 = vmatprep.mubr.f32.mxu0 %v6582
    %7146 = vmatmul.mubr.f32.gmra.mrb[0].mxu0 %v6005
    %v7147 = vpop.f32.mrb[0].mxu0
    %v7148 = vadd.f32 %v6578, %v7147
    %v7149 = vpop.f32.mrb[0].mxu0
    %v7150 = vadd.f32 %v6578, %v7149
    %7151 = vdwg.mxu0
    %7152 = vmatprep.subr.mxu0 %v6024
    %7153 = vmatpush1.msra.mxu0 %v6023
    %7154 = vmatprep.subr.mxu0 %v6045
    %7155 = vmatpush1.msra.mxu0 %v6044
    %7156 = vmatprep.subr.mxu0 %v6066
    %7157 = vmatpush1.msra.mxu0 %v6065
    %7158 = vmatprep.subr.mxu0 %v6087
    %7159 = vmatpush1.msra.mxu0 %v6086
    %7160 = vmatprep.subr.mxu0 %v6108
    %7161 = vmatpush1.msra.mxu0 %v6107
    %7162 = vmatprep.subr.mxu0 %v6129
    %7163 = vmatpush1.msra.mxu0 %v6128
    %7164 = vmatprep.subr.mxu0 %v6150
    %7165 = vmatpush1.msra.mxu0 %v6149
    %7166 = vmatprep.subr.mxu0 %v6171
    %7167 = vmatpush1.msra.mxu0 %v6170
    %7168 = vmatprep.subr.mxu0 %v6192
    %7169 = vmatpush1.msra.mxu0 %v6191
    %7170 = vmatprep.subr.mxu0 %v6213
    %7171 = vmatpush1.msra.mxu0 %v6212
    %7172 = vmatprep.subr.mxu0 %v6234
    %7173 = vmatpush1.msra.mxu0 %v6233
    %7174 = vmatprep.subr.mxu0 %v6255
    %7175 = vmatpush1.msra.mxu0 %v6254
    %7176 = vmatprep.subr.mxu0 %v6276
    %7177 = vmatpush1.msra.mxu0 %v6275
    %7178 = vmatprep.subr.mxu0 %v6297
    %7179 = vmatpush1.msra.mxu0 %v6296
    %7180 = vmatprep.subr.mxu0 %v6318
    %7181 = vmatpush1.msra.mxu0 %v6317
    %7182 = vmatprep.subr.mxu0 %v6339
    %7183 = vmatpush1.msra.mxu0 %v6338
    %7184 = vmatprep.subr.mxu0 %v6360
    %7185 = vmatpush1.msra.mxu0 %v6359
    %7186 = vmatprep.subr.mxu0 %v6381
    %7187 = vmatpush1.msra.mxu0 %v6380
    %7188 = vmatprep.subr.mxu0 %v6402
    %7189 = vmatpush1.msra.mxu0 %v6401
    %7190 = vmatprep.subr.mxu0 %v6423
    %7191 = vmatpush1.msra.mxu0 %v6422
    %7192 = vmatprep.subr.mxu0 %v6444
    %7193 = vmatpush1.msra.mxu0 %v6443
    %7194 = vmatprep.subr.mxu0 %v6465
    %7195 = vmatpush1.msra.mxu0 %v6464
    %7196 = vmatprep.subr.mxu0 %v6486
    %7197 = vmatpush1.msra.mxu0 %v6485
    %7198 = vmatprep.subr.mxu0 %v6507
    %7199 = vmatpush1.msra.mxu0 %v6506
    %7200 = vmatprep.subr.mxu0 %v6528
    %7201 = vmatpush1.msra.mxu0 %v6527
    %7202 = vmatprep.subr.mxu0 %v6549
    %7203 = vmatpush1.msra.mxu0 %v6548
    %7204 = vmatprep.subr.mxu0 %v6570
    %7205 = vmatpush1.msra.mxu0 %v6569
    %7206 = vmatprep.subr.mxu0 0.0
    %7207 = vmatpush1.msra.mxu0 0.0
    %7208 = vmatprep.subr.mxu0 0.0
    %7209 = vmatpush1.msra.mxu0 0.0
    %7210 = vmatprep.subr.mxu0 0.0
    %7211 = vmatpush1.msra.mxu0 0.0
    %7212 = vmatprep.subr.mxu0 0.0
    %7213 = vmatpush1.msra.mxu0 0.0
    %7214 = vmatprep.subr.mxu0 0.0
    %7215 = vmatpush1.msra.mxu0 0.0
    %7216 = vmatprep.mubr.f32.mxu0 %v6582
    %7217 = vmatmul.mubr.f32.gmra.mrb[0].mxu0 %v6005
    %v7218 = vpop.f32.mrb[0].mxu0
    %v7219 = vadd.f32 %v6578, %v7218
    %v7220 = vpop.f32.mrb[0].mxu0
    %v7221 = vadd.f32 %v6578, %v7220
    %7222 = vdwg.mxu0
    %7223 = vmatprep.subr.mxu0 %v6026
    %7224 = vmatpush1.msra.mxu0 %v6025
    %7225 = vmatprep.subr.mxu0 %v6047
    %7226 = vmatpush1.msra.mxu0 %v6046
    %7227 = vmatprep.subr.mxu0 %v6068
    %7228 = vmatpush1.msra.mxu0 %v6067
    %7229 = vmatprep.subr.mxu0 %v6089
    %7230 = vmatpush1.msra.mxu0 %v6088
    %7231 = vmatprep.subr.mxu0 %v6110
    %7232 = vmatpush1.msra.mxu0 %v6109
    %7233 = vmatprep.subr.mxu0 %v6131
    %7234 = vmatpush1.msra.mxu0 %v6130
    %7235 = vmatprep.subr.mxu0 %v6152
    %7236 = vmatpush1.msra.mxu0 %v6151
    %7237 = vmatprep.subr.mxu0 %v6173
    %7238 = vmatpush1.msra.mxu0 %v6172
    %7239 = vmatprep.subr.mxu0 %v6194
    %7240 = vmatpush1.msra.mxu0 %v6193
    %7241 = vmatprep.subr.mxu0 %v6215
    %7242 = vmatpush1.msra.mxu0 %v6214
    %7243 = vmatprep.subr.mxu0 %v6236
    %7244 = vmatpush1.msra.mxu0 %v6235
    %7245 = vmatprep.subr.mxu0 %v6257
    %7246 = vmatpush1.msra.mxu0 %v6256
    %7247 = vmatprep.subr.mxu0 %v6278
    %7248 = vmatpush1.msra.mxu0 %v6277
    %7249 = vmatprep.subr.mxu0 %v6299
    %7250 = vmatpush1.msra.mxu0 %v6298
    %7251 = vmatprep.subr.mxu0 %v6320
    %7252 = vmatpush1.msra.mxu0 %v6319
    %7253 = vmatprep.subr.mxu0 %v6341
    %7254 = vmatpush1.msra.mxu0 %v6340
    %7255 = vmatprep.subr.mxu0 %v6362
    %7256 = vmatpush1.msra.mxu0 %v6361
    %7257 = vmatprep.subr.mxu0 %v6383
    %7258 = vmatpush1.msra.mxu0 %v6382
    %7259 = vmatprep.subr.mxu0 %v6404
    %7260 = vmatpush1.msra.mxu0 %v6403
    %7261 = vmatprep.subr.mxu0 %v6425
    %7262 = vmatpush1.msra.mxu0 %v6424
    %7263 = vmatprep.subr.mxu0 %v6446
    %7264 = vmatpush1.msra.mxu0 %v6445
    %7265 = vmatprep.subr.mxu0 %v6467
    %7266 = vmatpush1.msra.mxu0 %v6466
    %7267 = vmatprep.subr.mxu0 %v6488
    %7268 = vmatpush1.msra.mxu0 %v6487
    %7269 = vmatprep.subr.mxu0 %v6509
    %7270 = vmatpush1.msra.mxu0 %v6508
    %7271 = vmatprep.subr.mxu0 %v6530
    %7272 = vmatpush1.msra.mxu0 %v6529
    %7273 = vmatprep.subr.mxu0 %v6551
    %7274 = vmatpush1.msra.mxu0 %v6550
    %7275 = vmatprep.subr.mxu0 %v6572
    %7276 = vmatpush1.msra.mxu0 %v6571
    %7277 = vmatprep.subr.mxu0 0.0
    %7278 = vmatpush1.msra.mxu0 0.0
    %7279 = vmatprep.subr.mxu0 0.0
    %7280 = vmatpush1.msra.mxu0 0.0
    %7281 = vmatprep.subr.mxu0 0.0
    %7282 = vmatpush1.msra.mxu0 0.0
    %7283 = vmatprep.subr.mxu0 0.0
    %7284 = vmatpush1.msra.mxu0 0.0
    %7285 = vmatprep.subr.mxu0 0.0
    %7286 = vmatpush1.msra.mxu0 0.0
    %7287 = vmatprep.mubr.f32.mxu0 %v6582
    %7288 = vmatmul.mubr.f32.gmra.mrb[0].mxu0 %v6005
    %v7289 = vpop.f32.mrb[0].mxu0
    %v7290 = vadd.f32 %v6578, %v7289
    %v7291 = vpop.f32.mrb[0].mxu0
    %v7292 = vadd.f32 %v6578, %v7291
    %7293 = vdwg.mxu0
    %7294 = vmatprep.subr.mxu0 0.0
    %7295 = vmatpush1.msra.mxu0 %v6027
    %7296 = vmatprep.subr.mxu0 0.0
    %7297 = vmatpush1.msra.mxu0 %v6048
    %7298 = vmatprep.subr.mxu0 0.0
    %7299 = vmatpush1.msra.mxu0 %v6069
    %7300 = vmatprep.subr.mxu0 0.0
    %7301 = vmatpush1.msra.mxu0 %v6090
    %7302 = vmatprep.subr.mxu0 0.0
    %7303 = vmatpush1.msra.mxu0 %v6111
    %7304 = vmatprep.subr.mxu0 0.0
    %7305 = vmatpush1.msra.mxu0 %v6132
    %7306 = vmatprep.subr.mxu0 0.0
    %7307 = vmatpush1.msra.mxu0 %v6153
    %7308 = vmatprep.subr.mxu0 0.0
    %7309 = vmatpush1.msra.mxu0 %v6174
    %7310 = vmatprep.subr.mxu0 0.0
    %7311 = vmatpush1.msra.mxu0 %v6195
    %7312 = vmatprep.subr.mxu0 0.0
    %7313 = vmatpush1.msra.mxu0 %v6216
    %7314 = vmatprep.subr.mxu0 0.0
    %7315 = vmatpush1.msra.mxu0 %v6237
    %7316 = vmatprep.subr.mxu0 0.0
    %7317 = vmatpush1.msra.mxu0 %v6258
    %7318 = vmatprep.subr.mxu0 0.0
    %7319 = vmatpush1.msra.mxu0 %v6279
    %7320 = vmatprep.subr.mxu0 0.0
    %7321 = vmatpush1.msra.mxu0 %v6300
    %7322 = vmatprep.subr.mxu0 0.0
    %7323 = vmatpush1.msra.mxu0 %v6321
    %7324 = vmatprep.subr.mxu0 0.0
    %7325 = vmatpush1.msra.mxu0 %v6342
    %7326 = vmatprep.subr.mxu0 0.0
    %7327 = vmatpush1.msra.mxu0 %v6363
    %7328 = vmatprep.subr.mxu0 0.0
    %7329 = vmatpush1.msra.mxu0 %v6384
    %7330 = vmatprep.subr.mxu0 0.0
    %7331 = vmatpush1.msra.mxu0 %v6405
    %7332 = vmatprep.subr.mxu0 0.0
    %7333 = vmatpush1.msra.mxu0 %v6426
    %7334 = vmatprep.subr.mxu0 0.0
    %7335 = vmatpush1.msra.mxu0 %v6447
    %7336 = vmatprep.subr.mxu0 0.0
    %7337 = vmatpush1.msra.mxu0 %v6468
    %7338 = vmatprep.subr.mxu0 0.0
    %7339 = vmatpush1.msra.mxu0 %v6489
    %7340 = vmatprep.subr.mxu0 0.0
    %7341 = vmatpush1.msra.mxu0 %v6510
    %7342 = vmatprep.subr.mxu0 0.0
    %7343 = vmatpush1.msra.mxu0 %v6531
    %7344 = vmatprep.subr.mxu0 0.0
    %7345 = vmatpush1.msra.mxu0 %v6552
    %7346 = vmatprep.subr.mxu0 0.0
    %7347 = vmatpush1.msra.mxu0 %v6573
    %7348 = vmatprep.subr.mxu0 0.0
    %7349 = vmatpush1.msra.mxu0 0.0
    %7350 = vmatprep.subr.mxu0 0.0
    %7351 = vmatpush1.msra.mxu0 0.0
    %7352 = vmatprep.subr.mxu0 0.0
    %7353 = vmatpush1.msra.mxu0 0.0
    %7354 = vmatprep.subr.mxu0 0.0
    %7355 = vmatpush1.msra.mxu0 0.0
    %7356 = vmatprep.subr.mxu0 0.0
    %7357 = vmatpush1.msra.mxu0 0.0
    %7358 = vmatprep.mubr.f32.mxu0 %v6582
    %7359 = vmatmul.mubr.f32.gmra.mrb[0].mxu0 %v6005
    %v7360 = vpop.f32.mrb[0].mxu0
    %v7361 = vadd.f32 %v6578, %v7360
    %v7362 = vpop.f32.mrb[0].mxu0
    %7363 = vdwg.mxu0
    %v7364 = vmax.f32 %v6651, 0.0
    %v7365 = vmax.f32 %v6653, 0.0
    %v7366 = vmax.f32 %v6722, 0.0
    %v7367 = vmax.f32 %v6724, 0.0
    %v7368 = vmax.f32 %v6793, 0.0
    %v7369 = vmax.f32 %v6795, 0.0
    %v7370 = vmax.f32 %v6864, 0.0
    %v7371 = vmax.f32 %v6866, 0.0
    %v7372 = vmax.f32 %v6935, 0.0
    %v7373 = vmax.f32 %v6937, 0.0
    %v7374 = vmax.f32 %v7006, 0.0
    %v7375 = vmax.f32 %v7008, 0.0
    %v7376 = vmax.f32 %v7077, 0.0
    %v7377 = vmax.f32 %v7079, 0.0
    %v7378 = vmax.f32 %v7148, 0.0
    %v7379 = vmax.f32 %v7150, 0.0
    %v7380 = vmax.f32 %v7219, 0.0
    %v7381 = vmax.f32 %v7221, 0.0
    %v7382 = vmax.f32 %v7290, 0.0
    %v7383 = vmax.f32 %v7292, 0.0
    %v7384 = vmax.f32 %v7361, 0.0
    %7385 = vst [vmem:[%s6] sm:$0xff] %v7364
    %7386 = vst [vmem:[%s6 + $0x8] sm:$0xff] %v7365
    %7387 = vst [vmem:[%s6 + $0x10] sm:$0xff] %v7366
    %7388 = vst [vmem:[%s6 + $0x18] sm:$0xff] %v7367
    %7389 = vst [vmem:[%s6 + $0x20] sm:$0xff] %v7368
    %7390 = vst [vmem:[%s6 + $0x28] sm:$0xff] %v7369
    %7391 = vst [vmem:[%s6 + $0x30] sm:$0xff] %v7370
    %7392 = vst [vmem:[%s6 + $0x38] sm:$0xff] %v7371
    %7393 = vst [vmem:[%s6 + $0x40] sm:$0xff] %v7372
    %7394 = vst [vmem:[%s6 + $0x48] sm:$0xff] %v7373
    %7395 = vst [vmem:[%s6 + $0x50] sm:$0xff] %v7374
    %7396 = vst [vmem:[%s6 + $0x58] sm:$0xff] %v7375
    %7397 = vst [vmem:[%s6 + $0x60] sm:$0xff] %v7376
    %7398 = vst [vmem:[%s6 + $0x68] sm:$0xff] %v7377
    %7399 = vst [vmem:[%s6 + $0x70] sm:$0xff] %v7378
    %7400 = vst [vmem:[%s6 + $0x78] sm:$0xff] %v7379
    %7401 = vst [vmem:[%s6 + $0x80] sm:$0xff] %v7380
    %7402 = vst [vmem:[%s6 + $0x88] sm:$0xff] %v7381
    %7403 = vst [vmem:[%s6 + $0x90] sm:$0xff] %v7382
    %7404 = vst [vmem:[%s6 + $0x98] sm:$0xff] %v7383
    %7405 = vst.msk [vmem:[%s6 + $0xa0] sm:$0xff] %vm2192, %v7384
    // Predicated region
    $region30: #{intermediate_output_forward.2} parent=1 // pred_check
      _
    $region31: #{intermediate_output_forward.2} parent=1 // pred_check_branch
      %7407 = sbr.rel (0) target = $region33
    $region32: #{intermediate_output_forward.2} parent=1 // pred_region
      _
    $region33: #{intermediate_output_forward.2} parent=1 // pred_fallthru
      _
    // Predicated region
    $region34: #{intermediate_output_forward.2} parent=1 // pred_check
      _
    $region35: #{intermediate_output_forward.2} parent=1 // pred_check_branch
      %7409 = sbr.rel (0) target = $region37
    $region36: #{intermediate_output_forward.2} parent=1 // pred_region
      _
    $region37: #{intermediate_output_forward.2} parent=1 // pred_fallthru
      _
    %7410 = vsyncpa [#allocation5], 1

// kernel: intermediate_output_forward.3
$region0: #{intermediate_output_forward.3}
  #allocation0 [shape = 'u32[]', space=smem, size = 0x4, offset = 0x4, fixed_abs, tag = 'smem constant byte address 0x4 - core index']
  #allocation1 [shape = 'u32[144,128]{1,0:T(1,128)}', space=vmem, size = 0x12000, scoped, tag = 'internal scratch']
  #allocation2 [shape = 'f32[16,622]{1,0:T(8,128)}', space=vmem, size = 0xa000, scoped, tag = 'scratch operand']
  #allocation3 [shape = 'f32[432,400]{1,0:T(8,128)}', space=vmem, size = 0xd8000, scoped, tag = 'scratch operand']
  %s0 = inlined_call_operand.vmem [shape: f32[64,622], index: 0, kind: input, shape index: {}]
  %s1 = inlined_call_operand.vmem [shape: f32[16,216], index: 1, kind: input, shape index: {}]
  %s2 = inlined_call_operand.vmem [shape: f32[16,1], index: 2, kind: input, shape index: {}]
  %s3 = inlined_call_operand.vmem [shape: f32[16,432], index: 3, kind: input, shape index: {}]
  %s4 = inlined_call_operand.vmem [shape: f32[16,1], index: 4, kind: input, shape index: {}]
  %s5 = inlined_call_operand.vmem [shape: f32[1,400], index: 5, kind: input, shape index: {}]
  %s6 = inlined_call_operand.vmem [shape: f32[16,400], index: 6, kind: output, shape index: {}]
  %s7 = sld [smem:[#allocation0]]
  $region34: #{intermediate_output_forward.3} parent=0
    _
  %s9 = ssub.s32 1, %s7
  %s10 = scalar_select 0, %s9, %s7
  // Predicated region
  $region2: #{intermediate_output_forward.3} parent=0 // pred_check
    _
  $region3: #{intermediate_output_forward.3} parent=0 // pred_check_branch
    %12 = sbr.rel (0) target = $region5
  $region4: #{intermediate_output_forward.3} parent=0 // pred_region
    _
  $region5: #{intermediate_output_forward.3} parent=0 // pred_fallthru
    _
  // Predicated region
  $region6: #{intermediate_output_forward.3} parent=0 // pred_check
    _
  $region7: #{intermediate_output_forward.3} parent=0 // pred_check_branch
    %14 = sbr.rel (0) target = $region9
  $region8: #{intermediate_output_forward.3} parent=0 // pred_region
    _
  $region9: #{intermediate_output_forward.3} parent=0 // pred_fallthru
    _
  // Predicated region
  $region10: #{intermediate_output_forward.3} parent=0 // pred_check
    _
  $region11: #{intermediate_output_forward.3} parent=0 // pred_check_branch
    %16 = sbr.rel (0) target = $region13
  $region12: #{intermediate_output_forward.3} parent=0 // pred_region
    _
  $region13: #{intermediate_output_forward.3} parent=0 // pred_fallthru
    _
  // Predicated region
  $region14: #{intermediate_output_forward.3} parent=0 // pred_check
    _
  $region15: #{intermediate_output_forward.3} parent=0 // pred_check_branch
    %18 = sbr.rel (0) target = $region17
  $region16: #{intermediate_output_forward.3} parent=0 // pred_region
    _
  $region17: #{intermediate_output_forward.3} parent=0 // pred_fallthru
    _
  // Predicated region
  $region18: #{intermediate_output_forward.3} parent=0 // pred_check
    _
  $region19: #{intermediate_output_forward.3} parent=0 // pred_check_branch
    %20 = sbr.rel (0) target = $region21
  $region20: #{intermediate_output_forward.3} parent=0 // pred_region
    _
  $region21: #{intermediate_output_forward.3} parent=0 // pred_fallthru
    _
  // Predicated region
  $region22: #{intermediate_output_forward.3} parent=0 // pred_check
    _
  $region23: #{intermediate_output_forward.3} parent=0 // pred_check_branch
    %22 = sbr.rel (0) target = $region25
  $region24: #{intermediate_output_forward.3} parent=0 // pred_region
    _
  $region25: #{intermediate_output_forward.3} parent=0 // pred_fallthru
    _
  %v23 = vld [vmem:[%s0] sm:$0xff]
  %v24 = vld [vmem:[%s0 + $0x8] sm:$0xff]
  %v25 = vld [vmem:[%s0 + $0x10] sm:$0xff]
  %v26 = vld [vmem:[%s0 + $0x18] sm:$0xff]
  %v27 = vld [vmem:[%s0 + $0x20] sm:$0xff]
  %v28 = vld [vmem:[%s0 + $0x28] sm:$0xff]
  %v29 = vld [vmem:[%s0 + $0x30] sm:$0xff]
  %v30 = vld [vmem:[%s0 + $0x38] sm:$0xff]
  %v31 = vld [vmem:[%s0 + $0x40] sm:$0xff]
  %v32 = vld [vmem:[%s0 + $0x48] sm:$0xff]
  %v33 = vmax.f32 %v23, %v28
  %v34 = vmax.f32 %v24, %v29
  %v35 = vmax.f32 %v25, %v30
  %v36 = vmax.f32 %v26, %v31
  %v37 = vmax.f32 %v27, %v32
  %v38 = vld [vmem:[%s0 + $0x50] sm:$0xff]
  %v39 = vld [vmem:[%s0 + $0x58] sm:$0xff]
  %v40 = vld [vmem:[%s0 + $0x60] sm:$0xff]
  %v41 = vld [vmem:[%s0 + $0x68] sm:$0xff]
  %v42 = vld [vmem:[%s0 + $0x70] sm:$0xff]
  %v43 = vmax.f32 %v33, %v38
  %v44 = vmax.f32 %v34, %v39
  %v45 = vmax.f32 %v35, %v40
  %v46 = vmax.f32 %v36, %v41
  %v47 = vmax.f32 %v37, %v42
  %v48 = vld [vmem:[%s0 + $0x78] sm:$0xff]
  %v49 = vld [vmem:[%s0 + $0x80] sm:$0xff]
  %v50 = vld [vmem:[%s0 + $0x88] sm:$0xff]
  %v51 = vld [vmem:[%s0 + $0x90] sm:$0xff]
  %v52 = vld [vmem:[%s0 + $0x98] sm:$0xff]
  %v53 = vmax.f32 %v43, %v48
  %v54 = vmax.f32 %v44, %v49
  %v55 = vmax.f32 %v45, %v50
  %v56 = vmax.f32 %v46, %v51
  %v57 = vmax.f32 %v47, %v52
  %v58 = vld [vmem:[%s0 + $0xa0] sm:$0xff]
  %v59 = vld [vmem:[%s0 + $0xa8] sm:$0xff]
  %v60 = vld [vmem:[%s0 + $0xb0] sm:$0xff]
  %v61 = vld [vmem:[%s0 + $0xb8] sm:$0xff]
  %v62 = vld [vmem:[%s0 + $0xc0] sm:$0xff]
  %v63 = vmax.f32 %v53, %v58
  %v64 = vmax.f32 %v54, %v59
  %v65 = vmax.f32 %v55, %v60
  %v66 = vmax.f32 %v56, %v61
  %v67 = vmax.f32 %v57, %v62
  %v68 = vld [vmem:[%s0 + $0xc8] sm:$0xff]
  %v69 = vld [vmem:[%s0 + $0xd0] sm:$0xff]
  %v70 = vld [vmem:[%s0 + $0xd8] sm:$0xff]
  %v71 = vld [vmem:[%s0 + $0xe0] sm:$0xff]
  %v72 = vld [vmem:[%s0 + $0xe8] sm:$0xff]
  %v73 = vmax.f32 %v63, %v68
  %v74 = vmax.f32 %v64, %v69
  %v75 = vmax.f32 %v65, %v70
  %v76 = vmax.f32 %v66, %v71
  %v77 = vmax.f32 %v67, %v72
  %v78 = vld [vmem:[%s0 + $0xf0] sm:$0xff]
  %v79 = vld [vmem:[%s0 + $0xf8] sm:$0xff]
  %v80 = vld [vmem:[%s0 + $0x100] sm:$0xff]
  %v81 = vld [vmem:[%s0 + $0x108] sm:$0xff]
  %v82 = vld [vmem:[%s0 + $0x110] sm:$0xff]
  %v83 = vmax.f32 %v73, %v78
  %v84 = vmax.f32 %v74, %v79
  %v85 = vmax.f32 %v75, %v80
  %v86 = vmax.f32 %v76, %v81
  %v87 = vmax.f32 %v77, %v82
  %v88 = vld [vmem:[%s0 + $0x118] sm:$0xff]
  %v89 = vld [vmem:[%s0 + $0x120] sm:$0xff]
  %v90 = vld [vmem:[%s0 + $0x128] sm:$0xff]
  %v91 = vld [vmem:[%s0 + $0x130] sm:$0xff]
  %v92 = vld [vmem:[%s0 + $0x138] sm:$0xff]
  %v93 = vmax.f32 %v83, %v88
  %v94 = vmax.f32 %v84, %v89
  %v95 = vmax.f32 %v85, %v90
  %v96 = vmax.f32 %v86, %v91
  %v97 = vmax.f32 %v87, %v92
  %98 = vst [vmem:[#allocation3] sm:$0xff] %v93
  %99 = vst [vmem:[#allocation3 + $0x8] sm:$0xff] %v94
  %100 = vst [vmem:[#allocation3 + $0x10] sm:$0xff] %v95
  %vm101 = vcmask 130048
  %102 = vst.msk [vmem:[#allocation3 + $0x18] sm:$0xff] %vm101, %v96
  %107 = vrot.lane.b32.xlu0 %v93, 127
  %v108 = vpop.permute.xlu0 %107
  %109 = vrot.lane.b32.xlu0 %v94, 127
  %v110 = vpop.permute.xlu0 %109
  %111 = vrot.lane.b32.xlu0 %v95, 127
  %v112 = vpop.permute.xlu0 %111
  %113 = vrot.lane.b32.xlu0 %v96, 127
  %v114 = vpop.permute.xlu0 %113
  %vm115 = vcmask 1039360
  %v116 = vsel %vm115, %v108, %v110
  %v117 = vsel %vm115, %v110, %v112
  %v118 = vsel %vm115, %v112, %v114
  %123 = vst [vmem:[#allocation3 + $0x20] sm:$0xff] %v116
  %124 = vst [vmem:[#allocation3 + $0x28] sm:$0xff] %v117
  %125 = vst [vmem:[#allocation3 + $0x30] sm:$0xff] %v118
  %126 = vst.msk [vmem:[#allocation3 + $0x38] sm:$0xff] %vm101, %v114
  %127 = vrot.lane.b32.xlu0 %v93, 126
  %v128 = vpop.permute.xlu0 %127
  %129 = vrot.lane.b32.xlu0 %v94, 126
  %v130 = vpop.permute.xlu0 %129
  %131 = vrot.lane.b32.xlu0 %v95, 126
  %v132 = vpop.permute.xlu0 %131
  %133 = vrot.lane.b32.xlu0 %v96, 126
  %v134 = vpop.permute.xlu0 %133
  %vm135 = vcmask 1031168
  %v136 = vsel %vm135, %v128, %v130
  %v137 = vsel %vm135, %v130, %v132
  %v138 = vsel %vm135, %v132, %v134
  %143 = vst [vmem:[#allocation3 + $0x40] sm:$0xff] %v136
  %144 = vst [vmem:[#allocation3 + $0x48] sm:$0xff] %v137
  %145 = vst [vmem:[#allocation3 + $0x50] sm:$0xff] %v138
  %146 = vst.msk [vmem:[#allocation3 + $0x58] sm:$0xff] %vm101, %v134
  %147 = vrot.lane.b32.xlu0 %v93, 118
  %v148 = vpop.permute.xlu0 %147
  %149 = vrot.lane.b32.xlu0 %v94, 118
  %v150 = vpop.permute.xlu0 %149
  %151 = vrot.lane.b32.xlu0 %v95, 118
  %v152 = vpop.permute.xlu0 %151
  %153 = vrot.lane.b32.xlu0 %v96, 118
  %v154 = vpop.permute.xlu0 %153
  %vm155 = vcmask 965632
  %v156 = vsel %vm155, %v148, %v150
  %v157 = vsel %vm155, %v150, %v152
  %v158 = vsel %vm155, %v152, %v154
  %163 = vst [vmem:[#allocation3 + $0x60] sm:$0xff] %v156
  %164 = vst [vmem:[#allocation3 + $0x68] sm:$0xff] %v157
  %165 = vst [vmem:[#allocation3 + $0x70] sm:$0xff] %v158
  %166 = vst.msk [vmem:[#allocation3 + $0x78] sm:$0xff] %vm101, %v154
  %167 = vrot.lane.b32.xlu0 %v93, 117
  %v168 = vpop.permute.xlu0 %167
  %169 = vrot.lane.b32.xlu0 %v94, 117
  %v170 = vpop.permute.xlu0 %169
  %171 = vrot.lane.b32.xlu0 %v95, 117
  %v172 = vpop.permute.xlu0 %171
  %173 = vrot.lane.b32.xlu0 %v96, 117
  %v174 = vpop.permute.xlu0 %173
  %vm175 = vcmask 957440
  %v176 = vsel %vm175, %v168, %v170
  %v177 = vsel %vm175, %v170, %v172
  %v178 = vsel %vm175, %v172, %v174
  %183 = vst [vmem:[#allocation3 + $0x80] sm:$0xff] %v176
  %184 = vst [vmem:[#allocation3 + $0x88] sm:$0xff] %v177
  %185 = vst [vmem:[#allocation3 + $0x90] sm:$0xff] %v178
  %186 = vst.msk [vmem:[#allocation3 + $0x98] sm:$0xff] %vm101, %v174
  %187 = vrot.lane.b32.xlu0 %v93, 116
  %v188 = vpop.permute.xlu0 %187
  %189 = vrot.lane.b32.xlu0 %v94, 116
  %v190 = vpop.permute.xlu0 %189
  %191 = vrot.lane.b32.xlu0 %v95, 116
  %v192 = vpop.permute.xlu0 %191
  %193 = vrot.lane.b32.xlu0 %v96, 116
  %v194 = vpop.permute.xlu0 %193
  %vm195 = vcmask 949248
  %v196 = vsel %vm195, %v188, %v190
  %v197 = vsel %vm195, %v190, %v192
  %v198 = vsel %vm195, %v192, %v194
  %203 = vst [vmem:[#allocation3 + $0xa0] sm:$0xff] %v196
  %204 = vst [vmem:[#allocation3 + $0xa8] sm:$0xff] %v197
  %205 = vst [vmem:[#allocation3 + $0xb0] sm:$0xff] %v198
  %206 = vst.msk [vmem:[#allocation3 + $0xb8] sm:$0xff] %vm101, %v194
  %207 = vrot.lane.b32.xlu0 %v93, 108
  %v208 = vpop.permute.xlu0 %207
  %209 = vrot.lane.b32.xlu0 %v94, 108
  %v210 = vpop.permute.xlu0 %209
  %211 = vrot.lane.b32.xlu0 %v95, 108
  %v212 = vpop.permute.xlu0 %211
  %213 = vrot.lane.b32.xlu0 %v96, 108
  %v214 = vpop.permute.xlu0 %213
  %vm215 = vcmask 883712
  %v216 = vsel %vm215, %v208, %v210
  %v217 = vsel %vm215, %v210, %v212
  %v218 = vsel %vm215, %v212, %v214
  %223 = vst [vmem:[#allocation3 + $0xc0] sm:$0xff] %v216
  %224 = vst [vmem:[#allocation3 + $0xc8] sm:$0xff] %v217
  %225 = vst [vmem:[#allocation3 + $0xd0] sm:$0xff] %v218
  %226 = vst.msk [vmem:[#allocation3 + $0xd8] sm:$0xff] %vm101, %v214
  %227 = vrot.lane.b32.xlu0 %v93, 107
  %v228 = vpop.permute.xlu0 %227
  %229 = vrot.lane.b32.xlu0 %v94, 107
  %v230 = vpop.permute.xlu0 %229
  %231 = vrot.lane.b32.xlu0 %v95, 107
  %v232 = vpop.permute.xlu0 %231
  %233 = vrot.lane.b32.xlu0 %v96, 107
  %v234 = vpop.permute.xlu0 %233
  %vm235 = vcmask 875520
  %v236 = vsel %vm235, %v228, %v230
  %v237 = vsel %vm235, %v230, %v232
  %v238 = vsel %vm235, %v232, %v234
  %243 = vst [vmem:[#allocation3 + $0xe0] sm:$0xff] %v236
  %244 = vst [vmem:[#allocation3 + $0xe8] sm:$0xff] %v237
  %245 = vst [vmem:[#allocation3 + $0xf0] sm:$0xff] %v238
  %246 = vst.msk [vmem:[#allocation3 + $0xf8] sm:$0xff] %vm101, %v234
  %247 = vrot.lane.b32.xlu0 %v93, 106
  %v248 = vpop.permute.xlu0 %247
  %249 = vrot.lane.b32.xlu0 %v94, 106
  %v250 = vpop.permute.xlu0 %249
  %251 = vrot.lane.b32.xlu0 %v95, 106
  %v252 = vpop.permute.xlu0 %251
  %253 = vrot.lane.b32.xlu0 %v96, 106
  %v254 = vpop.permute.xlu0 %253
  %vm255 = vcmask 867328
  %v256 = vsel %vm255, %v248, %v250
  %v257 = vsel %vm255, %v250, %v252
  %v258 = vsel %vm255, %v252, %v254
  %263 = vst [vmem:[#allocation3 + $0x100] sm:$0xff] %v256
  %264 = vst [vmem:[#allocation3 + $0x108] sm:$0xff] %v257
  %265 = vst [vmem:[#allocation3 + $0x110] sm:$0xff] %v258
  %266 = vst.msk [vmem:[#allocation3 + $0x118] sm:$0xff] %vm101, %v254
  %267 = vrot.lane.b32.xlu0 %v93, 28
  %v268 = vpop.permute.xlu0 %267
  %269 = vrot.lane.b32.xlu0 %v94, 28
  %v270 = vpop.permute.xlu0 %269
  %271 = vrot.lane.b32.xlu0 %v95, 28
  %v272 = vpop.permute.xlu0 %271
  %273 = vrot.lane.b32.xlu0 %v96, 28
  %v274 = vpop.permute.xlu0 %273
  %vm275 = vcmask 228352
  %v276 = vsel %vm275, %v268, %v270
  %v277 = vsel %vm275, %v270, %v272
  %v278 = vsel %vm275, %v272, %v274
  %283 = vst [vmem:[#allocation3 + $0x120] sm:$0xff] %v276
  %284 = vst [vmem:[#allocation3 + $0x128] sm:$0xff] %v277
  %285 = vst [vmem:[#allocation3 + $0x130] sm:$0xff] %v278
  %286 = vst.msk [vmem:[#allocation3 + $0x138] sm:$0xff] %vm101, %v274
  %287 = vrot.lane.b32.xlu0 %v93, 27
  %v288 = vpop.permute.xlu0 %287
  %289 = vrot.lane.b32.xlu0 %v94, 27
  %v290 = vpop.permute.xlu0 %289
  %291 = vrot.lane.b32.xlu0 %v95, 27
  %v292 = vpop.permute.xlu0 %291
  %293 = vrot.lane.b32.xlu0 %v96, 27
  %v294 = vpop.permute.xlu0 %293
  %vm295 = vcmask 220160
  %v296 = vsel %vm295, %v288, %v290
  %v297 = vsel %vm295, %v290, %v292
  %v298 = vsel %vm295, %v292, %v294
  %303 = vst [vmem:[#allocation3 + $0x140] sm:$0xff] %v296
  %304 = vst [vmem:[#allocation3 + $0x148] sm:$0xff] %v297
  %305 = vst [vmem:[#allocation3 + $0x150] sm:$0xff] %v298
  %306 = vst.msk [vmem:[#allocation3 + $0x158] sm:$0xff] %vm101, %v294
  %307 = vrot.lane.b32.xlu0 %v93, 26
  %v308 = vpop.permute.xlu0 %307
  %309 = vrot.lane.b32.xlu0 %v94, 26
  %v310 = vpop.permute.xlu0 %309
  %311 = vrot.lane.b32.xlu0 %v95, 26
  %v312 = vpop.permute.xlu0 %311
  %313 = vrot.lane.b32.xlu0 %v96, 26
  %v314 = vpop.permute.xlu0 %313
  %vm315 = vcmask 211968
  %v316 = vsel %vm315, %v308, %v310
  %v317 = vsel %vm315, %v310, %v312
  %v318 = vsel %vm315, %v312, %v314
  %323 = vst [vmem:[#allocation3 + $0x160] sm:$0xff] %v316
  %324 = vst [vmem:[#allocation3 + $0x168] sm:$0xff] %v317
  %325 = vst [vmem:[#allocation3 + $0x170] sm:$0xff] %v318
  %326 = vst.msk [vmem:[#allocation3 + $0x178] sm:$0xff] %vm101, %v314
  %327 = vrot.lane.b32.xlu0 %v93, 18
  %v328 = vpop.permute.xlu0 %327
  %329 = vrot.lane.b32.xlu0 %v94, 18
  %v330 = vpop.permute.xlu0 %329
  %331 = vrot.lane.b32.xlu0 %v95, 18
  %v332 = vpop.permute.xlu0 %331
  %333 = vrot.lane.b32.xlu0 %v96, 18
  %v334 = vpop.permute.xlu0 %333
  %vm335 = vcmask 146432
  %v336 = vsel %vm335, %v328, %v330
  %v337 = vsel %vm335, %v330, %v332
  %v338 = vsel %vm335, %v332, %v334
  %343 = vst [vmem:[#allocation3 + $0x180] sm:$0xff] %v336
  %344 = vst [vmem:[#allocation3 + $0x188] sm:$0xff] %v337
  %345 = vst [vmem:[#allocation3 + $0x190] sm:$0xff] %v338
  %346 = vst.msk [vmem:[#allocation3 + $0x198] sm:$0xff] %vm101, %v334
  %347 = vrot.lane.b32.xlu0 %v93, 17
  %v348 = vpop.permute.xlu0 %347
  %349 = vrot.lane.b32.xlu0 %v94, 17
  %v350 = vpop.permute.xlu0 %349
  %351 = vrot.lane.b32.xlu0 %v95, 17
  %v352 = vpop.permute.xlu0 %351
  %353 = vrot.lane.b32.xlu0 %v96, 17
  %v354 = vpop.permute.xlu0 %353
  %vm355 = vcmask 138240
  %v356 = vsel %vm355, %v348, %v350
  %v357 = vsel %vm355, %v350, %v352
  %v358 = vsel %vm355, %v352, %v354
  %363 = vst [vmem:[#allocation3 + $0x1a0] sm:$0xff] %v356
  %364 = vst [vmem:[#allocation3 + $0x1a8] sm:$0xff] %v357
  %365 = vst [vmem:[#allocation3 + $0x1b0] sm:$0xff] %v358
  %366 = vst.msk [vmem:[#allocation3 + $0x1b8] sm:$0xff] %vm101, %v354
  %367 = vrot.lane.b32.xlu0 %v93, 16
  %v368 = vpop.permute.xlu0 %367
  %369 = vrot.lane.b32.xlu0 %v94, 16
  %v370 = vpop.permute.xlu0 %369
  %371 = vrot.lane.b32.xlu0 %v95, 16
  %v372 = vpop.permute.xlu0 %371
  %373 = vrot.lane.b32.xlu0 %v96, 16
  %v374 = vpop.permute.xlu0 %373
  %v375 = vsel %vm101, %v368, %v370
  %v376 = vsel %vm101, %v370, %v372
  %v377 = vsel %vm101, %v372, %v374
  %382 = vst [vmem:[#allocation3 + $0x1c0] sm:$0xff] %v375
  %383 = vst [vmem:[#allocation3 + $0x1c8] sm:$0xff] %v376
  %384 = vst [vmem:[#allocation3 + $0x1d0] sm:$0xff] %v377
  %385 = vst.msk [vmem:[#allocation3 + $0x1d8] sm:$0xff] %vm101, %v374
  %387 = vrot.lane.b32.xlu0 %v93, 8
  %v388 = vpop.permute.xlu0 %387
  %389 = vrot.lane.b32.xlu0 %v94, 8
  %v390 = vpop.permute.xlu0 %389
  %391 = vrot.lane.b32.xlu0 %v95, 8
  %v392 = vpop.permute.xlu0 %391
  %393 = vrot.lane.b32.xlu0 %v96, 8
  %v394 = vpop.permute.xlu0 %393
  %395 = vrot.lane.b32.xlu0 %v97, 8
  %v396 = vpop.permute.xlu0 %395
  %vm397 = vcmask 64512
  %v398 = vsel %vm397, %v388, %v390
  %v399 = vsel %vm397, %v390, %v392
  %v400 = vsel %vm397, %v392, %v394
  %v401 = vsel %vm397, %v394, %v396
  %406 = vst [vmem:[#allocation3 + $0x1e0] sm:$0xff] %v398
  %407 = vst [vmem:[#allocation3 + $0x1e8] sm:$0xff] %v399
  %408 = vst [vmem:[#allocation3 + $0x1f0] sm:$0xff] %v400
  %409 = vst.msk [vmem:[#allocation3 + $0x1f8] sm:$0xff] %vm101, %v401
  %410 = vrot.lane.b32.xlu0 %v93, 7
  %v411 = vpop.permute.xlu0 %410
  %412 = vrot.lane.b32.xlu0 %v94, 7
  %v413 = vpop.permute.xlu0 %412
  %414 = vrot.lane.b32.xlu0 %v95, 7
  %v415 = vpop.permute.xlu0 %414
  %416 = vrot.lane.b32.xlu0 %v96, 7
  %v417 = vpop.permute.xlu0 %416
  %418 = vrot.lane.b32.xlu0 %v97, 7
  %v419 = vpop.permute.xlu0 %418
  %vm420 = vcmask 56320
  %v421 = vsel %vm420, %v411, %v413
  %v422 = vsel %vm420, %v413, %v415
  %v423 = vsel %vm420, %v415, %v417
  %v424 = vsel %vm420, %v417, %v419
  %429 = vst [vmem:[#allocation3 + $0x200] sm:$0xff] %v421
  %430 = vst [vmem:[#allocation3 + $0x208] sm:$0xff] %v422
  %431 = vst [vmem:[#allocation3 + $0x210] sm:$0xff] %v423
  %432 = vst.msk [vmem:[#allocation3 + $0x218] sm:$0xff] %vm101, %v424
  %433 = vrot.lane.b32.xlu0 %v93, 6
  %v434 = vpop.permute.xlu0 %433
  %435 = vrot.lane.b32.xlu0 %v94, 6
  %v436 = vpop.permute.xlu0 %435
  %437 = vrot.lane.b32.xlu0 %v95, 6
  %v438 = vpop.permute.xlu0 %437
  %439 = vrot.lane.b32.xlu0 %v96, 6
  %v440 = vpop.permute.xlu0 %439
  %441 = vrot.lane.b32.xlu0 %v97, 6
  %v442 = vpop.permute.xlu0 %441
  %vm443 = vcmask 48128
  %v444 = vsel %vm443, %v434, %v436
  %v445 = vsel %vm443, %v436, %v438
  %v446 = vsel %vm443, %v438, %v440
  %v447 = vsel %vm443, %v440, %v442
  %452 = vst [vmem:[#allocation3 + $0x220] sm:$0xff] %v444
  %453 = vst [vmem:[#allocation3 + $0x228] sm:$0xff] %v445
  %454 = vst [vmem:[#allocation3 + $0x230] sm:$0xff] %v446
  %455 = vst.msk [vmem:[#allocation3 + $0x238] sm:$0xff] %vm101, %v447
  %456 = vrot.lane.b32.xlu0 %v94, 56
  %v457 = vpop.permute.xlu0 %456
  %458 = vrot.lane.b32.xlu0 %v95, 56
  %v459 = vpop.permute.xlu0 %458
  %460 = vrot.lane.b32.xlu0 %v96, 56
  %v461 = vpop.permute.xlu0 %460
  %462 = vrot.lane.b32.xlu0 %v97, 56
  %v463 = vpop.permute.xlu0 %462
  %vm464 = vcmask 457728
  %v465 = vsel %vm464, %v457, %v459
  %v466 = vsel %vm464, %v459, %v461
  %v467 = vsel %vm464, %v461, %v463
  %472 = vst [vmem:[#allocation3 + $0x240] sm:$0xff] %v465
  %473 = vst [vmem:[#allocation3 + $0x248] sm:$0xff] %v466
  %474 = vst [vmem:[#allocation3 + $0x250] sm:$0xff] %v467
  %475 = vst.msk [vmem:[#allocation3 + $0x258] sm:$0xff] %vm101, %v463
  %476 = vrot.lane.b32.xlu0 %v94, 55
  %v477 = vpop.permute.xlu0 %476
  %478 = vrot.lane.b32.xlu0 %v95, 55
  %v479 = vpop.permute.xlu0 %478
  %480 = vrot.lane.b32.xlu0 %v96, 55
  %v481 = vpop.permute.xlu0 %480
  %482 = vrot.lane.b32.xlu0 %v97, 55
  %v483 = vpop.permute.xlu0 %482
  %vm484 = vcmask 449536
  %v485 = vsel %vm484, %v477, %v479
  %v486 = vsel %vm484, %v479, %v481
  %v487 = vsel %vm484, %v481, %v483
  %492 = vst [vmem:[#allocation3 + $0x260] sm:$0xff] %v485
  %493 = vst [vmem:[#allocation3 + $0x268] sm:$0xff] %v486
  %494 = vst [vmem:[#allocation3 + $0x270] sm:$0xff] %v487
  %495 = vst.msk [vmem:[#allocation3 + $0x278] sm:$0xff] %vm101, %v483
  %496 = vrot.lane.b32.xlu0 %v94, 54
  %v497 = vpop.permute.xlu0 %496
  %498 = vrot.lane.b32.xlu0 %v95, 54
  %v499 = vpop.permute.xlu0 %498
  %500 = vrot.lane.b32.xlu0 %v96, 54
  %v501 = vpop.permute.xlu0 %500
  %502 = vrot.lane.b32.xlu0 %v97, 54
  %v503 = vpop.permute.xlu0 %502
  %vm504 = vcmask 441344
  %v505 = vsel %vm504, %v497, %v499
  %v506 = vsel %vm504, %v499, %v501
  %v507 = vsel %vm504, %v501, %v503
  %512 = vst [vmem:[#allocation3 + $0x280] sm:$0xff] %v505
  %513 = vst [vmem:[#allocation3 + $0x288] sm:$0xff] %v506
  %514 = vst [vmem:[#allocation3 + $0x290] sm:$0xff] %v507
  %515 = vst.msk [vmem:[#allocation3 + $0x298] sm:$0xff] %vm101, %v503
  %516 = vrot.lane.b32.xlu0 %v94, 46
  %v517 = vpop.permute.xlu0 %516
  %518 = vrot.lane.b32.xlu0 %v95, 46
  %v519 = vpop.permute.xlu0 %518
  %520 = vrot.lane.b32.xlu0 %v96, 46
  %v521 = vpop.permute.xlu0 %520
  %522 = vrot.lane.b32.xlu0 %v97, 46
  %v523 = vpop.permute.xlu0 %522
  %vm524 = vcmask 375808
  %v525 = vsel %vm524, %v517, %v519
  %v526 = vsel %vm524, %v519, %v521
  %v527 = vsel %vm524, %v521, %v523
  %532 = vst [vmem:[#allocation3 + $0x2a0] sm:$0xff] %v525
  %533 = vst [vmem:[#allocation3 + $0x2a8] sm:$0xff] %v526
  %534 = vst [vmem:[#allocation3 + $0x2b0] sm:$0xff] %v527
  %535 = vst.msk [vmem:[#allocation3 + $0x2b8] sm:$0xff] %vm101, %v523
  %536 = vrot.lane.b32.xlu0 %v94, 45
  %v537 = vpop.permute.xlu0 %536
  %538 = vrot.lane.b32.xlu0 %v95, 45
  %v539 = vpop.permute.xlu0 %538
  %540 = vrot.lane.b32.xlu0 %v96, 45
  %v541 = vpop.permute.xlu0 %540
  %542 = vrot.lane.b32.xlu0 %v97, 45
  %v543 = vpop.permute.xlu0 %542
  %vm544 = vcmask 367616
  %v545 = vsel %vm544, %v537, %v539
  %v546 = vsel %vm544, %v539, %v541
  %v547 = vsel %vm544, %v541, %v543
  %552 = vst [vmem:[#allocation3 + $0x2c0] sm:$0xff] %v545
  %553 = vst [vmem:[#allocation3 + $0x2c8] sm:$0xff] %v546
  %554 = vst [vmem:[#allocation3 + $0x2d0] sm:$0xff] %v547
  %555 = vst.msk [vmem:[#allocation3 + $0x2d8] sm:$0xff] %vm101, %v543
  %556 = vrot.lane.b32.xlu0 %v94, 44
  %v557 = vpop.permute.xlu0 %556
  %558 = vrot.lane.b32.xlu0 %v95, 44
  %v559 = vpop.permute.xlu0 %558
  %560 = vrot.lane.b32.xlu0 %v96, 44
  %v561 = vpop.permute.xlu0 %560
  %562 = vrot.lane.b32.xlu0 %v97, 44
  %v563 = vpop.permute.xlu0 %562
  %vm564 = vcmask 359424
  %v565 = vsel %vm564, %v557, %v559
  %v566 = vsel %vm564, %v559, %v561
  %v567 = vsel %vm564, %v561, %v563
  %572 = vst [vmem:[#allocation3 + $0x2e0] sm:$0xff] %v565
  %573 = vst [vmem:[#allocation3 + $0x2e8] sm:$0xff] %v566
  %574 = vst [vmem:[#allocation3 + $0x2f0] sm:$0xff] %v567
  %575 = vst.msk [vmem:[#allocation3 + $0x2f8] sm:$0xff] %vm101, %v563
  %576 = vrot.lane.b32.xlu0 %v94, 36
  %v577 = vpop.permute.xlu0 %576
  %578 = vrot.lane.b32.xlu0 %v95, 36
  %v579 = vpop.permute.xlu0 %578
  %580 = vrot.lane.b32.xlu0 %v96, 36
  %v581 = vpop.permute.xlu0 %580
  %582 = vrot.lane.b32.xlu0 %v97, 36
  %v583 = vpop.permute.xlu0 %582
  %vm584 = vcmask 293888
  %v585 = vsel %vm584, %v577, %v579
  %v586 = vsel %vm584, %v579, %v581
  %v587 = vsel %vm584, %v581, %v583
  %592 = vst [vmem:[#allocation3 + $0x300] sm:$0xff] %v585
  %593 = vst [vmem:[#allocation3 + $0x308] sm:$0xff] %v586
  %594 = vst [vmem:[#allocation3 + $0x310] sm:$0xff] %v587
  %595 = vst.msk [vmem:[#allocation3 + $0x318] sm:$0xff] %vm101, %v583
  %596 = vrot.lane.b32.xlu0 %v94, 35
  %v597 = vpop.permute.xlu0 %596
  %598 = vrot.lane.b32.xlu0 %v95, 35
  %v599 = vpop.permute.xlu0 %598
  %600 = vrot.lane.b32.xlu0 %v96, 35
  %v601 = vpop.permute.xlu0 %600
  %602 = vrot.lane.b32.xlu0 %v97, 35
  %v603 = vpop.permute.xlu0 %602
  %vm604 = vcmask 285696
  %v605 = vsel %vm604, %v597, %v599
  %v606 = vsel %vm604, %v599, %v601
  %v607 = vsel %vm604, %v601, %v603
  %612 = vst [vmem:[#allocation3 + $0x320] sm:$0xff] %v605
  %613 = vst [vmem:[#allocation3 + $0x328] sm:$0xff] %v606
  %614 = vst [vmem:[#allocation3 + $0x330] sm:$0xff] %v607
  %615 = vst.msk [vmem:[#allocation3 + $0x338] sm:$0xff] %vm101, %v603
  %616 = vrot.lane.b32.xlu0 %v94, 34
  %v617 = vpop.permute.xlu0 %616
  %618 = vrot.lane.b32.xlu0 %v95, 34
  %v619 = vpop.permute.xlu0 %618
  %620 = vrot.lane.b32.xlu0 %v96, 34
  %v621 = vpop.permute.xlu0 %620
  %622 = vrot.lane.b32.xlu0 %v97, 34
  %v623 = vpop.permute.xlu0 %622
  %vm624 = vcmask 277504
  %v625 = vsel %vm624, %v617, %v619
  %v626 = vsel %vm624, %v619, %v621
  %v627 = vsel %vm624, %v621, %v623
  %632 = vst [vmem:[#allocation3 + $0x340] sm:$0xff] %v625
  %633 = vst [vmem:[#allocation3 + $0x348] sm:$0xff] %v626
  %634 = vst [vmem:[#allocation3 + $0x350] sm:$0xff] %v627
  %635 = vst.msk [vmem:[#allocation3 + $0x358] sm:$0xff] %vm101, %v623
  %v636 = vld [vmem:[%s1] sm:$0xff]
  %v637 = vld [vmem:[%s1 + $0x8] sm:$0xff]
  %v638 = vld [vmem:[%s1 + $0x10] sm:$0xff]
  %v639 = vld [vmem:[%s1 + $0x18] sm:$0xff]
  %v640 = vld [vmem:[#allocation3] sm:$0xff]
  %v641 = vld [vmem:[#allocation3 + $0x8] sm:$0xff]
  %v642 = vld [vmem:[#allocation3 + $0x10] sm:$0xff]
  %v643 = vld [vmem:[#allocation3 + $0x18] sm:$0xff]
  %v644 = vld [vmem:[#allocation3 + $0x20] sm:$0xff]
  %v645 = vld [vmem:[#allocation3 + $0x28] sm:$0xff]
  %v646 = vld [vmem:[#allocation3 + $0x30] sm:$0xff]
  %v647 = vld [vmem:[#allocation3 + $0x38] sm:$0xff]
  %v648 = vld [vmem:[#allocation3 + $0x40] sm:$0xff]
  %v649 = vld [vmem:[#allocation3 + $0x48] sm:$0xff]
  %v650 = vld [vmem:[#allocation3 + $0x50] sm:$0xff]
  %v651 = vld [vmem:[#allocation3 + $0x58] sm:$0xff]
  %v652 = vld [vmem:[#allocation3 + $0x60] sm:$0xff]
  %v653 = vld [vmem:[#allocation3 + $0x68] sm:$0xff]
  %v654 = vld [vmem:[#allocation3 + $0x70] sm:$0xff]
  %v655 = vld [vmem:[#allocation3 + $0x78] sm:$0xff]
  %v656 = vld [vmem:[#allocation3 + $0x80] sm:$0xff]
  %v657 = vld [vmem:[#allocation3 + $0x88] sm:$0xff]
  %v658 = vld [vmem:[#allocation3 + $0x90] sm:$0xff]
  %v659 = vld [vmem:[#allocation3 + $0x98] sm:$0xff]
  %v660 = vld [vmem:[#allocation3 + $0xa0] sm:$0xff]
  %v661 = vld [vmem:[#allocation3 + $0xa8] sm:$0xff]
  %v662 = vld [vmem:[#allocation3 + $0xb0] sm:$0xff]
  %v663 = vld [vmem:[#allocation3 + $0xb8] sm:$0xff]
  %v664 = vld [vmem:[#allocation3 + $0xc0] sm:$0xff]
  %v665 = vld [vmem:[#allocation3 + $0xc8] sm:$0xff]
  %v666 = vld [vmem:[#allocation3 + $0xd0] sm:$0xff]
  %v667 = vld [vmem:[#allocation3 + $0xd8] sm:$0xff]
  %v668 = vld [vmem:[#allocation3 + $0xe0] sm:$0xff]
  %v669 = vld [vmem:[#allocation3 + $0xe8] sm:$0xff]
  %v670 = vld [vmem:[#allocation3 + $0xf0] sm:$0xff]
  %v671 = vld [vmem:[#allocation3 + $0xf8] sm:$0xff]
  %v672 = vld [vmem:[#allocation3 + $0x100] sm:$0xff]
  %v673 = vld [vmem:[#allocation3 + $0x108] sm:$0xff]
  %v674 = vld [vmem:[#allocation3 + $0x110] sm:$0xff]
  %v675 = vld [vmem:[#allocation3 + $0x118] sm:$0xff]
  %v676 = vld [vmem:[#allocation3 + $0x120] sm:$0xff]
  %v677 = vld [vmem:[#allocation3 + $0x128] sm:$0xff]
  %v678 = vld [vmem:[#allocation3 + $0x130] sm:$0xff]
  %v679 = vld [vmem:[#allocation3 + $0x138] sm:$0xff]
  %v680 = vld [vmem:[#allocation3 + $0x140] sm:$0xff]
  %v681 = vld [vmem:[#allocation3 + $0x148] sm:$0xff]
  %v682 = vld [vmem:[#allocation3 + $0x150] sm:$0xff]
  %v683 = vld [vmem:[#allocation3 + $0x158] sm:$0xff]
  %v684 = vld [vmem:[#allocation3 + $0x160] sm:$0xff]
  %v685 = vld [vmem:[#allocation3 + $0x168] sm:$0xff]
  %v686 = vld [vmem:[#allocation3 + $0x170] sm:$0xff]
  %v687 = vld [vmem:[#allocation3 + $0x178] sm:$0xff]
  %v688 = vld [vmem:[#allocation3 + $0x180] sm:$0xff]
  %v689 = vld [vmem:[#allocation3 + $0x188] sm:$0xff]
  %v690 = vld [vmem:[#allocation3 + $0x190] sm:$0xff]
  %v691 = vld [vmem:[#allocation3 + $0x198] sm:$0xff]
  %v692 = vld [vmem:[#allocation3 + $0x1a0] sm:$0xff]
  %v693 = vld [vmem:[#allocation3 + $0x1a8] sm:$0xff]
  %v694 = vld [vmem:[#allocation3 + $0x1b0] sm:$0xff]
  %v695 = vld [vmem:[#allocation3 + $0x1b8] sm:$0xff]
  %v696 = vld [vmem:[#allocation3 + $0x1c0] sm:$0xff]
  %v697 = vld [vmem:[#allocation3 + $0x1c8] sm:$0xff]
  %v698 = vld [vmem:[#allocation3 + $0x1d0] sm:$0xff]
  %v699 = vld [vmem:[#allocation3 + $0x1d8] sm:$0xff]
  %v700 = vld [vmem:[#allocation3 + $0x1e0] sm:$0xff]
  %v701 = vld [vmem:[#allocation3 + $0x1e8] sm:$0xff]
  %v702 = vld [vmem:[#allocation3 + $0x1f0] sm:$0xff]
  %v703 = vld [vmem:[#allocation3 + $0x1f8] sm:$0xff]
  %v704 = vld [vmem:[#allocation3 + $0x200] sm:$0xff]
  %v705 = vld [vmem:[#allocation3 + $0x208] sm:$0xff]
  %v706 = vld [vmem:[#allocation3 + $0x210] sm:$0xff]
  %v707 = vld [vmem:[#allocation3 + $0x218] sm:$0xff]
  %v708 = vld [vmem:[#allocation3 + $0x220] sm:$0xff]
  %v709 = vld [vmem:[#allocation3 + $0x228] sm:$0xff]
  %v710 = vld [vmem:[#allocation3 + $0x230] sm:$0xff]
  %v711 = vld [vmem:[#allocation3 + $0x238] sm:$0xff]
  %v712 = vld [vmem:[#allocation3 + $0x240] sm:$0xff]
  %v713 = vld [vmem:[#allocation3 + $0x248] sm:$0xff]
  %v714 = vld [vmem:[#allocation3 + $0x250] sm:$0xff]
  %v715 = vld [vmem:[#allocation3 + $0x258] sm:$0xff]
  %v716 = vld [vmem:[#allocation3 + $0x260] sm:$0xff]
  %v717 = vld [vmem:[#allocation3 + $0x268] sm:$0xff]
  %v718 = vld [vmem:[#allocation3 + $0x270] sm:$0xff]
  %v719 = vld [vmem:[#allocation3 + $0x278] sm:$0xff]
  %v720 = vld [vmem:[#allocation3 + $0x280] sm:$0xff]
  %v721 = vld [vmem:[#allocation3 + $0x288] sm:$0xff]
  %v722 = vld [vmem:[#allocation3 + $0x290] sm:$0xff]
  %v723 = vld [vmem:[#allocation3 + $0x298] sm:$0xff]
  %v724 = vld [vmem:[#allocation3 + $0x2a0] sm:$0xff]
  %v725 = vld [vmem:[#allocation3 + $0x2a8] sm:$0xff]
  %v726 = vld [vmem:[#allocation3 + $0x2b0] sm:$0xff]
  %v727 = vld [vmem:[#allocation3 + $0x2b8] sm:$0xff]
  %v728 = vld [vmem:[#allocation3 + $0x2c0] sm:$0xff]
  %v729 = vld [vmem:[#allocation3 + $0x2c8] sm:$0xff]
  %v730 = vld [vmem:[#allocation3 + $0x2d0] sm:$0xff]
  %v731 = vld [vmem:[#allocation3 + $0x2d8] sm:$0xff]
  %v732 = vld [vmem:[#allocation3 + $0x2e0] sm:$0xff]
  %v733 = vld [vmem:[#allocation3 + $0x2e8] sm:$0xff]
  %v734 = vld [vmem:[#allocation3 + $0x2f0] sm:$0xff]
  %v735 = vld [vmem:[#allocation3 + $0x2f8] sm:$0xff]
  %v736 = vld [vmem:[#allocation3 + $0x300] sm:$0xff]
  %v737 = vld [vmem:[#allocation3 + $0x308] sm:$0xff]
  %v738 = vld [vmem:[#allocation3 + $0x310] sm:$0xff]
  %v739 = vld [vmem:[#allocation3 + $0x318] sm:$0xff]
  %v740 = vld [vmem:[#allocation3 + $0x320] sm:$0xff]
  %v741 = vld [vmem:[#allocation3 + $0x328] sm:$0xff]
  %v742 = vld [vmem:[#allocation3 + $0x330] sm:$0xff]
  %v743 = vld [vmem:[#allocation3 + $0x338] sm:$0xff]
  %v744 = vld [vmem:[#allocation3 + $0x340] sm:$0xff]
  %v745 = vld [vmem:[#allocation3 + $0x348] sm:$0xff]
  %v746 = vld [vmem:[#allocation3 + $0x350] sm:$0xff]
  %v747 = vld [vmem:[#allocation3 + $0x358] sm:$0xff]
  %v748 = vld [vmem:[%s2] sm:$0xff]
  %v749 = vld [vmem:[%s2 + $0x8] sm:$0xff]
  %751 = vset.pattern.permute.xlu0 0
  %752 = vperm.xlu0 %751, %v748
  %v753 = vpop.permute.xlu0 %752
  %756 = vset.pattern.permute.xlu0 0
  %757 = vperm.xlu0 %756, %v749
  %v758 = vpop.permute.xlu0 %757
  %vm760 = vcmask 719872
  %v762 = vsel %vm760, %v637, 0
  %v765 = vsel %vm760, %v639, 0
  %767 = vmatprep.subr.mxu0 %v641
  %768 = vmatpush1.msra.mxu0 %v640
  %769 = vmatprep.subr.mxu0 %v645
  %770 = vmatpush1.msra.mxu0 %v644
  %771 = vmatprep.subr.mxu0 %v649
  %772 = vmatpush1.msra.mxu0 %v648
  %773 = vmatprep.subr.mxu0 %v653
  %774 = vmatpush1.msra.mxu0 %v652
  %775 = vmatprep.subr.mxu0 %v657
  %776 = vmatpush1.msra.mxu0 %v656
  %777 = vmatprep.subr.mxu0 %v661
  %778 = vmatpush1.msra.mxu0 %v660
  %779 = vmatprep.subr.mxu0 %v665
  %780 = vmatpush1.msra.mxu0 %v664
  %781 = vmatprep.subr.mxu0 %v669
  %782 = vmatpush1.msra.mxu0 %v668
  %783 = vmatprep.subr.mxu0 %v673
  %784 = vmatpush1.msra.mxu0 %v672
  %785 = vmatprep.subr.mxu0 %v677
  %786 = vmatpush1.msra.mxu0 %v676
  %787 = vmatprep.subr.mxu0 %v681
  %788 = vmatpush1.msra.mxu0 %v680
  %789 = vmatprep.subr.mxu0 %v685
  %790 = vmatpush1.msra.mxu0 %v684
  %791 = vmatprep.subr.mxu0 %v689
  %792 = vmatpush1.msra.mxu0 %v688
  %793 = vmatprep.subr.mxu0 %v693
  %794 = vmatpush1.msra.mxu0 %v692
  %795 = vmatprep.subr.mxu0 %v697
  %796 = vmatpush1.msra.mxu0 %v696
  %797 = vmatprep.subr.mxu0 %v701
  %798 = vmatpush1.msra.mxu0 %v700
  %799 = vmatprep.subr.mxu0 %v705
  %800 = vmatpush1.msra.mxu0 %v704
  %801 = vmatprep.subr.mxu0 %v709
  %802 = vmatpush1.msra.mxu0 %v708
  %803 = vmatprep.subr.mxu0 %v713
  %804 = vmatpush1.msra.mxu0 %v712
  %805 = vmatprep.subr.mxu0 %v717
  %806 = vmatpush1.msra.mxu0 %v716
  %807 = vmatprep.subr.mxu0 %v721
  %808 = vmatpush1.msra.mxu0 %v720
  %809 = vmatprep.subr.mxu0 %v725
  %810 = vmatpush1.msra.mxu0 %v724
  %811 = vmatprep.subr.mxu0 %v729
  %812 = vmatpush1.msra.mxu0 %v728
  %813 = vmatprep.subr.mxu0 %v733
  %814 = vmatpush1.msra.mxu0 %v732
  %815 = vmatprep.subr.mxu0 %v737
  %816 = vmatpush1.msra.mxu0 %v736
  %817 = vmatprep.subr.mxu0 %v741
  %818 = vmatpush1.msra.mxu0 %v740
  %819 = vmatprep.subr.mxu0 %v745
  %820 = vmatpush1.msra.mxu0 %v744
  %821 = vmatprep.subr.mxu0 0.0
  %822 = vmatpush1.msra.mxu0 0.0
  %823 = vmatprep.subr.mxu0 0.0
  %824 = vmatpush1.msra.mxu0 0.0
  %825 = vmatprep.subr.mxu0 0.0
  %826 = vmatpush1.msra.mxu0 0.0
  %827 = vmatprep.subr.mxu0 0.0
  %828 = vmatpush1.msra.mxu0 0.0
  %829 = vmatprep.subr.mxu0 0.0
  %830 = vmatpush1.msra.mxu0 0.0
  %831 = vmatprep.mubr.f32.mxu0 %v762
  %832 = vmatmul.mubr.f32.gmra.mrb[0].mxu0 %v636
  %v833 = vpop.f32.mrb[0].mxu0
  %v834 = vadd.f32 %v753, %v833
  %v835 = vpop.f32.mrb[0].mxu0
  %v836 = vadd.f32 %v753, %v835
  %837 = vmatprep.mubr.f32.mxu0 %v765
  %838 = vmatmul.mubr.f32.gmra.mrb[0].mxu0 %v638
  %v839 = vpop.f32.mrb[0].mxu0
  %v840 = vadd.f32 %v758, %v839
  %v841 = vpop.f32.mrb[0].mxu0
  %v842 = vadd.f32 %v758, %v841
  %843 = vdwg.mxu0
  %844 = vmatprep.subr.mxu0 %v643
  %845 = vmatpush1.msra.mxu0 %v642
  %846 = vmatprep.subr.mxu0 %v647
  %847 = vmatpush1.msra.mxu0 %v646
  %848 = vmatprep.subr.mxu0 %v651
  %849 = vmatpush1.msra.mxu0 %v650
  %850 = vmatprep.subr.mxu0 %v655
  %851 = vmatpush1.msra.mxu0 %v654
  %852 = vmatprep.subr.mxu0 %v659
  %853 = vmatpush1.msra.mxu0 %v658
  %854 = vmatprep.subr.mxu0 %v663
  %855 = vmatpush1.msra.mxu0 %v662
  %856 = vmatprep.subr.mxu0 %v667
  %857 = vmatpush1.msra.mxu0 %v666
  %858 = vmatprep.subr.mxu0 %v671
  %859 = vmatpush1.msra.mxu0 %v670
  %860 = vmatprep.subr.mxu0 %v675
  %861 = vmatpush1.msra.mxu0 %v674
  %862 = vmatprep.subr.mxu0 %v679
  %863 = vmatpush1.msra.mxu0 %v678
  %864 = vmatprep.subr.mxu0 %v683
  %865 = vmatpush1.msra.mxu0 %v682
  %866 = vmatprep.subr.mxu0 %v687
  %867 = vmatpush1.msra.mxu0 %v686
  %868 = vmatprep.subr.mxu0 %v691
  %869 = vmatpush1.msra.mxu0 %v690
  %870 = vmatprep.subr.mxu0 %v695
  %871 = vmatpush1.msra.mxu0 %v694
  %872 = vmatprep.subr.mxu0 %v699
  %873 = vmatpush1.msra.mxu0 %v698
  %874 = vmatprep.subr.mxu0 %v703
  %875 = vmatpush1.msra.mxu0 %v702
  %876 = vmatprep.subr.mxu0 %v707
  %877 = vmatpush1.msra.mxu0 %v706
  %878 = vmatprep.subr.mxu0 %v711
  %879 = vmatpush1.msra.mxu0 %v710
  %880 = vmatprep.subr.mxu0 %v715
  %881 = vmatpush1.msra.mxu0 %v714
  %882 = vmatprep.subr.mxu0 %v719
  %883 = vmatpush1.msra.mxu0 %v718
  %884 = vmatprep.subr.mxu0 %v723
  %885 = vmatpush1.msra.mxu0 %v722
  %886 = vmatprep.subr.mxu0 %v727
  %887 = vmatpush1.msra.mxu0 %v726
  %888 = vmatprep.subr.mxu0 %v731
  %889 = vmatpush1.msra.mxu0 %v730
  %890 = vmatprep.subr.mxu0 %v735
  %891 = vmatpush1.msra.mxu0 %v734
  %892 = vmatprep.subr.mxu0 %v739
  %893 = vmatpush1.msra.mxu0 %v738
  %894 = vmatprep.subr.mxu0 %v743
  %895 = vmatpush1.msra.mxu0 %v742
  %896 = vmatprep.subr.mxu0 %v747
  %897 = vmatpush1.msra.mxu0 %v746
  %898 = vmatprep.subr.mxu0 0.0
  %899 = vmatpush1.msra.mxu0 0.0
  %900 = vmatprep.subr.mxu0 0.0
  %901 = vmatpush1.msra.mxu0 0.0
  %902 = vmatprep.subr.mxu0 0.0
  %903 = vmatpush1.msra.mxu0 0.0
  %904 = vmatprep.subr.mxu0 0.0
  %905 = vmatpush1.msra.mxu0 0.0
  %906 = vmatprep.subr.mxu0 0.0
  %907 = vmatpush1.msra.mxu0 0.0
  %908 = vmatprep.mubr.f32.mxu0 %v762
  %909 = vmatmul.mubr.f32.gmra.mrb[0].mxu0 %v636
  %v910 = vpop.f32.mrb[0].mxu0
  %v911 = vadd.f32 %v753, %v910
  %v912 = vpop.f32.mrb[0].mxu0
  %v913 = vadd.f32 %v753, %v912
  %914 = vmatprep.mubr.f32.mxu0 %v765
  %915 = vmatmul.mubr.f32.gmra.mrb[0].mxu0 %v638
  %v916 = vpop.f32.mrb[0].mxu0
  %v917 = vadd.f32 %v758, %v916
  %v918 = vpop.f32.mrb[0].mxu0
  %v919 = vadd.f32 %v758, %v918
  %920 = vdwg.mxu0
  %v921 = vmax.f32 %v834, 0.0
  %v922 = vmax.f32 %v836, 0.0
  %v923 = vmax.f32 %v911, 0.0
  %v924 = vmax.f32 %v913, 0.0
  %v925 = vmax.f32 %v840, 0.0
  %v926 = vmax.f32 %v842, 0.0
  %v927 = vmax.f32 %v917, 0.0
  %v928 = vmax.f32 %v919, 0.0
  %v929 = vld [vmem:[%s5] sm:$0xf]
  %v931 = vlaneseq
  %v932 = vshrl.u32 %v931, 7
  %v933 = vsub.s32 0, %v932
  %v934 = vrot.slane %v929, %v933
  %v935 = vlaneseq
  %v936 = vshrl.u32 %v935, 7
  %v937 = vsub.s32 1, %v936
  %v938 = vrot.slane %v929, %v937
  %v939 = vlaneseq
  %v940 = vshrl.u32 %v939, 7
  %v941 = vsub.s32 2, %v940
  %v942 = vrot.slane %v929, %v941
  %v943 = vlaneseq
  %v944 = vshrl.u32 %v943, 7
  %v945 = vsub.s32 3, %v944
  %v946 = vrot.slane %v929, %v945
  %v951 = vmul.f32 %v921, %v934
  %v952 = vmul.f32 %v922, %v938
  %v953 = vmul.f32 %v923, %v942
  %v954 = vmul.f32 %v924, %v946
  %v955 = vmul.f32 %v925, %v934
  %v956 = vmul.f32 %v926, %v938
  %v957 = vmul.f32 %v927, %v942
  %v958 = vmul.f32 %v928, %v946
  %959 = vst [vmem:[#allocation2] sm:$0xff] 0.0
  %960 = vst [vmem:[#allocation2 + $0x8] sm:$0xff] 0.0
  %961 = vst [vmem:[#allocation2 + $0x10] sm:$0xff] 0.0
  %962 = vst [vmem:[#allocation2 + $0x18] sm:$0xff] 0.0
  %vm963 = vcmask 900096
  %964 = vst.msk [vmem:[#allocation2 + $0x20] sm:$0xff] %vm963, 0.0
  %965 = vst [vmem:[#allocation2 + $0x28] sm:$0xff] 0.0
  %966 = vst [vmem:[#allocation2 + $0x30] sm:$0xff] 0.0
  %967 = vst [vmem:[#allocation2 + $0x38] sm:$0xff] 0.0
  %968 = vst [vmem:[#allocation2 + $0x40] sm:$0xff] 0.0
  %969 = vst.msk [vmem:[#allocation2 + $0x48] sm:$0xff] %vm963, 0.0
  %978 = vrot.lane.b32.xlu0 %v951, 111
  %v979 = vpop.permute.xlu0 %978
  %980 = vrot.lane.b32.xlu0 %v952, 111
  %v981 = vpop.permute.xlu0 %980
  %982 = vrot.lane.b32.xlu0 %v953, 111
  %v983 = vpop.permute.xlu0 %982
  %984 = vrot.lane.b32.xlu0 %v954, 111
  %v985 = vpop.permute.xlu0 %984
  %986 = vrot.lane.b32.xlu0 %v955, 111
  %v987 = vpop.permute.xlu0 %986
  %988 = vrot.lane.b32.xlu0 %v956, 111
  %v989 = vpop.permute.xlu0 %988
  %990 = vrot.lane.b32.xlu0 %v957, 111
  %v991 = vpop.permute.xlu0 %990
  %992 = vrot.lane.b32.xlu0 %v958, 111
  %v993 = vpop.permute.xlu0 %992
  %vm994 = vcmask 908288
  %v995 = vsel %vm994, %v979, %v981
  %v996 = vsel %vm994, %v981, %v983
  %v997 = vsel %vm994, %v983, %v985
  %v998 = vsel %vm994, %v987, %v989
  %v999 = vsel %vm994, %v989, %v991
  %v1000 = vsel %vm994, %v991, %v993
  %vm1009 = vcmask 1048440
  %1010 = vst.msk [vmem:[#allocation2] sm:$0xff] %vm1009, %v979
  %1011 = vst [vmem:[#allocation2 + $0x8] sm:$0xff] %v995
  %1012 = vst [vmem:[#allocation2 + $0x10] sm:$0xff] %v996
  %1013 = vst.msk [vmem:[#allocation2 + $0x18] sm:$0xff] %vm115, %v997
  %1014 = vst.msk [vmem:[#allocation2 + $0x28] sm:$0xff] %vm1009, %v987
  %1015 = vst [vmem:[#allocation2 + $0x30] sm:$0xff] %v998
  %1016 = vst [vmem:[#allocation2 + $0x38] sm:$0xff] %v999
  %1017 = vst.msk [vmem:[#allocation2 + $0x40] sm:$0xff] %vm115, %v1000
  %v1018 = vld [vmem:[#allocation2] sm:$0xff]
  %v1019 = vld [vmem:[#allocation2 + $0x8] sm:$0xff]
  %v1020 = vld [vmem:[#allocation2 + $0x10] sm:$0xff]
  %v1021 = vld [vmem:[#allocation2 + $0x18] sm:$0xff]
  %v1022 = vld [vmem:[#allocation2 + $0x28] sm:$0xff]
  %v1023 = vld [vmem:[#allocation2 + $0x30] sm:$0xff]
  %v1024 = vld [vmem:[#allocation2 + $0x38] sm:$0xff]
  %v1025 = vld [vmem:[#allocation2 + $0x40] sm:$0xff]
  %1026 = vst [vmem:[#allocation3] sm:$0xff] %v1018
  %1027 = vst [vmem:[#allocation3 + $0x8] sm:$0xff] %v1019
  %1028 = vst [vmem:[#allocation3 + $0x10] sm:$0xff] %v1020
  %1029 = vst.msk [vmem:[#allocation3 + $0x18] sm:$0xff] %vm101, %v1021
  %1030 = vst [vmem:[#allocation3 + $0x20] sm:$0xff] %v1022
  %1031 = vst [vmem:[#allocation3 + $0x28] sm:$0xff] %v1023
  %1032 = vst [vmem:[#allocation3 + $0x30] sm:$0xff] %v1024
  %1033 = vst.msk [vmem:[#allocation3 + $0x38] sm:$0xff] %vm101, %v1025
  %v1034 = vld [vmem:[#allocation2] sm:$0xff]
  %v1035 = vld [vmem:[#allocation2 + $0x8] sm:$0xff]
  %v1036 = vld [vmem:[#allocation2 + $0x10] sm:$0xff]
  %v1037 = vld [vmem:[#allocation2 + $0x18] sm:$0xff]
  %v1038 = vld [vmem:[#allocation2 + $0x28] sm:$0xff]
  %v1039 = vld [vmem:[#allocation2 + $0x30] sm:$0xff]
  %v1040 = vld [vmem:[#allocation2 + $0x38] sm:$0xff]
  %v1041 = vld [vmem:[#allocation2 + $0x40] sm:$0xff]
  %1050 = vrot.lane.b32.xlu0 %v1034, 127
  %v1051 = vpop.permute.xlu0 %1050
  %1052 = vrot.lane.b32.xlu0 %v1035, 127
  %v1053 = vpop.permute.xlu0 %1052
  %1054 = vrot.lane.b32.xlu0 %v1036, 127
  %v1055 = vpop.permute.xlu0 %1054
  %1056 = vrot.lane.b32.xlu0 %v1037, 127
  %v1057 = vpop.permute.xlu0 %1056
  %1058 = vrot.lane.b32.xlu0 %v1038, 127
  %v1059 = vpop.permute.xlu0 %1058
  %1060 = vrot.lane.b32.xlu0 %v1039, 127
  %v1061 = vpop.permute.xlu0 %1060
  %1062 = vrot.lane.b32.xlu0 %v1040, 127
  %v1063 = vpop.permute.xlu0 %1062
  %1064 = vrot.lane.b32.xlu0 %v1041, 127
  %v1065 = vpop.permute.xlu0 %1064
  %v1066 = vsel %vm115, %v1051, %v1053
  %v1067 = vsel %vm115, %v1053, %v1055
  %v1068 = vsel %vm115, %v1055, %v1057
  %v1069 = vsel %vm115, %v1059, %v1061
  %v1070 = vsel %vm115, %v1061, %v1063
  %v1071 = vsel %vm115, %v1063, %v1065
  %1080 = vst [vmem:[#allocation3 + $0x40] sm:$0xff] %v1066
  %1081 = vst [vmem:[#allocation3 + $0x48] sm:$0xff] %v1067
  %1082 = vst [vmem:[#allocation3 + $0x50] sm:$0xff] %v1068
  %1083 = vst.msk [vmem:[#allocation3 + $0x58] sm:$0xff] %vm101, %v1057
  %1084 = vst [vmem:[#allocation3 + $0x60] sm:$0xff] %v1069
  %1085 = vst [vmem:[#allocation3 + $0x68] sm:$0xff] %v1070
  %1086 = vst [vmem:[#allocation3 + $0x70] sm:$0xff] %v1071
  %1087 = vst.msk [vmem:[#allocation3 + $0x78] sm:$0xff] %vm101, %v1065
  %v1088 = vld [vmem:[#allocation2] sm:$0xff]
  %v1089 = vld [vmem:[#allocation2 + $0x8] sm:$0xff]
  %v1090 = vld [vmem:[#allocation2 + $0x10] sm:$0xff]
  %v1091 = vld [vmem:[#allocation2 + $0x18] sm:$0xff]
  %v1092 = vld [vmem:[#allocation2 + $0x28] sm:$0xff]
  %v1093 = vld [vmem:[#allocation2 + $0x30] sm:$0xff]
  %v1094 = vld [vmem:[#allocation2 + $0x38] sm:$0xff]
  %v1095 = vld [vmem:[#allocation2 + $0x40] sm:$0xff]
  %1104 = vrot.lane.b32.xlu0 %v1088, 126
  %v1105 = vpop.permute.xlu0 %1104
  %1106 = vrot.lane.b32.xlu0 %v1089, 126
  %v1107 = vpop.permute.xlu0 %1106
  %1108 = vrot.lane.b32.xlu0 %v1090, 126
  %v1109 = vpop.permute.xlu0 %1108
  %1110 = vrot.lane.b32.xlu0 %v1091, 126
  %v1111 = vpop.permute.xlu0 %1110
  %1112 = vrot.lane.b32.xlu0 %v1092, 126
  %v1113 = vpop.permute.xlu0 %1112
  %1114 = vrot.lane.b32.xlu0 %v1093, 126
  %v1115 = vpop.permute.xlu0 %1114
  %1116 = vrot.lane.b32.xlu0 %v1094, 126
  %v1117 = vpop.permute.xlu0 %1116
  %1118 = vrot.lane.b32.xlu0 %v1095, 126
  %v1119 = vpop.permute.xlu0 %1118
  %v1120 = vsel %vm135, %v1105, %v1107
  %v1121 = vsel %vm135, %v1107, %v1109
  %v1122 = vsel %vm135, %v1109, %v1111
  %v1123 = vsel %vm135, %v1113, %v1115
  %v1124 = vsel %vm135, %v1115, %v1117
  %v1125 = vsel %vm135, %v1117, %v1119
  %1134 = vst [vmem:[#allocation3 + $0x80] sm:$0xff] %v1120
  %1135 = vst [vmem:[#allocation3 + $0x88] sm:$0xff] %v1121
  %1136 = vst [vmem:[#allocation3 + $0x90] sm:$0xff] %v1122
  %1137 = vst.msk [vmem:[#allocation3 + $0x98] sm:$0xff] %vm101, %v1111
  %1138 = vst [vmem:[#allocation3 + $0xa0] sm:$0xff] %v1123
  %1139 = vst [vmem:[#allocation3 + $0xa8] sm:$0xff] %v1124
  %1140 = vst [vmem:[#allocation3 + $0xb0] sm:$0xff] %v1125
  %1141 = vst.msk [vmem:[#allocation3 + $0xb8] sm:$0xff] %vm101, %v1119
  %v1142 = vld [vmem:[#allocation2] sm:$0xff]
  %v1143 = vld [vmem:[#allocation2 + $0x8] sm:$0xff]
  %v1144 = vld [vmem:[#allocation2 + $0x10] sm:$0xff]
  %v1145 = vld [vmem:[#allocation2 + $0x18] sm:$0xff]
  %v1146 = vld [vmem:[#allocation2 + $0x28] sm:$0xff]
  %v1147 = vld [vmem:[#allocation2 + $0x30] sm:$0xff]
  %v1148 = vld [vmem:[#allocation2 + $0x38] sm:$0xff]
  %v1149 = vld [vmem:[#allocation2 + $0x40] sm:$0xff]
  %1158 = vrot.lane.b32.xlu0 %v1142, 118
  %v1159 = vpop.permute.xlu0 %1158
  %1160 = vrot.lane.b32.xlu0 %v1143, 118
  %v1161 = vpop.permute.xlu0 %1160
  %1162 = vrot.lane.b32.xlu0 %v1144, 118
  %v1163 = vpop.permute.xlu0 %1162
  %1164 = vrot.lane.b32.xlu0 %v1145, 118
  %v1165 = vpop.permute.xlu0 %1164
  %1166 = vrot.lane.b32.xlu0 %v1146, 118
  %v1167 = vpop.permute.xlu0 %1166
  %1168 = vrot.lane.b32.xlu0 %v1147, 118
  %v1169 = vpop.permute.xlu0 %1168
  %1170 = vrot.lane.b32.xlu0 %v1148, 118
  %v1171 = vpop.permute.xlu0 %1170
  %1172 = vrot.lane.b32.xlu0 %v1149, 118
  %v1173 = vpop.permute.xlu0 %1172
  %v1174 = vsel %vm155, %v1159, %v1161
  %v1175 = vsel %vm155, %v1161, %v1163
  %v1176 = vsel %vm155, %v1163, %v1165
  %v1177 = vsel %vm155, %v1167, %v1169
  %v1178 = vsel %vm155, %v1169, %v1171
  %v1179 = vsel %vm155, %v1171, %v1173
  %1188 = vst [vmem:[#allocation3 + $0xc0] sm:$0xff] %v1174
  %1189 = vst [vmem:[#allocation3 + $0xc8] sm:$0xff] %v1175
  %1190 = vst [vmem:[#allocation3 + $0xd0] sm:$0xff] %v1176
  %1191 = vst.msk [vmem:[#allocation3 + $0xd8] sm:$0xff] %vm101, %v1165
  %1192 = vst [vmem:[#allocation3 + $0xe0] sm:$0xff] %v1177
  %1193 = vst [vmem:[#allocation3 + $0xe8] sm:$0xff] %v1178
  %1194 = vst [vmem:[#allocation3 + $0xf0] sm:$0xff] %v1179
  %1195 = vst.msk [vmem:[#allocation3 + $0xf8] sm:$0xff] %vm101, %v1173
  %v1196 = vld [vmem:[#allocation2] sm:$0xff]
  %v1197 = vld [vmem:[#allocation2 + $0x8] sm:$0xff]
  %v1198 = vld [vmem:[#allocation2 + $0x10] sm:$0xff]
  %v1199 = vld [vmem:[#allocation2 + $0x18] sm:$0xff]
  %v1200 = vld [vmem:[#allocation2 + $0x28] sm:$0xff]
  %v1201 = vld [vmem:[#allocation2 + $0x30] sm:$0xff]
  %v1202 = vld [vmem:[#allocation2 + $0x38] sm:$0xff]
  %v1203 = vld [vmem:[#allocation2 + $0x40] sm:$0xff]
  %1212 = vrot.lane.b32.xlu0 %v1196, 117
  %v1213 = vpop.permute.xlu0 %1212
  %1214 = vrot.lane.b32.xlu0 %v1197, 117
  %v1215 = vpop.permute.xlu0 %1214
  %1216 = vrot.lane.b32.xlu0 %v1198, 117
  %v1217 = vpop.permute.xlu0 %1216
  %1218 = vrot.lane.b32.xlu0 %v1199, 117
  %v1219 = vpop.permute.xlu0 %1218
  %1220 = vrot.lane.b32.xlu0 %v1200, 117
  %v1221 = vpop.permute.xlu0 %1220
  %1222 = vrot.lane.b32.xlu0 %v1201, 117
  %v1223 = vpop.permute.xlu0 %1222
  %1224 = vrot.lane.b32.xlu0 %v1202, 117
  %v1225 = vpop.permute.xlu0 %1224
  %1226 = vrot.lane.b32.xlu0 %v1203, 117
  %v1227 = vpop.permute.xlu0 %1226
  %v1228 = vsel %vm175, %v1213, %v1215
  %v1229 = vsel %vm175, %v1215, %v1217
  %v1230 = vsel %vm175, %v1217, %v1219
  %v1231 = vsel %vm175, %v1221, %v1223
  %v1232 = vsel %vm175, %v1223, %v1225
  %v1233 = vsel %vm175, %v1225, %v1227
  %1242 = vst [vmem:[#allocation3 + $0x100] sm:$0xff] %v1228
  %1243 = vst [vmem:[#allocation3 + $0x108] sm:$0xff] %v1229
  %1244 = vst [vmem:[#allocation3 + $0x110] sm:$0xff] %v1230
  %1245 = vst.msk [vmem:[#allocation3 + $0x118] sm:$0xff] %vm101, %v1219
  %1246 = vst [vmem:[#allocation3 + $0x120] sm:$0xff] %v1231
  %1247 = vst [vmem:[#allocation3 + $0x128] sm:$0xff] %v1232
  %1248 = vst [vmem:[#allocation3 + $0x130] sm:$0xff] %v1233
  %1249 = vst.msk [vmem:[#allocation3 + $0x138] sm:$0xff] %vm101, %v1227
  %v1250 = vld [vmem:[#allocation2] sm:$0xff]
  %v1251 = vld [vmem:[#allocation2 + $0x8] sm:$0xff]
  %v1252 = vld [vmem:[#allocation2 + $0x10] sm:$0xff]
  %v1253 = vld [vmem:[#allocation2 + $0x18] sm:$0xff]
  %v1254 = vld [vmem:[#allocation2 + $0x28] sm:$0xff]
  %v1255 = vld [vmem:[#allocation2 + $0x30] sm:$0xff]
  %v1256 = vld [vmem:[#allocation2 + $0x38] sm:$0xff]
  %v1257 = vld [vmem:[#allocation2 + $0x40] sm:$0xff]
  %1266 = vrot.lane.b32.xlu0 %v1250, 116
  %v1267 = vpop.permute.xlu0 %1266
  %1268 = vrot.lane.b32.xlu0 %v1251, 116
  %v1269 = vpop.permute.xlu0 %1268
  %1270 = vrot.lane.b32.xlu0 %v1252, 116
  %v1271 = vpop.permute.xlu0 %1270
  %1272 = vrot.lane.b32.xlu0 %v1253, 116
  %v1273 = vpop.permute.xlu0 %1272
  %1274 = vrot.lane.b32.xlu0 %v1254, 116
  %v1275 = vpop.permute.xlu0 %1274
  %1276 = vrot.lane.b32.xlu0 %v1255, 116
  %v1277 = vpop.permute.xlu0 %1276
  %1278 = vrot.lane.b32.xlu0 %v1256, 116
  %v1279 = vpop.permute.xlu0 %1278
  %1280 = vrot.lane.b32.xlu0 %v1257, 116
  %v1281 = vpop.permute.xlu0 %1280
  %v1282 = vsel %vm195, %v1267, %v1269
  %v1283 = vsel %vm195, %v1269, %v1271
  %v1284 = vsel %vm195, %v1271, %v1273
  %v1285 = vsel %vm195, %v1275, %v1277
  %v1286 = vsel %vm195, %v1277, %v1279
  %v1287 = vsel %vm195, %v1279, %v1281
  %1296 = vst [vmem:[#allocation3 + $0x140] sm:$0xff] %v1282
  %1297 = vst [vmem:[#allocation3 + $0x148] sm:$0xff] %v1283
  %1298 = vst [vmem:[#allocation3 + $0x150] sm:$0xff] %v1284
  %1299 = vst.msk [vmem:[#allocation3 + $0x158] sm:$0xff] %vm101, %v1273
  %1300 = vst [vmem:[#allocation3 + $0x160] sm:$0xff] %v1285
  %1301 = vst [vmem:[#allocation3 + $0x168] sm:$0xff] %v1286
  %1302 = vst [vmem:[#allocation3 + $0x170] sm:$0xff] %v1287
  %1303 = vst.msk [vmem:[#allocation3 + $0x178] sm:$0xff] %vm101, %v1281
  %v1304 = vld [vmem:[#allocation2] sm:$0xff]
  %v1305 = vld [vmem:[#allocation2 + $0x8] sm:$0xff]
  %v1306 = vld [vmem:[#allocation2 + $0x10] sm:$0xff]
  %v1307 = vld [vmem:[#allocation2 + $0x18] sm:$0xff]
  %v1308 = vld [vmem:[#allocation2 + $0x28] sm:$0xff]
  %v1309 = vld [vmem:[#allocation2 + $0x30] sm:$0xff]
  %v1310 = vld [vmem:[#allocation2 + $0x38] sm:$0xff]
  %v1311 = vld [vmem:[#allocation2 + $0x40] sm:$0xff]
  %1320 = vrot.lane.b32.xlu0 %v1304, 108
  %v1321 = vpop.permute.xlu0 %1320
  %1322 = vrot.lane.b32.xlu0 %v1305, 108
  %v1323 = vpop.permute.xlu0 %1322
  %1324 = vrot.lane.b32.xlu0 %v1306, 108
  %v1325 = vpop.permute.xlu0 %1324
  %1326 = vrot.lane.b32.xlu0 %v1307, 108
  %v1327 = vpop.permute.xlu0 %1326
  %1328 = vrot.lane.b32.xlu0 %v1308, 108
  %v1329 = vpop.permute.xlu0 %1328
  %1330 = vrot.lane.b32.xlu0 %v1309, 108
  %v1331 = vpop.permute.xlu0 %1330
  %1332 = vrot.lane.b32.xlu0 %v1310, 108
  %v1333 = vpop.permute.xlu0 %1332
  %1334 = vrot.lane.b32.xlu0 %v1311, 108
  %v1335 = vpop.permute.xlu0 %1334
  %v1336 = vsel %vm215, %v1321, %v1323
  %v1337 = vsel %vm215, %v1323, %v1325
  %v1338 = vsel %vm215, %v1325, %v1327
  %v1339 = vsel %vm215, %v1329, %v1331
  %v1340 = vsel %vm215, %v1331, %v1333
  %v1341 = vsel %vm215, %v1333, %v1335
  %1350 = vst [vmem:[#allocation3 + $0x180] sm:$0xff] %v1336
  %1351 = vst [vmem:[#allocation3 + $0x188] sm:$0xff] %v1337
  %1352 = vst [vmem:[#allocation3 + $0x190] sm:$0xff] %v1338
  %1353 = vst.msk [vmem:[#allocation3 + $0x198] sm:$0xff] %vm101, %v1327
  %1354 = vst [vmem:[#allocation3 + $0x1a0] sm:$0xff] %v1339
  %1355 = vst [vmem:[#allocation3 + $0x1a8] sm:$0xff] %v1340
  %1356 = vst [vmem:[#allocation3 + $0x1b0] sm:$0xff] %v1341
  %1357 = vst.msk [vmem:[#allocation3 + $0x1b8] sm:$0xff] %vm101, %v1335
  %v1358 = vld [vmem:[#allocation2] sm:$0xff]
  %v1359 = vld [vmem:[#allocation2 + $0x8] sm:$0xff]
  %v1360 = vld [vmem:[#allocation2 + $0x10] sm:$0xff]
  %v1361 = vld [vmem:[#allocation2 + $0x18] sm:$0xff]
  %v1362 = vld [vmem:[#allocation2 + $0x28] sm:$0xff]
  %v1363 = vld [vmem:[#allocation2 + $0x30] sm:$0xff]
  %v1364 = vld [vmem:[#allocation2 + $0x38] sm:$0xff]
  %v1365 = vld [vmem:[#allocation2 + $0x40] sm:$0xff]
  %1374 = vrot.lane.b32.xlu0 %v1358, 107
  %v1375 = vpop.permute.xlu0 %1374
  %1376 = vrot.lane.b32.xlu0 %v1359, 107
  %v1377 = vpop.permute.xlu0 %1376
  %1378 = vrot.lane.b32.xlu0 %v1360, 107
  %v1379 = vpop.permute.xlu0 %1378
  %1380 = vrot.lane.b32.xlu0 %v1361, 107
  %v1381 = vpop.permute.xlu0 %1380
  %1382 = vrot.lane.b32.xlu0 %v1362, 107
  %v1383 = vpop.permute.xlu0 %1382
  %1384 = vrot.lane.b32.xlu0 %v1363, 107
  %v1385 = vpop.permute.xlu0 %1384
  %1386 = vrot.lane.b32.xlu0 %v1364, 107
  %v1387 = vpop.permute.xlu0 %1386
  %1388 = vrot.lane.b32.xlu0 %v1365, 107
  %v1389 = vpop.permute.xlu0 %1388
  %v1390 = vsel %vm235, %v1375, %v1377
  %v1391 = vsel %vm235, %v1377, %v1379
  %v1392 = vsel %vm235, %v1379, %v1381
  %v1393 = vsel %vm235, %v1383, %v1385
  %v1394 = vsel %vm235, %v1385, %v1387
  %v1395 = vsel %vm235, %v1387, %v1389
  %1404 = vst [vmem:[#allocation3 + $0x1c0] sm:$0xff] %v1390
  %1405 = vst [vmem:[#allocation3 + $0x1c8] sm:$0xff] %v1391
  %1406 = vst [vmem:[#allocation3 + $0x1d0] sm:$0xff] %v1392
  %1407 = vst.msk [vmem:[#allocation3 + $0x1d8] sm:$0xff] %vm101, %v1381
  %1408 = vst [vmem:[#allocation3 + $0x1e0] sm:$0xff] %v1393
  %1409 = vst [vmem:[#allocation3 + $0x1e8] sm:$0xff] %v1394
  %1410 = vst [vmem:[#allocation3 + $0x1f0] sm:$0xff] %v1395
  %1411 = vst.msk [vmem:[#allocation3 + $0x1f8] sm:$0xff] %vm101, %v1389
  %v1412 = vld [vmem:[#allocation2] sm:$0xff]
  %v1413 = vld [vmem:[#allocation2 + $0x8] sm:$0xff]
  %v1414 = vld [vmem:[#allocation2 + $0x10] sm:$0xff]
  %v1415 = vld [vmem:[#allocation2 + $0x18] sm:$0xff]
  %v1416 = vld [vmem:[#allocation2 + $0x28] sm:$0xff]
  %v1417 = vld [vmem:[#allocation2 + $0x30] sm:$0xff]
  %v1418 = vld [vmem:[#allocation2 + $0x38] sm:$0xff]
  %v1419 = vld [vmem:[#allocation2 + $0x40] sm:$0xff]
  %1428 = vrot.lane.b32.xlu0 %v1412, 106
  %v1429 = vpop.permute.xlu0 %1428
  %1430 = vrot.lane.b32.xlu0 %v1413, 106
  %v1431 = vpop.permute.xlu0 %1430
  %1432 = vrot.lane.b32.xlu0 %v1414, 106
  %v1433 = vpop.permute.xlu0 %1432
  %1434 = vrot.lane.b32.xlu0 %v1415, 106
  %v1435 = vpop.permute.xlu0 %1434
  %1436 = vrot.lane.b32.xlu0 %v1416, 106
  %v1437 = vpop.permute.xlu0 %1436
  %1438 = vrot.lane.b32.xlu0 %v1417, 106
  %v1439 = vpop.permute.xlu0 %1438
  %1440 = vrot.lane.b32.xlu0 %v1418, 106
  %v1441 = vpop.permute.xlu0 %1440
  %1442 = vrot.lane.b32.xlu0 %v1419, 106
  %v1443 = vpop.permute.xlu0 %1442
  %v1444 = vsel %vm255, %v1429, %v1431
  %v1445 = vsel %vm255, %v1431, %v1433
  %v1446 = vsel %vm255, %v1433, %v1435
  %v1447 = vsel %vm255, %v1437, %v1439
  %v1448 = vsel %vm255, %v1439, %v1441
  %v1449 = vsel %vm255, %v1441, %v1443
  %1458 = vst [vmem:[#allocation3 + $0x200] sm:$0xff] %v1444
  %1459 = vst [vmem:[#allocation3 + $0x208] sm:$0xff] %v1445
  %1460 = vst [vmem:[#allocation3 + $0x210] sm:$0xff] %v1446
  %1461 = vst.msk [vmem:[#allocation3 + $0x218] sm:$0xff] %vm101, %v1435
  %1462 = vst [vmem:[#allocation3 + $0x220] sm:$0xff] %v1447
  %1463 = vst [vmem:[#allocation3 + $0x228] sm:$0xff] %v1448
  %1464 = vst [vmem:[#allocation3 + $0x230] sm:$0xff] %v1449
  %1465 = vst.msk [vmem:[#allocation3 + $0x238] sm:$0xff] %vm101, %v1443
  %v1466 = vld [vmem:[#allocation2] sm:$0xff]
  %v1467 = vld [vmem:[#allocation2 + $0x8] sm:$0xff]
  %v1468 = vld [vmem:[#allocation2 + $0x10] sm:$0xff]
  %v1469 = vld [vmem:[#allocation2 + $0x18] sm:$0xff]
  %v1470 = vld [vmem:[#allocation2 + $0x28] sm:$0xff]
  %v1471 = vld [vmem:[#allocation2 + $0x30] sm:$0xff]
  %v1472 = vld [vmem:[#allocation2 + $0x38] sm:$0xff]
  %v1473 = vld [vmem:[#allocation2 + $0x40] sm:$0xff]
  %1482 = vrot.lane.b32.xlu0 %v1466, 28
  %v1483 = vpop.permute.xlu0 %1482
  %1484 = vrot.lane.b32.xlu0 %v1467, 28
  %v1485 = vpop.permute.xlu0 %1484
  %1486 = vrot.lane.b32.xlu0 %v1468, 28
  %v1487 = vpop.permute.xlu0 %1486
  %1488 = vrot.lane.b32.xlu0 %v1469, 28
  %v1489 = vpop.permute.xlu0 %1488
  %1490 = vrot.lane.b32.xlu0 %v1470, 28
  %v1491 = vpop.permute.xlu0 %1490
  %1492 = vrot.lane.b32.xlu0 %v1471, 28
  %v1493 = vpop.permute.xlu0 %1492
  %1494 = vrot.lane.b32.xlu0 %v1472, 28
  %v1495 = vpop.permute.xlu0 %1494
  %1496 = vrot.lane.b32.xlu0 %v1473, 28
  %v1497 = vpop.permute.xlu0 %1496
  %v1498 = vsel %vm275, %v1483, %v1485
  %v1499 = vsel %vm275, %v1485, %v1487
  %v1500 = vsel %vm275, %v1487, %v1489
  %v1501 = vsel %vm275, %v1491, %v1493
  %v1502 = vsel %vm275, %v1493, %v1495
  %v1503 = vsel %vm275, %v1495, %v1497
  %1512 = vst [vmem:[#allocation3 + $0x240] sm:$0xff] %v1498
  %1513 = vst [vmem:[#allocation3 + $0x248] sm:$0xff] %v1499
  %1514 = vst [vmem:[#allocation3 + $0x250] sm:$0xff] %v1500
  %1515 = vst.msk [vmem:[#allocation3 + $0x258] sm:$0xff] %vm101, %v1489
  %1516 = vst [vmem:[#allocation3 + $0x260] sm:$0xff] %v1501
  %1517 = vst [vmem:[#allocation3 + $0x268] sm:$0xff] %v1502
  %1518 = vst [vmem:[#allocation3 + $0x270] sm:$0xff] %v1503
  %1519 = vst.msk [vmem:[#allocation3 + $0x278] sm:$0xff] %vm101, %v1497
  %v1520 = vld [vmem:[#allocation2] sm:$0xff]
  %v1521 = vld [vmem:[#allocation2 + $0x8] sm:$0xff]
  %v1522 = vld [vmem:[#allocation2 + $0x10] sm:$0xff]
  %v1523 = vld [vmem:[#allocation2 + $0x18] sm:$0xff]
  %v1524 = vld [vmem:[#allocation2 + $0x28] sm:$0xff]
  %v1525 = vld [vmem:[#allocation2 + $0x30] sm:$0xff]
  %v1526 = vld [vmem:[#allocation2 + $0x38] sm:$0xff]
  %v1527 = vld [vmem:[#allocation2 + $0x40] sm:$0xff]
  %1536 = vrot.lane.b32.xlu0 %v1520, 27
  %v1537 = vpop.permute.xlu0 %1536
  %1538 = vrot.lane.b32.xlu0 %v1521, 27
  %v1539 = vpop.permute.xlu0 %1538
  %1540 = vrot.lane.b32.xlu0 %v1522, 27
  %v1541 = vpop.permute.xlu0 %1540
  %1542 = vrot.lane.b32.xlu0 %v1523, 27
  %v1543 = vpop.permute.xlu0 %1542
  %1544 = vrot.lane.b32.xlu0 %v1524, 27
  %v1545 = vpop.permute.xlu0 %1544
  %1546 = vrot.lane.b32.xlu0 %v1525, 27
  %v1547 = vpop.permute.xlu0 %1546
  %1548 = vrot.lane.b32.xlu0 %v1526, 27
  %v1549 = vpop.permute.xlu0 %1548
  %1550 = vrot.lane.b32.xlu0 %v1527, 27
  %v1551 = vpop.permute.xlu0 %1550
  %v1552 = vsel %vm295, %v1537, %v1539
  %v1553 = vsel %vm295, %v1539, %v1541
  %v1554 = vsel %vm295, %v1541, %v1543
  %v1555 = vsel %vm295, %v1545, %v1547
  %v1556 = vsel %vm295, %v1547, %v1549
  %v1557 = vsel %vm295, %v1549, %v1551
  %1566 = vst [vmem:[#allocation3 + $0x280] sm:$0xff] %v1552
  %1567 = vst [vmem:[#allocation3 + $0x288] sm:$0xff] %v1553
  %1568 = vst [vmem:[#allocation3 + $0x290] sm:$0xff] %v1554
  %1569 = vst.msk [vmem:[#allocation3 + $0x298] sm:$0xff] %vm101, %v1543
  %1570 = vst [vmem:[#allocation3 + $0x2a0] sm:$0xff] %v1555
  %1571 = vst [vmem:[#allocation3 + $0x2a8] sm:$0xff] %v1556
  %1572 = vst [vmem:[#allocation3 + $0x2b0] sm:$0xff] %v1557
  %1573 = vst.msk [vmem:[#allocation3 + $0x2b8] sm:$0xff] %vm101, %v1551
  %v1574 = vld [vmem:[#allocation2] sm:$0xff]
  %v1575 = vld [vmem:[#allocation2 + $0x8] sm:$0xff]
  %v1576 = vld [vmem:[#allocation2 + $0x10] sm:$0xff]
  %v1577 = vld [vmem:[#allocation2 + $0x18] sm:$0xff]
  %v1578 = vld [vmem:[#allocation2 + $0x28] sm:$0xff]
  %v1579 = vld [vmem:[#allocation2 + $0x30] sm:$0xff]
  %v1580 = vld [vmem:[#allocation2 + $0x38] sm:$0xff]
  %v1581 = vld [vmem:[#allocation2 + $0x40] sm:$0xff]
  %1590 = vrot.lane.b32.xlu0 %v1574, 26
  %v1591 = vpop.permute.xlu0 %1590
  %1592 = vrot.lane.b32.xlu0 %v1575, 26
  %v1593 = vpop.permute.xlu0 %1592
  %1594 = vrot.lane.b32.xlu0 %v1576, 26
  %v1595 = vpop.permute.xlu0 %1594
  %1596 = vrot.lane.b32.xlu0 %v1577, 26
  %v1597 = vpop.permute.xlu0 %1596
  %1598 = vrot.lane.b32.xlu0 %v1578, 26
  %v1599 = vpop.permute.xlu0 %1598
  %1600 = vrot.lane.b32.xlu0 %v1579, 26
  %v1601 = vpop.permute.xlu0 %1600
  %1602 = vrot.lane.b32.xlu0 %v1580, 26
  %v1603 = vpop.permute.xlu0 %1602
  %1604 = vrot.lane.b32.xlu0 %v1581, 26
  %v1605 = vpop.permute.xlu0 %1604
  %v1606 = vsel %vm315, %v1591, %v1593
  %v1607 = vsel %vm315, %v1593, %v1595
  %v1608 = vsel %vm315, %v1595, %v1597
  %v1609 = vsel %vm315, %v1599, %v1601
  %v1610 = vsel %vm315, %v1601, %v1603
  %v1611 = vsel %vm315, %v1603, %v1605
  %1620 = vst [vmem:[#allocation3 + $0x2c0] sm:$0xff] %v1606
  %1621 = vst [vmem:[#allocation3 + $0x2c8] sm:$0xff] %v1607
  %1622 = vst [vmem:[#allocation3 + $0x2d0] sm:$0xff] %v1608
  %1623 = vst.msk [vmem:[#allocation3 + $0x2d8] sm:$0xff] %vm101, %v1597
  %1624 = vst [vmem:[#allocation3 + $0x2e0] sm:$0xff] %v1609
  %1625 = vst [vmem:[#allocation3 + $0x2e8] sm:$0xff] %v1610
  %1626 = vst [vmem:[#allocation3 + $0x2f0] sm:$0xff] %v1611
  %1627 = vst.msk [vmem:[#allocation3 + $0x2f8] sm:$0xff] %vm101, %v1605
  %v1628 = vld [vmem:[#allocation2] sm:$0xff]
  %v1629 = vld [vmem:[#allocation2 + $0x8] sm:$0xff]
  %v1630 = vld [vmem:[#allocation2 + $0x10] sm:$0xff]
  %v1631 = vld [vmem:[#allocation2 + $0x18] sm:$0xff]
  %v1632 = vld [vmem:[#allocation2 + $0x28] sm:$0xff]
  %v1633 = vld [vmem:[#allocation2 + $0x30] sm:$0xff]
  %v1634 = vld [vmem:[#allocation2 + $0x38] sm:$0xff]
  %v1635 = vld [vmem:[#allocation2 + $0x40] sm:$0xff]
  %1644 = vrot.lane.b32.xlu0 %v1628, 18
  %v1645 = vpop.permute.xlu0 %1644
  %1646 = vrot.lane.b32.xlu0 %v1629, 18
  %v1647 = vpop.permute.xlu0 %1646
  %1648 = vrot.lane.b32.xlu0 %v1630, 18
  %v1649 = vpop.permute.xlu0 %1648
  %1650 = vrot.lane.b32.xlu0 %v1631, 18
  %v1651 = vpop.permute.xlu0 %1650
  %1652 = vrot.lane.b32.xlu0 %v1632, 18
  %v1653 = vpop.permute.xlu0 %1652
  %1654 = vrot.lane.b32.xlu0 %v1633, 18
  %v1655 = vpop.permute.xlu0 %1654
  %1656 = vrot.lane.b32.xlu0 %v1634, 18
  %v1657 = vpop.permute.xlu0 %1656
  %1658 = vrot.lane.b32.xlu0 %v1635, 18
  %v1659 = vpop.permute.xlu0 %1658
  %v1660 = vsel %vm335, %v1645, %v1647
  %v1661 = vsel %vm335, %v1647, %v1649
  %v1662 = vsel %vm335, %v1649, %v1651
  %v1663 = vsel %vm335, %v1653, %v1655
  %v1664 = vsel %vm335, %v1655, %v1657
  %v1665 = vsel %vm335, %v1657, %v1659
  %1674 = vst [vmem:[#allocation3 + $0x300] sm:$0xff] %v1660
  %1675 = vst [vmem:[#allocation3 + $0x308] sm:$0xff] %v1661
  %1676 = vst [vmem:[#allocation3 + $0x310] sm:$0xff] %v1662
  %1677 = vst.msk [vmem:[#allocation3 + $0x318] sm:$0xff] %vm101, %v1651
  %1678 = vst [vmem:[#allocation3 + $0x320] sm:$0xff] %v1663
  %1679 = vst [vmem:[#allocation3 + $0x328] sm:$0xff] %v1664
  %1680 = vst [vmem:[#allocation3 + $0x330] sm:$0xff] %v1665
  %1681 = vst.msk [vmem:[#allocation3 + $0x338] sm:$0xff] %vm101, %v1659
  %v1682 = vld [vmem:[#allocation2] sm:$0xff]
  %v1683 = vld [vmem:[#allocation2 + $0x8] sm:$0xff]
  %v1684 = vld [vmem:[#allocation2 + $0x10] sm:$0xff]
  %v1685 = vld [vmem:[#allocation2 + $0x18] sm:$0xff]
  %v1686 = vld [vmem:[#allocation2 + $0x28] sm:$0xff]
  %v1687 = vld [vmem:[#allocation2 + $0x30] sm:$0xff]
  %v1688 = vld [vmem:[#allocation2 + $0x38] sm:$0xff]
  %v1689 = vld [vmem:[#allocation2 + $0x40] sm:$0xff]
  %1698 = vrot.lane.b32.xlu0 %v1682, 17
  %v1699 = vpop.permute.xlu0 %1698
  %1700 = vrot.lane.b32.xlu0 %v1683, 17
  %v1701 = vpop.permute.xlu0 %1700
  %1702 = vrot.lane.b32.xlu0 %v1684, 17
  %v1703 = vpop.permute.xlu0 %1702
  %1704 = vrot.lane.b32.xlu0 %v1685, 17
  %v1705 = vpop.permute.xlu0 %1704
  %1706 = vrot.lane.b32.xlu0 %v1686, 17
  %v1707 = vpop.permute.xlu0 %1706
  %1708 = vrot.lane.b32.xlu0 %v1687, 17
  %v1709 = vpop.permute.xlu0 %1708
  %1710 = vrot.lane.b32.xlu0 %v1688, 17
  %v1711 = vpop.permute.xlu0 %1710
  %1712 = vrot.lane.b32.xlu0 %v1689, 17
  %v1713 = vpop.permute.xlu0 %1712
  %v1714 = vsel %vm355, %v1699, %v1701
  %v1715 = vsel %vm355, %v1701, %v1703
  %v1716 = vsel %vm355, %v1703, %v1705
  %v1717 = vsel %vm355, %v1707, %v1709
  %v1718 = vsel %vm355, %v1709, %v1711
  %v1719 = vsel %vm355, %v1711, %v1713
  %1728 = vst [vmem:[#allocation3 + $0x340] sm:$0xff] %v1714
  %1729 = vst [vmem:[#allocation3 + $0x348] sm:$0xff] %v1715
  %1730 = vst [vmem:[#allocation3 + $0x350] sm:$0xff] %v1716
  %1731 = vst.msk [vmem:[#allocation3 + $0x358] sm:$0xff] %vm101, %v1705
  %1732 = vst [vmem:[#allocation3 + $0x360] sm:$0xff] %v1717
  %1733 = vst [vmem:[#allocation3 + $0x368] sm:$0xff] %v1718
  %1734 = vst [vmem:[#allocation3 + $0x370] sm:$0xff] %v1719
  %1735 = vst.msk [vmem:[#allocation3 + $0x378] sm:$0xff] %vm101, %v1713
  %v1736 = vld [vmem:[#allocation2] sm:$0xff]
  %v1737 = vld [vmem:[#allocation2 + $0x8] sm:$0xff]
  %v1738 = vld [vmem:[#allocation2 + $0x10] sm:$0xff]
  %v1739 = vld [vmem:[#allocation2 + $0x18] sm:$0xff]
  %v1740 = vld [vmem:[#allocation2 + $0x28] sm:$0xff]
  %v1741 = vld [vmem:[#allocation2 + $0x30] sm:$0xff]
  %v1742 = vld [vmem:[#allocation2 + $0x38] sm:$0xff]
  %v1743 = vld [vmem:[#allocation2 + $0x40] sm:$0xff]
  %1752 = vrot.lane.b32.xlu0 %v1736, 16
  %v1753 = vpop.permute.xlu0 %1752
  %1754 = vrot.lane.b32.xlu0 %v1737, 16
  %v1755 = vpop.permute.xlu0 %1754
  %1756 = vrot.lane.b32.xlu0 %v1738, 16
  %v1757 = vpop.permute.xlu0 %1756
  %1758 = vrot.lane.b32.xlu0 %v1739, 16
  %v1759 = vpop.permute.xlu0 %1758
  %1760 = vrot.lane.b32.xlu0 %v1740, 16
  %v1761 = vpop.permute.xlu0 %1760
  %1762 = vrot.lane.b32.xlu0 %v1741, 16
  %v1763 = vpop.permute.xlu0 %1762
  %1764 = vrot.lane.b32.xlu0 %v1742, 16
  %v1765 = vpop.permute.xlu0 %1764
  %1766 = vrot.lane.b32.xlu0 %v1743, 16
  %v1767 = vpop.permute.xlu0 %1766
  %v1768 = vsel %vm101, %v1753, %v1755
  %v1769 = vsel %vm101, %v1755, %v1757
  %v1770 = vsel %vm101, %v1757, %v1759
  %v1771 = vsel %vm101, %v1761, %v1763
  %v1772 = vsel %vm101, %v1763, %v1765
  %v1773 = vsel %vm101, %v1765, %v1767
  %1782 = vst [vmem:[#allocation3 + $0x380] sm:$0xff] %v1768
  %1783 = vst [vmem:[#allocation3 + $0x388] sm:$0xff] %v1769
  %1784 = vst [vmem:[#allocation3 + $0x390] sm:$0xff] %v1770
  %1785 = vst.msk [vmem:[#allocation3 + $0x398] sm:$0xff] %vm101, %v1759
  %1786 = vst [vmem:[#allocation3 + $0x3a0] sm:$0xff] %v1771
  %1787 = vst [vmem:[#allocation3 + $0x3a8] sm:$0xff] %v1772
  %1788 = vst [vmem:[#allocation3 + $0x3b0] sm:$0xff] %v1773
  %1789 = vst.msk [vmem:[#allocation3 + $0x3b8] sm:$0xff] %vm101, %v1767
  %v1790 = vld [vmem:[#allocation2] sm:$0xff]
  %v1791 = vld [vmem:[#allocation2 + $0x8] sm:$0xff]
  %v1792 = vld [vmem:[#allocation2 + $0x10] sm:$0xff]
  %v1793 = vld [vmem:[#allocation2 + $0x18] sm:$0xff]
  %v1794 = vld [vmem:[#allocation2 + $0x20] sm:$0xff]
  %v1795 = vld [vmem:[#allocation2 + $0x28] sm:$0xff]
  %v1796 = vld [vmem:[#allocation2 + $0x30] sm:$0xff]
  %v1797 = vld [vmem:[#allocation2 + $0x38] sm:$0xff]
  %v1798 = vld [vmem:[#allocation2 + $0x40] sm:$0xff]
  %v1799 = vld [vmem:[#allocation2 + $0x48] sm:$0xff]
  %1810 = vrot.lane.b32.xlu0 %v1790, 8
  %v1811 = vpop.permute.xlu0 %1810
  %1812 = vrot.lane.b32.xlu0 %v1791, 8
  %v1813 = vpop.permute.xlu0 %1812
  %1814 = vrot.lane.b32.xlu0 %v1792, 8
  %v1815 = vpop.permute.xlu0 %1814
  %1816 = vrot.lane.b32.xlu0 %v1793, 8
  %v1817 = vpop.permute.xlu0 %1816
  %1818 = vrot.lane.b32.xlu0 %v1794, 8
  %v1819 = vpop.permute.xlu0 %1818
  %1820 = vrot.lane.b32.xlu0 %v1795, 8
  %v1821 = vpop.permute.xlu0 %1820
  %1822 = vrot.lane.b32.xlu0 %v1796, 8
  %v1823 = vpop.permute.xlu0 %1822
  %1824 = vrot.lane.b32.xlu0 %v1797, 8
  %v1825 = vpop.permute.xlu0 %1824
  %1826 = vrot.lane.b32.xlu0 %v1798, 8
  %v1827 = vpop.permute.xlu0 %1826
  %1828 = vrot.lane.b32.xlu0 %v1799, 8
  %v1829 = vpop.permute.xlu0 %1828
  %v1830 = vsel %vm397, %v1811, %v1813
  %v1831 = vsel %vm397, %v1813, %v1815
  %v1832 = vsel %vm397, %v1815, %v1817
  %v1833 = vsel %vm397, %v1817, %v1819
  %v1834 = vsel %vm397, %v1821, %v1823
  %v1835 = vsel %vm397, %v1823, %v1825
  %v1836 = vsel %vm397, %v1825, %v1827
  %v1837 = vsel %vm397, %v1827, %v1829
  %1846 = vst [vmem:[#allocation3 + $0x3c0] sm:$0xff] %v1830
  %1847 = vst [vmem:[#allocation3 + $0x3c8] sm:$0xff] %v1831
  %1848 = vst [vmem:[#allocation3 + $0x3d0] sm:$0xff] %v1832
  %1849 = vst.msk [vmem:[#allocation3 + $0x3d8] sm:$0xff] %vm101, %v1833
  %1850 = vst [vmem:[#allocation3 + $0x3e0] sm:$0xff] %v1834
  %1851 = vst [vmem:[#allocation3 + $0x3e8] sm:$0xff] %v1835
  %1852 = vst [vmem:[#allocation3 + $0x3f0] sm:$0xff] %v1836
  %1853 = vst.msk [vmem:[#allocation3 + $0x3f8] sm:$0xff] %vm101, %v1837
  %v1854 = vld [vmem:[#allocation2] sm:$0xff]
  %v1855 = vld [vmem:[#allocation2 + $0x8] sm:$0xff]
  %v1856 = vld [vmem:[#allocation2 + $0x10] sm:$0xff]
  %v1857 = vld [vmem:[#allocation2 + $0x18] sm:$0xff]
  %v1858 = vld [vmem:[#allocation2 + $0x20] sm:$0xff]
  %v1859 = vld [vmem:[#allocation2 + $0x28] sm:$0xff]
  %v1860 = vld [vmem:[#allocation2 + $0x30] sm:$0xff]
  %v1861 = vld [vmem:[#allocation2 + $0x38] sm:$0xff]
  %v1862 = vld [vmem:[#allocation2 + $0x40] sm:$0xff]
  %v1863 = vld [vmem:[#allocation2 + $0x48] sm:$0xff]
  %1874 = vrot.lane.b32.xlu0 %v1854, 7
  %v1875 = vpop.permute.xlu0 %1874
  %1876 = vrot.lane.b32.xlu0 %v1855, 7
  %v1877 = vpop.permute.xlu0 %1876
  %1878 = vrot.lane.b32.xlu0 %v1856, 7
  %v1879 = vpop.permute.xlu0 %1878
  %1880 = vrot.lane.b32.xlu0 %v1857, 7
  %v1881 = vpop.permute.xlu0 %1880
  %1882 = vrot.lane.b32.xlu0 %v1858, 7
  %v1883 = vpop.permute.xlu0 %1882
  %1884 = vrot.lane.b32.xlu0 %v1859, 7
  %v1885 = vpop.permute.xlu0 %1884
  %1886 = vrot.lane.b32.xlu0 %v1860, 7
  %v1887 = vpop.permute.xlu0 %1886
  %1888 = vrot.lane.b32.xlu0 %v1861, 7
  %v1889 = vpop.permute.xlu0 %1888
  %1890 = vrot.lane.b32.xlu0 %v1862, 7
  %v1891 = vpop.permute.xlu0 %1890
  %1892 = vrot.lane.b32.xlu0 %v1863, 7
  %v1893 = vpop.permute.xlu0 %1892
  %v1894 = vsel %vm420, %v1875, %v1877
  %v1895 = vsel %vm420, %v1877, %v1879
  %v1896 = vsel %vm420, %v1879, %v1881
  %v1897 = vsel %vm420, %v1881, %v1883
  %v1898 = vsel %vm420, %v1885, %v1887
  %v1899 = vsel %vm420, %v1887, %v1889
  %v1900 = vsel %vm420, %v1889, %v1891
  %v1901 = vsel %vm420, %v1891, %v1893
  %1910 = vst [vmem:[#allocation3 + $0x400] sm:$0xff] %v1894
  %1911 = vst [vmem:[#allocation3 + $0x408] sm:$0xff] %v1895
  %1912 = vst [vmem:[#allocation3 + $0x410] sm:$0xff] %v1896
  %1913 = vst.msk [vmem:[#allocation3 + $0x418] sm:$0xff] %vm101, %v1897
  %1914 = vst [vmem:[#allocation3 + $0x420] sm:$0xff] %v1898
  %1915 = vst [vmem:[#allocation3 + $0x428] sm:$0xff] %v1899
  %1916 = vst [vmem:[#allocation3 + $0x430] sm:$0xff] %v1900
  %1917 = vst.msk [vmem:[#allocation3 + $0x438] sm:$0xff] %vm101, %v1901
  %v1918 = vld [vmem:[#allocation2] sm:$0xff]
  %v1919 = vld [vmem:[#allocation2 + $0x8] sm:$0xff]
  %v1920 = vld [vmem:[#allocation2 + $0x10] sm:$0xff]
  %v1921 = vld [vmem:[#allocation2 + $0x18] sm:$0xff]
  %v1922 = vld [vmem:[#allocation2 + $0x20] sm:$0xff]
  %v1923 = vld [vmem:[#allocation2 + $0x28] sm:$0xff]
  %v1924 = vld [vmem:[#allocation2 + $0x30] sm:$0xff]
  %v1925 = vld [vmem:[#allocation2 + $0x38] sm:$0xff]
  %v1926 = vld [vmem:[#allocation2 + $0x40] sm:$0xff]
  %v1927 = vld [vmem:[#allocation2 + $0x48] sm:$0xff]
  %1938 = vrot.lane.b32.xlu0 %v1918, 6
  %v1939 = vpop.permute.xlu0 %1938
  %1940 = vrot.lane.b32.xlu0 %v1919, 6
  %v1941 = vpop.permute.xlu0 %1940
  %1942 = vrot.lane.b32.xlu0 %v1920, 6
  %v1943 = vpop.permute.xlu0 %1942
  %1944 = vrot.lane.b32.xlu0 %v1921, 6
  %v1945 = vpop.permute.xlu0 %1944
  %1946 = vrot.lane.b32.xlu0 %v1922, 6
  %v1947 = vpop.permute.xlu0 %1946
  %1948 = vrot.lane.b32.xlu0 %v1923, 6
  %v1949 = vpop.permute.xlu0 %1948
  %1950 = vrot.lane.b32.xlu0 %v1924, 6
  %v1951 = vpop.permute.xlu0 %1950
  %1952 = vrot.lane.b32.xlu0 %v1925, 6
  %v1953 = vpop.permute.xlu0 %1952
  %1954 = vrot.lane.b32.xlu0 %v1926, 6
  %v1955 = vpop.permute.xlu0 %1954
  %1956 = vrot.lane.b32.xlu0 %v1927, 6
  %v1957 = vpop.permute.xlu0 %1956
  %v1958 = vsel %vm443, %v1939, %v1941
  %v1959 = vsel %vm443, %v1941, %v1943
  %v1960 = vsel %vm443, %v1943, %v1945
  %v1961 = vsel %vm443, %v1945, %v1947
  %v1962 = vsel %vm443, %v1949, %v1951
  %v1963 = vsel %vm443, %v1951, %v1953
  %v1964 = vsel %vm443, %v1953, %v1955
  %v1965 = vsel %vm443, %v1955, %v1957
  %1974 = vst [vmem:[#allocation3 + $0x440] sm:$0xff] %v1958
  %1975 = vst [vmem:[#allocation3 + $0x448] sm:$0xff] %v1959
  %1976 = vst [vmem:[#allocation3 + $0x450] sm:$0xff] %v1960
  %1977 = vst.msk [vmem:[#allocation3 + $0x458] sm:$0xff] %vm101, %v1961
  %1978 = vst [vmem:[#allocation3 + $0x460] sm:$0xff] %v1962
  %1979 = vst [vmem:[#allocation3 + $0x468] sm:$0xff] %v1963
  %1980 = vst [vmem:[#allocation3 + $0x470] sm:$0xff] %v1964
  %1981 = vst.msk [vmem:[#allocation3 + $0x478] sm:$0xff] %vm101, %v1965
  %v1982 = vld [vmem:[#allocation2 + $0x8] sm:$0xff]
  %v1983 = vld [vmem:[#allocation2 + $0x10] sm:$0xff]
  %v1984 = vld [vmem:[#allocation2 + $0x18] sm:$0xff]
  %v1985 = vld [vmem:[#allocation2 + $0x20] sm:$0xff]
  %v1986 = vld [vmem:[#allocation2 + $0x30] sm:$0xff]
  %v1987 = vld [vmem:[#allocation2 + $0x38] sm:$0xff]
  %v1988 = vld [vmem:[#allocation2 + $0x40] sm:$0xff]
  %v1989 = vld [vmem:[#allocation2 + $0x48] sm:$0xff]
  %1998 = vrot.lane.b32.xlu0 %v1982, 56
  %v1999 = vpop.permute.xlu0 %1998
  %2000 = vrot.lane.b32.xlu0 %v1983, 56
  %v2001 = vpop.permute.xlu0 %2000
  %2002 = vrot.lane.b32.xlu0 %v1984, 56
  %v2003 = vpop.permute.xlu0 %2002
  %2004 = vrot.lane.b32.xlu0 %v1985, 56
  %v2005 = vpop.permute.xlu0 %2004
  %2006 = vrot.lane.b32.xlu0 %v1986, 56
  %v2007 = vpop.permute.xlu0 %2006
  %2008 = vrot.lane.b32.xlu0 %v1987, 56
  %v2009 = vpop.permute.xlu0 %2008
  %2010 = vrot.lane.b32.xlu0 %v1988, 56
  %v2011 = vpop.permute.xlu0 %2010
  %2012 = vrot.lane.b32.xlu0 %v1989, 56
  %v2013 = vpop.permute.xlu0 %2012
  %v2014 = vsel %vm464, %v1999, %v2001
  %v2015 = vsel %vm464, %v2001, %v2003
  %v2016 = vsel %vm464, %v2003, %v2005
  %v2017 = vsel %vm464, %v2007, %v2009
  %v2018 = vsel %vm464, %v2009, %v2011
  %v2019 = vsel %vm464, %v2011, %v2013
  %2028 = vst [vmem:[#allocation3 + $0x480] sm:$0xff] %v2014
  %2029 = vst [vmem:[#allocation3 + $0x488] sm:$0xff] %v2015
  %2030 = vst [vmem:[#allocation3 + $0x490] sm:$0xff] %v2016
  %2031 = vst.msk [vmem:[#allocation3 + $0x498] sm:$0xff] %vm101, %v2005
  %2032 = vst [vmem:[#allocation3 + $0x4a0] sm:$0xff] %v2017
  %2033 = vst [vmem:[#allocation3 + $0x4a8] sm:$0xff] %v2018
  %2034 = vst [vmem:[#allocation3 + $0x4b0] sm:$0xff] %v2019
  %2035 = vst.msk [vmem:[#allocation3 + $0x4b8] sm:$0xff] %vm101, %v2013
  %v2036 = vld [vmem:[#allocation2 + $0x8] sm:$0xff]
  %v2037 = vld [vmem:[#allocation2 + $0x10] sm:$0xff]
  %v2038 = vld [vmem:[#allocation2 + $0x18] sm:$0xff]
  %v2039 = vld [vmem:[#allocation2 + $0x20] sm:$0xff]
  %v2040 = vld [vmem:[#allocation2 + $0x30] sm:$0xff]
  %v2041 = vld [vmem:[#allocation2 + $0x38] sm:$0xff]
  %v2042 = vld [vmem:[#allocation2 + $0x40] sm:$0xff]
  %v2043 = vld [vmem:[#allocation2 + $0x48] sm:$0xff]
  %2052 = vrot.lane.b32.xlu0 %v2036, 55
  %v2053 = vpop.permute.xlu0 %2052
  %2054 = vrot.lane.b32.xlu0 %v2037, 55
  %v2055 = vpop.permute.xlu0 %2054
  %2056 = vrot.lane.b32.xlu0 %v2038, 55
  %v2057 = vpop.permute.xlu0 %2056
  %2058 = vrot.lane.b32.xlu0 %v2039, 55
  %v2059 = vpop.permute.xlu0 %2058
  %2060 = vrot.lane.b32.xlu0 %v2040, 55
  %v2061 = vpop.permute.xlu0 %2060
  %2062 = vrot.lane.b32.xlu0 %v2041, 55
  %v2063 = vpop.permute.xlu0 %2062
  %2064 = vrot.lane.b32.xlu0 %v2042, 55
  %v2065 = vpop.permute.xlu0 %2064
  %2066 = vrot.lane.b32.xlu0 %v2043, 55
  %v2067 = vpop.permute.xlu0 %2066
  %v2068 = vsel %vm484, %v2053, %v2055
  %v2069 = vsel %vm484, %v2055, %v2057
  %v2070 = vsel %vm484, %v2057, %v2059
  %v2071 = vsel %vm484, %v2061, %v2063
  %v2072 = vsel %vm484, %v2063, %v2065
  %v2073 = vsel %vm484, %v2065, %v2067
  %2082 = vst [vmem:[#allocation3 + $0x4c0] sm:$0xff] %v2068
  %2083 = vst [vmem:[#allocation3 + $0x4c8] sm:$0xff] %v2069
  %2084 = vst [vmem:[#allocation3 + $0x4d0] sm:$0xff] %v2070
  %2085 = vst.msk [vmem:[#allocation3 + $0x4d8] sm:$0xff] %vm101, %v2059
  %2086 = vst [vmem:[#allocation3 + $0x4e0] sm:$0xff] %v2071
  %2087 = vst [vmem:[#allocation3 + $0x4e8] sm:$0xff] %v2072
  %2088 = vst [vmem:[#allocation3 + $0x4f0] sm:$0xff] %v2073
  %2089 = vst.msk [vmem:[#allocation3 + $0x4f8] sm:$0xff] %vm101, %v2067
  %v2090 = vld [vmem:[#allocation2 + $0x8] sm:$0xff]
  %v2091 = vld [vmem:[#allocation2 + $0x10] sm:$0xff]
  %v2092 = vld [vmem:[#allocation2 + $0x18] sm:$0xff]
  %v2093 = vld [vmem:[#allocation2 + $0x20] sm:$0xff]
  %v2094 = vld [vmem:[#allocation2 + $0x30] sm:$0xff]
  %v2095 = vld [vmem:[#allocation2 + $0x38] sm:$0xff]
  %v2096 = vld [vmem:[#allocation2 + $0x40] sm:$0xff]
  %v2097 = vld [vmem:[#allocation2 + $0x48] sm:$0xff]
  %2106 = vrot.lane.b32.xlu0 %v2090, 54
  %v2107 = vpop.permute.xlu0 %2106
  %2108 = vrot.lane.b32.xlu0 %v2091, 54
  %v2109 = vpop.permute.xlu0 %2108
  %2110 = vrot.lane.b32.xlu0 %v2092, 54
  %v2111 = vpop.permute.xlu0 %2110
  %2112 = vrot.lane.b32.xlu0 %v2093, 54
  %v2113 = vpop.permute.xlu0 %2112
  %2114 = vrot.lane.b32.xlu0 %v2094, 54
  %v2115 = vpop.permute.xlu0 %2114
  %2116 = vrot.lane.b32.xlu0 %v2095, 54
  %v2117 = vpop.permute.xlu0 %2116
  %2118 = vrot.lane.b32.xlu0 %v2096, 54
  %v2119 = vpop.permute.xlu0 %2118
  %2120 = vrot.lane.b32.xlu0 %v2097, 54
  %v2121 = vpop.permute.xlu0 %2120
  %v2122 = vsel %vm504, %v2107, %v2109
  %v2123 = vsel %vm504, %v2109, %v2111
  %v2124 = vsel %vm504, %v2111, %v2113
  %v2125 = vsel %vm504, %v2115, %v2117
  %v2126 = vsel %vm504, %v2117, %v2119
  %v2127 = vsel %vm504, %v2119, %v2121
  %2136 = vst [vmem:[#allocation3 + $0x500] sm:$0xff] %v2122
  %2137 = vst [vmem:[#allocation3 + $0x508] sm:$0xff] %v2123
  %2138 = vst [vmem:[#allocation3 + $0x510] sm:$0xff] %v2124
  %2139 = vst.msk [vmem:[#allocation3 + $0x518] sm:$0xff] %vm101, %v2113
  %2140 = vst [vmem:[#allocation3 + $0x520] sm:$0xff] %v2125
  %2141 = vst [vmem:[#allocation3 + $0x528] sm:$0xff] %v2126
  %2142 = vst [vmem:[#allocation3 + $0x530] sm:$0xff] %v2127
  %2143 = vst.msk [vmem:[#allocation3 + $0x538] sm:$0xff] %vm101, %v2121
  %v2144 = vld [vmem:[#allocation2 + $0x8] sm:$0xff]
  %v2145 = vld [vmem:[#allocation2 + $0x10] sm:$0xff]
  %v2146 = vld [vmem:[#allocation2 + $0x18] sm:$0xff]
  %v2147 = vld [vmem:[#allocation2 + $0x20] sm:$0xff]
  %v2148 = vld [vmem:[#allocation2 + $0x30] sm:$0xff]
  %v2149 = vld [vmem:[#allocation2 + $0x38] sm:$0xff]
  %v2150 = vld [vmem:[#allocation2 + $0x40] sm:$0xff]
  %v2151 = vld [vmem:[#allocation2 + $0x48] sm:$0xff]
  %2160 = vrot.lane.b32.xlu0 %v2144, 46
  %v2161 = vpop.permute.xlu0 %2160
  %2162 = vrot.lane.b32.xlu0 %v2145, 46
  %v2163 = vpop.permute.xlu0 %2162
  %2164 = vrot.lane.b32.xlu0 %v2146, 46
  %v2165 = vpop.permute.xlu0 %2164
  %2166 = vrot.lane.b32.xlu0 %v2147, 46
  %v2167 = vpop.permute.xlu0 %2166
  %2168 = vrot.lane.b32.xlu0 %v2148, 46
  %v2169 = vpop.permute.xlu0 %2168
  %2170 = vrot.lane.b32.xlu0 %v2149, 46
  %v2171 = vpop.permute.xlu0 %2170
  %2172 = vrot.lane.b32.xlu0 %v2150, 46
  %v2173 = vpop.permute.xlu0 %2172
  %2174 = vrot.lane.b32.xlu0 %v2151, 46
  %v2175 = vpop.permute.xlu0 %2174
  %v2176 = vsel %vm524, %v2161, %v2163
  %v2177 = vsel %vm524, %v2163, %v2165
  %v2178 = vsel %vm524, %v2165, %v2167
  %v2179 = vsel %vm524, %v2169, %v2171
  %v2180 = vsel %vm524, %v2171, %v2173
  %v2181 = vsel %vm524, %v2173, %v2175
  %2190 = vst [vmem:[#allocation3 + $0x540] sm:$0xff] %v2176
  %2191 = vst [vmem:[#allocation3 + $0x548] sm:$0xff] %v2177
  %2192 = vst [vmem:[#allocation3 + $0x550] sm:$0xff] %v2178
  %2193 = vst.msk [vmem:[#allocation3 + $0x558] sm:$0xff] %vm101, %v2167
  %2194 = vst [vmem:[#allocation3 + $0x560] sm:$0xff] %v2179
  %2195 = vst [vmem:[#allocation3 + $0x568] sm:$0xff] %v2180
  %2196 = vst [vmem:[#allocation3 + $0x570] sm:$0xff] %v2181
  %2197 = vst.msk [vmem:[#allocation3 + $0x578] sm:$0xff] %vm101, %v2175
  %v2198 = vld [vmem:[#allocation2 + $0x8] sm:$0xff]
  %v2199 = vld [vmem:[#allocation2 + $0x10] sm:$0xff]
  %v2200 = vld [vmem:[#allocation2 + $0x18] sm:$0xff]
  %v2201 = vld [vmem:[#allocation2 + $0x20] sm:$0xff]
  %v2202 = vld [vmem:[#allocation2 + $0x30] sm:$0xff]
  %v2203 = vld [vmem:[#allocation2 + $0x38] sm:$0xff]
  %v2204 = vld [vmem:[#allocation2 + $0x40] sm:$0xff]
  %v2205 = vld [vmem:[#allocation2 + $0x48] sm:$0xff]
  %2214 = vrot.lane.b32.xlu0 %v2198, 45
  %v2215 = vpop.permute.xlu0 %2214
  %2216 = vrot.lane.b32.xlu0 %v2199, 45
  %v2217 = vpop.permute.xlu0 %2216
  %2218 = vrot.lane.b32.xlu0 %v2200, 45
  %v2219 = vpop.permute.xlu0 %2218
  %2220 = vrot.lane.b32.xlu0 %v2201, 45
  %v2221 = vpop.permute.xlu0 %2220
  %2222 = vrot.lane.b32.xlu0 %v2202, 45
  %v2223 = vpop.permute.xlu0 %2222
  %2224 = vrot.lane.b32.xlu0 %v2203, 45
  %v2225 = vpop.permute.xlu0 %2224
  %2226 = vrot.lane.b32.xlu0 %v2204, 45
  %v2227 = vpop.permute.xlu0 %2226
  %2228 = vrot.lane.b32.xlu0 %v2205, 45
  %v2229 = vpop.permute.xlu0 %2228
  %v2230 = vsel %vm544, %v2215, %v2217
  %v2231 = vsel %vm544, %v2217, %v2219
  %v2232 = vsel %vm544, %v2219, %v2221
  %v2233 = vsel %vm544, %v2223, %v2225
  %v2234 = vsel %vm544, %v2225, %v2227
  %v2235 = vsel %vm544, %v2227, %v2229
  %2244 = vst [vmem:[#allocation3 + $0x580] sm:$0xff] %v2230
  %2245 = vst [vmem:[#allocation3 + $0x588] sm:$0xff] %v2231
  %2246 = vst [vmem:[#allocation3 + $0x590] sm:$0xff] %v2232
  %2247 = vst.msk [vmem:[#allocation3 + $0x598] sm:$0xff] %vm101, %v2221
  %2248 = vst [vmem:[#allocation3 + $0x5a0] sm:$0xff] %v2233
  %2249 = vst [vmem:[#allocation3 + $0x5a8] sm:$0xff] %v2234
  %2250 = vst [vmem:[#allocation3 + $0x5b0] sm:$0xff] %v2235
  %2251 = vst.msk [vmem:[#allocation3 + $0x5b8] sm:$0xff] %vm101, %v2229
  %v2252 = vld [vmem:[#allocation2 + $0x8] sm:$0xff]
  %v2253 = vld [vmem:[#allocation2 + $0x10] sm:$0xff]
  %v2254 = vld [vmem:[#allocation2 + $0x18] sm:$0xff]
  %v2255 = vld [vmem:[#allocation2 + $0x20] sm:$0xff]
  %v2256 = vld [vmem:[#allocation2 + $0x30] sm:$0xff]
  %v2257 = vld [vmem:[#allocation2 + $0x38] sm:$0xff]
  %v2258 = vld [vmem:[#allocation2 + $0x40] sm:$0xff]
  %v2259 = vld [vmem:[#allocation2 + $0x48] sm:$0xff]
  %2268 = vrot.lane.b32.xlu0 %v2252, 44
  %v2269 = vpop.permute.xlu0 %2268
  %2270 = vrot.lane.b32.xlu0 %v2253, 44
  %v2271 = vpop.permute.xlu0 %2270
  %2272 = vrot.lane.b32.xlu0 %v2254, 44
  %v2273 = vpop.permute.xlu0 %2272
  %2274 = vrot.lane.b32.xlu0 %v2255, 44
  %v2275 = vpop.permute.xlu0 %2274
  %2276 = vrot.lane.b32.xlu0 %v2256, 44
  %v2277 = vpop.permute.xlu0 %2276
  %2278 = vrot.lane.b32.xlu0 %v2257, 44
  %v2279 = vpop.permute.xlu0 %2278
  %2280 = vrot.lane.b32.xlu0 %v2258, 44
  %v2281 = vpop.permute.xlu0 %2280
  %2282 = vrot.lane.b32.xlu0 %v2259, 44
  %v2283 = vpop.permute.xlu0 %2282
  %v2284 = vsel %vm564, %v2269, %v2271
  %v2285 = vsel %vm564, %v2271, %v2273
  %v2286 = vsel %vm564, %v2273, %v2275
  %v2287 = vsel %vm564, %v2277, %v2279
  %v2288 = vsel %vm564, %v2279, %v2281
  %v2289 = vsel %vm564, %v2281, %v2283
  %2298 = vst [vmem:[#allocation3 + $0x5c0] sm:$0xff] %v2284
  %2299 = vst [vmem:[#allocation3 + $0x5c8] sm:$0xff] %v2285
  %2300 = vst [vmem:[#allocation3 + $0x5d0] sm:$0xff] %v2286
  %2301 = vst.msk [vmem:[#allocation3 + $0x5d8] sm:$0xff] %vm101, %v2275
  %2302 = vst [vmem:[#allocation3 + $0x5e0] sm:$0xff] %v2287
  %2303 = vst [vmem:[#allocation3 + $0x5e8] sm:$0xff] %v2288
  %2304 = vst [vmem:[#allocation3 + $0x5f0] sm:$0xff] %v2289
  %2305 = vst.msk [vmem:[#allocation3 + $0x5f8] sm:$0xff] %vm101, %v2283
  %v2306 = vld [vmem:[#allocation2 + $0x8] sm:$0xff]
  %v2307 = vld [vmem:[#allocation2 + $0x10] sm:$0xff]
  %v2308 = vld [vmem:[#allocation2 + $0x18] sm:$0xff]
  %v2309 = vld [vmem:[#allocation2 + $0x20] sm:$0xff]
  %v2310 = vld [vmem:[#allocation2 + $0x30] sm:$0xff]
  %v2311 = vld [vmem:[#allocation2 + $0x38] sm:$0xff]
  %v2312 = vld [vmem:[#allocation2 + $0x40] sm:$0xff]
  %v2313 = vld [vmem:[#allocation2 + $0x48] sm:$0xff]
  %2322 = vrot.lane.b32.xlu0 %v2306, 36
  %v2323 = vpop.permute.xlu0 %2322
  %2324 = vrot.lane.b32.xlu0 %v2307, 36
  %v2325 = vpop.permute.xlu0 %2324
  %2326 = vrot.lane.b32.xlu0 %v2308, 36
  %v2327 = vpop.permute.xlu0 %2326
  %2328 = vrot.lane.b32.xlu0 %v2309, 36
  %v2329 = vpop.permute.xlu0 %2328
  %2330 = vrot.lane.b32.xlu0 %v2310, 36
  %v2331 = vpop.permute.xlu0 %2330
  %2332 = vrot.lane.b32.xlu0 %v2311, 36
  %v2333 = vpop.permute.xlu0 %2332
  %2334 = vrot.lane.b32.xlu0 %v2312, 36
  %v2335 = vpop.permute.xlu0 %2334
  %2336 = vrot.lane.b32.xlu0 %v2313, 36
  %v2337 = vpop.permute.xlu0 %2336
  %v2338 = vsel %vm584, %v2323, %v2325
  %v2339 = vsel %vm584, %v2325, %v2327
  %v2340 = vsel %vm584, %v2327, %v2329
  %v2341 = vsel %vm584, %v2331, %v2333
  %v2342 = vsel %vm584, %v2333, %v2335
  %v2343 = vsel %vm584, %v2335, %v2337
  %2352 = vst [vmem:[#allocation3 + $0x600] sm:$0xff] %v2338
  %2353 = vst [vmem:[#allocation3 + $0x608] sm:$0xff] %v2339
  %2354 = vst [vmem:[#allocation3 + $0x610] sm:$0xff] %v2340
  %2355 = vst.msk [vmem:[#allocation3 + $0x618] sm:$0xff] %vm101, %v2329
  %2356 = vst [vmem:[#allocation3 + $0x620] sm:$0xff] %v2341
  %2357 = vst [vmem:[#allocation3 + $0x628] sm:$0xff] %v2342
  %2358 = vst [vmem:[#allocation3 + $0x630] sm:$0xff] %v2343
  %2359 = vst.msk [vmem:[#allocation3 + $0x638] sm:$0xff] %vm101, %v2337
  %v2360 = vld [vmem:[#allocation2 + $0x8] sm:$0xff]
  %v2361 = vld [vmem:[#allocation2 + $0x10] sm:$0xff]
  %v2362 = vld [vmem:[#allocation2 + $0x18] sm:$0xff]
  %v2363 = vld [vmem:[#allocation2 + $0x20] sm:$0xff]
  %v2364 = vld [vmem:[#allocation2 + $0x30] sm:$0xff]
  %v2365 = vld [vmem:[#allocation2 + $0x38] sm:$0xff]
  %v2366 = vld [vmem:[#allocation2 + $0x40] sm:$0xff]
  %v2367 = vld [vmem:[#allocation2 + $0x48] sm:$0xff]
  %2376 = vrot.lane.b32.xlu0 %v2360, 35
  %v2377 = vpop.permute.xlu0 %2376
  %2378 = vrot.lane.b32.xlu0 %v2361, 35
  %v2379 = vpop.permute.xlu0 %2378
  %2380 = vrot.lane.b32.xlu0 %v2362, 35
  %v2381 = vpop.permute.xlu0 %2380
  %2382 = vrot.lane.b32.xlu0 %v2363, 35
  %v2383 = vpop.permute.xlu0 %2382
  %2384 = vrot.lane.b32.xlu0 %v2364, 35
  %v2385 = vpop.permute.xlu0 %2384
  %2386 = vrot.lane.b32.xlu0 %v2365, 35
  %v2387 = vpop.permute.xlu0 %2386
  %2388 = vrot.lane.b32.xlu0 %v2366, 35
  %v2389 = vpop.permute.xlu0 %2388
  %2390 = vrot.lane.b32.xlu0 %v2367, 35
  %v2391 = vpop.permute.xlu0 %2390
  %v2392 = vsel %vm604, %v2377, %v2379
  %v2393 = vsel %vm604, %v2379, %v2381
  %v2394 = vsel %vm604, %v2381, %v2383
  %v2395 = vsel %vm604, %v2385, %v2387
  %v2396 = vsel %vm604, %v2387, %v2389
  %v2397 = vsel %vm604, %v2389, %v2391
  %2406 = vst [vmem:[#allocation3 + $0x640] sm:$0xff] %v2392
  %2407 = vst [vmem:[#allocation3 + $0x648] sm:$0xff] %v2393
  %2408 = vst [vmem:[#allocation3 + $0x650] sm:$0xff] %v2394
  %2409 = vst.msk [vmem:[#allocation3 + $0x658] sm:$0xff] %vm101, %v2383
  %2410 = vst [vmem:[#allocation3 + $0x660] sm:$0xff] %v2395
  %2411 = vst [vmem:[#allocation3 + $0x668] sm:$0xff] %v2396
  %2412 = vst [vmem:[#allocation3 + $0x670] sm:$0xff] %v2397
  %2413 = vst.msk [vmem:[#allocation3 + $0x678] sm:$0xff] %vm101, %v2391
  %v2414 = vld [vmem:[#allocation2 + $0x8] sm:$0xff]
  %v2415 = vld [vmem:[#allocation2 + $0x10] sm:$0xff]
  %v2416 = vld [vmem:[#allocation2 + $0x18] sm:$0xff]
  %v2417 = vld [vmem:[#allocation2 + $0x20] sm:$0xff]
  %v2418 = vld [vmem:[#allocation2 + $0x30] sm:$0xff]
  %v2419 = vld [vmem:[#allocation2 + $0x38] sm:$0xff]
  %v2420 = vld [vmem:[#allocation2 + $0x40] sm:$0xff]
  %v2421 = vld [vmem:[#allocation2 + $0x48] sm:$0xff]
  %2430 = vrot.lane.b32.xlu0 %v2414, 34
  %v2431 = vpop.permute.xlu0 %2430
  %2432 = vrot.lane.b32.xlu0 %v2415, 34
  %v2433 = vpop.permute.xlu0 %2432
  %2434 = vrot.lane.b32.xlu0 %v2416, 34
  %v2435 = vpop.permute.xlu0 %2434
  %2436 = vrot.lane.b32.xlu0 %v2417, 34
  %v2437 = vpop.permute.xlu0 %2436
  %2438 = vrot.lane.b32.xlu0 %v2418, 34
  %v2439 = vpop.permute.xlu0 %2438
  %2440 = vrot.lane.b32.xlu0 %v2419, 34
  %v2441 = vpop.permute.xlu0 %2440
  %2442 = vrot.lane.b32.xlu0 %v2420, 34
  %v2443 = vpop.permute.xlu0 %2442
  %2444 = vrot.lane.b32.xlu0 %v2421, 34
  %v2445 = vpop.permute.xlu0 %2444
  %v2446 = vsel %vm624, %v2431, %v2433
  %v2447 = vsel %vm624, %v2433, %v2435
  %v2448 = vsel %vm624, %v2435, %v2437
  %v2449 = vsel %vm624, %v2439, %v2441
  %v2450 = vsel %vm624, %v2441, %v2443
  %v2451 = vsel %vm624, %v2443, %v2445
  %2460 = vst [vmem:[#allocation3 + $0x680] sm:$0xff] %v2446
  %2461 = vst [vmem:[#allocation3 + $0x688] sm:$0xff] %v2447
  %2462 = vst [vmem:[#allocation3 + $0x690] sm:$0xff] %v2448
  %2463 = vst.msk [vmem:[#allocation3 + $0x698] sm:$0xff] %vm101, %v2437
  %2464 = vst [vmem:[#allocation3 + $0x6a0] sm:$0xff] %v2449
  %2465 = vst [vmem:[#allocation3 + $0x6a8] sm:$0xff] %v2450
  %2466 = vst [vmem:[#allocation3 + $0x6b0] sm:$0xff] %v2451
  %2467 = vst.msk [vmem:[#allocation3 + $0x6b8] sm:$0xff] %vm101, %v2445
  %v2468 = vld [vmem:[%s3] sm:$0xff]
  %v2469 = vld [vmem:[%s3 + $0x8] sm:$0xff]
  %v2470 = vld [vmem:[%s3 + $0x10] sm:$0xff]
  %v2471 = vld [vmem:[%s3 + $0x18] sm:$0xff]
  %v2472 = vld [vmem:[%s3 + $0x20] sm:$0xff]
  %v2473 = vld [vmem:[%s3 + $0x28] sm:$0xff]
  %v2474 = vld [vmem:[%s3 + $0x30] sm:$0xff]
  %v2475 = vld [vmem:[%s3 + $0x38] sm:$0xff]
  %v2476 = vld [vmem:[#allocation3] sm:$0xff]
  %v2477 = vld [vmem:[#allocation3 + $0x8] sm:$0xff]
  %v2478 = vld [vmem:[#allocation3 + $0x10] sm:$0xff]
  %v2479 = vld [vmem:[#allocation3 + $0x18] sm:$0xff]
  %v2480 = vld [vmem:[#allocation3 + $0x20] sm:$0xff]
  %v2481 = vld [vmem:[#allocation3 + $0x28] sm:$0xff]
  %v2482 = vld [vmem:[#allocation3 + $0x30] sm:$0xff]
  %v2483 = vld [vmem:[#allocation3 + $0x38] sm:$0xff]
  %v2484 = vld [vmem:[#allocation3 + $0x40] sm:$0xff]
  %v2485 = vld [vmem:[#allocation3 + $0x48] sm:$0xff]
  %v2486 = vld [vmem:[#allocation3 + $0x50] sm:$0xff]
  %v2487 = vld [vmem:[#allocation3 + $0x58] sm:$0xff]
  %v2488 = vld [vmem:[#allocation3 + $0x60] sm:$0xff]
  %v2489 = vld [vmem:[#allocation3 + $0x68] sm:$0xff]
  %v2490 = vld [vmem:[#allocation3 + $0x70] sm:$0xff]
  %v2491 = vld [vmem:[#allocation3 + $0x78] sm:$0xff]
  %v2492 = vld [vmem:[#allocation3 + $0x80] sm:$0xff]
  %v2493 = vld [vmem:[#allocation3 + $0x88] sm:$0xff]
  %v2494 = vld [vmem:[#allocation3 + $0x90] sm:$0xff]
  %v2495 = vld [vmem:[#allocation3 + $0x98] sm:$0xff]
  %v2496 = vld [vmem:[#allocation3 + $0xa0] sm:$0xff]
  %v2497 = vld [vmem:[#allocation3 + $0xa8] sm:$0xff]
  %v2498 = vld [vmem:[#allocation3 + $0xb0] sm:$0xff]
  %v2499 = vld [vmem:[#allocation3 + $0xb8] sm:$0xff]
  %v2500 = vld [vmem:[#allocation3 + $0xc0] sm:$0xff]
  %v2501 = vld [vmem:[#allocation3 + $0xc8] sm:$0xff]
  %v2502 = vld [vmem:[#allocation3 + $0xd0] sm:$0xff]
  %v2503 = vld [vmem:[#allocation3 + $0xd8] sm:$0xff]
  %v2504 = vld [vmem:[#allocation3 + $0xe0] sm:$0xff]
  %v2505 = vld [vmem:[#allocation3 + $0xe8] sm:$0xff]
  %v2506 = vld [vmem:[#allocation3 + $0xf0] sm:$0xff]
  %v2507 = vld [vmem:[#allocation3 + $0xf8] sm:$0xff]
  %v2508 = vld [vmem:[#allocation3 + $0x100] sm:$0xff]
  %v2509 = vld [vmem:[#allocation3 + $0x108] sm:$0xff]
  %v2510 = vld [vmem:[#allocation3 + $0x110] sm:$0xff]
  %v2511 = vld [vmem:[#allocation3 + $0x118] sm:$0xff]
  %v2512 = vld [vmem:[#allocation3 + $0x120] sm:$0xff]
  %v2513 = vld [vmem:[#allocation3 + $0x128] sm:$0xff]
  %v2514 = vld [vmem:[#allocation3 + $0x130] sm:$0xff]
  %v2515 = vld [vmem:[#allocation3 + $0x138] sm:$0xff]
  %v2516 = vld [vmem:[#allocation3 + $0x140] sm:$0xff]
  %v2517 = vld [vmem:[#allocation3 + $0x148] sm:$0xff]
  %v2518 = vld [vmem:[#allocation3 + $0x150] sm:$0xff]
  %v2519 = vld [vmem:[#allocation3 + $0x158] sm:$0xff]
  %v2520 = vld [vmem:[#allocation3 + $0x160] sm:$0xff]
  %v2521 = vld [vmem:[#allocation3 + $0x168] sm:$0xff]
  %v2522 = vld [vmem:[#allocation3 + $0x170] sm:$0xff]
  %v2523 = vld [vmem:[#allocation3 + $0x178] sm:$0xff]
  %v2524 = vld [vmem:[#allocation3 + $0x180] sm:$0xff]
  %v2525 = vld [vmem:[#allocation3 + $0x188] sm:$0xff]
  %v2526 = vld [vmem:[#allocation3 + $0x190] sm:$0xff]
  %v2527 = vld [vmem:[#allocation3 + $0x198] sm:$0xff]
  %v2528 = vld [vmem:[#allocation3 + $0x1a0] sm:$0xff]
  %v2529 = vld [vmem:[#allocation3 + $0x1a8] sm:$0xff]
  %v2530 = vld [vmem:[#allocation3 + $0x1b0] sm:$0xff]
  %v2531 = vld [vmem:[#allocation3 + $0x1b8] sm:$0xff]
  %v2532 = vld [vmem:[#allocation3 + $0x1c0] sm:$0xff]
  %v2533 = vld [vmem:[#allocation3 + $0x1c8] sm:$0xff]
  %v2534 = vld [vmem:[#allocation3 + $0x1d0] sm:$0xff]
  %v2535 = vld [vmem:[#allocation3 + $0x1d8] sm:$0xff]
  %v2536 = vld [vmem:[#allocation3 + $0x1e0] sm:$0xff]
  %v2537 = vld [vmem:[#allocation3 + $0x1e8] sm:$0xff]
  %v2538 = vld [vmem:[#allocation3 + $0x1f0] sm:$0xff]
  %v2539 = vld [vmem:[#allocation3 + $0x1f8] sm:$0xff]
  %v2540 = vld [vmem:[#allocation3 + $0x200] sm:$0xff]
  %v2541 = vld [vmem:[#allocation3 + $0x208] sm:$0xff]
  %v2542 = vld [vmem:[#allocation3 + $0x210] sm:$0xff]
  %v2543 = vld [vmem:[#allocation3 + $0x218] sm:$0xff]
  %v2544 = vld [vmem:[#allocation3 + $0x220] sm:$0xff]
  %v2545 = vld [vmem:[#allocation3 + $0x228] sm:$0xff]
  %v2546 = vld [vmem:[#allocation3 + $0x230] sm:$0xff]
  %v2547 = vld [vmem:[#allocation3 + $0x238] sm:$0xff]
  %v2548 = vld [vmem:[#allocation3 + $0x240] sm:$0xff]
  %v2549 = vld [vmem:[#allocation3 + $0x248] sm:$0xff]
  %v2550 = vld [vmem:[#allocation3 + $0x250] sm:$0xff]
  %v2551 = vld [vmem:[#allocation3 + $0x258] sm:$0xff]
  %v2552 = vld [vmem:[#allocation3 + $0x260] sm:$0xff]
  %v2553 = vld [vmem:[#allocation3 + $0x268] sm:$0xff]
  %v2554 = vld [vmem:[#allocation3 + $0x270] sm:$0xff]
  %v2555 = vld [vmem:[#allocation3 + $0x278] sm:$0xff]
  %v2556 = vld [vmem:[#allocation3 + $0x280] sm:$0xff]
  %v2557 = vld [vmem:[#allocation3 + $0x288] sm:$0xff]
  %v2558 = vld [vmem:[#allocation3 + $0x290] sm:$0xff]
  %v2559 = vld [vmem:[#allocation3 + $0x298] sm:$0xff]
  %v2560 = vld [vmem:[#allocation3 + $0x2a0] sm:$0xff]
  %v2561 = vld [vmem:[#allocation3 + $0x2a8] sm:$0xff]
  %v2562 = vld [vmem:[#allocation3 + $0x2b0] sm:$0xff]
  %v2563 = vld [vmem:[#allocation3 + $0x2b8] sm:$0xff]
  %v2564 = vld [vmem:[#allocation3 + $0x2c0] sm:$0xff]
  %v2565 = vld [vmem:[#allocation3 + $0x2c8] sm:$0xff]
  %v2566 = vld [vmem:[#allocation3 + $0x2d0] sm:$0xff]
  %v2567 = vld [vmem:[#allocation3 + $0x2d8] sm:$0xff]
  %v2568 = vld [vmem:[#allocation3 + $0x2e0] sm:$0xff]
  %v2569 = vld [vmem:[#allocation3 + $0x2e8] sm:$0xff]
  %v2570 = vld [vmem:[#allocation3 + $0x2f0] sm:$0xff]
  %v2571 = vld [vmem:[#allocation3 + $0x2f8] sm:$0xff]
  %v2572 = vld [vmem:[#allocation3 + $0x300] sm:$0xff]
  %v2573 = vld [vmem:[#allocation3 + $0x308] sm:$0xff]
  %v2574 = vld [vmem:[#allocation3 + $0x310] sm:$0xff]
  %v2575 = vld [vmem:[#allocation3 + $0x318] sm:$0xff]
  %v2576 = vld [vmem:[#allocation3 + $0x320] sm:$0xff]
  %v2577 = vld [vmem:[#allocation3 + $0x328] sm:$0xff]
  %v2578 = vld [vmem:[#allocation3 + $0x330] sm:$0xff]
  %v2579 = vld [vmem:[#allocation3 + $0x338] sm:$0xff]
  %v2580 = vld [vmem:[#allocation3 + $0x340] sm:$0xff]
  %v2581 = vld [vmem:[#allocation3 + $0x348] sm:$0xff]
  %v2582 = vld [vmem:[#allocation3 + $0x350] sm:$0xff]
  %v2583 = vld [vmem:[#allocation3 + $0x358] sm:$0xff]
  %v2584 = vld [vmem:[#allocation3 + $0x360] sm:$0xff]
  %v2585 = vld [vmem:[#allocation3 + $0x368] sm:$0xff]
  %v2586 = vld [vmem:[#allocation3 + $0x370] sm:$0xff]
  %v2587 = vld [vmem:[#allocation3 + $0x378] sm:$0xff]
  %v2588 = vld [vmem:[#allocation3 + $0x380] sm:$0xff]
  %v2589 = vld [vmem:[#allocation3 + $0x388] sm:$0xff]
  %v2590 = vld [vmem:[#allocation3 + $0x390] sm:$0xff]
  %v2591 = vld [vmem:[#allocation3 + $0x398] sm:$0xff]
  %v2592 = vld [vmem:[#allocation3 + $0x3a0] sm:$0xff]
  %v2593 = vld [vmem:[#allocation3 + $0x3a8] sm:$0xff]
  %v2594 = vld [vmem:[#allocation3 + $0x3b0] sm:$0xff]
  %v2595 = vld [vmem:[#allocation3 + $0x3b8] sm:$0xff]
  %v2596 = vld [vmem:[#allocation3 + $0x3c0] sm:$0xff]
  %v2597 = vld [vmem:[#allocation3 + $0x3c8] sm:$0xff]
  %v2598 = vld [vmem:[#allocation3 + $0x3d0] sm:$0xff]
  %v2599 = vld [vmem:[#allocation3 + $0x3d8] sm:$0xff]
  %v2600 = vld [vmem:[#allocation3 + $0x3e0] sm:$0xff]
  %v2601 = vld [vmem:[#allocation3 + $0x3e8] sm:$0xff]
  %v2602 = vld [vmem:[#allocation3 + $0x3f0] sm:$0xff]
  %v2603 = vld [vmem:[#allocation3 + $0x3f8] sm:$0xff]
  %v2604 = vld [vmem:[#allocation3 + $0x400] sm:$0xff]
  %v2605 = vld [vmem:[#allocation3 + $0x408] sm:$0xff]
  %v2606 = vld [vmem:[#allocation3 + $0x410] sm:$0xff]
  %v2607 = vld [vmem:[#allocation3 + $0x418] sm:$0xff]
  %v2608 = vld [vmem:[#allocation3 + $0x420] sm:$0xff]
  %v2609 = vld [vmem:[#allocation3 + $0x428] sm:$0xff]
  %v2610 = vld [vmem:[#allocation3 + $0x430] sm:$0xff]
  %v2611 = vld [vmem:[#allocation3 + $0x438] sm:$0xff]
  %v2612 = vld [vmem:[#allocation3 + $0x440] sm:$0xff]
  %v2613 = vld [vmem:[#allocation3 + $0x448] sm:$0xff]
  %v2614 = vld [vmem:[#allocation3 + $0x450] sm:$0xff]
  %v2615 = vld [vmem:[#allocation3 + $0x458] sm:$0xff]
  %v2616 = vld [vmem:[#allocation3 + $0x460] sm:$0xff]
  %v2617 = vld [vmem:[#allocation3 + $0x468] sm:$0xff]
  %v2618 = vld [vmem:[#allocation3 + $0x470] sm:$0xff]
  %v2619 = vld [vmem:[#allocation3 + $0x478] sm:$0xff]
  %v2620 = vld [vmem:[#allocation3 + $0x480] sm:$0xff]
  %v2621 = vld [vmem:[#allocation3 + $0x488] sm:$0xff]
  %v2622 = vld [vmem:[#allocation3 + $0x490] sm:$0xff]
  %v2623 = vld [vmem:[#allocation3 + $0x498] sm:$0xff]
  %v2624 = vld [vmem:[#allocation3 + $0x4a0] sm:$0xff]
  %v2625 = vld [vmem:[#allocation3 + $0x4a8] sm:$0xff]
  %v2626 = vld [vmem:[#allocation3 + $0x4b0] sm:$0xff]
  %v2627 = vld [vmem:[#allocation3 + $0x4b8] sm:$0xff]
  %v2628 = vld [vmem:[#allocation3 + $0x4c0] sm:$0xff]
  %v2629 = vld [vmem:[#allocation3 + $0x4c8] sm:$0xff]
  %v2630 = vld [vmem:[#allocation3 + $0x4d0] sm:$0xff]
  %v2631 = vld [vmem:[#allocation3 + $0x4d8] sm:$0xff]
  %v2632 = vld [vmem:[#allocation3 + $0x4e0] sm:$0xff]
  %v2633 = vld [vmem:[#allocation3 + $0x4e8] sm:$0xff]
  %v2634 = vld [vmem:[#allocation3 + $0x4f0] sm:$0xff]
  %v2635 = vld [vmem:[#allocation3 + $0x4f8] sm:$0xff]
  %v2636 = vld [vmem:[#allocation3 + $0x500] sm:$0xff]
  %v2637 = vld [vmem:[#allocation3 + $0x508] sm:$0xff]
  %v2638 = vld [vmem:[#allocation3 + $0x510] sm:$0xff]
  %v2639 = vld [vmem:[#allocation3 + $0x518] sm:$0xff]
  %v2640 = vld [vmem:[#allocation3 + $0x520] sm:$0xff]
  %v2641 = vld [vmem:[#allocation3 + $0x528] sm:$0xff]
  %v2642 = vld [vmem:[#allocation3 + $0x530] sm:$0xff]
  %v2643 = vld [vmem:[#allocation3 + $0x538] sm:$0xff]
  %v2644 = vld [vmem:[#allocation3 + $0x540] sm:$0xff]
  %v2645 = vld [vmem:[#allocation3 + $0x548] sm:$0xff]
  %v2646 = vld [vmem:[#allocation3 + $0x550] sm:$0xff]
  %v2647 = vld [vmem:[#allocation3 + $0x558] sm:$0xff]
  %v2648 = vld [vmem:[#allocation3 + $0x560] sm:$0xff]
  %v2649 = vld [vmem:[#allocation3 + $0x568] sm:$0xff]
  %v2650 = vld [vmem:[#allocation3 + $0x570] sm:$0xff]
  %v2651 = vld [vmem:[#allocation3 + $0x578] sm:$0xff]
  %v2652 = vld [vmem:[#allocation3 + $0x580] sm:$0xff]
  %v2653 = vld [vmem:[#allocation3 + $0x588] sm:$0xff]
  %v2654 = vld [vmem:[#allocation3 + $0x590] sm:$0xff]
  %v2655 = vld [vmem:[#allocation3 + $0x598] sm:$0xff]
  %v2656 = vld [vmem:[#allocation3 + $0x5a0] sm:$0xff]
  %v2657 = vld [vmem:[#allocation3 + $0x5a8] sm:$0xff]
  %v2658 = vld [vmem:[#allocation3 + $0x5b0] sm:$0xff]
  %v2659 = vld [vmem:[#allocation3 + $0x5b8] sm:$0xff]
  %v2660 = vld [vmem:[#allocation3 + $0x5c0] sm:$0xff]
  %v2661 = vld [vmem:[#allocation3 + $0x5c8] sm:$0xff]
  %v2662 = vld [vmem:[#allocation3 + $0x5d0] sm:$0xff]
  %v2663 = vld [vmem:[#allocation3 + $0x5d8] sm:$0xff]
  %v2664 = vld [vmem:[#allocation3 + $0x5e0] sm:$0xff]
  %v2665 = vld [vmem:[#allocation3 + $0x5e8] sm:$0xff]
  %v2666 = vld [vmem:[#allocation3 + $0x5f0] sm:$0xff]
  %v2667 = vld [vmem:[#allocation3 + $0x5f8] sm:$0xff]
  %v2668 = vld [vmem:[#allocation3 + $0x600] sm:$0xff]
  %v2669 = vld [vmem:[#allocation3 + $0x608] sm:$0xff]
  %v2670 = vld [vmem:[#allocation3 + $0x610] sm:$0xff]
  %v2671 = vld [vmem:[#allocation3 + $0x618] sm:$0xff]
  %v2672 = vld [vmem:[#allocation3 + $0x620] sm:$0xff]
  %v2673 = vld [vmem:[#allocation3 + $0x628] sm:$0xff]
  %v2674 = vld [vmem:[#allocation3 + $0x630] sm:$0xff]
  %v2675 = vld [vmem:[#allocation3 + $0x638] sm:$0xff]
  %v2676 = vld [vmem:[#allocation3 + $0x640] sm:$0xff]
  %v2677 = vld [vmem:[#allocation3 + $0x648] sm:$0xff]
  %v2678 = vld [vmem:[#allocation3 + $0x650] sm:$0xff]
  %v2679 = vld [vmem:[#allocation3 + $0x658] sm:$0xff]
  %v2680 = vld [vmem:[#allocation3 + $0x660] sm:$0xff]
  %v2681 = vld [vmem:[#allocation3 + $0x668] sm:$0xff]
  %v2682 = vld [vmem:[#allocation3 + $0x670] sm:$0xff]
  %v2683 = vld [vmem:[#allocation3 + $0x678] sm:$0xff]
  %v2684 = vld [vmem:[#allocation3 + $0x680] sm:$0xff]
  %v2685 = vld [vmem:[#allocation3 + $0x688] sm:$0xff]
  %v2686 = vld [vmem:[#allocation3 + $0x690] sm:$0xff]
  %v2687 = vld [vmem:[#allocation3 + $0x698] sm:$0xff]
  %v2688 = vld [vmem:[#allocation3 + $0x6a0] sm:$0xff]
  %v2689 = vld [vmem:[#allocation3 + $0x6a8] sm:$0xff]
  %v2690 = vld [vmem:[#allocation3 + $0x6b0] sm:$0xff]
  %v2691 = vld [vmem:[#allocation3 + $0x6b8] sm:$0xff]
  %v2692 = vld [vmem:[%s4] sm:$0xff]
  %v2693 = vld [vmem:[%s4 + $0x8] sm:$0xff]
  %2695 = vset.pattern.permute.xlu0 0
  %2696 = vperm.xlu0 %2695, %v2692
  %v2697 = vpop.permute.xlu0 %2696
  %2700 = vset.pattern.permute.xlu0 0
  %2701 = vperm.xlu0 %2700, %v2693
  %v2702 = vpop.permute.xlu0 %2701
  %vm2704 = vcmask 392192
  %v2706 = vsel %vm2704, %v2471, 0
  %v2709 = vsel %vm2704, %v2475, 0
  %2711 = vmatprep.subr.mxu0 %v2477
  %2712 = vmatpush1.msra.mxu0 %v2476
  %2713 = vmatprep.subr.mxu0 %v2481
  %2714 = vmatpush1.msra.mxu0 %v2480
  %2715 = vmatprep.subr.mxu0 %v2485
  %2716 = vmatpush1.msra.mxu0 %v2484
  %2717 = vmatprep.subr.mxu0 %v2489
  %2718 = vmatpush1.msra.mxu0 %v2488
  %2719 = vmatprep.subr.mxu0 %v2493
  %2720 = vmatpush1.msra.mxu0 %v2492
  %2721 = vmatprep.subr.mxu0 %v2497
  %2722 = vmatpush1.msra.mxu0 %v2496
  %2723 = vmatprep.subr.mxu0 %v2501
  %2724 = vmatpush1.msra.mxu0 %v2500
  %2725 = vmatprep.subr.mxu0 %v2505
  %2726 = vmatpush1.msra.mxu0 %v2504
  %2727 = vmatprep.subr.mxu0 %v2509
  %2728 = vmatpush1.msra.mxu0 %v2508
  %2729 = vmatprep.subr.mxu0 %v2513
  %2730 = vmatpush1.msra.mxu0 %v2512
  %2731 = vmatprep.subr.mxu0 %v2517
  %2732 = vmatpush1.msra.mxu0 %v2516
  %2733 = vmatprep.subr.mxu0 %v2521
  %2734 = vmatpush1.msra.mxu0 %v2520
  %2735 = vmatprep.subr.mxu0 %v2525
  %2736 = vmatpush1.msra.mxu0 %v2524
  %2737 = vmatprep.subr.mxu0 %v2529
  %2738 = vmatpush1.msra.mxu0 %v2528
  %2739 = vmatprep.subr.mxu0 %v2533
  %2740 = vmatpush1.msra.mxu0 %v2532
  %2741 = vmatprep.subr.mxu0 %v2537
  %2742 = vmatpush1.msra.mxu0 %v2536
  %2743 = vmatprep.subr.mxu0 %v2541
  %2744 = vmatpush1.msra.mxu0 %v2540
  %2745 = vmatprep.subr.mxu0 %v2545
  %2746 = vmatpush1.msra.mxu0 %v2544
  %2747 = vmatprep.subr.mxu0 %v2549
  %2748 = vmatpush1.msra.mxu0 %v2548
  %2749 = vmatprep.subr.mxu0 %v2553
  %2750 = vmatpush1.msra.mxu0 %v2552
  %2751 = vmatprep.subr.mxu0 %v2557
  %2752 = vmatpush1.msra.mxu0 %v2556
  %2753 = vmatprep.subr.mxu0 %v2561
  %2754 = vmatpush1.msra.mxu0 %v2560
  %2755 = vmatprep.subr.mxu0 %v2565
  %2756 = vmatpush1.msra.mxu0 %v2564
  %2757 = vmatprep.subr.mxu0 %v2569
  %2758 = vmatpush1.msra.mxu0 %v2568
  %2759 = vmatprep.subr.mxu0 %v2573
  %2760 = vmatpush1.msra.mxu0 %v2572
  %2761 = vmatprep.subr.mxu0 %v2577
  %2762 = vmatpush1.msra.mxu0 %v2576
  %2763 = vmatprep.subr.mxu0 %v2581
  %2764 = vmatpush1.msra.mxu0 %v2580
  %2765 = vmatprep.subr.mxu0 %v2585
  %2766 = vmatpush1.msra.mxu0 %v2584
  %2767 = vmatprep.subr.mxu0 %v2589
  %2768 = vmatpush1.msra.mxu0 %v2588
  %2769 = vmatprep.subr.mxu0 %v2593
  %2770 = vmatpush1.msra.mxu0 %v2592
  %2771 = vmatprep.subr.mxu0 %v2597
  %2772 = vmatpush1.msra.mxu0 %v2596
  %2773 = vmatprep.subr.mxu0 %v2601
  %2774 = vmatpush1.msra.mxu0 %v2600
  %2775 = vmatprep.mubr.f32.mxu0 %v2469
  %2776 = vmatmul.mubr.f32.gmra.mrb[0].mxu0 %v2468
  %v2777 = vpop.f32.mrb[0].mxu0
  %v2778 = vadd.f32 %v2697, %v2777
  %v2779 = vpop.f32.mrb[0].mxu0
  %v2780 = vadd.f32 %v2697, %v2779
  %2781 = vmatprep.mubr.f32.mxu0 %v2473
  %2782 = vmatmul.mubr.f32.gmra.mrb[0].mxu0 %v2472
  %v2783 = vpop.f32.mrb[0].mxu0
  %v2784 = vadd.f32 %v2702, %v2783
  %v2785 = vpop.f32.mrb[0].mxu0
  %v2786 = vadd.f32 %v2702, %v2785
  %2787 = vdwg.mxu0
  %2788 = vmatprep.subr.mxu0 %v2605
  %2789 = vmatpush1.msra.mxu0 %v2604
  %2790 = vmatprep.subr.mxu0 %v2609
  %2791 = vmatpush1.msra.mxu0 %v2608
  %2792 = vmatprep.subr.mxu0 %v2613
  %2793 = vmatpush1.msra.mxu0 %v2612
  %2794 = vmatprep.subr.mxu0 %v2617
  %2795 = vmatpush1.msra.mxu0 %v2616
  %2796 = vmatprep.subr.mxu0 %v2621
  %2797 = vmatpush1.msra.mxu0 %v2620
  %2798 = vmatprep.subr.mxu0 %v2625
  %2799 = vmatpush1.msra.mxu0 %v2624
  %2800 = vmatprep.subr.mxu0 %v2629
  %2801 = vmatpush1.msra.mxu0 %v2628
  %2802 = vmatprep.subr.mxu0 %v2633
  %2803 = vmatpush1.msra.mxu0 %v2632
  %2804 = vmatprep.subr.mxu0 %v2637
  %2805 = vmatpush1.msra.mxu0 %v2636
  %2806 = vmatprep.subr.mxu0 %v2641
  %2807 = vmatpush1.msra.mxu0 %v2640
  %2808 = vmatprep.subr.mxu0 %v2645
  %2809 = vmatpush1.msra.mxu0 %v2644
  %2810 = vmatprep.subr.mxu0 %v2649
  %2811 = vmatpush1.msra.mxu0 %v2648
  %2812 = vmatprep.subr.mxu0 %v2653
  %2813 = vmatpush1.msra.mxu0 %v2652
  %2814 = vmatprep.subr.mxu0 %v2657
  %2815 = vmatpush1.msra.mxu0 %v2656
  %2816 = vmatprep.subr.mxu0 %v2661
  %2817 = vmatpush1.msra.mxu0 %v2660
  %2818 = vmatprep.subr.mxu0 %v2665
  %2819 = vmatpush1.msra.mxu0 %v2664
  %2820 = vmatprep.subr.mxu0 %v2669
  %2821 = vmatpush1.msra.mxu0 %v2668
  %2822 = vmatprep.subr.mxu0 %v2673
  %2823 = vmatpush1.msra.mxu0 %v2672
  %2824 = vmatprep.subr.mxu0 %v2677
  %2825 = vmatpush1.msra.mxu0 %v2676
  %2826 = vmatprep.subr.mxu0 %v2681
  %2827 = vmatpush1.msra.mxu0 %v2680
  %2828 = vmatprep.subr.mxu0 %v2685
  %2829 = vmatpush1.msra.mxu0 %v2684
  %2830 = vmatprep.subr.mxu0 %v2689
  %2831 = vmatpush1.msra.mxu0 %v2688
  %2832 = vmatprep.subr.mxu0 0.0
  %2833 = vmatpush1.msra.mxu0 0.0
  %2834 = vmatprep.subr.mxu0 0.0
  %2835 = vmatpush1.msra.mxu0 0.0
  %2836 = vmatprep.subr.mxu0 0.0
  %2837 = vmatpush1.msra.mxu0 0.0
  %2838 = vmatprep.subr.mxu0 0.0
  %2839 = vmatpush1.msra.mxu0 0.0
  %2840 = vmatprep.subr.mxu0 0.0
  %2841 = vmatpush1.msra.mxu0 0.0
  %2842 = vmatprep.subr.mxu0 0.0
  %2843 = vmatpush1.msra.mxu0 0.0
  %2844 = vmatprep.subr.mxu0 0.0
  %2845 = vmatpush1.msra.mxu0 0.0
  %2846 = vmatprep.subr.mxu0 0.0
  %2847 = vmatpush1.msra.mxu0 0.0
  %2848 = vmatprep.subr.mxu0 0.0
  %2849 = vmatpush1.msra.mxu0 0.0
  %2850 = vmatprep.subr.mxu0 0.0
  %2851 = vmatpush1.msra.mxu0 0.0
  %2852 = vmatprep.mubr.f32.mxu0 %v2706
  %2853 = vmatmul.mubr.f32.gmra.mrb[0].mxu0 %v2470
  %v2854 = vpop.f32.mrb[0].mxu0
  %v2855 = vadd.f32 %v2778, %v2854
  %v2856 = vpop.f32.mrb[0].mxu0
  %v2857 = vadd.f32 %v2780, %v2856
  %2858 = vmatprep.mubr.f32.mxu0 %v2709
  %2859 = vmatmul.mubr.f32.gmra.mrb[0].mxu0 %v2474
  %v2860 = vpop.f32.mrb[0].mxu0
  %v2861 = vadd.f32 %v2784, %v2860
  %v2862 = vpop.f32.mrb[0].mxu0
  %v2863 = vadd.f32 %v2786, %v2862
  %2864 = vdwg.mxu0
  %2865 = vmatprep.subr.mxu0 %v2479
  %2866 = vmatpush1.msra.mxu0 %v2478
  %2867 = vmatprep.subr.mxu0 %v2483
  %2868 = vmatpush1.msra.mxu0 %v2482
  %2869 = vmatprep.subr.mxu0 %v2487
  %2870 = vmatpush1.msra.mxu0 %v2486
  %2871 = vmatprep.subr.mxu0 %v2491
  %2872 = vmatpush1.msra.mxu0 %v2490
  %2873 = vmatprep.subr.mxu0 %v2495
  %2874 = vmatpush1.msra.mxu0 %v2494
  %2875 = vmatprep.subr.mxu0 %v2499
  %2876 = vmatpush1.msra.mxu0 %v2498
  %2877 = vmatprep.subr.mxu0 %v2503
  %2878 = vmatpush1.msra.mxu0 %v2502
  %2879 = vmatprep.subr.mxu0 %v2507
  %2880 = vmatpush1.msra.mxu0 %v2506
  %2881 = vmatprep.subr.mxu0 %v2511
  %2882 = vmatpush1.msra.mxu0 %v2510
  %2883 = vmatprep.subr.mxu0 %v2515
  %2884 = vmatpush1.msra.mxu0 %v2514
  %2885 = vmatprep.subr.mxu0 %v2519
  %2886 = vmatpush1.msra.mxu0 %v2518
  %2887 = vmatprep.subr.mxu0 %v2523
  %2888 = vmatpush1.msra.mxu0 %v2522
  %2889 = vmatprep.subr.mxu0 %v2527
  %2890 = vmatpush1.msra.mxu0 %v2526
  %2891 = vmatprep.subr.mxu0 %v2531
  %2892 = vmatpush1.msra.mxu0 %v2530
  %2893 = vmatprep.subr.mxu0 %v2535
  %2894 = vmatpush1.msra.mxu0 %v2534
  %2895 = vmatprep.subr.mxu0 %v2539
  %2896 = vmatpush1.msra.mxu0 %v2538
  %2897 = vmatprep.subr.mxu0 %v2543
  %2898 = vmatpush1.msra.mxu0 %v2542
  %2899 = vmatprep.subr.mxu0 %v2547
  %2900 = vmatpush1.msra.mxu0 %v2546
  %2901 = vmatprep.subr.mxu0 %v2551
  %2902 = vmatpush1.msra.mxu0 %v2550
  %2903 = vmatprep.subr.mxu0 %v2555
  %2904 = vmatpush1.msra.mxu0 %v2554
  %2905 = vmatprep.subr.mxu0 %v2559
  %2906 = vmatpush1.msra.mxu0 %v2558
  %2907 = vmatprep.subr.mxu0 %v2563
  %2908 = vmatpush1.msra.mxu0 %v2562
  %2909 = vmatprep.subr.mxu0 %v2567
  %2910 = vmatpush1.msra.mxu0 %v2566
  %2911 = vmatprep.subr.mxu0 %v2571
  %2912 = vmatpush1.msra.mxu0 %v2570
  %2913 = vmatprep.subr.mxu0 %v2575
  %2914 = vmatpush1.msra.mxu0 %v2574
  %2915 = vmatprep.subr.mxu0 %v2579
  %2916 = vmatpush1.msra.mxu0 %v2578
  %2917 = vmatprep.subr.mxu0 %v2583
  %2918 = vmatpush1.msra.mxu0 %v2582
  %2919 = vmatprep.subr.mxu0 %v2587
  %2920 = vmatpush1.msra.mxu0 %v2586
  %2921 = vmatprep.subr.mxu0 %v2591
  %2922 = vmatpush1.msra.mxu0 %v2590
  %2923 = vmatprep.subr.mxu0 %v2595
  %2924 = vmatpush1.msra.mxu0 %v2594
  %2925 = vmatprep.subr.mxu0 %v2599
  %2926 = vmatpush1.msra.mxu0 %v2598
  %2927 = vmatprep.subr.mxu0 %v2603
  %2928 = vmatpush1.msra.mxu0 %v2602
  %2929 = vmatprep.mubr.f32.mxu0 %v2469
  %2930 = vmatmul.mubr.f32.gmra.mrb[0].mxu0 %v2468
  %v2931 = vpop.f32.mrb[0].mxu0
  %v2932 = vadd.f32 %v2697, %v2931
  %v2933 = vpop.f32.mrb[0].mxu0
  %v2934 = vadd.f32 %v2697, %v2933
  %2935 = vmatprep.mubr.f32.mxu0 %v2473
  %2936 = vmatmul.mubr.f32.gmra.mrb[0].mxu0 %v2472
  %v2937 = vpop.f32.mrb[0].mxu0
  %v2938 = vadd.f32 %v2702, %v2937
  %v2939 = vpop.f32.mrb[0].mxu0
  %v2940 = vadd.f32 %v2702, %v2939
  %2941 = vdwg.mxu0
  %2942 = vmatprep.subr.mxu0 %v2607
  %2943 = vmatpush1.msra.mxu0 %v2606
  %2944 = vmatprep.subr.mxu0 %v2611
  %2945 = vmatpush1.msra.mxu0 %v2610
  %2946 = vmatprep.subr.mxu0 %v2615
  %2947 = vmatpush1.msra.mxu0 %v2614
  %2948 = vmatprep.subr.mxu0 %v2619
  %2949 = vmatpush1.msra.mxu0 %v2618
  %2950 = vmatprep.subr.mxu0 %v2623
  %2951 = vmatpush1.msra.mxu0 %v2622
  %2952 = vmatprep.subr.mxu0 %v2627
  %2953 = vmatpush1.msra.mxu0 %v2626
  %2954 = vmatprep.subr.mxu0 %v2631
  %2955 = vmatpush1.msra.mxu0 %v2630
  %2956 = vmatprep.subr.mxu0 %v2635
  %2957 = vmatpush1.msra.mxu0 %v2634
  %2958 = vmatprep.subr.mxu0 %v2639
  %2959 = vmatpush1.msra.mxu0 %v2638
  %2960 = vmatprep.subr.mxu0 %v2643
  %2961 = vmatpush1.msra.mxu0 %v2642
  %2962 = vmatprep.subr.mxu0 %v2647
  %2963 = vmatpush1.msra.mxu0 %v2646
  %2964 = vmatprep.subr.mxu0 %v2651
  %2965 = vmatpush1.msra.mxu0 %v2650
  %2966 = vmatprep.subr.mxu0 %v2655
  %2967 = vmatpush1.msra.mxu0 %v2654
  %2968 = vmatprep.subr.mxu0 %v2659
  %2969 = vmatpush1.msra.mxu0 %v2658
  %2970 = vmatprep.subr.mxu0 %v2663
  %2971 = vmatpush1.msra.mxu0 %v2662
  %2972 = vmatprep.subr.mxu0 %v2667
  %2973 = vmatpush1.msra.mxu0 %v2666
  %2974 = vmatprep.subr.mxu0 %v2671
  %2975 = vmatpush1.msra.mxu0 %v2670
  %2976 = vmatprep.subr.mxu0 %v2675
  %2977 = vmatpush1.msra.mxu0 %v2674
  %2978 = vmatprep.subr.mxu0 %v2679
  %2979 = vmatpush1.msra.mxu0 %v2678
  %2980 = vmatprep.subr.mxu0 %v2683
  %2981 = vmatpush1.msra.mxu0 %v2682
  %2982 = vmatprep.subr.mxu0 %v2687
  %2983 = vmatpush1.msra.mxu0 %v2686
  %2984 = vmatprep.subr.mxu0 %v2691
  %2985 = vmatpush1.msra.mxu0 %v2690
  %2986 = vmatprep.subr.mxu0 0.0
  %2987 = vmatpush1.msra.mxu0 0.0
  %2988 = vmatprep.subr.mxu0 0.0
  %2989 = vmatpush1.msra.mxu0 0.0
  %2990 = vmatprep.subr.mxu0 0.0
  %2991 = vmatpush1.msra.mxu0 0.0
  %2992 = vmatprep.subr.mxu0 0.0
  %2993 = vmatpush1.msra.mxu0 0.0
  %2994 = vmatprep.subr.mxu0 0.0
  %2995 = vmatpush1.msra.mxu0 0.0
  %2996 = vmatprep.subr.mxu0 0.0
  %2997 = vmatpush1.msra.mxu0 0.0
  %2998 = vmatprep.subr.mxu0 0.0
  %2999 = vmatpush1.msra.mxu0 0.0
  %3000 = vmatprep.subr.mxu0 0.0
  %3001 = vmatpush1.msra.mxu0 0.0
  %3002 = vmatprep.subr.mxu0 0.0
  %3003 = vmatpush1.msra.mxu0 0.0
  %3004 = vmatprep.subr.mxu0 0.0
  %3005 = vmatpush1.msra.mxu0 0.0
  %3006 = vmatprep.mubr.f32.mxu0 %v2706
  %3007 = vmatmul.mubr.f32.gmra.mrb[0].mxu0 %v2470
  %v3008 = vpop.f32.mrb[0].mxu0
  %v3009 = vadd.f32 %v2932, %v3008
  %v3010 = vpop.f32.mrb[0].mxu0
  %v3011 = vadd.f32 %v2934, %v3010
  %3012 = vmatprep.mubr.f32.mxu0 %v2709
  %3013 = vmatmul.mubr.f32.gmra.mrb[0].mxu0 %v2474
  %v3014 = vpop.f32.mrb[0].mxu0
  %v3015 = vadd.f32 %v2938, %v3014
  %v3016 = vpop.f32.mrb[0].mxu0
  %v3017 = vadd.f32 %v2940, %v3016
  %3018 = vdwg.mxu0
  %v3019 = vmax.f32 %v2855, 0.0
  %v3020 = vmax.f32 %v2857, 0.0
  %v3021 = vmax.f32 %v3009, 0.0
  %v3022 = vmax.f32 %v3011, 0.0
  %v3023 = vmax.f32 %v2861, 0.0
  %v3024 = vmax.f32 %v2863, 0.0
  %v3025 = vmax.f32 %v3015, 0.0
  %v3026 = vmax.f32 %v3017, 0.0
  %3027 = vst [vmem:[%s6] sm:$0xff] %v3019
  %3028 = vst [vmem:[%s6 + $0x8] sm:$0xff] %v3020
  %3029 = vst [vmem:[%s6 + $0x10] sm:$0xff] %v3021
  %3030 = vst.msk [vmem:[%s6 + $0x18] sm:$0xff] %vm101, %v3022
  %3031 = vst [vmem:[%s6 + $0x20] sm:$0xff] %v3023
  %3032 = vst [vmem:[%s6 + $0x28] sm:$0xff] %v3024
  %3033 = vst [vmem:[%s6 + $0x30] sm:$0xff] %v3025
  %3034 = vst.msk [vmem:[%s6 + $0x38] sm:$0xff] %vm101, %v3026
  // Predicated region
  $region26: #{intermediate_output_forward.3} parent=0 // pred_check
    _
  $region27: #{intermediate_output_forward.3} parent=0 // pred_check_branch
    %3036 = sbr.rel (0) target = $region29
  $region28: #{intermediate_output_forward.3} parent=0 // pred_region
    _
  $region29: #{intermediate_output_forward.3} parent=0 // pred_fallthru
    _
  // Predicated region
  $region30: #{intermediate_output_forward.3} parent=0 // pred_check
    _
  $region31: #{intermediate_output_forward.3} parent=0 // pred_check_branch
    %3038 = sbr.rel (0) target = $region33
  $region32: #{intermediate_output_forward.3} parent=0 // pred_region
    _
  $region33: #{intermediate_output_forward.3} parent=0 // pred_fallthru
    _

</llo_original>
